<compile_context>
chip_gen: v6e
topology: v6e:2x2x1
jax: 0.10.0
libtpu: 0.0.40
codegen_flags: <defaults>
</compile_context>

<pallas_src>
import jax
import jax.numpy as jnp
from jax.experimental import pallas as pl
from jax.experimental.pallas import tpu as pltpu

_ACT_DTYPE = jnp.bfloat16            # inter-layer activations / MXU operands
_VMEM_LIMIT = 32 * 1024 * 1024       # safe on v5e/v6e (128 MiB) and v7x (64 MiB)


def _pick_tm(m):
    """Largest tile that divides m, is a multiple of 8, and leaves >=2 M-blocks
    (so both v7x TensorCores get work); capped at 256 rows."""
    for t in (256, 128, 64, 32, 16, 8):
        if t < m and m % t == 0:
            return t
    return m


# ---------------------------------------------------------------------------
# Kernel 1: fused matmul + folded-BN bias (+ ReLU)   -- used for 1x1 convs
# ---------------------------------------------------------------------------
def _matmul_kernel(relu):
    def kernel(x_ref, w_ref, b_ref, o_ref):
        acc = jnp.dot(x_ref[...], w_ref[...], preferred_element_type=jnp.float32)
        y = acc + b_ref[...]
        if relu:
            y = jnp.maximum(y, 0.0)
        o_ref[...] = y.astype(o_ref.dtype)
    return kernel


def matmul_bias_act(x, w, b, *, relu=False, out_dtype=_ACT_DTYPE):
    m, k = x.shape
    _, n = w.shape
    tm = _pick_tm(m)
    return pl.pallas_call(
        _matmul_kernel(relu),
        out_shape=jax.ShapeDtypeStruct((m, n), out_dtype),
        grid_spec=pltpu.PrefetchScalarGridSpec(
            num_scalar_prefetch=0,
            grid=(1, m // tm),                  # (cout tiles, M tiles): weights resident
            in_specs=[
                pl.BlockSpec((tm, k), lambda j, i: (i, 0)),
                pl.BlockSpec((k, n), lambda j, i: (0, j)),
                pl.BlockSpec((1, n), lambda j, i: (0, j)),
            ],
            out_specs=pl.BlockSpec((tm, n), lambda j, i: (i, j)),
        ),
        compiler_params=pltpu.CompilerParams(
            dimension_semantics=("parallel", "parallel"),
            vmem_limit_bytes=_VMEM_LIMIT),
    )(x, w, b)


# ---------------------------------------------------------------------------
# Kernel 2: fused 3x3 / stride-1 / pad-1 conv + folded BN (+ residual)(+ ReLU)
# The im2col never touches HBM: tap (dy, dx) is a contiguous H*W-row slice (at
# offset dy*W+dx) of a zero-padded, row-flattened activation held in VMEM.
# ---------------------------------------------------------------------------
def _conv3x3_kernel(H, W, has_res, relu):
    HW = H * W

    def kernel(x_ref, w_ref, b_ref, m_ref, *rest):
        if has_res:
            r_ref, o_ref = rest
        else:
            (o_ref,) = rest
        cout = o_ref.shape[-1]
        mask_l = m_ref[0]                      # (HW, 1): valid mask for dx == 0 taps
        mask_r = m_ref[1]                      # (HW, 1): valid mask for dx == 2 taps
        acc = jnp.zeros((HW, cout), jnp.float32)
        for dy in range(3):
            for dx in range(3):
                t = dy * 3 + dx
                lhs = x_ref[0, pl.ds(dy * W + dx, HW), :].astype(jnp.bfloat16)
                c = jnp.dot(lhs, w_ref[t], preferred_element_type=jnp.float32)
                if dx == 0:
                    c = c * mask_l
                elif dx == 2:
                    c = c * mask_r
                acc = acc + c
        y = acc + b_ref[...]
        if has_res:
            y = y + r_ref[0].astype(jnp.float32)
        if relu:
            y = jnp.maximum(y, 0.0)
        o_ref[0] = y.astype(o_ref.dtype)

    return kernel


def _edge_masks(H, W):
    col = jnp.arange(H * W, dtype=jnp.int32) % W
    left = (col >= 1).astype(jnp.float32)          # dx == 0 taps read x-1
    right = (col <= W - 2).astype(jnp.float32)     # dx == 2 taps read x+1
    return jnp.stack([left, right], axis=0)[:, :, None]    # (2, H*W, 1)


def conv3x3_same(x, w9, b, H, W, *, residual=None, relu=False, out_dtype=_ACT_DTYPE):
    """x: (N, H*W, Cin) bf16; w9: (9, Cin, Cout) bf16 (BN folded); b: (1, Cout) f32."""
    n_batch, hw, cin = x.shape
    assert hw == H * W
    cout = w9.shape[-1]
    # Pad H with one zero row top/bottom, flatten (H+2, W) row-major, then pad
    # the flat row axis by one zero row on each side so every tap (dy, dx) is a
    # contiguous H*W-row slice at offset dy*W+dx.  Kept in f32 so the unaligned
    # sublane-offset loads inside the kernel stay on a 32-bit layout; the lhs is
    # cast back to bf16 right before the MXU.
    xs = x.astype(jnp.float32).reshape(n_batch, H, W, cin)
    xs = jnp.pad(xs, ((0, 0), (1, 1), (0, 0), (0, 0)))
    xs = xs.reshape(n_batch, (H + 2) * W, cin)
    xs = jnp.pad(xs, ((0, 0), (1, 1), (0, 0)))
    rows = (H + 2) * W + 2
    masks = _edge_masks(H, W)

    in_specs = [
        pl.BlockSpec((1, rows, cin), lambda j, nb: (nb, 0, 0)),
        pl.BlockSpec((9, cin, cout), lambda j, nb: (0, 0, j)),
        pl.BlockSpec((1, cout), lambda j, nb: (0, j)),
        pl.BlockSpec((2, hw, 1), lambda j, nb: (0, 0, 0)),
    ]
    args = [xs, w9, b, masks]
    if residual is not None:
        in_specs.append(pl.BlockSpec((1, hw, cout), lambda j, nb: (nb, 0, j)))
        args.append(residual)

    return pl.pallas_call(
        _conv3x3_kernel(H, W, residual is not None, relu),
        out_shape=jax.ShapeDtypeStruct((n_batch, hw, cout), out_dtype),
        grid_spec=pltpu.PrefetchScalarGridSpec(
            num_scalar_prefetch=0,
            grid=(1, n_batch),                 # (cout tiles, batch): weights resident
            in_specs=in_specs,
            out_specs=pl.BlockSpec((1, hw, cout), lambda j, nb: (nb, 0, j)),
        ),
        compiler_params=pltpu.CompilerParams(
            dimension_semantics=("parallel", "parallel"),
            vmem_limit_bytes=_VMEM_LIMIT),
    )(*args)


# ---------------------------------------------------------------------------
# Kernel 3: fused dual consumer of out14:
#   out17 = ReLU(BN16(conv15_3x3_s2(out14)))   and   out21 = BN21(conv20_1x1_s2(out14))
# Both read the same patch block (layer20's input == centre tap of the patches).
# ---------------------------------------------------------------------------
def _dual_kernel(cin):
    center = 4 * cin          # tap (dy, dx) = (1, 1) of the 3x3 stride-2 patches

    def kernel(p_ref, w15_ref, b15_ref, w20_ref, b20_ref, o17_ref, o21_ref):
        p = p_ref[...]
        y15 = jnp.dot(p, w15_ref[...], preferred_element_type=jnp.float32) + b15_ref[...]
        o17_ref[...] = jnp.maximum(y15, 0.0).astype(o17_ref.dtype)     # layers 16+17
        pc = p[:, center:center + cin]     # stride-2 subsample of out14 (layer20 input)
        y20 = jnp.dot(pc, w20_ref[...], preferred_element_type=jnp.float32) + b20_ref[...]
        o21_ref[...] = y20.astype(o21_ref.dtype)                       # layer 21 (no ReLU yet)

    return kernel


def dual_downsample(patches, w15, b15, w20, b20, cin):
    m, k = patches.shape
    n = w15.shape[-1]
    tm = _pick_tm(m)
    return pl.pallas_call(
        _dual_kernel(cin),
        out_shape=(jax.ShapeDtypeStruct((m, n), _ACT_DTYPE),
                   jax.ShapeDtypeStruct((m, n), _ACT_DTYPE)),
        grid_spec=pltpu.PrefetchScalarGridSpec(
            num_scalar_prefetch=0,
            grid=(1, m // tm),
            in_specs=[
                pl.BlockSpec((tm, k), lambda j, i: (i, 0)),
                pl.BlockSpec((k, n), lambda j, i: (0, j)),
                pl.BlockSpec((1, n), lambda j, i: (0, j)),
                pl.BlockSpec((cin, n), lambda j, i: (0, j)),
                pl.BlockSpec((1, n), lambda j, i: (0, j)),
            ],
            out_specs=(pl.BlockSpec((tm, n), lambda j, i: (i, j)),
                       pl.BlockSpec((tm, n), lambda j, i: (i, j))),
        ),
        compiler_params=pltpu.CompilerParams(
            dimension_semantics=("parallel", "parallel"),
            vmem_limit_bytes=_VMEM_LIMIT),
    )(patches, w15, b15, w20, b20)


# JAX-side im2col, used ONLY for the single 3x3 stride-2 conv (layer15); stride-2
# output has 4x fewer rows so this is ~2.25x, not 9x, on a tiny tensor.
def _im2col(x_nhwc, kh, kw, stride, pad):
    n, h, w, c = x_nhwc.shape
    xp = jnp.pad(x_nhwc, ((0, 0), (pad, pad), (pad, pad), (0, 0)))
    ho = (h + 2 * pad - kh) // stride + 1
    wo = (w + 2 * pad - kw) // stride + 1
    taps = []
    for dy in range(kh):
        for dx in range(kw):
            taps.append(xp[:, dy:dy + stride * ho:stride, dx:dx + stride * wo:stride, :])
    patches = jnp.concatenate(taps, axis=-1)
    return patches.reshape(n * ho * wo, kh * kw * c), (ho, wo)


# ----------------------------------------------------------------------------
# Parameter construction (deterministic, synthetic) with BN folding at init.
# ----------------------------------------------------------------------------
def _conv_w(key, cout, cin, kh, kw):
    fan_in = cin * kh * kw
    std = (2.0 / fan_in) ** 0.5
    return jax.random.normal(key, (cout, cin, kh, kw), jnp.float32) * std


def _bn_params(key, c, eps=1e-5):
    k1, k2, k3, k4 = jax.random.split(key, 4)
    gamma = jax.random.uniform(k1, (c,), jnp.float32, 0.5, 1.5)
    beta = jax.random.normal(k2, (c,), jnp.float32) * 0.1
    rmean = jax.random.normal(k3, (c,), jnp.float32) * 0.1
    rvar = jax.random.uniform(k4, (c,), jnp.float32, 0.5, 1.5)
    scale = gamma / jnp.sqrt(rvar + eps)
    bias = beta - rmean * scale
    return scale, bias


def _fold_1x1(w_oihw, scale, bias):
    cout = w_oihw.shape[0]
    w = w_oihw[:, :, 0, 0].T * scale[None, :]                              # (Cin, Cout)
    return w.astype(_ACT_DTYPE), bias.reshape(1, cout).astype(jnp.float32)


def _fold_3x3_taps(w_oihw, scale, bias):
    cout, cin, kh, kw = w_oihw.shape
    w = jnp.transpose(w_oihw, (2, 3, 1, 0)).reshape(kh * kw, cin, cout) * scale[None, None, :]
    return w.astype(_ACT_DTYPE), bias.reshape(1, cout).astype(jnp.float32)


def _fold_3x3_mat(w_oihw, scale, bias):
    cout, cin, kh, kw = w_oihw.shape
    w = jnp.transpose(w_oihw, (2, 3, 1, 0)).reshape(kh * kw * cin, cout) * scale[None, :]
    return w.astype(_ACT_DTYPE), bias.reshape(1, cout).astype(jnp.float32)


def init_stage2_params(key):
    keys = jax.random.split(key, 14)
    w2 = _conv_w(keys[0], 128, 64, 1, 1);   bn4 = _bn_params(keys[1], 128)
    w3 = _conv_w(keys[2], 128, 128, 3, 3);  bn5 = _bn_params(keys[3], 128)
    w8 = _conv_w(keys[4], 128, 128, 3, 3);  bn9 = _bn_params(keys[5], 128)
    w11 = _conv_w(keys[6], 128, 128, 3, 3); bn12 = _bn_params(keys[7], 128)
    w15 = _conv_w(keys[8], 256, 128, 3, 3); bn16 = _bn_params(keys[9], 256)
    w18 = _conv_w(keys[10], 256, 256, 3, 3); bn19 = _bn_params(keys[11], 256)
    w20 = _conv_w(keys[12], 256, 128, 1, 1); bn21 = _bn_params(keys[13], 256)

    p = {}
    p["w2"], p["b4"] = _fold_1x1(w2, *bn4)
    p["w3"], p["b5"] = _fold_3x3_taps(w3, *bn5)
    p["w8"], p["b9"] = _fold_3x3_taps(w8, *bn9)
    p["w11"], p["b12"] = _fold_3x3_taps(w11, *bn12)
    p["w15"], p["b16"] = _fold_3x3_mat(w15, *bn16)
    p["w18"], p["b19"] = _fold_3x3_taps(w18, *bn19)
    p["w20"], p["b21"] = _fold_1x1(w20, *bn21)
    return p


# ----------------------------------------------------------------------------
# Stage2 forward
# ----------------------------------------------------------------------------
@jax.jit
def stage2_forward(params, input1_nchw, input0_nchw):
    n = input1_nchw.shape[0]
    # NCHW (PyTorch) -> NHWC, bf16 activations between layers.
    x1 = jnp.transpose(input1_nchw, (0, 2, 3, 1)).astype(_ACT_DTYPE)   # (N, 16, 16, 64)
    x0 = jnp.transpose(input0_nchw, (0, 2, 3, 1)).astype(_ACT_DTYPE)   # (N, 8, 8, 128)
    h0, w0, c0 = x0.shape[1], x0.shape[2], x0.shape[3]
    hw0 = h0 * w0

    # layer2 + layer4: 1x1 stride-2 conv + folded BN -> out4
    x1s = x1[:, ::2, ::2, :]                                           # (N, 8, 8, 64)
    out4 = matmul_bias_act(x1s.reshape(n * hw0, x1s.shape[-1]),
                           params["w2"], params["b4"])
    out4 = out4.reshape(n, hw0, -1)

    # layer3 + layer5 (+ out4) + layer7 -> out7
    x0f = x0.reshape(n, hw0, c0)
    out7 = conv3x3_same(x0f, params["w3"], params["b5"], h0, w0,
                        residual=out4, relu=True)
    # layer8 + layer9 + layer10 -> out10
    out10 = conv3x3_same(out7, params["w8"], params["b9"], h0, w0, relu=True)
    # layer11 + layer12 (+ out7) + layer14 -> out14
    out14 = conv3x3_same(out10, params["w11"], params["b12"], h0, w0,
                         residual=out7, relu=True)

    # layer15+16+17 and layer20+21 fused (both consume out14, shared patch DMA).
    patches, (ho2, wo2) = _im2col(out14.reshape(n, h0, w0, c0), 3, 3, 2, 1)
    out17, out21 = dual_downsample(patches, params["w15"], params["b16"],
                                   params["w20"], params["b21"], c0)
    hw2 = ho2 * wo2
    out17 = out17.reshape(n, hw2, -1)
    out21 = out21.reshape(n, hw2, -1)

    # layer18 + layer19 (+ out21) + layer23 -> out23 (f32 stage output)
    out23 = conv3x3_same(out17, params["w18"], params["b19"], ho2, wo2,
                         residual=out21, relu=True, out_dtype=jnp.float32)

    out23 = out23.reshape(n, ho2, wo2, -1)
    return jnp.transpose(out23, (0, 3, 1, 2))                          # back to NCHW


if __name__ == "__main__":
    key = jax.random.PRNGKey(0)
    k_p, k_i1, k_i0 = jax.random.split(key, 3)

    params = init_stage2_params(k_p)

    # Small shapes consistent with the module: input1 has 64 channels at 2x the
    # spatial resolution of input0 (128 channels), so out2 and out3 line up.
    input1 = jax.random.normal(k_i1, (2, 64, 16, 16), jnp.float32)     # NCHW
    input0 = jax.random.normal(k_i0, (2, 128, 8, 8), jnp.float32)      # NCHW

    out = stage2_forward(params, input1, input0)
    jax.block_until_ready(out)
    assert out.shape == (2, 256, 4, 4), out.shape
    assert bool(jnp.all(out >= 0.0))   # final ReLU
    print("KERNEL_OK")
</pallas_src>

<mosaic_0001>
module attributes {stable_mosaic.version = 11 : i64} {
  func.func @kernel(%arg0: i32, %arg1: i32, %arg2: memref<64x64xbf16, #tpu.memory_space<vmem>>, %arg3: memref<64x128xbf16, #tpu.memory_space<vmem>>, %arg4: memref<1x128xf32, #tpu.memory_space<vmem>>, %arg5: memref<64x128xbf16, #tpu.memory_space<vmem>>) attributes {dimension_semantics = [#tpu.dimension_semantics<parallel>, #tpu.dimension_semantics<parallel>], iteration_bounds = array<i64: 1, 2>, scalar_prefetch = 0 : i64, scratch_operands = 0 : i64, tpu.core_type = #tpu.core_type<tc>, window_params = [{transform_indices = @transform_0, window_bounds = array<i64: 64, 64>}, {transform_indices = @transform_1, window_bounds = array<i64: 64, 128>}, {transform_indices = @transform_2, window_bounds = array<i64: 1, 128>}, {transform_indices = @transform_3, window_bounds = array<i64: 64, 128>}]} {
    %c0 = arith.constant 0 : index
    %c0_0 = arith.constant 0 : index
    %0 = vector.load %arg2[%c0, %c0_0] : memref<64x64xbf16, #tpu.memory_space<vmem>>, vector<64x64xbf16>
    %c0_1 = arith.constant 0 : index
    %c0_2 = arith.constant 0 : index
    %1 = vector.load %arg3[%c0_1, %c0_2] : memref<64x128xbf16, #tpu.memory_space<vmem>>, vector<64x128xbf16>
    %cst = arith.constant dense<0.000000e+00> : vector<64x128xf32>
    %2 = tpu.matmul %0, %1, %cst {dimension_numbers = #tpu.dot_dimension_numbers<[1], [0], [0], [1], [0, 0, 1, 1], [], []>} : vector<64x64xbf16>, vector<64x128xbf16>, vector<64x128xf32> -> vector<64x128xf32>
    %c0_3 = arith.constant 0 : index
    %c0_4 = arith.constant 0 : index
    %3 = vector.load %arg4[%c0_3, %c0_4] : memref<1x128xf32, #tpu.memory_space<vmem>>, vector<1x128xf32>
    %4 = vector.broadcast %3 : vector<1x128xf32> to vector<64x128xf32>
    %5 = arith.addf %2, %4 : vector<64x128xf32>
    %6 = arith.truncf %5 : vector<64x128xf32> to vector<64x128xbf16>
    %c0_5 = arith.constant 0 : index
    %c0_6 = arith.constant 0 : index
    %7 = vector.load %arg5[%c0_5, %c0_6] : memref<64x128xbf16, #tpu.memory_space<vmem>>, vector<64x128xbf16>
    tpu.vector_store %arg5[%c0_5, %c0_6], %6 {strides = array<i32>} : memref<64x128xbf16, #tpu.memory_space<vmem>>, vector<64x128xbf16>,
    return
  }
  func.func @transform_0(%arg0: i32, %arg1: i32) -> (i32, i32) {
    %c0_i32 = arith.constant 0 : i32
    %c0_i32_0 = arith.constant 0 : i32
    return %arg1, %c0_i32 : i32, i32
  }
  func.func @transform_1(%arg0: i32, %arg1: i32) -> (i32, i32) {
    %c0_i32 = arith.constant 0 : i32
    %c0_i32_0 = arith.constant 0 : i32
    return %c0_i32, %arg0 : i32, i32
  }
  func.func @transform_2(%arg0: i32, %arg1: i32) -> (i32, i32) {
    %c0_i32 = arith.constant 0 : i32
    %c0_i32_0 = arith.constant 0 : i32
    return %c0_i32, %arg0 : i32, i32
  }
  func.func @transform_3(%arg0: i32, %arg1: i32) -> (i32, i32) {
    %c0_i32 = arith.constant 0 : i32
    return %arg1, %arg0 : i32, i32
  }
}

module attributes {stable_mosaic.version = 11 : i64} {
  func.func @kernel(%arg0: i32, %arg1: i32, %arg2: memref<1x82x128xf32, #tpu.memory_space<vmem>>, %arg3: memref<9x128x128xbf16, #tpu.memory_space<vmem>>, %arg4: memref<1x128xf32, #tpu.memory_space<vmem>>, %arg5: memref<2x64x1xf32, #tpu.memory_space<vmem>>, %arg6: memref<1x64x128xbf16, #tpu.memory_space<vmem>>, %arg7: memref<1x64x128xbf16, #tpu.memory_space<vmem>>) attributes {dimension_semantics = [#tpu.dimension_semantics<parallel>, #tpu.dimension_semantics<parallel>], iteration_bounds = array<i64: 1, 2>, scalar_prefetch = 0 : i64, scratch_operands = 0 : i64, tpu.core_type = #tpu.core_type<tc>, window_params = [{transform_indices = @transform_0, window_bounds = array<i64: 1, 82, 128>}, {transform_indices = @transform_1, window_bounds = array<i64: 9, 128, 128>}, {transform_indices = @transform_2, window_bounds = array<i64: 1, 128>}, {pipeline_mode = #tpu.pipeline_mode<synchronous>, transform_indices = @transform_3, window_bounds = array<i64: 2, 64, 1>}, {transform_indices = @transform_4, window_bounds = array<i64: 1, 64, 128>}, {transform_indices = @transform_5, window_bounds = array<i64: 1, 64, 128>}]} {
    %c0 = arith.constant 0 : index
    %c0_0 = arith.constant 0 : index
    %c0_1 = arith.constant 0 : index
    %0 = vector.load %arg5[%c0, %c0_0, %c0_1] : memref<2x64x1xf32, #tpu.memory_space<vmem>>, vector<1x64x1xf32>
    %1 = vector.shape_cast %0 : vector<1x64x1xf32> to vector<64x1xf32>
    %c1 = arith.constant 1 : index
    %c0_2 = arith.constant 0 : index
    %c0_3 = arith.constant 0 : index
    %2 = vector.load %arg5[%c1, %c0_2, %c0_3] : memref<2x64x1xf32, #tpu.memory_space<vmem>>, vector<1x64x1xf32>
    %3 = vector.shape_cast %2 : vector<1x64x1xf32> to vector<64x1xf32>
    %cst = arith.constant 0.000000e+00 : f32
    %4 = vector.broadcast %cst : f32 to vector<64x128xf32>
    %c0_4 = arith.constant 0 : index
    %c0_5 = arith.constant 0 : index
    %c0_6 = arith.constant 0 : index
    %5 = vector.load %arg2[%c0_4, %c0_5, %c0_6] : memref<1x82x128xf32, #tpu.memory_space<vmem>>, vector<1x64x128xf32>
    %6 = vector.shape_cast %5 : vector<1x64x128xf32> to vector<64x128xf32>
    %7 = arith.truncf %6 : vector<64x128xf32> to vector<64x128xbf16>
    %c0_7 = arith.constant 0 : index
    %c0_8 = arith.constant 0 : index
    %c0_9 = arith.constant 0 : index
    %8 = vector.load %arg3[%c0_7, %c0_8, %c0_9] : memref<9x128x128xbf16, #tpu.memory_space<vmem>>, vector<1x128x128xbf16>
    %9 = vector.shape_cast %8 : vector<1x128x128xbf16> to vector<128x128xbf16>
    %cst_10 = arith.constant dense<0.000000e+00> : vector<64x128xf32>
    %10 = tpu.matmul %7, %9, %cst_10 {dimension_numbers = #tpu.dot_dimension_numbers<[1], [0], [0], [1], [0, 0, 1, 1], [], []>} : vector<64x128xbf16>, vector<128x128xbf16>, vector<64x128xf32> -> vector<64x128xf32>
    %11 = vector.broadcast %1 : vector<64x1xf32> to vector<64x128xf32>
    %12 = arith.mulf %10, %11 : vector<64x128xf32>
    %13 = arith.addf %4, %12 : vector<64x128xf32>
    %c0_11 = arith.constant 0 : index
    %c1_12 = arith.constant 1 : index
    %c0_13 = arith.constant 0 : index
    %14 = vector.load %arg2[%c0_11, %c1_12, %c0_13] : memref<1x82x128xf32, #tpu.memory_space<vmem>>, vector<1x64x128xf32>
    %15 = vector.shape_cast %14 : vector<1x64x128xf32> to vector<64x128xf32>
    %16 = arith.truncf %15 : vector<64x128xf32> to vector<64x128xbf16>
    %c1_14 = arith.constant 1 : index
    %c0_15 = arith.constant 0 : index
    %c0_16 = arith.constant 0 : index
    %17 = vector.load %arg3[%c1_14, %c0_15, %c0_16] : memref<9x128x128xbf16, #tpu.memory_space<vmem>>, vector<1x128x128xbf16>
    %18 = vector.shape_cast %17 : vector<1x128x128xbf16> to vector<128x128xbf16>
    %cst_17 = arith.constant dense<0.000000e+00> : vector<64x128xf32>
    %19 = tpu.matmul %16, %18, %cst_17 {dimension_numbers = #tpu.dot_dimension_numbers<[1], [0], [0], [1], [0, 0, 1, 1], [], []>} : vector<64x128xbf16>, vector<128x128xbf16>, vector<64x128xf32> -> vector<64x128xf32>
    %20 = arith.addf %13, %19 : vector<64x128xf32>
    %c0_18 = arith.constant 0 : index
    %c2 = arith.constant 2 : index
    %c0_19 = arith.constant 0 : index
    %21 = vector.load %arg2[%c0_18, %c2, %c0_19] : memref<1x82x128xf32, #tpu.memory_space<vmem>>, vector<1x64x128xf32>
    %22 = vector.shape_cast %21 : vector<1x64x128xf32> to vector<64x128xf32>
    %23 = arith.truncf %22 : vector<64x128xf32> to vector<64x128xbf16>
    %c2_20 = arith.constant 2 : index
    %c0_21 = arith.constant 0 : index
    %c0_22 = arith.constant 0 : index
    %24 = vector.load %arg3[%c2_20, %c0_21, %c0_22] : memref<9x128x128xbf16, #tpu.memory_space<vmem>>, vector<1x128x128xbf16>
    %25 = vector.shape_cast %24 : vector<1x128x128xbf16> to vector<128x128xbf16>
    %cst_23 = arith.constant dense<0.000000e+00> : vector<64x128xf32>
    %26 = tpu.matmul %23, %25, %cst_23 {dimension_numbers = #tpu.dot_dimension_numbers<[1], [0], [0], [1], [0, 0, 1, 1], [], []>} : vector<64x128xbf16>, vector<128x128xbf16>, vector<64x128xf32> -> vector<64x128xf32>
    %27 = vector.broadcast %3 : vector<64x1xf32> to vector<64x128xf32>
    %28 = arith.mulf %26, %27 : vector<64x128xf32>
    %29 = arith.addf %20, %28 : vector<64x128xf32>
    %c0_24 = arith.constant 0 : index
    %c8 = arith.constant 8 : index
    %c0_25 = arith.constant 0 : index
    %30 = vector.load %arg2[%c0_24, %c8, %c0_25] : memref<1x82x128xf32, #tpu.memory_space<vmem>>, vector<1x64x128xf32>
    %31 = vector.shape_cast %30 : vector<1x64x128xf32> to vector<64x128xf32>
    %32 = arith.truncf %31 : vector<64x128xf32> to vector<64x128xbf16>
    %c3 = arith.constant 3 : index
    %c0_26 = arith.constant 0 : index
    %c0_27 = arith.constant 0 : index
    %33 = vector.load %arg3[%c3, %c0_26, %c0_27] : memref<9x128x128xbf16, #tpu.memory_space<vmem>>, vector<1x128x128xbf16>
    %34 = vector.shape_cast %33 : vector<1x128x128xbf16> to vector<128x128xbf16>
    %cst_28 = arith.constant dense<0.000000e+00> : vector<64x128xf32>
    %35 = tpu.matmul %32, %34, %cst_28 {dimension_numbers = #tpu.dot_dimension_numbers<[1], [0], [0], [1], [0, 0, 1, 1], [], []>} : vector<64x128xbf16>, vector<128x128xbf16>, vector<64x128xf32> -> vector<64x128xf32>
    %36 = vector.broadcast %1 : vector<64x1xf32> to vector<64x128xf32>
    %37 = arith.mulf %35, %36 : vector<64x128xf32>
    %38 = arith.addf %29, %37 : vector<64x128xf32>
    %c0_29 = arith.constant 0 : index
    %c9 = arith.constant 9 : index
    %c0_30 = arith.constant 0 : index
    %39 = vector.load %arg2[%c0_29, %c9, %c0_30] : memref<1x82x128xf32, #tpu.memory_space<vmem>>, vector<1x64x128xf32>
    %40 = vector.shape_cast %39 : vector<1x64x128xf32> to vector<64x128xf32>
    %41 = arith.truncf %40 : vector<64x128xf32> to vector<64x128xbf16>
    %c4 = arith.constant 4 : index
    %c0_31 = arith.constant 0 : index
    %c0_32 = arith.constant 0 : index
    %42 = vector.load %arg3[%c4, %c0_31, %c0_32] : memref<9x128x128xbf16, #tpu.memory_space<vmem>>, vector<1x128x128xbf16>
    %43 = vector.shape_cast %42 : vector<1x128x128xbf16> to vector<128x128xbf16>
    %cst_33 = arith.constant dense<0.000000e+00> : vector<64x128xf32>
    %44 = tpu.matmul %41, %43, %cst_33 {dimension_numbers = #tpu.dot_dimension_numbers<[1], [0], [0], [1], [0, 0, 1, 1], [], []>} : vector<64x128xbf16>, vector<128x128xbf16>, vector<64x128xf32> -> vector<64x128xf32>
    %45 = arith.addf %38, %44 : vector<64x128xf32>
    %c0_34 = arith.constant 0 : index
    %c10 = arith.constant 10 : index
    %c0_35 = arith.constant 0 : index
    %46 = vector.load %arg2[%c0_34, %c10, %c0_35] : memref<1x82x128xf32, #tpu.memory_space<vmem>>, vector<1x64x128xf32>
    %47 = vector.shape_cast %46 : vector<1x64x128xf32> to vector<64x128xf32>
    %48 = arith.truncf %47 : vector<64x128xf32> to vector<64x128xbf16>
    %c5 = arith.constant 5 : index
    %c0_36 = arith.constant 0 : index
    %c0_37 = arith.constant 0 : index
    %49 = vector.load %arg3[%c5, %c0_36, %c0_37] : memref<9x128x128xbf16, #tpu.memory_space<vmem>>, vector<1x128x128xbf16>
    %50 = vector.shape_cast %49 : vector<1x128x128xbf16> to vector<128x128xbf16>
    %cst_38 = arith.constant dense<0.000000e+00> : vector<64x128xf32>
    %51 = tpu.matmul %48, %50, %cst_38 {dimension_numbers = #tpu.dot_dimension_numbers<[1], [0], [0], [1], [0, 0, 1, 1], [], []>} : vector<64x128xbf16>, vector<128x128xbf16>, vector<64x128xf32> -> vector<64x128xf32>
    %52 = vector.broadcast %3 : vector<64x1xf32> to vector<64x128xf32>
    %53 = arith.mulf %51, %52 : vector<64x128xf32>
    %54 = arith.addf %45, %53 : vector<64x128xf32>
    %c0_39 = arith.constant 0 : index
    %c16 = arith.constant 16 : index
    %c0_40 = arith.constant 0 : index
    %55 = vector.load %arg2[%c0_39, %c16, %c0_40] : memref<1x82x128xf32, #tpu.memory_space<vmem>>, vector<1x64x128xf32>
    %56 = vector.shape_cast %55 : vector<1x64x128xf32> to vector<64x128xf32>
    %57 = arith.truncf %56 : vector<64x128xf32> to vector<64x128xbf16>
    %c6 = arith.constant 6 : index
    %c0_41 = arith.constant 0 : index
    %c0_42 = arith.constant 0 : index
    %58 = vector.load %arg3[%c6, %c0_41, %c0_42] : memref<9x128x128xbf16, #tpu.memory_space<vmem>>, vector<1x128x128xbf16>
    %59 = vector.shape_cast %58 : vector<1x128x128xbf16> to vector<128x128xbf16>
    %cst_43 = arith.constant dense<0.000000e+00> : vector<64x128xf32>
    %60 = tpu.matmul %57, %59, %cst_43 {dimension_numbers = #tpu.dot_dimension_numbers<[1], [0], [0], [1], [0, 0, 1, 1], [], []>} : vector<64x128xbf16>, vector<128x128xbf16>, vector<64x128xf32> -> vector<64x128xf32>
    %61 = vector.broadcast %1 : vector<64x1xf32> to vector<64x128xf32>
    %62 = arith.mulf %60, %61 : vector<64x128xf32>
    %63 = arith.addf %54, %62 : vector<64x128xf32>
    %c0_44 = arith.constant 0 : index
    %c17 = arith.constant 17 : index
    %c0_45 = arith.constant 0 : index
    %64 = vector.load %arg2[%c0_44, %c17, %c0_45] : memref<1x82x128xf32, #tpu.memory_space<vmem>>, vector<1x64x128xf32>
    %65 = vector.shape_cast %64 : vector<1x64x128xf32> to vector<64x128xf32>
    %66 = arith.truncf %65 : vector<64x128xf32> to vector<64x128xbf16>
    %c7 = arith.constant 7 : index
    %c0_46 = arith.constant 0 : index
    %c0_47 = arith.constant 0 : index
    %67 = vector.load %arg3[%c7, %c0_46, %c0_47] : memref<9x128x128xbf16, #tpu.memory_space<vmem>>, vector<1x128x128xbf16>
    %68 = vector.shape_cast %67 : vector<1x128x128xbf16> to vector<128x128xbf16>
    %cst_48 = arith.constant dense<0.000000e+00> : vector<64x128xf32>
    %69 = tpu.matmul %66, %68, %cst_48 {dimension_numbers = #tpu.dot_dimension_numbers<[1], [0], [0], [1], [0, 0, 1, 1], [], []>} : vector<64x128xbf16>, vector<128x128xbf16>, vector<64x128xf32> -> vector<64x128xf32>
    %70 = arith.addf %63, %69 : vector<64x128xf32>
    %c0_49 = arith.constant 0 : index
    %c18 = arith.constant 18 : index
    %c0_50 = arith.constant 0 : index
    %71 = vector.load %arg2[%c0_49, %c18, %c0_50] : memref<1x82x128xf32, #tpu.memory_space<vmem>>, vector<1x64x128xf32>
    %72 = vector.shape_cast %71 : vector<1x64x128xf32> to vector<64x128xf32>
    %73 = arith.truncf %72 : vector<64x128xf32> to vector<64x128xbf16>
    %c8_51 = arith.constant 8 : index
    %c0_52 = arith.constant 0 : index
    %c0_53 = arith.constant 0 : index
    %74 = vector.load %arg3[%c8_51, %c0_52, %c0_53] : memref<9x128x128xbf16, #tpu.memory_space<vmem>>, vector<1x128x128xbf16>
    %75 = vector.shape_cast %74 : vector<1x128x128xbf16> to vector<128x128xbf16>
    %cst_54 = arith.constant dense<0.000000e+00> : vector<64x128xf32>
    %76 = tpu.matmul %73, %75, %cst_54 {dimension_numbers = #tpu.dot_dimension_numbers<[1], [0], [0], [1], [0, 0, 1, 1], [], []>} : vector<64x128xbf16>, vector<128x128xbf16>, vector<64x128xf32> -> vector<64x128xf32>
    %77 = vector.broadcast %3 : vector<64x1xf32> to vector<64x128xf32>
    %78 = arith.mulf %76, %77 : vector<64x128xf32>
    %79 = arith.addf %70, %78 : vector<64x128xf32>
    %c0_55 = arith.constant 0 : index
    %c0_56 = arith.constant 0 : index
    %80 = vector.load %arg4[%c0_55, %c0_56] : memref<1x128xf32, #tpu.memory_space<vmem>>, vector<1x128xf32>
    %81 = vector.broadcast %80 : vector<1x128xf32> to vector<64x128xf32>
    %82 = arith.addf %79, %81 : vector<64x128xf32>
    %c0_57 = arith.constant 0 : index
    %c0_58 = arith.constant 0 : index
    %c0_59 = arith.constant 0 : index
    %83 = vector.load %arg6[%c0_57, %c0_58, %c0_59] : memref<1x64x128xbf16, #tpu.memory_space<vmem>>, vector<1x64x128xbf16>
    %84 = vector.shape_cast %83 : vector<1x64x128xbf16> to vector<64x128xbf16>
    %85 = arith.extf %84 : vector<64x128xbf16> to vector<64x128xf32>
    %86 = arith.addf %82, %85 : vector<64x128xf32>
    %cst_60 = arith.constant 0.000000e+00 : f32
    %87 = vector.broadcast %cst_60 : f32 to vector<64x128xf32>
    %88 = arith.maximumf %86, %87 : vector<64x128xf32>
    %89 = arith.truncf %88 : vector<64x128xf32> to vector<64x128xbf16>
    %c0_61 = arith.constant 0 : index
    %c0_62 = arith.constant 0 : index
    %c0_63 = arith.constant 0 : index
    %90 = vector.load %arg7[%c0_61, %c0_62, %c0_63] : memref<1x64x128xbf16, #tpu.memory_space<vmem>>, vector<1x64x128xbf16>
    %91 = vector.shape_cast %90 : vector<1x64x128xbf16> to vector<64x128xbf16>
    %92 = vector.shape_cast %89 : vector<64x128xbf16> to vector<1x64x128xbf16>
    tpu.vector_store %arg7[%c0_61, %c0_62, %c0_63], %92 {strides = array<i32>} : memref<1x64x128xbf16, #tpu.memory_space<vmem>>, vector<1x64x128xbf16>,
    return
  }
  func.func @transform_0(%arg0: i32, %arg1: i32) -> (i32, i32, i32) {
    %c0_i32 = arith.constant 0 : i32
    %c0_i32_0 = arith.constant 0 : i32
    %c0_i32_1 = arith.constant 0 : i32
    return %arg1, %c0_i32, %c0_i32_0 : i32, i32, i32
  }
  func.func @transform_1(%arg0: i32, %arg1: i32) -> (i32, i32, i32) {
    %c0_i32 = arith.constant 0 : i32
    %c0_i32_0 = arith.constant 0 : i32
    %c0_i32_1 = arith.constant 0 : i32
    return %c0_i32, %c0_i32_0, %arg0 : i32, i32, i32
  }
  func.func @transform_2(%arg0: i32, %arg1: i32) -> (i32, i32) {
    %c0_i32 = arith.constant 0 : i32
    %c0_i32_0 = arith.constant 0 : i32
    return %c0_i32, %arg0 : i32, i32
  }
  func.func @transform_3(%arg0: i32, %arg1: i32) -> (i32, i32, i32) {
    %c0_i32 = arith.constant 0 : i32
    %c0_i32_0 = arith.constant 0 : i32
    %c0_i32_1 = arith.constant 0 : i32
    %c0_i32_2 = arith.constant 0 : i32
    return %c0_i32, %c0_i32_0, %c0_i32_1 : i32, i32, i32
  }
  func.func @transform_4(%arg0: i32, %arg1: i32) -> (i32, i32, i32) {
    %c0_i32 = arith.constant 0 : i32
    %c0_i32_0 = arith.constant 0 : i32
    return %arg1, %c0_i32, %arg0 : i32, i32, i32
  }
  func.func @transform_5(%arg0: i32, %arg1: i32) -> (i32, i32, i32) {
    %c0_i32 = arith.constant 0 : i32
    %c0_i32_0 = arith.constant 0 : i32
    return %arg1, %c0_i32, %arg0 : i32, i32, i32
  }
}

module attributes {stable_mosaic.version = 11 : i64} {
  func.func @kernel(%arg0: i32, %arg1: i32, %arg2: memref<1x82x128xf32, #tpu.memory_space<vmem>>, %arg3: memref<9x128x128xbf16, #tpu.memory_space<vmem>>, %arg4: memref<1x128xf32, #tpu.memory_space<vmem>>, %arg5: memref<2x64x1xf32, #tpu.memory_space<vmem>>, %arg6: memref<1x64x128xbf16, #tpu.memory_space<vmem>>) attributes {dimension_semantics = [#tpu.dimension_semantics<parallel>, #tpu.dimension_semantics<parallel>], iteration_bounds = array<i64: 1, 2>, scalar_prefetch = 0 : i64, scratch_operands = 0 : i64, tpu.core_type = #tpu.core_type<tc>, window_params = [{transform_indices = @transform_0, window_bounds = array<i64: 1, 82, 128>}, {transform_indices = @transform_1, window_bounds = array<i64: 9, 128, 128>}, {transform_indices = @transform_2, window_bounds = array<i64: 1, 128>}, {pipeline_mode = #tpu.pipeline_mode<synchronous>, transform_indices = @transform_3, window_bounds = array<i64: 2, 64, 1>}, {transform_indices = @transform_4, window_bounds = array<i64: 1, 64, 128>}]} {
    %c0 = arith.constant 0 : index
    %c0_0 = arith.constant 0 : index
    %c0_1 = arith.constant 0 : index
    %0 = vector.load %arg5[%c0, %c0_0, %c0_1] : memref<2x64x1xf32, #tpu.memory_space<vmem>>, vector<1x64x1xf32>
    %1 = vector.shape_cast %0 : vector<1x64x1xf32> to vector<64x1xf32>
    %c1 = arith.constant 1 : index
    %c0_2 = arith.constant 0 : index
    %c0_3 = arith.constant 0 : index
    %2 = vector.load %arg5[%c1, %c0_2, %c0_3] : memref<2x64x1xf32, #tpu.memory_space<vmem>>, vector<1x64x1xf32>
    %3 = vector.shape_cast %2 : vector<1x64x1xf32> to vector<64x1xf32>
    %cst = arith.constant 0.000000e+00 : f32
    %4 = vector.broadcast %cst : f32 to vector<64x128xf32>
    %c0_4 = arith.constant 0 : index
    %c0_5 = arith.constant 0 : index
    %c0_6 = arith.constant 0 : index
    %5 = vector.load %arg2[%c0_4, %c0_5, %c0_6] : memref<1x82x128xf32, #tpu.memory_space<vmem>>, vector<1x64x128xf32>
    %6 = vector.shape_cast %5 : vector<1x64x128xf32> to vector<64x128xf32>
    %7 = arith.truncf %6 : vector<64x128xf32> to vector<64x128xbf16>
    %c0_7 = arith.constant 0 : index
    %c0_8 = arith.constant 0 : index
    %c0_9 = arith.constant 0 : index
    %8 = vector.load %arg3[%c0_7, %c0_8, %c0_9] : memref<9x128x128xbf16, #tpu.memory_space<vmem>>, vector<1x128x128xbf16>
    %9 = vector.shape_cast %8 : vector<1x128x128xbf16> to vector<128x128xbf16>
    %cst_10 = arith.constant dense<0.000000e+00> : vector<64x128xf32>
    %10 = tpu.matmul %7, %9, %cst_10 {dimension_numbers = #tpu.dot_dimension_numbers<[1], [0], [0], [1], [0, 0, 1, 1], [], []>} : vector<64x128xbf16>, vector<128x128xbf16>, vector<64x128xf32> -> vector<64x128xf32>
    %11 = vector.broadcast %1 : vector<64x1xf32> to vector<64x128xf32>
    %12 = arith.mulf %10, %11 : vector<64x128xf32>
    %13 = arith.addf %4, %12 : vector<64x128xf32>
    %c0_11 = arith.constant 0 : index
    %c1_12 = arith.constant 1 : index
    %c0_13 = arith.constant 0 : index
    %14 = vector.load %arg2[%c0_11, %c1_12, %c0_13] : memref<1x82x128xf32, #tpu.memory_space<vmem>>, vector<1x64x128xf32>
    %15 = vector.shape_cast %14 : vector<1x64x128xf32> to vector<64x128xf32>
    %16 = arith.truncf %15 : vector<64x128xf32> to vector<64x128xbf16>
    %c1_14 = arith.constant 1 : index
    %c0_15 = arith.constant 0 : index
    %c0_16 = arith.constant 0 : index
    %17 = vector.load %arg3[%c1_14, %c0_15, %c0_16] : memref<9x128x128xbf16, #tpu.memory_space<vmem>>, vector<1x128x128xbf16>
    %18 = vector.shape_cast %17 : vector<1x128x128xbf16> to vector<128x128xbf16>
    %cst_17 = arith.constant dense<0.000000e+00> : vector<64x128xf32>
    %19 = tpu.matmul %16, %18, %cst_17 {dimension_numbers = #tpu.dot_dimension_numbers<[1], [0], [0], [1], [0, 0, 1, 1], [], []>} : vector<64x128xbf16>, vector<128x128xbf16>, vector<64x128xf32> -> vector<64x128xf32>
    %20 = arith.addf %13, %19 : vector<64x128xf32>
    %c0_18 = arith.constant 0 : index
    %c2 = arith.constant 2 : index
    %c0_19 = arith.constant 0 : index
    %21 = vector.load %arg2[%c0_18, %c2, %c0_19] : memref<1x82x128xf32, #tpu.memory_space<vmem>>, vector<1x64x128xf32>
    %22 = vector.shape_cast %21 : vector<1x64x128xf32> to vector<64x128xf32>
    %23 = arith.truncf %22 : vector<64x128xf32> to vector<64x128xbf16>
    %c2_20 = arith.constant 2 : index
    %c0_21 = arith.constant 0 : index
    %c0_22 = arith.constant 0 : index
    %24 = vector.load %arg3[%c2_20, %c0_21, %c0_22] : memref<9x128x128xbf16, #tpu.memory_space<vmem>>, vector<1x128x128xbf16>
    %25 = vector.shape_cast %24 : vector<1x128x128xbf16> to vector<128x128xbf16>
    %cst_23 = arith.constant dense<0.000000e+00> : vector<64x128xf32>
    %26 = tpu.matmul %23, %25, %cst_23 {dimension_numbers = #tpu.dot_dimension_numbers<[1], [0], [0], [1], [0, 0, 1, 1], [], []>} : vector<64x128xbf16>, vector<128x128xbf16>, vector<64x128xf32> -> vector<64x128xf32>
    %27 = vector.broadcast %3 : vector<64x1xf32> to vector<64x128xf32>
    %28 = arith.mulf %26, %27 : vector<64x128xf32>
    %29 = arith.addf %20, %28 : vector<64x128xf32>
    %c0_24 = arith.constant 0 : index
    %c8 = arith.constant 8 : index
    %c0_25 = arith.constant 0 : index
    %30 = vector.load %arg2[%c0_24, %c8, %c0_25] : memref<1x82x128xf32, #tpu.memory_space<vmem>>, vector<1x64x128xf32>
    %31 = vector.shape_cast %30 : vector<1x64x128xf32> to vector<64x128xf32>
    %32 = arith.truncf %31 : vector<64x128xf32> to vector<64x128xbf16>
    %c3 = arith.constant 3 : index
    %c0_26 = arith.constant 0 : index
    %c0_27 = arith.constant 0 : index
    %33 = vector.load %arg3[%c3, %c0_26, %c0_27] : memref<9x128x128xbf16, #tpu.memory_space<vmem>>, vector<1x128x128xbf16>
    %34 = vector.shape_cast %33 : vector<1x128x128xbf16> to vector<128x128xbf16>
    %cst_28 = arith.constant dense<0.000000e+00> : vector<64x128xf32>
    %35 = tpu.matmul %32, %34, %cst_28 {dimension_numbers = #tpu.dot_dimension_numbers<[1], [0], [0], [1], [0, 0, 1, 1], [], []>} : vector<64x128xbf16>, vector<128x128xbf16>, vector<64x128xf32> -> vector<64x128xf32>
    %36 = vector.broadcast %1 : vector<64x1xf32> to vector<64x128xf32>
    %37 = arith.mulf %35, %36 : vector<64x128xf32>
    %38 = arith.addf %29, %37 : vector<64x128xf32>
    %c0_29 = arith.constant 0 : index
    %c9 = arith.constant 9 : index
    %c0_30 = arith.constant 0 : index
    %39 = vector.load %arg2[%c0_29, %c9, %c0_30] : memref<1x82x128xf32, #tpu.memory_space<vmem>>, vector<1x64x128xf32>
    %40 = vector.shape_cast %39 : vector<1x64x128xf32> to vector<64x128xf32>
    %41 = arith.truncf %40 : vector<64x128xf32> to vector<64x128xbf16>
    %c4 = arith.constant 4 : index
    %c0_31 = arith.constant 0 : index
    %c0_32 = arith.constant 0 : index
    %42 = vector.load %arg3[%c4, %c0_31, %c0_32] : memref<9x128x128xbf16, #tpu.memory_space<vmem>>, vector<1x128x128xbf16>
    %43 = vector.shape_cast %42 : vector<1x128x128xbf16> to vector<128x128xbf16>
    %cst_33 = arith.constant dense<0.000000e+00> : vector<64x128xf32>
    %44 = tpu.matmul %41, %43, %cst_33 {dimension_numbers = #tpu.dot_dimension_numbers<[1], [0], [0], [1], [0, 0, 1, 1], [], []>} : vector<64x128xbf16>, vector<128x128xbf16>, vector<64x128xf32> -> vector<64x128xf32>
    %45 = arith.addf %38, %44 : vector<64x128xf32>
    %c0_34 = arith.constant 0 : index
    %c10 = arith.constant 10 : index
    %c0_35 = arith.constant 0 : index
    %46 = vector.load %arg2[%c0_34, %c10, %c0_35] : memref<1x82x128xf32, #tpu.memory_space<vmem>>, vector<1x64x128xf32>
    %47 = vector.shape_cast %46 : vector<1x64x128xf32> to vector<64x128xf32>
    %48 = arith.truncf %47 : vector<64x128xf32> to vector<64x128xbf16>
    %c5 = arith.constant 5 : index
    %c0_36 = arith.constant 0 : index
    %c0_37 = arith.constant 0 : index
    %49 = vector.load %arg3[%c5, %c0_36, %c0_37] : memref<9x128x128xbf16, #tpu.memory_space<vmem>>, vector<1x128x128xbf16>
    %50 = vector.shape_cast %49 : vector<1x128x128xbf16> to vector<128x128xbf16>
    %cst_38 = arith.constant dense<0.000000e+00> : vector<64x128xf32>
    %51 = tpu.matmul %48, %50, %cst_38 {dimension_numbers = #tpu.dot_dimension_numbers<[1], [0], [0], [1], [0, 0, 1, 1], [], []>} : vector<64x128xbf16>, vector<128x128xbf16>, vector<64x128xf32> -> vector<64x128xf32>
    %52 = vector.broadcast %3 : vector<64x1xf32> to vector<64x128xf32>
    %53 = arith.mulf %51, %52 : vector<64x128xf32>
    %54 = arith.addf %45, %53 : vector<64x128xf32>
    %c0_39 = arith.constant 0 : index
    %c16 = arith.constant 16 : index
    %c0_40 = arith.constant 0 : index
    %55 = vector.load %arg2[%c0_39, %c16, %c0_40] : memref<1x82x128xf32, #tpu.memory_space<vmem>>, vector<1x64x128xf32>
    %56 = vector.shape_cast %55 : vector<1x64x128xf32> to vector<64x128xf32>
    %57 = arith.truncf %56 : vector<64x128xf32> to vector<64x128xbf16>
    %c6 = arith.constant 6 : index
    %c0_41 = arith.constant 0 : index
    %c0_42 = arith.constant 0 : index
    %58 = vector.load %arg3[%c6, %c0_41, %c0_42] : memref<9x128x128xbf16, #tpu.memory_space<vmem>>, vector<1x128x128xbf16>
    %59 = vector.shape_cast %58 : vector<1x128x128xbf16> to vector<128x128xbf16>
    %cst_43 = arith.constant dense<0.000000e+00> : vector<64x128xf32>
    %60 = tpu.matmul %57, %59, %cst_43 {dimension_numbers = #tpu.dot_dimension_numbers<[1], [0], [0], [1], [0, 0, 1, 1], [], []>} : vector<64x128xbf16>, vector<128x128xbf16>, vector<64x128xf32> -> vector<64x128xf32>
    %61 = vector.broadcast %1 : vector<64x1xf32> to vector<64x128xf32>
    %62 = arith.mulf %60, %61 : vector<64x128xf32>
    %63 = arith.addf %54, %62 : vector<64x128xf32>
    %c0_44 = arith.constant 0 : index
    %c17 = arith.constant 17 : index
    %c0_45 = arith.constant 0 : index
    %64 = vector.load %arg2[%c0_44, %c17, %c0_45] : memref<1x82x128xf32, #tpu.memory_space<vmem>>, vector<1x64x128xf32>
    %65 = vector.shape_cast %64 : vector<1x64x128xf32> to vector<64x128xf32>
    %66 = arith.truncf %65 : vector<64x128xf32> to vector<64x128xbf16>
    %c7 = arith.constant 7 : index
    %c0_46 = arith.constant 0 : index
    %c0_47 = arith.constant 0 : index
    %67 = vector.load %arg3[%c7, %c0_46, %c0_47] : memref<9x128x128xbf16, #tpu.memory_space<vmem>>, vector<1x128x128xbf16>
    %68 = vector.shape_cast %67 : vector<1x128x128xbf16> to vector<128x128xbf16>
    %cst_48 = arith.constant dense<0.000000e+00> : vector<64x128xf32>
    %69 = tpu.matmul %66, %68, %cst_48 {dimension_numbers = #tpu.dot_dimension_numbers<[1], [0], [0], [1], [0, 0, 1, 1], [], []>} : vector<64x128xbf16>, vector<128x128xbf16>, vector<64x128xf32> -> vector<64x128xf32>
    %70 = arith.addf %63, %69 : vector<64x128xf32>
    %c0_49 = arith.constant 0 : index
    %c18 = arith.constant 18 : index
    %c0_50 = arith.constant 0 : index
    %71 = vector.load %arg2[%c0_49, %c18, %c0_50] : memref<1x82x128xf32, #tpu.memory_space<vmem>>, vector<1x64x128xf32>
    %72 = vector.shape_cast %71 : vector<1x64x128xf32> to vector<64x128xf32>
    %73 = arith.truncf %72 : vector<64x128xf32> to vector<64x128xbf16>
    %c8_51 = arith.constant 8 : index
    %c0_52 = arith.constant 0 : index
    %c0_53 = arith.constant 0 : index
    %74 = vector.load %arg3[%c8_51, %c0_52, %c0_53] : memref<9x128x128xbf16, #tpu.memory_space<vmem>>, vector<1x128x128xbf16>
    %75 = vector.shape_cast %74 : vector<1x128x128xbf16> to vector<128x128xbf16>
    %cst_54 = arith.constant dense<0.000000e+00> : vector<64x128xf32>
    %76 = tpu.matmul %73, %75, %cst_54 {dimension_numbers = #tpu.dot_dimension_numbers<[1], [0], [0], [1], [0, 0, 1, 1], [], []>} : vector<64x128xbf16>, vector<128x128xbf16>, vector<64x128xf32> -> vector<64x128xf32>
    %77 = vector.broadcast %3 : vector<64x1xf32> to vector<64x128xf32>
    %78 = arith.mulf %76, %77 : vector<64x128xf32>
    %79 = arith.addf %70, %78 : vector<64x128xf32>
    %c0_55 = arith.constant 0 : index
    %c0_56 = arith.constant 0 : index
    %80 = vector.load %arg4[%c0_55, %c0_56] : memref<1x128xf32, #tpu.memory_space<vmem>>, vector<1x128xf32>
    %81 = vector.broadcast %80 : vector<1x128xf32> to vector<64x128xf32>
    %82 = arith.addf %79, %81 : vector<64x128xf32>
    %cst_57 = arith.constant 0.000000e+00 : f32
    %83 = vector.broadcast %cst_57 : f32 to vector<64x128xf32>
    %84 = arith.maximumf %82, %83 : vector<64x128xf32>
    %85 = arith.truncf %84 : vector<64x128xf32> to vector<64x128xbf16>
    %c0_58 = arith.constant 0 : index
    %c0_59 = arith.constant 0 : index
    %c0_60 = arith.constant 0 : index
    %86 = vector.load %arg6[%c0_58, %c0_59, %c0_60] : memref<1x64x128xbf16, #tpu.memory_space<vmem>>, vector<1x64x128xbf16>
    %87 = vector.shape_cast %86 : vector<1x64x128xbf16> to vector<64x128xbf16>
    %88 = vector.shape_cast %85 : vector<64x128xbf16> to vector<1x64x128xbf16>
    tpu.vector_store %arg6[%c0_58, %c0_59, %c0_60], %88 {strides = array<i32>} : memref<1x64x128xbf16, #tpu.memory_space<vmem>>, vector<1x64x128xbf16>,
    return
  }
  func.func @transform_0(%arg0: i32, %arg1: i32) -> (i32, i32, i32) {
    %c0_i32 = arith.constant 0 : i32
    %c0_i32_0 = arith.constant 0 : i32
    %c0_i32_1 = arith.constant 0 : i32
    return %arg1, %c0_i32, %c0_i32_0 : i32, i32, i32
  }
  func.func @transform_1(%arg0: i32, %arg1: i32) -> (i32, i32, i32) {
    %c0_i32 = arith.constant 0 : i32
    %c0_i32_0 = arith.constant 0 : i32
    %c0_i32_1 = arith.constant 0 : i32
    return %c0_i32, %c0_i32_0, %arg0 : i32, i32, i32
  }
  func.func @transform_2(%arg0: i32, %arg1: i32) -> (i32, i32) {
    %c0_i32 = arith.constant 0 : i32
    %c0_i32_0 = arith.constant 0 : i32
    return %c0_i32, %arg0 : i32, i32
  }
  func.func @transform_3(%arg0: i32, %arg1: i32) -> (i32, i32, i32) {
    %c0_i32 = arith.constant 0 : i32
    %c0_i32_0 = arith.constant 0 : i32
    %c0_i32_1 = arith.constant 0 : i32
    %c0_i32_2 = arith.constant 0 : i32
    return %c0_i32, %c0_i32_0, %c0_i32_1 : i32, i32, i32
  }
  func.func @transform_4(%arg0: i32, %arg1: i32) -> (i32, i32, i32) {
    %c0_i32 = arith.constant 0 : i32
    %c0_i32_0 = arith.constant 0 : i32
    return %arg1, %c0_i32, %arg0 : i32, i32, i32
  }
}

module attributes {stable_mosaic.version = 11 : i64} {
  func.func @kernel(%arg0: i32, %arg1: i32, %arg2: memref<1x82x128xf32, #tpu.memory_space<vmem>>, %arg3: memref<9x128x128xbf16, #tpu.memory_space<vmem>>, %arg4: memref<1x128xf32, #tpu.memory_space<vmem>>, %arg5: memref<2x64x1xf32, #tpu.memory_space<vmem>>, %arg6: memref<1x64x128xbf16, #tpu.memory_space<vmem>>, %arg7: memref<1x64x128xbf16, #tpu.memory_space<vmem>>) attributes {dimension_semantics = [#tpu.dimension_semantics<parallel>, #tpu.dimension_semantics<parallel>], iteration_bounds = array<i64: 1, 2>, scalar_prefetch = 0 : i64, scratch_operands = 0 : i64, tpu.core_type = #tpu.core_type<tc>, window_params = [{transform_indices = @transform_0, window_bounds = array<i64: 1, 82, 128>}, {transform_indices = @transform_1, window_bounds = array<i64: 9, 128, 128>}, {transform_indices = @transform_2, window_bounds = array<i64: 1, 128>}, {pipeline_mode = #tpu.pipeline_mode<synchronous>, transform_indices = @transform_3, window_bounds = array<i64: 2, 64, 1>}, {transform_indices = @transform_4, window_bounds = array<i64: 1, 64, 128>}, {transform_indices = @transform_5, window_bounds = array<i64: 1, 64, 128>}]} {
    %c0 = arith.constant 0 : index
    %c0_0 = arith.constant 0 : index
    %c0_1 = arith.constant 0 : index
    %0 = vector.load %arg5[%c0, %c0_0, %c0_1] : memref<2x64x1xf32, #tpu.memory_space<vmem>>, vector<1x64x1xf32>
    %1 = vector.shape_cast %0 : vector<1x64x1xf32> to vector<64x1xf32>
    %c1 = arith.constant 1 : index
    %c0_2 = arith.constant 0 : index
    %c0_3 = arith.constant 0 : index
    %2 = vector.load %arg5[%c1, %c0_2, %c0_3] : memref<2x64x1xf32, #tpu.memory_space<vmem>>, vector<1x64x1xf32>
    %3 = vector.shape_cast %2 : vector<1x64x1xf32> to vector<64x1xf32>
    %cst = arith.constant 0.000000e+00 : f32
    %4 = vector.broadcast %cst : f32 to vector<64x128xf32>
    %c0_4 = arith.constant 0 : index
    %c0_5 = arith.constant 0 : index
    %c0_6 = arith.constant 0 : index
    %5 = vector.load %arg2[%c0_4, %c0_5, %c0_6] : memref<1x82x128xf32, #tpu.memory_space<vmem>>, vector<1x64x128xf32>
    %6 = vector.shape_cast %5 : vector<1x64x128xf32> to vector<64x128xf32>
    %7 = arith.truncf %6 : vector<64x128xf32> to vector<64x128xbf16>
    %c0_7 = arith.constant 0 : index
    %c0_8 = arith.constant 0 : index
    %c0_9 = arith.constant 0 : index
    %8 = vector.load %arg3[%c0_7, %c0_8, %c0_9] : memref<9x128x128xbf16, #tpu.memory_space<vmem>>, vector<1x128x128xbf16>
    %9 = vector.shape_cast %8 : vector<1x128x128xbf16> to vector<128x128xbf16>
    %cst_10 = arith.constant dense<0.000000e+00> : vector<64x128xf32>
    %10 = tpu.matmul %7, %9, %cst_10 {dimension_numbers = #tpu.dot_dimension_numbers<[1], [0], [0], [1], [0, 0, 1, 1], [], []>} : vector<64x128xbf16>, vector<128x128xbf16>, vector<64x128xf32> -> vector<64x128xf32>
    %11 = vector.broadcast %1 : vector<64x1xf32> to vector<64x128xf32>
    %12 = arith.mulf %10, %11 : vector<64x128xf32>
    %13 = arith.addf %4, %12 : vector<64x128xf32>
    %c0_11 = arith.constant 0 : index
    %c1_12 = arith.constant 1 : index
    %c0_13 = arith.constant 0 : index
    %14 = vector.load %arg2[%c0_11, %c1_12, %c0_13] : memref<1x82x128xf32, #tpu.memory_space<vmem>>, vector<1x64x128xf32>
    %15 = vector.shape_cast %14 : vector<1x64x128xf32> to vector<64x128xf32>
    %16 = arith.truncf %15 : vector<64x128xf32> to vector<64x128xbf16>
    %c1_14 = arith.constant 1 : index
    %c0_15 = arith.constant 0 : index
    %c0_16 = arith.constant 0 : index
    %17 = vector.load %arg3[%c1_14, %c0_15, %c0_16] : memref<9x128x128xbf16, #tpu.memory_space<vmem>>, vector<1x128x128xbf16>
    %18 = vector.shape_cast %17 : vector<1x128x128xbf16> to vector<128x128xbf16>
    %cst_17 = arith.constant dense<0.000000e+00> : vector<64x128xf32>
    %19 = tpu.matmul %16, %18, %cst_17 {dimension_numbers = #tpu.dot_dimension_numbers<[1], [0], [0], [1], [0, 0, 1, 1], [], []>} : vector<64x128xbf16>, vector<128x128xbf16>, vector<64x128xf32> -> vector<64x128xf32>
    %20 = arith.addf %13, %19 : vector<64x128xf32>
    %c0_18 = arith.constant 0 : index
    %c2 = arith.constant 2 : index
    %c0_19 = arith.constant 0 : index
    %21 = vector.load %arg2[%c0_18, %c2, %c0_19] : memref<1x82x128xf32, #tpu.memory_space<vmem>>, vector<1x64x128xf32>
    %22 = vector.shape_cast %21 : vector<1x64x128xf32> to vector<64x128xf32>
    %23 = arith.truncf %22 : vector<64x128xf32> to vector<64x128xbf16>
    %c2_20 = arith.constant 2 : index
    %c0_21 = arith.constant 0 : index
    %c0_22 = arith.constant 0 : index
    %24 = vector.load %arg3[%c2_20, %c0_21, %c0_22] : memref<9x128x128xbf16, #tpu.memory_space<vmem>>, vector<1x128x128xbf16>
    %25 = vector.shape_cast %24 : vector<1x128x128xbf16> to vector<128x128xbf16>
    %cst_23 = arith.constant dense<0.000000e+00> : vector<64x128xf32>
    %26 = tpu.matmul %23, %25, %cst_23 {dimension_numbers = #tpu.dot_dimension_numbers<[1], [0], [0], [1], [0, 0, 1, 1], [], []>} : vector<64x128xbf16>, vector<128x128xbf16>, vector<64x128xf32> -> vector<64x128xf32>
    %27 = vector.broadcast %3 : vector<64x1xf32> to vector<64x128xf32>
    %28 = arith.mulf %26, %27 : vector<64x128xf32>
    %29 = arith.addf %20, %28 : vector<64x128xf32>
    %c0_24 = arith.constant 0 : index
    %c8 = arith.constant 8 : index
    %c0_25 = arith.constant 0 : index
    %30 = vector.load %arg2[%c0_24, %c8, %c0_25] : memref<1x82x128xf32, #tpu.memory_space<vmem>>, vector<1x64x128xf32>
    %31 = vector.shape_cast %30 : vector<1x64x128xf32> to vector<64x128xf32>
    %32 = arith.truncf %31 : vector<64x128xf32> to vector<64x128xbf16>
    %c3 = arith.constant 3 : index
    %c0_26 = arith.constant 0 : index
    %c0_27 = arith.constant 0 : index
    %33 = vector.load %arg3[%c3, %c0_26, %c0_27] : memref<9x128x128xbf16, #tpu.memory_space<vmem>>, vector<1x128x128xbf16>
    %34 = vector.shape_cast %33 : vector<1x128x128xbf16> to vector<128x128xbf16>
    %cst_28 = arith.constant dense<0.000000e+00> : vector<64x128xf32>
    %35 = tpu.matmul %32, %34, %cst_28 {dimension_numbers = #tpu.dot_dimension_numbers<[1], [0], [0], [1], [0, 0, 1, 1], [], []>} : vector<64x128xbf16>, vector<128x128xbf16>, vector<64x128xf32> -> vector<64x128xf32>
    %36 = vector.broadcast %1 : vector<64x1xf32> to vector<64x128xf32>
    %37 = arith.mulf %35, %36 : vector<64x128xf32>
    %38 = arith.addf %29, %37 : vector<64x128xf32>
    %c0_29 = arith.constant 0 : index
    %c9 = arith.constant 9 : index
    %c0_30 = arith.constant 0 : index
    %39 = vector.load %arg2[%c0_29, %c9, %c0_30] : memref<1x82x128xf32, #tpu.memory_space<vmem>>, vector<1x64x128xf32>
    %40 = vector.shape_cast %39 : vector<1x64x128xf32> to vector<64x128xf32>
    %41 = arith.truncf %40 : vector<64x128xf32> to vector<64x128xbf16>
    %c4 = arith.constant 4 : index
    %c0_31 = arith.constant 0 : index
    %c0_32 = arith.constant 0 : index
    %42 = vector.load %arg3[%c4, %c0_31, %c0_32] : memref<9x128x128xbf16, #tpu.memory_space<vmem>>, vector<1x128x128xbf16>
    %43 = vector.shape_cast %42 : vector<1x128x128xbf16> to vector<128x128xbf16>
    %cst_33 = arith.constant dense<0.000000e+00> : vector<64x128xf32>
    %44 = tpu.matmul %41, %43, %cst_33 {dimension_numbers = #tpu.dot_dimension_numbers<[1], [0], [0], [1], [0, 0, 1, 1], [], []>} : vector<64x128xbf16>, vector<128x128xbf16>, vector<64x128xf32> -> vector<64x128xf32>
    %45 = arith.addf %38, %44 : vector<64x128xf32>
    %c0_34 = arith.constant 0 : index
    %c10 = arith.constant 10 : index
    %c0_35 = arith.constant 0 : index
    %46 = vector.load %arg2[%c0_34, %c10, %c0_35] : memref<1x82x128xf32, #tpu.memory_space<vmem>>, vector<1x64x128xf32>
    %47 = vector.shape_cast %46 : vector<1x64x128xf32> to vector<64x128xf32>
    %48 = arith.truncf %47 : vector<64x128xf32> to vector<64x128xbf16>
    %c5 = arith.constant 5 : index
    %c0_36 = arith.constant 0 : index
    %c0_37 = arith.constant 0 : index
    %49 = vector.load %arg3[%c5, %c0_36, %c0_37] : memref<9x128x128xbf16, #tpu.memory_space<vmem>>, vector<1x128x128xbf16>
    %50 = vector.shape_cast %49 : vector<1x128x128xbf16> to vector<128x128xbf16>
    %cst_38 = arith.constant dense<0.000000e+00> : vector<64x128xf32>
    %51 = tpu.matmul %48, %50, %cst_38 {dimension_numbers = #tpu.dot_dimension_numbers<[1], [0], [0], [1], [0, 0, 1, 1], [], []>} : vector<64x128xbf16>, vector<128x128xbf16>, vector<64x128xf32> -> vector<64x128xf32>
    %52 = vector.broadcast %3 : vector<64x1xf32> to vector<64x128xf32>
    %53 = arith.mulf %51, %52 : vector<64x128xf32>
    %54 = arith.addf %45, %53 : vector<64x128xf32>
    %c0_39 = arith.constant 0 : index
    %c16 = arith.constant 16 : index
    %c0_40 = arith.constant 0 : index
    %55 = vector.load %arg2[%c0_39, %c16, %c0_40] : memref<1x82x128xf32, #tpu.memory_space<vmem>>, vector<1x64x128xf32>
    %56 = vector.shape_cast %55 : vector<1x64x128xf32> to vector<64x128xf32>
    %57 = arith.truncf %56 : vector<64x128xf32> to vector<64x128xbf16>
    %c6 = arith.constant 6 : index
    %c0_41 = arith.constant 0 : index
    %c0_42 = arith.constant 0 : index
    %58 = vector.load %arg3[%c6, %c0_41, %c0_42] : memref<9x128x128xbf16, #tpu.memory_space<vmem>>, vector<1x128x128xbf16>
    %59 = vector.shape_cast %58 : vector<1x128x128xbf16> to vector<128x128xbf16>
    %cst_43 = arith.constant dense<0.000000e+00> : vector<64x128xf32>
    %60 = tpu.matmul %57, %59, %cst_43 {dimension_numbers = #tpu.dot_dimension_numbers<[1], [0], [0], [1], [0, 0, 1, 1], [], []>} : vector<64x128xbf16>, vector<128x128xbf16>, vector<64x128xf32> -> vector<64x128xf32>
    %61 = vector.broadcast %1 : vector<64x1xf32> to vector<64x128xf32>
    %62 = arith.mulf %60, %61 : vector<64x128xf32>
    %63 = arith.addf %54, %62 : vector<64x128xf32>
    %c0_44 = arith.constant 0 : index
    %c17 = arith.constant 17 : index
    %c0_45 = arith.constant 0 : index
    %64 = vector.load %arg2[%c0_44, %c17, %c0_45] : memref<1x82x128xf32, #tpu.memory_space<vmem>>, vector<1x64x128xf32>
    %65 = vector.shape_cast %64 : vector<1x64x128xf32> to vector<64x128xf32>
    %66 = arith.truncf %65 : vector<64x128xf32> to vector<64x128xbf16>
    %c7 = arith.constant 7 : index
    %c0_46 = arith.constant 0 : index
    %c0_47 = arith.constant 0 : index
    %67 = vector.load %arg3[%c7, %c0_46, %c0_47] : memref<9x128x128xbf16, #tpu.memory_space<vmem>>, vector<1x128x128xbf16>
    %68 = vector.shape_cast %67 : vector<1x128x128xbf16> to vector<128x128xbf16>
    %cst_48 = arith.constant dense<0.000000e+00> : vector<64x128xf32>
    %69 = tpu.matmul %66, %68, %cst_48 {dimension_numbers = #tpu.dot_dimension_numbers<[1], [0], [0], [1], [0, 0, 1, 1], [], []>} : vector<64x128xbf16>, vector<128x128xbf16>, vector<64x128xf32> -> vector<64x128xf32>
    %70 = arith.addf %63, %69 : vector<64x128xf32>
    %c0_49 = arith.constant 0 : index
    %c18 = arith.constant 18 : index
    %c0_50 = arith.constant 0 : index
    %71 = vector.load %arg2[%c0_49, %c18, %c0_50] : memref<1x82x128xf32, #tpu.memory_space<vmem>>, vector<1x64x128xf32>
    %72 = vector.shape_cast %71 : vector<1x64x128xf32> to vector<64x128xf32>
    %73 = arith.truncf %72 : vector<64x128xf32> to vector<64x128xbf16>
    %c8_51 = arith.constant 8 : index
    %c0_52 = arith.constant 0 : index
    %c0_53 = arith.constant 0 : index
    %74 = vector.load %arg3[%c8_51, %c0_52, %c0_53] : memref<9x128x128xbf16, #tpu.memory_space<vmem>>, vector<1x128x128xbf16>
    %75 = vector.shape_cast %74 : vector<1x128x128xbf16> to vector<128x128xbf16>
    %cst_54 = arith.constant dense<0.000000e+00> : vector<64x128xf32>
    %76 = tpu.matmul %73, %75, %cst_54 {dimension_numbers = #tpu.dot_dimension_numbers<[1], [0], [0], [1], [0, 0, 1, 1], [], []>} : vector<64x128xbf16>, vector<128x128xbf16>, vector<64x128xf32> -> vector<64x128xf32>
    %77 = vector.broadcast %3 : vector<64x1xf32> to vector<64x128xf32>
    %78 = arith.mulf %76, %77 : vector<64x128xf32>
    %79 = arith.addf %70, %78 : vector<64x128xf32>
    %c0_55 = arith.constant 0 : index
    %c0_56 = arith.constant 0 : index
    %80 = vector.load %arg4[%c0_55, %c0_56] : memref<1x128xf32, #tpu.memory_space<vmem>>, vector<1x128xf32>
    %81 = vector.broadcast %80 : vector<1x128xf32> to vector<64x128xf32>
    %82 = arith.addf %79, %81 : vector<64x128xf32>
    %c0_57 = arith.constant 0 : index
    %c0_58 = arith.constant 0 : index
    %c0_59 = arith.constant 0 : index
    %83 = vector.load %arg6[%c0_57, %c0_58, %c0_59] : memref<1x64x128xbf16, #tpu.memory_space<vmem>>, vector<1x64x128xbf16>
    %84 = vector.shape_cast %83 : vector<1x64x128xbf16> to vector<64x128xbf16>
    %85 = arith.extf %84 : vector<64x128xbf16> to vector<64x128xf32>
    %86 = arith.addf %82, %85 : vector<64x128xf32>
    %cst_60 = arith.constant 0.000000e+00 : f32
    %87 = vector.broadcast %cst_60 : f32 to vector<64x128xf32>
    %88 = arith.maximumf %86, %87 : vector<64x128xf32>
    %89 = arith.truncf %88 : vector<64x128xf32> to vector<64x128xbf16>
    %c0_61 = arith.constant 0 : index
    %c0_62 = arith.constant 0 : index
    %c0_63 = arith.constant 0 : index
    %90 = vector.load %arg7[%c0_61, %c0_62, %c0_63] : memref<1x64x128xbf16, #tpu.memory_space<vmem>>, vector<1x64x128xbf16>
    %91 = vector.shape_cast %90 : vector<1x64x128xbf16> to vector<64x128xbf16>
    %92 = vector.shape_cast %89 : vector<64x128xbf16> to vector<1x64x128xbf16>
    tpu.vector_store %arg7[%c0_61, %c0_62, %c0_63], %92 {strides = array<i32>} : memref<1x64x128xbf16, #tpu.memory_space<vmem>>, vector<1x64x128xbf16>,
    return
  }
  func.func @transform_0(%arg0: i32, %arg1: i32) -> (i32, i32, i32) {
    %c0_i32 = arith.constant 0 : i32
    %c0_i32_0 = arith.constant 0 : i32
    %c0_i32_1 = arith.constant 0 : i32
    return %arg1, %c0_i32, %c0_i32_0 : i32, i32, i32
  }
  func.func @transform_1(%arg0: i32, %arg1: i32) -> (i32, i32, i32) {
    %c0_i32 = arith.constant 0 : i32
    %c0_i32_0 = arith.constant 0 : i32
    %c0_i32_1 = arith.constant 0 : i32
    return %c0_i32, %c0_i32_0, %arg0 : i32, i32, i32
  }
  func.func @transform_2(%arg0: i32, %arg1: i32) -> (i32, i32) {
    %c0_i32 = arith.constant 0 : i32
    %c0_i32_0 = arith.constant 0 : i32
    return %c0_i32, %arg0 : i32, i32
  }
  func.func @transform_3(%arg0: i32, %arg1: i32) -> (i32, i32, i32) {
    %c0_i32 = arith.constant 0 : i32
    %c0_i32_0 = arith.constant 0 : i32
    %c0_i32_1 = arith.constant 0 : i32
    %c0_i32_2 = arith.constant 0 : i32
    return %c0_i32, %c0_i32_0, %c0_i32_1 : i32, i32, i32
  }
  func.func @transform_4(%arg0: i32, %arg1: i32) -> (i32, i32, i32) {
    %c0_i32 = arith.constant 0 : i32
    %c0_i32_0 = arith.constant 0 : i32
    return %arg1, %c0_i32, %arg0 : i32, i32, i32
  }
  func.func @transform_5(%arg0: i32, %arg1: i32) -> (i32, i32, i32) {
    %c0_i32 = arith.constant 0 : i32
    %c0_i32_0 = arith.constant 0 : i32
    return %arg1, %c0_i32, %arg0 : i32, i32, i32
  }
}

module attributes {stable_mosaic.version = 11 : i64} {
  func.func @kernel(%arg0: i32, %arg1: i32, %arg2: memref<16x1152xbf16, #tpu.memory_space<vmem>>, %arg3: memref<1152x256xbf16, #tpu.memory_space<vmem>>, %arg4: memref<1x256xf32, #tpu.memory_space<vmem>>, %arg5: memref<128x256xbf16, #tpu.memory_space<vmem>>, %arg6: memref<1x256xf32, #tpu.memory_space<vmem>>, %arg7: memref<16x256xbf16, #tpu.memory_space<vmem>>, %arg8: memref<16x256xbf16, #tpu.memory_space<vmem>>) attributes {dimension_semantics = [#tpu.dimension_semantics<parallel>, #tpu.dimension_semantics<parallel>], iteration_bounds = array<i64: 1, 2>, scalar_prefetch = 0 : i64, scratch_operands = 0 : i64, tpu.core_type = #tpu.core_type<tc>, window_params = [{transform_indices = @transform_0, window_bounds = array<i64: 16, 1152>}, {transform_indices = @transform_1, window_bounds = array<i64: 1152, 256>}, {transform_indices = @transform_2, window_bounds = array<i64: 1, 256>}, {transform_indices = @transform_3, window_bounds = array<i64: 128, 256>}, {transform_indices = @transform_4, window_bounds = array<i64: 1, 256>}, {transform_indices = @transform_5, window_bounds = array<i64: 16, 256>}, {transform_indices = @transform_6, window_bounds = array<i64: 16, 256>}]} {
    %c0 = arith.constant 0 : index
    %c0_0 = arith.constant 0 : index
    %0 = vector.load %arg2[%c0, %c0_0] : memref<16x1152xbf16, #tpu.memory_space<vmem>>, vector<16x1152xbf16>
    %c0_1 = arith.constant 0 : index
    %c0_2 = arith.constant 0 : index
    %1 = vector.load %arg3[%c0_1, %c0_2] : memref<1152x256xbf16, #tpu.memory_space<vmem>>, vector<1152x256xbf16>
    %cst = arith.constant dense<0.000000e+00> : vector<16x256xf32>
    %2 = tpu.matmul %0, %1, %cst {dimension_numbers = #tpu.dot_dimension_numbers<[1], [0], [0], [1], [0, 0, 1, 1], [], []>} : vector<16x1152xbf16>, vector<1152x256xbf16>, vector<16x256xf32> -> vector<16x256xf32>
    %c0_3 = arith.constant 0 : index
    %c0_4 = arith.constant 0 : index
    %3 = vector.load %arg4[%c0_3, %c0_4] : memref<1x256xf32, #tpu.memory_space<vmem>>, vector<1x256xf32>
    %4 = vector.broadcast %3 : vector<1x256xf32> to vector<16x256xf32>
    %5 = arith.addf %2, %4 : vector<16x256xf32>
    %cst_5 = arith.constant 0.000000e+00 : f32
    %6 = vector.broadcast %cst_5 : f32 to vector<16x256xf32>
    %7 = arith.maximumf %5, %6 : vector<16x256xf32>
    %8 = arith.truncf %7 : vector<16x256xf32> to vector<16x256xbf16>
    %c0_6 = arith.constant 0 : index
    %c0_7 = arith.constant 0 : index
    %9 = vector.load %arg7[%c0_6, %c0_7] : memref<16x256xbf16, #tpu.memory_space<vmem>>, vector<16x256xbf16>
    tpu.vector_store %arg7[%c0_6, %c0_7], %8 {strides = array<i32>} : memref<16x256xbf16, #tpu.memory_space<vmem>>, vector<16x256xbf16>,
    %10 = vector.extract_strided_slice %0 {offsets = [0, 512], sizes = [16, 128], strides = [1, 1]} : vector<16x1152xbf16> to vector<16x128xbf16>
    %c0_8 = arith.constant 0 : index
    %c0_9 = arith.constant 0 : index
    %11 = vector.load %arg5[%c0_8, %c0_9] : memref<128x256xbf16, #tpu.memory_space<vmem>>, vector<128x256xbf16>
    %cst_10 = arith.constant dense<0.000000e+00> : vector<16x256xf32>
    %12 = tpu.matmul %10, %11, %cst_10 {dimension_numbers = #tpu.dot_dimension_numbers<[1], [0], [0], [1], [0, 0, 1, 1], [], []>} : vector<16x128xbf16>, vector<128x256xbf16>, vector<16x256xf32> -> vector<16x256xf32>
    %c0_11 = arith.constant 0 : index
    %c0_12 = arith.constant 0 : index
    %13 = vector.load %arg6[%c0_11, %c0_12] : memref<1x256xf32, #tpu.memory_space<vmem>>, vector<1x256xf32>
    %14 = vector.broadcast %13 : vector<1x256xf32> to vector<16x256xf32>
    %15 = arith.addf %12, %14 : vector<16x256xf32>
    %16 = arith.truncf %15 : vector<16x256xf32> to vector<16x256xbf16>
    %c0_13 = arith.constant 0 : index
    %c0_14 = arith.constant 0 : index
    %17 = vector.load %arg8[%c0_13, %c0_14] : memref<16x256xbf16, #tpu.memory_space<vmem>>, vector<16x256xbf16>
    tpu.vector_store %arg8[%c0_13, %c0_14], %16 {strides = array<i32>} : memref<16x256xbf16, #tpu.memory_space<vmem>>, vector<16x256xbf16>,
    return
  }
  func.func @transform_0(%arg0: i32, %arg1: i32) -> (i32, i32) {
    %c0_i32 = arith.constant 0 : i32
    %c0_i32_0 = arith.constant 0 : i32
    return %arg1, %c0_i32 : i32, i32
  }
  func.func @transform_1(%arg0: i32, %arg1: i32) -> (i32, i32) {
    %c0_i32 = arith.constant 0 : i32
    %c0_i32_0 = arith.constant 0 : i32
    return %c0_i32, %arg0 : i32, i32
  }
  func.func @transform_2(%arg0: i32, %arg1: i32) -> (i32, i32) {
    %c0_i32 = arith.constant 0 : i32
    %c0_i32_0 = arith.constant 0 : i32
    return %c0_i32, %arg0 : i32, i32
  }
  func.func @transform_3(%arg0: i32, %arg1: i32) -> (i32, i32) {
    %c0_i32 = arith.constant 0 : i32
    %c0_i32_0 = arith.constant 0 : i32
    return %c0_i32, %arg0 : i32, i32
  }
  func.func @transform_4(%arg0: i32, %arg1: i32) -> (i32, i32) {
    %c0_i32 = arith.constant 0 : i32
    %c0_i32_0 = arith.constant 0 : i32
    return %c0_i32, %arg0 : i32, i32
  }
  func.func @transform_5(%arg0: i32, %arg1: i32) -> (i32, i32) {
    %c0_i32 = arith.constant 0 : i32
    return %arg1, %arg0 : i32, i32
  }
  func.func @transform_6(%arg0: i32, %arg1: i32) -> (i32, i32) {
    %c0_i32 = arith.constant 0 : i32
    return %arg1, %arg0 : i32, i32
  }
}

module attributes {stable_mosaic.version = 11 : i64} {
  func.func @kernel(%arg0: i32, %arg1: i32, %arg2: memref<1x26x256xf32, #tpu.memory_space<vmem>>, %arg3: memref<9x256x256xbf16, #tpu.memory_space<vmem>>, %arg4: memref<1x256xf32, #tpu.memory_space<vmem>>, %arg5: memref<2x16x1xf32, #tpu.memory_space<vmem>>, %arg6: memref<1x16x256xbf16, #tpu.memory_space<vmem>>, %arg7: memref<1x16x256xf32, #tpu.memory_space<vmem>>) attributes {dimension_semantics = [#tpu.dimension_semantics<parallel>, #tpu.dimension_semantics<parallel>], iteration_bounds = array<i64: 1, 2>, scalar_prefetch = 0 : i64, scratch_operands = 0 : i64, tpu.core_type = #tpu.core_type<tc>, window_params = [{transform_indices = @transform_0, window_bounds = array<i64: 1, 26, 256>}, {transform_indices = @transform_1, window_bounds = array<i64: 9, 256, 256>}, {transform_indices = @transform_2, window_bounds = array<i64: 1, 256>}, {pipeline_mode = #tpu.pipeline_mode<synchronous>, transform_indices = @transform_3, window_bounds = array<i64: 2, 16, 1>}, {transform_indices = @transform_4, window_bounds = array<i64: 1, 16, 256>}, {transform_indices = @transform_5, window_bounds = array<i64: 1, 16, 256>}]} {
    %c0 = arith.constant 0 : index
    %c0_0 = arith.constant 0 : index
    %c0_1 = arith.constant 0 : index
    %0 = vector.load %arg5[%c0, %c0_0, %c0_1] : memref<2x16x1xf32, #tpu.memory_space<vmem>>, vector<1x16x1xf32>
    %1 = vector.shape_cast %0 : vector<1x16x1xf32> to vector<16x1xf32>
    %c1 = arith.constant 1 : index
    %c0_2 = arith.constant 0 : index
    %c0_3 = arith.constant 0 : index
    %2 = vector.load %arg5[%c1, %c0_2, %c0_3] : memref<2x16x1xf32, #tpu.memory_space<vmem>>, vector<1x16x1xf32>
    %3 = vector.shape_cast %2 : vector<1x16x1xf32> to vector<16x1xf32>
    %cst = arith.constant 0.000000e+00 : f32
    %4 = vector.broadcast %cst : f32 to vector<16x256xf32>
    %c0_4 = arith.constant 0 : index
    %c0_5 = arith.constant 0 : index
    %c0_6 = arith.constant 0 : index
    %5 = vector.load %arg2[%c0_4, %c0_5, %c0_6] : memref<1x26x256xf32, #tpu.memory_space<vmem>>, vector<1x16x256xf32>
    %6 = vector.shape_cast %5 : vector<1x16x256xf32> to vector<16x256xf32>
    %7 = arith.truncf %6 : vector<16x256xf32> to vector<16x256xbf16>
    %c0_7 = arith.constant 0 : index
    %c0_8 = arith.constant 0 : index
    %c0_9 = arith.constant 0 : index
    %8 = vector.load %arg3[%c0_7, %c0_8, %c0_9] : memref<9x256x256xbf16, #tpu.memory_space<vmem>>, vector<1x256x256xbf16>
    %9 = vector.shape_cast %8 : vector<1x256x256xbf16> to vector<256x256xbf16>
    %cst_10 = arith.constant dense<0.000000e+00> : vector<16x256xf32>
    %10 = tpu.matmul %7, %9, %cst_10 {dimension_numbers = #tpu.dot_dimension_numbers<[1], [0], [0], [1], [0, 0, 1, 1], [], []>} : vector<16x256xbf16>, vector<256x256xbf16>, vector<16x256xf32> -> vector<16x256xf32>
    %11 = vector.broadcast %1 : vector<16x1xf32> to vector<16x256xf32>
    %12 = arith.mulf %10, %11 : vector<16x256xf32>
    %13 = arith.addf %4, %12 : vector<16x256xf32>
    %c0_11 = arith.constant 0 : index
    %c1_12 = arith.constant 1 : index
    %c0_13 = arith.constant 0 : index
    %14 = vector.load %arg2[%c0_11, %c1_12, %c0_13] : memref<1x26x256xf32, #tpu.memory_space<vmem>>, vector<1x16x256xf32>
    %15 = vector.shape_cast %14 : vector<1x16x256xf32> to vector<16x256xf32>
    %16 = arith.truncf %15 : vector<16x256xf32> to vector<16x256xbf16>
    %c1_14 = arith.constant 1 : index
    %c0_15 = arith.constant 0 : index
    %c0_16 = arith.constant 0 : index
    %17 = vector.load %arg3[%c1_14, %c0_15, %c0_16] : memref<9x256x256xbf16, #tpu.memory_space<vmem>>, vector<1x256x256xbf16>
    %18 = vector.shape_cast %17 : vector<1x256x256xbf16> to vector<256x256xbf16>
    %cst_17 = arith.constant dense<0.000000e+00> : vector<16x256xf32>
    %19 = tpu.matmul %16, %18, %cst_17 {dimension_numbers = #tpu.dot_dimension_numbers<[1], [0], [0], [1], [0, 0, 1, 1], [], []>} : vector<16x256xbf16>, vector<256x256xbf16>, vector<16x256xf32> -> vector<16x256xf32>
    %20 = arith.addf %13, %19 : vector<16x256xf32>
    %c0_18 = arith.constant 0 : index
    %c2 = arith.constant 2 : index
    %c0_19 = arith.constant 0 : index
    %21 = vector.load %arg2[%c0_18, %c2, %c0_19] : memref<1x26x256xf32, #tpu.memory_space<vmem>>, vector<1x16x256xf32>
    %22 = vector.shape_cast %21 : vector<1x16x256xf32> to vector<16x256xf32>
    %23 = arith.truncf %22 : vector<16x256xf32> to vector<16x256xbf16>
    %c2_20 = arith.constant 2 : index
    %c0_21 = arith.constant 0 : index
    %c0_22 = arith.constant 0 : index
    %24 = vector.load %arg3[%c2_20, %c0_21, %c0_22] : memref<9x256x256xbf16, #tpu.memory_space<vmem>>, vector<1x256x256xbf16>
    %25 = vector.shape_cast %24 : vector<1x256x256xbf16> to vector<256x256xbf16>
    %cst_23 = arith.constant dense<0.000000e+00> : vector<16x256xf32>
    %26 = tpu.matmul %23, %25, %cst_23 {dimension_numbers = #tpu.dot_dimension_numbers<[1], [0], [0], [1], [0, 0, 1, 1], [], []>} : vector<16x256xbf16>, vector<256x256xbf16>, vector<16x256xf32> -> vector<16x256xf32>
    %27 = vector.broadcast %3 : vector<16x1xf32> to vector<16x256xf32>
    %28 = arith.mulf %26, %27 : vector<16x256xf32>
    %29 = arith.addf %20, %28 : vector<16x256xf32>
    %c0_24 = arith.constant 0 : index
    %c4 = arith.constant 4 : index
    %c0_25 = arith.constant 0 : index
    %30 = vector.load %arg2[%c0_24, %c4, %c0_25] : memref<1x26x256xf32, #tpu.memory_space<vmem>>, vector<1x16x256xf32>
    %31 = vector.shape_cast %30 : vector<1x16x256xf32> to vector<16x256xf32>
    %32 = arith.truncf %31 : vector<16x256xf32> to vector<16x256xbf16>
    %c3 = arith.constant 3 : index
    %c0_26 = arith.constant 0 : index
    %c0_27 = arith.constant 0 : index
    %33 = vector.load %arg3[%c3, %c0_26, %c0_27] : memref<9x256x256xbf16, #tpu.memory_space<vmem>>, vector<1x256x256xbf16>
    %34 = vector.shape_cast %33 : vector<1x256x256xbf16> to vector<256x256xbf16>
    %cst_28 = arith.constant dense<0.000000e+00> : vector<16x256xf32>
    %35 = tpu.matmul %32, %34, %cst_28 {dimension_numbers = #tpu.dot_dimension_numbers<[1], [0], [0], [1], [0, 0, 1, 1], [], []>} : vector<16x256xbf16>, vector<256x256xbf16>, vector<16x256xf32> -> vector<16x256xf32>
    %36 = vector.broadcast %1 : vector<16x1xf32> to vector<16x256xf32>
    %37 = arith.mulf %35, %36 : vector<16x256xf32>
    %38 = arith.addf %29, %37 : vector<16x256xf32>
    %c0_29 = arith.constant 0 : index
    %c5 = arith.constant 5 : index
    %c0_30 = arith.constant 0 : index
    %39 = vector.load %arg2[%c0_29, %c5, %c0_30] : memref<1x26x256xf32, #tpu.memory_space<vmem>>, vector<1x16x256xf32>
    %40 = vector.shape_cast %39 : vector<1x16x256xf32> to vector<16x256xf32>
    %41 = arith.truncf %40 : vector<16x256xf32> to vector<16x256xbf16>
    %c4_31 = arith.constant 4 : index
    %c0_32 = arith.constant 0 : index
    %c0_33 = arith.constant 0 : index
    %42 = vector.load %arg3[%c4_31, %c0_32, %c0_33] : memref<9x256x256xbf16, #tpu.memory_space<vmem>>, vector<1x256x256xbf16>
    %43 = vector.shape_cast %42 : vector<1x256x256xbf16> to vector<256x256xbf16>
    %cst_34 = arith.constant dense<0.000000e+00> : vector<16x256xf32>
    %44 = tpu.matmul %41, %43, %cst_34 {dimension_numbers = #tpu.dot_dimension_numbers<[1], [0], [0], [1], [0, 0, 1, 1], [], []>} : vector<16x256xbf16>, vector<256x256xbf16>, vector<16x256xf32> -> vector<16x256xf32>
    %45 = arith.addf %38, %44 : vector<16x256xf32>
    %c0_35 = arith.constant 0 : index
    %c6 = arith.constant 6 : index
    %c0_36 = arith.constant 0 : index
    %46 = vector.load %arg2[%c0_35, %c6, %c0_36] : memref<1x26x256xf32, #tpu.memory_space<vmem>>, vector<1x16x256xf32>
    %47 = vector.shape_cast %46 : vector<1x16x256xf32> to vector<16x256xf32>
    %48 = arith.truncf %47 : vector<16x256xf32> to vector<16x256xbf16>
    %c5_37 = arith.constant 5 : index
    %c0_38 = arith.constant 0 : index
    %c0_39 = arith.constant 0 : index
    %49 = vector.load %arg3[%c5_37, %c0_38, %c0_39] : memref<9x256x256xbf16, #tpu.memory_space<vmem>>, vector<1x256x256xbf16>
    %50 = vector.shape_cast %49 : vector<1x256x256xbf16> to vector<256x256xbf16>
    %cst_40 = arith.constant dense<0.000000e+00> : vector<16x256xf32>
    %51 = tpu.matmul %48, %50, %cst_40 {dimension_numbers = #tpu.dot_dimension_numbers<[1], [0], [0], [1], [0, 0, 1, 1], [], []>} : vector<16x256xbf16>, vector<256x256xbf16>, vector<16x256xf32> -> vector<16x256xf32>
    %52 = vector.broadcast %3 : vector<16x1xf32> to vector<16x256xf32>
    %53 = arith.mulf %51, %52 : vector<16x256xf32>
    %54 = arith.addf %45, %53 : vector<16x256xf32>
    %c0_41 = arith.constant 0 : index
    %c8 = arith.constant 8 : index
    %c0_42 = arith.constant 0 : index
    %55 = vector.load %arg2[%c0_41, %c8, %c0_42] : memref<1x26x256xf32, #tpu.memory_space<vmem>>, vector<1x16x256xf32>
    %56 = vector.shape_cast %55 : vector<1x16x256xf32> to vector<16x256xf32>
    %57 = arith.truncf %56 : vector<16x256xf32> to vector<16x256xbf16>
    %c6_43 = arith.constant 6 : index
    %c0_44 = arith.constant 0 : index
    %c0_45 = arith.constant 0 : index
    %58 = vector.load %arg3[%c6_43, %c0_44, %c0_45] : memref<9x256x256xbf16, #tpu.memory_space<vmem>>, vector<1x256x256xbf16>
    %59 = vector.shape_cast %58 : vector<1x256x256xbf16> to vector<256x256xbf16>
    %cst_46 = arith.constant dense<0.000000e+00> : vector<16x256xf32>
    %60 = tpu.matmul %57, %59, %cst_46 {dimension_numbers = #tpu.dot_dimension_numbers<[1], [0], [0], [1], [0, 0, 1, 1], [], []>} : vector<16x256xbf16>, vector<256x256xbf16>, vector<16x256xf32> -> vector<16x256xf32>
    %61 = vector.broadcast %1 : vector<16x1xf32> to vector<16x256xf32>
    %62 = arith.mulf %60, %61 : vector<16x256xf32>
    %63 = arith.addf %54, %62 : vector<16x256xf32>
    %c0_47 = arith.constant 0 : index
    %c9 = arith.constant 9 : index
    %c0_48 = arith.constant 0 : index
    %64 = vector.load %arg2[%c0_47, %c9, %c0_48] : memref<1x26x256xf32, #tpu.memory_space<vmem>>, vector<1x16x256xf32>
    %65 = vector.shape_cast %64 : vector<1x16x256xf32> to vector<16x256xf32>
    %66 = arith.truncf %65 : vector<16x256xf32> to vector<16x256xbf16>
    %c7 = arith.constant 7 : index
    %c0_49 = arith.constant 0 : index
    %c0_50 = arith.constant 0 : index
    %67 = vector.load %arg3[%c7, %c0_49, %c0_50] : memref<9x256x256xbf16, #tpu.memory_space<vmem>>, vector<1x256x256xbf16>
    %68 = vector.shape_cast %67 : vector<1x256x256xbf16> to vector<256x256xbf16>
    %cst_51 = arith.constant dense<0.000000e+00> : vector<16x256xf32>
    %69 = tpu.matmul %66, %68, %cst_51 {dimension_numbers = #tpu.dot_dimension_numbers<[1], [0], [0], [1], [0, 0, 1, 1], [], []>} : vector<16x256xbf16>, vector<256x256xbf16>, vector<16x256xf32> -> vector<16x256xf32>
    %70 = arith.addf %63, %69 : vector<16x256xf32>
    %c0_52 = arith.constant 0 : index
    %c10 = arith.constant 10 : index
    %c0_53 = arith.constant 0 : index
    %71 = vector.load %arg2[%c0_52, %c10, %c0_53] : memref<1x26x256xf32, #tpu.memory_space<vmem>>, vector<1x16x256xf32>
    %72 = vector.shape_cast %71 : vector<1x16x256xf32> to vector<16x256xf32>
    %73 = arith.truncf %72 : vector<16x256xf32> to vector<16x256xbf16>
    %c8_54 = arith.constant 8 : index
    %c0_55 = arith.constant 0 : index
    %c0_56 = arith.constant 0 : index
    %74 = vector.load %arg3[%c8_54, %c0_55, %c0_56] : memref<9x256x256xbf16, #tpu.memory_space<vmem>>, vector<1x256x256xbf16>
    %75 = vector.shape_cast %74 : vector<1x256x256xbf16> to vector<256x256xbf16>
    %cst_57 = arith.constant dense<0.000000e+00> : vector<16x256xf32>
    %76 = tpu.matmul %73, %75, %cst_57 {dimension_numbers = #tpu.dot_dimension_numbers<[1], [0], [0], [1], [0, 0, 1, 1], [], []>} : vector<16x256xbf16>, vector<256x256xbf16>, vector<16x256xf32> -> vector<16x256xf32>
    %77 = vector.broadcast %3 : vector<16x1xf32> to vector<16x256xf32>
    %78 = arith.mulf %76, %77 : vector<16x256xf32>
    %79 = arith.addf %70, %78 : vector<16x256xf32>
    %c0_58 = arith.constant 0 : index
    %c0_59 = arith.constant 0 : index
    %80 = vector.load %arg4[%c0_58, %c0_59] : memref<1x256xf32, #tpu.memory_space<vmem>>, vector<1x256xf32>
    %81 = vector.broadcast %80 : vector<1x256xf32> to vector<16x256xf32>
    %82 = arith.addf %79, %81 : vector<16x256xf32>
    %c0_60 = arith.constant 0 : index
    %c0_61 = arith.constant 0 : index
    %c0_62 = arith.constant 0 : index
    %83 = vector.load %arg6[%c0_60, %c0_61, %c0_62] : memref<1x16x256xbf16, #tpu.memory_space<vmem>>, vector<1x16x256xbf16>
    %84 = vector.shape_cast %83 : vector<1x16x256xbf16> to vector<16x256xbf16>
    %85 = arith.extf %84 : vector<16x256xbf16> to vector<16x256xf32>
    %86 = arith.addf %82, %85 : vector<16x256xf32>
    %cst_63 = arith.constant 0.000000e+00 : f32
    %87 = vector.broadcast %cst_63 : f32 to vector<16x256xf32>
    %88 = arith.maximumf %86, %87 : vector<16x256xf32>
    %c0_64 = arith.constant 0 : index
    %c0_65 = arith.constant 0 : index
    %c0_66 = arith.constant 0 : index
    %89 = vector.load %arg7[%c0_64, %c0_65, %c0_66] : memref<1x16x256xf32, #tpu.memory_space<vmem>>, vector<1x16x256xf32>
    %90 = vector.shape_cast %89 : vector<1x16x256xf32> to vector<16x256xf32>
    %91 = vector.shape_cast %88 : vector<16x256xf32> to vector<1x16x256xf32>
    tpu.vector_store %arg7[%c0_64, %c0_65, %c0_66], %91 {strides = array<i32>} : memref<1x16x256xf32, #tpu.memory_space<vmem>>, vector<1x16x256xf32>,
    return
  }
  func.func @transform_0(%arg0: i32, %arg1: i32) -> (i32, i32, i32) {
    %c0_i32 = arith.constant 0 : i32
    %c0_i32_0 = arith.constant 0 : i32
    %c0_i32_1 = arith.constant 0 : i32
    return %arg1, %c0_i32, %c0_i32_0 : i32, i32, i32
  }
  func.func @transform_1(%arg0: i32, %arg1: i32) -> (i32, i32, i32) {
    %c0_i32 = arith.constant 0 : i32
    %c0_i32_0 = arith.constant 0 : i32
    %c0_i32_1 = arith.constant 0 : i32
    return %c0_i32, %c0_i32_0, %arg0 : i32, i32, i32
  }
  func.func @transform_2(%arg0: i32, %arg1: i32) -> (i32, i32) {
    %c0_i32 = arith.constant 0 : i32
    %c0_i32_0 = arith.constant 0 : i32
    return %c0_i32, %arg0 : i32, i32
  }
  func.func @transform_3(%arg0: i32, %arg1: i32) -> (i32, i32, i32) {
    %c0_i32 = arith.constant 0 : i32
    %c0_i32_0 = arith.constant 0 : i32
    %c0_i32_1 = arith.constant 0 : i32
    %c0_i32_2 = arith.constant 0 : i32
    return %c0_i32, %c0_i32_0, %c0_i32_1 : i32, i32, i32
  }
  func.func @transform_4(%arg0: i32, %arg1: i32) -> (i32, i32, i32) {
    %c0_i32 = arith.constant 0 : i32
    %c0_i32_0 = arith.constant 0 : i32
    return %arg1, %c0_i32, %arg0 : i32, i32, i32
  }
  func.func @transform_5(%arg0: i32, %arg1: i32) -> (i32, i32, i32) {
    %c0_i32 = arith.constant 0 : i32
    %c0_i32_0 = arith.constant 0 : i32
    return %arg1, %c0_i32, %arg0 : i32, i32, i32
  }
}

</mosaic_0001>

<llo_original>
// kernel: stage2_forward.6
$region0: #{stage2_forward.6}
  #allocation0 [shape = 'u32[]', space=smem, size = 0x4, offset = 0x4, fixed_abs, tag = 'smem constant byte address 0x4 - core index']
  #allocation1 [shape = 'u32[144,128]{1,0:T(1,128)}', space=vmem, size = 0x12000, scoped, tag = 'internal scratch']
  %s0 = inlined_call_operand.vmem [shape: bf16[128,64], index: 0, kind: input, shape index: {}]
  %s1 = inlined_call_operand.hbm [shape: bf16[64,128], index: 1, kind: input, shape index: {}]
  %s2 = inlined_call_operand.hbm [shape: f32[1,128], index: 2, kind: input, shape index: {}]
  %s3 = inlined_call_operand.vmem [shape: bf16[128,128], index: 3, kind: output, shape index: {}]
  %s4 = sld [smem:[#allocation0]]
  $region53: #{stage2_forward.6} parent=0
    _
  %s6 = ssub.s32 1, %s4
  %s7 = scalar_select 0, %s6, %s4
  $region1: #{stage2_forward.6} parent=0
    #allocation2 [shape = 'u8[16384]{0}', space=vmem, size = 0x4000, scoped, tag = 'input window, operand 1, single buffered']
    #allocation3 [shape = 's32[2]{0}', space=sflag, size = 0x8, scoped, tag = 'scoped memory for stage2_forward.6']
    #allocation4 [shape = 'u8[512]{0}', space=vmem, size = 0x400, scoped, tag = 'input window, operand 2, single buffered']
    #allocation5 [shape = 's32[1]{0}', space=sflag, size = 0x4, scoped, tag = 'scoped memory for stage2_forward.6']
    %8 = vsyncpa [#allocation3], 0
    %9 = vsyncpa [#allocation5], 0
    loop: start=0, step=1, limit=4
    $region2: #{stage2_forward.6} parent=1 // loop_pre_header
      _
    $region3: #{stage2_forward.6} parent=1 // loop_header
      %s11 = sphi 0, %s15
      %p12 = scmp.ge.s32.totalorder %s11, 4
      %s18 = sphi 0, %s30
      %s19 = sphi 0, %s26
      %s20 = sphi 0, %s18
      %s21 = sphi 0, %s19
      %s22 = sphi 0, %s20
      %s23 = sphi 0, %s21
      %s33 = sphi 0, %s35
      %s36 = sphi 0, %s33
      %s37 = sphi 0, %s36
      %s53 = sphi 0, %s37
      %s59 = sphi 0, %s61
      %s62 = sphi 0, %s59
      %s63 = sphi 0, %s62
      %s79 = sphi 0, %s63
      %s85 = sphi 0, %s87
      %s88 = sphi 0, %s85
      %s89 = sphi 0, %s88
      %s105 = sphi 0, %s89
      %s113 = sphi 0, %s115
      %s116 = sphi 0, %s113
      %s117 = sphi 0, %s116
      %s133 = sphi 0, %s117
    $region4: #{stage2_forward.6} parent=1 // loop_header_branch
      %14 = sbr.rel (%p12) target = $region8
    $region5: #{stage2_forward.6} parent=1 // loop_body
      %s16 = ssub.s32 %s11, 1
      %s17 = ssub.s32 %s11, 2
      %s24 = sadd.s32 1, %s19
      %p25 = scmp.ge.s32.totalorder %s24, 2
      %s26 = scalar_select %p25, 0, %s24
      %s27 = sadd.s32 1, %s18
      %s28 = scalar_select %p25, %s27, %s18
      %p29 = scmp.ge.s32.totalorder %s28, 1
      %s30 = scalar_select %p29, 0, %s28
      %s31 = ssub.s32 %s19, %s26
      %p32 = scmp.eq.s32.totalorder %s31, 0
      %s34 = sadd.s32 %s33, 1
      %s35 = scalar_select %p32, %s33, %s34
      %p38 = pneg %p32
      %p39 = scmp.eq.s32.totalorder %s11, 1
      %p40 = por %p38, %p39
      %p41 = scmp.ne.s32.totalorder %s33, %s36
      %p42 = scmp.eq.s32.totalorder %s11, 0
      %p43 = por %p41, %p42
      %p44 = scmp.ne.s32.totalorder %s33, %s36
      %p45 = scmp.eq.s32.totalorder %s16, 1
      %p46 = por %p44, %p45
      %p47 = scmp.ne.s32.totalorder %s36, %s37
      %p48 = scmp.eq.s32.totalorder %s16, 0
      %p49 = por %p47, %p48
      %p50 = scmp.ne.s32.totalorder %s36, %s37
      %p51 = scmp.eq.s32.totalorder %s17, 1
      %p52 = por %p50, %p51
      %p54 = scmp.ne.s32.totalorder %s37, %s53
      %p55 = scmp.eq.s32.totalorder %s17, 0
      %p56 = por %p54, %p55
      %s57 = ssub.s32 %s18, %s30
      %p58 = scmp.eq.s32.totalorder %s57, 0
      %s60 = sadd.s32 %s59, 1
      %s61 = scalar_select %p58, %s59, %s60
      %p64 = pneg %p58
      %p65 = scmp.eq.s32.totalorder %s11, 1
      %p66 = por %p64, %p65
      %p67 = scmp.ne.s32.totalorder %s59, %s62
      %p68 = scmp.eq.s32.totalorder %s11, 0
      %p69 = por %p67, %p68
      %p70 = scmp.ne.s32.totalorder %s59, %s62
      %p71 = scmp.eq.s32.totalorder %s16, 1
      %p72 = por %p70, %p71
      %p73 = scmp.ne.s32.totalorder %s62, %s63
      %p74 = scmp.eq.s32.totalorder %s16, 0
      %p75 = por %p73, %p74
      %p76 = scmp.ne.s32.totalorder %s62, %s63
      %p77 = scmp.eq.s32.totalorder %s17, 1
      %p78 = por %p76, %p77
      %p80 = scmp.ne.s32.totalorder %s63, %s79
      %p81 = scmp.eq.s32.totalorder %s17, 0
      %p82 = por %p80, %p81
      %s83 = ssub.s32 %s18, %s30
      %p84 = scmp.eq.s32.totalorder %s83, 0
      %s86 = sadd.s32 %s85, 1
      %s87 = scalar_select %p84, %s85, %s86
      %p90 = pneg %p84
      %p91 = scmp.eq.s32.totalorder %s11, 1
      %p92 = por %p90, %p91
      %p93 = scmp.ne.s32.totalorder %s85, %s88
      %p94 = scmp.eq.s32.totalorder %s11, 0
      %p95 = por %p93, %p94
      %p96 = scmp.ne.s32.totalorder %s85, %s88
      %p97 = scmp.eq.s32.totalorder %s16, 1
      %p98 = por %p96, %p97
      %p99 = scmp.ne.s32.totalorder %s88, %s89
      %p100 = scmp.eq.s32.totalorder %s16, 0
      %p101 = por %p99, %p100
      %p102 = scmp.ne.s32.totalorder %s88, %s89
      %p103 = scmp.eq.s32.totalorder %s17, 1
      %p104 = por %p102, %p103
      %p106 = scmp.ne.s32.totalorder %s89, %s105
      %p107 = scmp.eq.s32.totalorder %s17, 0
      %p108 = por %p106, %p107
      %s109 = ssub.s32 %s19, %s26
      %s110 = ssub.s32 %s18, %s30
      %s111 = sor.u32 %s109, %s110
      %p112 = scmp.eq.s32.totalorder %s111, 0
      %s114 = sadd.s32 %s113, 1
      %s115 = scalar_select %p112, %s113, %s114
      %p118 = pneg %p112
      %p119 = scmp.eq.s32.totalorder %s11, 1
      %p120 = por %p118, %p119
      %p121 = scmp.ne.s32.totalorder %s113, %s116
      %p122 = scmp.eq.s32.totalorder %s11, 0
      %p123 = por %p121, %p122
      %p124 = scmp.ne.s32.totalorder %s113, %s116
      %p125 = scmp.eq.s32.totalorder %s16, 1
      %p126 = por %p124, %p125
      %p127 = scmp.ne.s32.totalorder %s116, %s117
      %p128 = scmp.eq.s32.totalorder %s16, 0
      %p129 = por %p127, %p128
      %p130 = scmp.ne.s32.totalorder %s116, %s117
      %p131 = scmp.eq.s32.totalorder %s17, 1
      %p132 = por %p130, %p131
      %p134 = scmp.ne.s32.totalorder %s117, %s133
      %p135 = scmp.eq.s32.totalorder %s17, 0
      %p136 = por %p134, %p135
      %p137 = scmp.le.s32.totalorder 1, %s11
      %p138 = scmp.lt.s32.totalorder %s11, 3
      %p139 = pnand %p137, %p138
      %p140 = pneg %p139
      // Predicated region
      $region9: #{stage2_forward.6} parent=5 // pred_check
        _
      $region10: #{stage2_forward.6} parent=5 // pred_check_branch
        %142 = sbr.rel (%p139) target = $region12
      $region11: #{stage2_forward.6} parent=5 // pred_region
        %s143 = ssub.s32 %s11, 1
        // Predicated region
        $region13: #{stage2_forward.6} parent=11 // pred_check
          %p144 = pneg %p75
        $region14: #{stage2_forward.6} parent=11 // pred_check_branch
          %146 = sbr.rel (%p144) target = $region16
        $region15: #{stage2_forward.6} parent=11 // pred_region
          %s148 = ssub.s32 512, 512
          %149 = vsyncadd [#allocation3], %s148
          %s150 = smul.addr %s20, 64
          %s151 = scalar_lea.hbm %s1, %s150
          %s152 = sshll.u32 [#allocation2], 4
          %s153 = int_to_ptr.vmem [resolvable:$true] %s152
          %158 = dma.hbm_to_vmem [thread:$0]  %s151, 512, %s153, [#allocation3], 64, 64, 4
        $region16: #{stage2_forward.6} parent=11 // pred_fallthru
          _
        // Predicated region
        $region17: #{stage2_forward.6} parent=11 // pred_check
          %p159 = pneg %p101
        $region18: #{stage2_forward.6} parent=11 // pred_check_branch
          %161 = sbr.rel (%p159) target = $region20
        $region19: #{stage2_forward.6} parent=11 // pred_region
          %s163 = ssub.s32 16, 16
          %164 = vsyncadd [#allocation5], %s163
          %s165 = smul.addr %s20, 16
          %s166 = scalar_lea.hbm %s2, %s165
          %s168 = sshll.u32 [#allocation4], 4
          %s169 = int_to_ptr.vmem [resolvable:$true] %s168
          %171 = dma.hbm_to_vmem [thread:$0]  %s166, 16, %s169, [#allocation5]
        $region20: #{stage2_forward.6} parent=11 // pred_fallthru
          _
      $region12: #{stage2_forward.6} parent=5 // pred_fallthru
        _
      %p172 = scmp.lt.s32.totalorder %s11, 2
      // Predicated region
      $region21: #{stage2_forward.6} parent=5 // pred_check
        %p173 = pneg %p172
      $region22: #{stage2_forward.6} parent=5 // pred_check_branch
        %175 = sbr.rel (%p173) target = $region24
      $region23: #{stage2_forward.6} parent=5 // pred_region
        // Predicated region
        $region25: #{stage2_forward.6} parent=23 // pred_check
          %p176 = pneg %p43
        $region26: #{stage2_forward.6} parent=23 // pred_check_branch
          %178 = sbr.rel (%p176) target = $region28
        $region27: #{stage2_forward.6} parent=23 // pred_region
          %s179 = smul.u32 8, %s19
          %p180 = scmp.lt.s32.totalorder %s179, 15
          %s181 = scalar_select %p180, %s179, 15
          %s182 = smul.addr %s181, 4
          %s183 = scalar_lea.vmem %s0, %s182
          %s184 = smul.u32 8, %s19
        $region28: #{stage2_forward.6} parent=23 // pred_fallthru
          _
      $region24: #{stage2_forward.6} parent=5 // pred_fallthru
        _
      %p185 = scmp.le.s32.totalorder 1, %s11
      %p186 = scmp.lt.s32.totalorder %s11, 3
      %p187 = pnand %p185, %p186
      %p188 = pneg %p187
      // Predicated region
      $region29: #{stage2_forward.6} parent=5 // pred_check
        _
      $region30: #{stage2_forward.6} parent=5 // pred_check_branch
        %190 = sbr.rel (%p187) target = $region32
      $region31: #{stage2_forward.6} parent=5 // pred_region
        %s191 = ssub.s32 %s11, 1
        // Predicated region
        $region33: #{stage2_forward.6} parent=31 // pred_check
          %p192 = pneg %p75
        $region34: #{stage2_forward.6} parent=31 // pred_check_branch
          %194 = sbr.rel (%p192) target = $region36
        $region35: #{stage2_forward.6} parent=31 // pred_region
          %195 = dma.done [#allocation3], 512
        $region36: #{stage2_forward.6} parent=31 // pred_fallthru
          _
        // Predicated region
        $region37: #{stage2_forward.6} parent=31 // pred_check
          %p196 = pneg %p101
        $region38: #{stage2_forward.6} parent=31 // pred_check_branch
          %198 = sbr.rel (%p196) target = $region40
        $region39: #{stage2_forward.6} parent=31 // pred_region
          %199 = dma.done [#allocation5], 16
        $region40: #{stage2_forward.6} parent=31 // pred_fallthru
          _
        %s200 = smul.u32 8, %s21
        %p201 = scmp.lt.s32.totalorder %s200, 15
        %s202 = scalar_select %p201, %s200, 15
        %s203 = smul.addr %s202, 4
        %s204 = scalar_lea.vmem %s0, %s203
        %p205 = pneg %p49
        %p206 = pneg %p46
        %p207 = pneg %p75
        %p208 = pneg %p72
        %p209 = pneg %p101
        %p210 = pneg %p98
        %p211 = pneg %p129
        %p212 = pneg %p126
        %s213 = smul.u32 8, %s21
        %p214 = scmp.lt.s32.totalorder %s213, 15
        %s215 = scalar_select %p214, %s213, 15
        %p216 = scmp.lt.s32.totalorder %s20, 0
        %s217 = scalar_select %p216, %s20, 0
        %s218 = sadd.s32 %s217, %s215
        %s219 = smul.addr %s218, 4
        %s220 = scalar_lea.vmem %s3, %s219
        %s221 = smul.u32 8, %s21
        %p222 = scmp.lt.s32.totalorder %s221, 15
        %s223 = scalar_select %p222, %s221, 15
        %s224 = smul.addr %s223, 4
        %s225 = scalar_lea.vmem %s0, %s224
        %s226 = smul.u32 8, %s21
        %s227 = smul.u32 8, %s21
        %p228 = scmp.lt.s32.totalorder %s227, 15
        %s229 = scalar_select %p228, %s227, 15
        %p230 = scmp.lt.s32.totalorder %s20, 0
        %s231 = scalar_select %p230, %s20, 0
        %s232 = sadd.s32 %s231, %s229
        %s233 = smul.addr %s232, 4
        %s234 = scalar_lea.vmem %s3, %s233
        %s235 = smul.u32 8, %s21
        %v237 = vld [vmem:[%s225] sm:$0xf]
        %v238 = vld [vmem:[%s225 + $0x4] sm:$0xf]
        %v239 = vld [vmem:[%s225 + $0x8] sm:$0xf]
        %v240 = vld [vmem:[%s225 + $0xc] sm:$0xf]
        %v241 = vld [vmem:[%s225 + $0x10] sm:$0xf]
        %v242 = vld [vmem:[%s225 + $0x14] sm:$0xf]
        %v243 = vld [vmem:[%s225 + $0x18] sm:$0xf]
        %v244 = vld [vmem:[%s225 + $0x1c] sm:$0xf]
        %v245 = vld [vmem:[#allocation2] sm:$0xf]
        %v246 = vld [vmem:[#allocation2 + $0x4] sm:$0xf]
        %v247 = vld [vmem:[#allocation2 + $0x8] sm:$0xf]
        %v248 = vld [vmem:[#allocation2 + $0xc] sm:$0xf]
        %v249 = vld [vmem:[#allocation2 + $0x10] sm:$0xf]
        %v250 = vld [vmem:[#allocation2 + $0x14] sm:$0xf]
        %v251 = vld [vmem:[#allocation2 + $0x18] sm:$0xf]
        %v252 = vld [vmem:[#allocation2 + $0x1c] sm:$0xf]
        %v253 = vld [vmem:[#allocation4] sm:$0x1]
        %v255 = vlaneseq
        %v256 = vshrl.u32 %v255, 7
        %v257 = vsub.s32 0, %v256
        %v258 = vrot.slane %v253, %v257
        %v268 = vunpack.c.l.b16 %v237
        %v269 = vunpack.c.l.b16 %v238
        %v270 = vunpack.c.l.b16 %v239
        %v271 = vunpack.c.l.b16 %v240
        %v272 = vunpack.c.l.b16 %v241
        %v273 = vunpack.c.l.b16 %v242
        %v274 = vunpack.c.l.b16 %v243
        %v275 = vunpack.c.l.b16 %v244
        %v276 = vpack.c.b16 %v269, %v268
        %v277 = vpack.c.b16 %v271, %v270
        %v278 = vpack.c.b16 %v273, %v272
        %v279 = vpack.c.b16 %v275, %v274
        %v288 = vunpack.c.l.b16 %v245
        %v289 = vunpack.c.l.b16 %v246
        %v290 = vunpack.c.l.b16 %v247
        %v291 = vunpack.c.l.b16 %v248
        %v292 = vunpack.c.l.b16 %v249
        %v293 = vunpack.c.l.b16 %v250
        %v294 = vunpack.c.l.b16 %v251
        %v295 = vunpack.c.l.b16 %v252
        %v296 = vpack.c.b16 %v289, %v288
        %v297 = vpack.c.b16 %v291, %v290
        %v298 = vpack.c.b16 %v293, %v292
        %v299 = vpack.c.b16 %v295, %v294
        %vm304 = vcmask 523264
        %v306 = vsel %vm304, %v276, 0
        %v309 = vsel %vm304, %v277, 0
        %v312 = vsel %vm304, %v278, 0
        %v315 = vsel %vm304, %v279, 0
        %317 = vmatprep.subr.bf16.mxu0 0
        %318 = vmatpush1.bf16.msra.mxu0 0
        %319 = vmatprep.subr.bf16.mxu0 0
        %320 = vmatpush1.bf16.msra.mxu0 0
        %321 = vmatprep.subr.bf16.mxu0 0
        %322 = vmatpush1.bf16.msra.mxu0 0
        %323 = vmatprep.subr.bf16.mxu0 0
        %324 = vmatpush1.bf16.msra.mxu0 0
        %325 = vmatprep.subr.bf16.mxu0 0
        %326 = vmatpush1.bf16.msra.mxu0 %v299
        %327 = vmatprep.subr.bf16.mxu0 0
        %328 = vmatpush1.bf16.msra.mxu0 %v298
        %329 = vmatprep.subr.bf16.mxu0 0
        %330 = vmatpush1.bf16.msra.mxu0 %v297
        %331 = vmatprep.subr.bf16.mxu0 0
        %332 = vmatpush1.bf16.msra.mxu0 %v296
        %333 = vmatprep.subr.bf16.mxu0 0
        %334 = vmatpush2.bf16.msra.mxu0 0
        %335 = vmatprep.subr.bf16.mxu0 0
        %336 = vmatpush2.bf16.msra.mxu0 0
        %337 = vmatprep.subr.bf16.mxu0 0
        %338 = vmatpush2.bf16.msra.mxu0 0
        %339 = vmatprep.subr.bf16.mxu0 0
        %340 = vmatpush2.bf16.msra.mxu0 0
        %341 = vmatprep.subr.bf16.mxu0 0
        %342 = vmatpush2.bf16.msra.mxu0 0
        %343 = vmatprep.subr.bf16.mxu0 0
        %344 = vmatpush2.bf16.msra.mxu0 0
        %345 = vmatprep.subr.bf16.mxu0 0
        %346 = vmatpush2.bf16.msra.mxu0 0
        %347 = vmatprep.subr.bf16.mxu0 0
        %348 = vmatpush2.bf16.msra.mxu0 0
        %349 = vmatprep.mubr.bf16.mxu0 0
        %350 = vmatmul.mubr.bf16.gmra.mxu0 %v306
        %v351 = vpop.f32.mrf.mxu0
        %v352 = vadd.f32 %v258, %v351
        %v353 = vpop.f32.mrf.mxu0
        %v354 = vpop.f32.mrf.mxu0
        %v355 = vadd.f32 %v258, %v354
        %v356 = vpop.f32.mrf.mxu0
        %357 = vmatprep.mubr.bf16.mxu0 0
        %358 = vmatmul.mubr.bf16.gmra.mxu0 %v309
        %v359 = vpop.f32.mrf.mxu0
        %v360 = vadd.f32 %v258, %v359
        %v361 = vpop.f32.mrf.mxu0
        %v362 = vpop.f32.mrf.mxu0
        %v363 = vadd.f32 %v258, %v362
        %v364 = vpop.f32.mrf.mxu0
        %365 = vmatprep.mubr.bf16.mxu0 0
        %366 = vmatmul.mubr.bf16.gmra.mxu0 %v312
        %v367 = vpop.f32.mrf.mxu0
        %v368 = vadd.f32 %v258, %v367
        %v369 = vpop.f32.mrf.mxu0
        %v370 = vpop.f32.mrf.mxu0
        %v371 = vadd.f32 %v258, %v370
        %v372 = vpop.f32.mrf.mxu0
        %373 = vmatprep.mubr.bf16.mxu0 0
        %374 = vmatmul.mubr.bf16.gmra.mxu0 %v315
        %v375 = vpop.f32.mrf.mxu0
        %v376 = vadd.f32 %v258, %v375
        %v377 = vpop.f32.mrf.mxu0
        %v378 = vpop.f32.mrf.mxu0
        %v379 = vadd.f32 %v258, %v378
        %v380 = vpop.f32.mrf.mxu0
        %381 = vdwg.mxu0
        %v382 = vpack.c.bf16 %v355, %v352
        %v383 = vpack.c.bf16 %v363, %v360
        %v384 = vpack.c.bf16 %v371, %v368
        %v385 = vpack.c.bf16 %v379, %v376
        %v390 = vunpack.c.l.b16 %v382
        %v391 = vunpack.c.h.b16 %v382
        %v392 = vunpack.c.l.b16 %v383
        %v393 = vunpack.c.h.b16 %v383
        %v394 = vunpack.c.l.b16 %v384
        %v395 = vunpack.c.h.b16 %v384
        %v396 = vunpack.c.l.b16 %v385
        %v397 = vunpack.c.h.b16 %v385
        %v398 = vpack.c.b16 %v390, %v390
        %v399 = vpack.c.b16 %v391, %v391
        %v400 = vpack.c.b16 %v392, %v392
        %v401 = vpack.c.b16 %v393, %v393
        %v402 = vpack.c.b16 %v394, %v394
        %v403 = vpack.c.b16 %v395, %v395
        %v404 = vpack.c.b16 %v396, %v396
        %v405 = vpack.c.b16 %v397, %v397
        %414 = vst [vmem:[%s234] sm:$0xf] %v398
        %415 = vst [vmem:[%s234 + $0x4] sm:$0xf] %v399
        %416 = vst [vmem:[%s234 + $0x8] sm:$0xf] %v400
        %417 = vst [vmem:[%s234 + $0xc] sm:$0xf] %v401
        %418 = vst [vmem:[%s234 + $0x10] sm:$0xf] %v402
        %419 = vst [vmem:[%s234 + $0x14] sm:$0xf] %v403
        %420 = vst [vmem:[%s234 + $0x18] sm:$0xf] %v404
        %421 = vst [vmem:[%s234 + $0x1c] sm:$0xf] %v405
        %s422 = smul.u32 8, %s21
        %p423 = scmp.lt.s32.totalorder %s422, 15
        %s424 = scalar_select %p423, %s422, 15
        %p425 = scmp.lt.s32.totalorder %s20, 0
        %s426 = scalar_select %p425, %s20, 0
        %s427 = sadd.s32 %s426, %s424
        %s428 = smul.addr %s427, 4
        %s429 = scalar_lea.vmem %s3, %s428
        // Predicated region
        $region41: #{stage2_forward.6} parent=31 // pred_check
          %p430 = pneg %p126
        $region42: #{stage2_forward.6} parent=31 // pred_check_branch
          %432 = sbr.rel (%p430) target = $region44
        $region43: #{stage2_forward.6} parent=31 // pred_region
          %s433 = smul.u32 8, %s21
        $region44: #{stage2_forward.6} parent=31 // pred_fallthru
          _
      $region32: #{stage2_forward.6} parent=5 // pred_fallthru
        _
      %p434 = scmp.le.s32.totalorder 2, %s11
      // Predicated region
      $region45: #{stage2_forward.6} parent=5 // pred_check
        %p435 = pneg %p434
      $region46: #{stage2_forward.6} parent=5 // pred_check_branch
        %437 = sbr.rel (%p435) target = $region48
      $region47: #{stage2_forward.6} parent=5 // pred_region
        %s438 = ssub.s32 %s11, 2
        // Predicated region
        $region49: #{stage2_forward.6} parent=47 // pred_check
          %p439 = pneg %p132
        $region50: #{stage2_forward.6} parent=47 // pred_check_branch
          %441 = sbr.rel (%p439) target = $region52
        $region51: #{stage2_forward.6} parent=47 // pred_region
          %s442 = smul.u32 8, %s23
          %p443 = scmp.lt.s32.totalorder %s442, 15
          %s444 = scalar_select %p443, %s442, 15
          %p445 = scmp.lt.s32.totalorder %s22, 0
          %s446 = scalar_select %p445, %s22, 0
          %s447 = sadd.s32 %s446, %s444
          %s448 = smul.addr %s447, 4
          %s449 = scalar_lea.vmem %s3, %s448
        $region52: #{stage2_forward.6} parent=47 // pred_fallthru
          _
      $region48: #{stage2_forward.6} parent=5 // pred_fallthru
        _
    $region6: #{stage2_forward.6} parent=1 // loop_footer
      %s15 = sadd.s32 1, %s11
    $region7: #{stage2_forward.6} parent=1 // loop_footer_branch
      %10 = sbr.rel target = $region3
    $region8: #{stage2_forward.6} parent=1 // loop_exit
      _
    %450 = vsyncpa [#allocation3], 1
    %s451 = scalar_lea.sflag [#allocation3], 1
    %452 = vsyncpa %s451, 1
    %453 = vsyncpa [#allocation5], 1

// kernel: stage2_forward.7
$region0: #{stage2_forward.7}
  #allocation0 [shape = 'u32[]', space=smem, size = 0x4, offset = 0x4, fixed_abs, tag = 'smem constant byte address 0x4 - core index']
  #allocation1 [shape = 'u32[144,128]{1,0:T(1,128)}', space=vmem, size = 0x12000, scoped, tag = 'internal scratch']
  %s0 = inlined_call_operand.vmem [shape: f32[2,82,128], index: 0, kind: input, shape index: {}]
  %s1 = inlined_call_operand.vmem [shape: bf16[9,128,128], index: 1, kind: input, shape index: {}]
  %s2 = inlined_call_operand.hbm [shape: f32[1,128], index: 2, kind: input, shape index: {}]
  %s3 = inlined_call_operand.vmem [shape: f32[2,64,1], index: 3, kind: input, shape index: {}]
  %s4 = inlined_call_operand.vmem [shape: bf16[2,64,128], index: 4, kind: input, shape index: {}]
  %s5 = inlined_call_operand.vmem [shape: bf16[2,64,128], index: 5, kind: output, shape index: {}]
  %s6 = sld [smem:[#allocation0]]
  $region57: #{stage2_forward.7} parent=0
    _
  %s8 = ssub.s32 1, %s6
  %s9 = scalar_select 0, %s8, %s6
  $region1: #{stage2_forward.7} parent=0
    #allocation2 [shape = 'u8[512]{0}', space=vmem, size = 0x400, scoped, tag = 'input window, operand 2, single buffered']
    #allocation3 [shape = 's32[2]{0}', space=sflag, size = 0x8, scoped, tag = 'scoped memory for stage2_forward.7']
    %10 = vsyncpa [#allocation3], 0
    loop: start=0, step=1, limit=4
    $region2: #{stage2_forward.7} parent=1 // loop_pre_header
      _
    $region3: #{stage2_forward.7} parent=1 // loop_header
      %s12 = sphi 0, %s16
      %p13 = scmp.ge.s32.totalorder %s12, 4
      %s19 = sphi 0, %s31
      %s20 = sphi 0, %s27
      %s21 = sphi 0, %s19
      %s22 = sphi 0, %s20
      %s23 = sphi 0, %s21
      %s24 = sphi 0, %s22
      %s34 = sphi 0, %s36
      %s37 = sphi 0, %s34
      %s38 = sphi 0, %s37
      %s54 = sphi 0, %s38
      %s60 = sphi 0, %s62
      %s63 = sphi 0, %s60
      %s64 = sphi 0, %s63
      %s80 = sphi 0, %s64
      %s86 = sphi 0, %s88
      %s89 = sphi 0, %s86
      %s90 = sphi 0, %s89
      %s106 = sphi 0, %s90
      %s110 = sphi 0, %s110
      %s112 = sphi 0, %s110
      %s113 = sphi 0, %s112
      %s127 = sphi 0, %s113
      %s135 = sphi 0, %s137
      %s138 = sphi 0, %s135
      %s139 = sphi 0, %s138
      %s155 = sphi 0, %s139
      %s163 = sphi 0, %s165
      %s166 = sphi 0, %s163
      %s167 = sphi 0, %s166
      %s183 = sphi 0, %s167
    $region4: #{stage2_forward.7} parent=1 // loop_header_branch
      %15 = sbr.rel (%p13) target = $region8
    $region5: #{stage2_forward.7} parent=1 // loop_body
      %s17 = ssub.s32 %s12, 1
      %s18 = ssub.s32 %s12, 2
      %s25 = sadd.s32 1, %s20
      %p26 = scmp.ge.s32.totalorder %s25, 2
      %s27 = scalar_select %p26, 0, %s25
      %s28 = sadd.s32 1, %s19
      %s29 = scalar_select %p26, %s28, %s19
      %p30 = scmp.ge.s32.totalorder %s29, 1
      %s31 = scalar_select %p30, 0, %s29
      %s32 = ssub.s32 %s20, %s27
      %p33 = scmp.eq.s32.totalorder %s32, 0
      %s35 = sadd.s32 %s34, 1
      %s36 = scalar_select %p33, %s34, %s35
      %p39 = pneg %p33
      %p40 = scmp.eq.s32.totalorder %s12, 1
      %p41 = por %p39, %p40
      %p42 = scmp.ne.s32.totalorder %s34, %s37
      %p43 = scmp.eq.s32.totalorder %s12, 0
      %p44 = por %p42, %p43
      %p45 = scmp.ne.s32.totalorder %s34, %s37
      %p46 = scmp.eq.s32.totalorder %s17, 1
      %p47 = por %p45, %p46
      %p48 = scmp.ne.s32.totalorder %s37, %s38
      %p49 = scmp.eq.s32.totalorder %s17, 0
      %p50 = por %p48, %p49
      %p51 = scmp.ne.s32.totalorder %s37, %s38
      %p52 = scmp.eq.s32.totalorder %s18, 1
      %p53 = por %p51, %p52
      %p55 = scmp.ne.s32.totalorder %s38, %s54
      %p56 = scmp.eq.s32.totalorder %s18, 0
      %p57 = por %p55, %p56
      %s58 = ssub.s32 %s19, %s31
      %p59 = scmp.eq.s32.totalorder %s58, 0
      %s61 = sadd.s32 %s60, 1
      %s62 = scalar_select %p59, %s60, %s61
      %p65 = pneg %p59
      %p66 = scmp.eq.s32.totalorder %s12, 1
      %p67 = por %p65, %p66
      %p68 = scmp.ne.s32.totalorder %s60, %s63
      %p69 = scmp.eq.s32.totalorder %s12, 0
      %p70 = por %p68, %p69
      %p71 = scmp.ne.s32.totalorder %s60, %s63
      %p72 = scmp.eq.s32.totalorder %s17, 1
      %p73 = por %p71, %p72
      %p74 = scmp.ne.s32.totalorder %s63, %s64
      %p75 = scmp.eq.s32.totalorder %s17, 0
      %p76 = por %p74, %p75
      %p77 = scmp.ne.s32.totalorder %s63, %s64
      %p78 = scmp.eq.s32.totalorder %s18, 1
      %p79 = por %p77, %p78
      %p81 = scmp.ne.s32.totalorder %s64, %s80
      %p82 = scmp.eq.s32.totalorder %s18, 0
      %p83 = por %p81, %p82
      %s84 = ssub.s32 %s19, %s31
      %p85 = scmp.eq.s32.totalorder %s84, 0
      %s87 = sadd.s32 %s86, 1
      %s88 = scalar_select %p85, %s86, %s87
      %p91 = pneg %p85
      %p92 = scmp.eq.s32.totalorder %s12, 1
      %p93 = por %p91, %p92
      %p94 = scmp.ne.s32.totalorder %s86, %s89
      %p95 = scmp.eq.s32.totalorder %s12, 0
      %p96 = por %p94, %p95
      %p97 = scmp.ne.s32.totalorder %s86, %s89
      %p98 = scmp.eq.s32.totalorder %s17, 1
      %p99 = por %p97, %p98
      %p100 = scmp.ne.s32.totalorder %s89, %s90
      %p101 = scmp.eq.s32.totalorder %s17, 0
      %p102 = por %p100, %p101
      %p103 = scmp.ne.s32.totalorder %s89, %s90
      %p104 = scmp.eq.s32.totalorder %s18, 1
      %p105 = por %p103, %p104
      %p107 = scmp.ne.s32.totalorder %s90, %s106
      %p108 = scmp.eq.s32.totalorder %s18, 0
      %p109 = por %p107, %p108
      %s111 = sadd.s32 %s110, 1
      %p114 = scmp.eq.s32.totalorder %s12, 1
      %p115 = scmp.ne.s32.totalorder %s110, %s112
      %p116 = scmp.eq.s32.totalorder %s12, 0
      %p117 = por %p115, %p116
      %p118 = scmp.ne.s32.totalorder %s110, %s112
      %p119 = scmp.eq.s32.totalorder %s17, 1
      %p120 = por %p118, %p119
      %p121 = scmp.ne.s32.totalorder %s112, %s113
      %p122 = scmp.eq.s32.totalorder %s17, 0
      %p123 = por %p121, %p122
      %p124 = scmp.ne.s32.totalorder %s112, %s113
      %p125 = scmp.eq.s32.totalorder %s18, 1
      %p126 = por %p124, %p125
      %p128 = scmp.ne.s32.totalorder %s113, %s127
      %p129 = scmp.eq.s32.totalorder %s18, 0
      %p130 = por %p128, %p129
      %s131 = ssub.s32 %s20, %s27
      %s132 = ssub.s32 %s19, %s31
      %s133 = sor.u32 %s131, %s132
      %p134 = scmp.eq.s32.totalorder %s133, 0
      %s136 = sadd.s32 %s135, 1
      %s137 = scalar_select %p134, %s135, %s136
      %p140 = pneg %p134
      %p141 = scmp.eq.s32.totalorder %s12, 1
      %p142 = por %p140, %p141
      %p143 = scmp.ne.s32.totalorder %s135, %s138
      %p144 = scmp.eq.s32.totalorder %s12, 0
      %p145 = por %p143, %p144
      %p146 = scmp.ne.s32.totalorder %s135, %s138
      %p147 = scmp.eq.s32.totalorder %s17, 1
      %p148 = por %p146, %p147
      %p149 = scmp.ne.s32.totalorder %s138, %s139
      %p150 = scmp.eq.s32.totalorder %s17, 0
      %p151 = por %p149, %p150
      %p152 = scmp.ne.s32.totalorder %s138, %s139
      %p153 = scmp.eq.s32.totalorder %s18, 1
      %p154 = por %p152, %p153
      %p156 = scmp.ne.s32.totalorder %s139, %s155
      %p157 = scmp.eq.s32.totalorder %s18, 0
      %p158 = por %p156, %p157
      %s159 = ssub.s32 %s20, %s27
      %s160 = ssub.s32 %s19, %s31
      %s161 = sor.u32 %s159, %s160
      %p162 = scmp.eq.s32.totalorder %s161, 0
      %s164 = sadd.s32 %s163, 1
      %s165 = scalar_select %p162, %s163, %s164
      %p168 = pneg %p162
      %p169 = scmp.eq.s32.totalorder %s12, 1
      %p170 = por %p168, %p169
      %p171 = scmp.ne.s32.totalorder %s163, %s166
      %p172 = scmp.eq.s32.totalorder %s12, 0
      %p173 = por %p171, %p172
      %p174 = scmp.ne.s32.totalorder %s163, %s166
      %p175 = scmp.eq.s32.totalorder %s17, 1
      %p176 = por %p174, %p175
      %p177 = scmp.ne.s32.totalorder %s166, %s167
      %p178 = scmp.eq.s32.totalorder %s17, 0
      %p179 = por %p177, %p178
      %p180 = scmp.ne.s32.totalorder %s166, %s167
      %p181 = scmp.eq.s32.totalorder %s18, 1
      %p182 = por %p180, %p181
      %p184 = scmp.ne.s32.totalorder %s167, %s183
      %p185 = scmp.eq.s32.totalorder %s18, 0
      %p186 = por %p184, %p185
      %p187 = scmp.le.s32.totalorder 1, %s12
      %p188 = scmp.lt.s32.totalorder %s12, 3
      %p189 = pnand %p187, %p188
      %p190 = pneg %p189
      // Predicated region
      $region9: #{stage2_forward.7} parent=5 // pred_check
        _
      $region10: #{stage2_forward.7} parent=5 // pred_check_branch
        %192 = sbr.rel (%p189) target = $region12
      $region11: #{stage2_forward.7} parent=5 // pred_region
        %s193 = ssub.s32 %s12, 1
        // Predicated region
        $region13: #{stage2_forward.7} parent=11 // pred_check
          %p194 = pneg %p76
        $region14: #{stage2_forward.7} parent=11 // pred_check_branch
          %196 = sbr.rel (%p194) target = $region16
        $region15: #{stage2_forward.7} parent=11 // pred_region
          %p197 = scmp.lt.s32.totalorder %s21, 0
          %s198 = scalar_select %p197, %s21, 0
          %s199 = smul.addr %s198, 4
          %s200 = scalar_lea.vmem %s1, %s199
        $region16: #{stage2_forward.7} parent=11 // pred_fallthru
          _
        // Predicated region
        $region17: #{stage2_forward.7} parent=11 // pred_check
          %p201 = pneg %p102
        $region18: #{stage2_forward.7} parent=11 // pred_check_branch
          %203 = sbr.rel (%p201) target = $region20
        $region19: #{stage2_forward.7} parent=11 // pred_region
          %s205 = ssub.s32 16, 16
          %206 = vsyncadd [#allocation3], %s205
          %s207 = smul.addr %s21, 16
          %s208 = scalar_lea.hbm %s2, %s207
          %s210 = sshll.u32 [#allocation2], 4
          %s211 = int_to_ptr.vmem [resolvable:$true] %s210
          %213 = dma.hbm_to_vmem [thread:$0]  %s208, 16, %s211, [#allocation3]
        $region20: #{stage2_forward.7} parent=11 // pred_fallthru
          _
        // Predicated region
        $region21: #{stage2_forward.7} parent=11 // pred_check
          %p214 = pneg %p123
        $region22: #{stage2_forward.7} parent=11 // pred_check_branch
          %216 = sbr.rel (%p214) target = $region24
        $region23: #{stage2_forward.7} parent=11 // pred_region
          _
        $region24: #{stage2_forward.7} parent=11 // pred_fallthru
          _
      $region12: #{stage2_forward.7} parent=5 // pred_fallthru
        _
      %p217 = scmp.lt.s32.totalorder %s12, 2
      // Predicated region
      $region25: #{stage2_forward.7} parent=5 // pred_check
        %p218 = pneg %p217
      $region26: #{stage2_forward.7} parent=5 // pred_check_branch
        %220 = sbr.rel (%p218) target = $region28
      $region27: #{stage2_forward.7} parent=5 // pred_region
        // Predicated region
        $region29: #{stage2_forward.7} parent=27 // pred_check
          %p221 = pneg %p44
        $region30: #{stage2_forward.7} parent=27 // pred_check_branch
          %223 = sbr.rel (%p221) target = $region32
        $region31: #{stage2_forward.7} parent=27 // pred_region
          %p224 = scmp.lt.s32.totalorder %s20, 1
          %s225 = scalar_select %p224, %s20, 1
          %s226 = smul.addr %s225, 11
          %s227 = smul.addr %s226, 8
          %s228 = scalar_lea.vmem %s0, %s227
        $region32: #{stage2_forward.7} parent=27 // pred_fallthru
          _
        // Predicated region
        $region33: #{stage2_forward.7} parent=27 // pred_check
          %p229 = pneg %p145
        $region34: #{stage2_forward.7} parent=27 // pred_check_branch
          %231 = sbr.rel (%p229) target = $region36
        $region35: #{stage2_forward.7} parent=27 // pred_region
          %p232 = scmp.lt.s32.totalorder %s20, 1
          %s233 = scalar_select %p232, %s20, 1
          %p234 = scmp.lt.s32.totalorder %s19, 0
          %s235 = scalar_select %p234, %s19, 0
          %s236 = smul.addr %s233, 8
          %s237 = sadd.s32 %s235, %s236
          %s238 = smul.addr %s237, 4
          %s239 = scalar_lea.vmem %s4, %s238
        $region36: #{stage2_forward.7} parent=27 // pred_fallthru
          _
      $region28: #{stage2_forward.7} parent=5 // pred_fallthru
        _
      %p240 = scmp.le.s32.totalorder 1, %s12
      %p241 = scmp.lt.s32.totalorder %s12, 3
      %p242 = pnand %p240, %p241
      %p243 = pneg %p242
      // Predicated region
      $region37: #{stage2_forward.7} parent=5 // pred_check
        _
      $region38: #{stage2_forward.7} parent=5 // pred_check_branch
        %245 = sbr.rel (%p242) target = $region40
      $region39: #{stage2_forward.7} parent=5 // pred_region
        %s246 = ssub.s32 %s12, 1
        // Predicated region
        $region41: #{stage2_forward.7} parent=39 // pred_check
          %p247 = pneg %p102
        $region42: #{stage2_forward.7} parent=39 // pred_check_branch
          %249 = sbr.rel (%p247) target = $region44
        $region43: #{stage2_forward.7} parent=39 // pred_region
          %250 = dma.done [#allocation3], 16
        $region44: #{stage2_forward.7} parent=39 // pred_fallthru
          _
        %p251 = scmp.lt.s32.totalorder %s22, 1
        %s252 = scalar_select %p251, %s22, 1
        %s253 = smul.addr %s252, 11
        %s254 = smul.addr %s253, 8
        %s255 = scalar_lea.vmem %s0, %s254
        %p256 = pneg %p50
        %p257 = pneg %p47
        %p258 = scmp.lt.s32.totalorder %s21, 0
        %s259 = scalar_select %p258, %s21, 0
        %s260 = smul.addr %s259, 4
        %s261 = scalar_lea.vmem %s1, %s260
        %p262 = pneg %p76
        %p263 = pneg %p73
        %p264 = pneg %p102
        %p265 = pneg %p99
        %p266 = pneg %p123
        %p267 = pneg %p120
        %p268 = scmp.lt.s32.totalorder %s22, 1
        %s269 = scalar_select %p268, %s22, 1
        %p270 = scmp.lt.s32.totalorder %s21, 0
        %s271 = scalar_select %p270, %s21, 0
        %s272 = smul.addr %s269, 8
        %s273 = sadd.s32 %s271, %s272
        %s274 = smul.addr %s273, 4
        %s275 = scalar_lea.vmem %s4, %s274
        %p276 = pneg %p151
        %p277 = pneg %p148
        %p278 = pneg %p179
        %p279 = pneg %p176
        %p280 = scmp.lt.s32.totalorder %s22, 1
        %s281 = scalar_select %p280, %s22, 1
        %p282 = scmp.lt.s32.totalorder %s21, 0
        %s283 = scalar_select %p282, %s21, 0
        %s284 = smul.addr %s281, 8
        %s285 = sadd.s32 %s283, %s284
        %s286 = smul.addr %s285, 4
        %s287 = scalar_lea.vmem %s5, %s286
        %p288 = scmp.lt.s32.totalorder %s22, 1
        %s289 = scalar_select %p288, %s22, 1
        %s290 = smul.addr %s289, 11
        %s291 = smul.addr %s290, 8
        %s292 = scalar_lea.vmem %s0, %s291
        %p293 = scmp.lt.s32.totalorder %s21, 0
        %s294 = scalar_select %p293, %s21, 0
        %s295 = smul.addr %s294, 4
        %s296 = scalar_lea.vmem %s1, %s295
        %p297 = scmp.lt.s32.totalorder %s22, 1
        %s298 = scalar_select %p297, %s22, 1
        %p299 = scmp.lt.s32.totalorder %s21, 0
        %s300 = scalar_select %p299, %s21, 0
        %s301 = smul.addr %s298, 8
        %s302 = sadd.s32 %s300, %s301
        %s303 = smul.addr %s302, 4
        %s304 = scalar_lea.vmem %s4, %s303
        %p305 = scmp.lt.s32.totalorder %s22, 1
        %s306 = scalar_select %p305, %s22, 1
        %p307 = scmp.lt.s32.totalorder %s21, 0
        %s308 = scalar_select %p307, %s21, 0
        %s309 = smul.addr %s306, 8
        %s310 = sadd.s32 %s308, %s309
        %s311 = smul.addr %s310, 4
        %s312 = scalar_lea.vmem %s5, %s311
        %v314 = vld [vmem:[%s3] sm:$0xff]
        %v315 = vld [vmem:[%s3 + $0x8] sm:$0xff]
        %v316 = vld [vmem:[%s3 + $0x10] sm:$0xff]
        %v317 = vld [vmem:[%s3 + $0x18] sm:$0xff]
        %v318 = vld [vmem:[%s3 + $0x20] sm:$0xff]
        %v319 = vld [vmem:[%s3 + $0x28] sm:$0xff]
        %v320 = vld [vmem:[%s3 + $0x30] sm:$0xff]
        %v321 = vld [vmem:[%s3 + $0x38] sm:$0xff]
        %s322 = scalar_lea.vmem %s3, 64
        %v323 = vld [vmem:[%s322] sm:$0xff]
        %v324 = vld [vmem:[%s322 + $0x8] sm:$0xff]
        %v325 = vld [vmem:[%s322 + $0x10] sm:$0xff]
        %v326 = vld [vmem:[%s322 + $0x18] sm:$0xff]
        %v327 = vld [vmem:[%s322 + $0x20] sm:$0xff]
        %v328 = vld [vmem:[%s322 + $0x28] sm:$0xff]
        %v329 = vld [vmem:[%s322 + $0x30] sm:$0xff]
        %v330 = vld [vmem:[%s322 + $0x38] sm:$0xff]
        %v331 = vld [vmem:[%s292] sm:$0xff]
        %v332 = vld [vmem:[%s292 + $0x8] sm:$0xff]
        %v333 = vld [vmem:[%s292 + $0x10] sm:$0xff]
        %v334 = vld [vmem:[%s292 + $0x18] sm:$0xff]
        %v335 = vld [vmem:[%s292 + $0x20] sm:$0xff]
        %v336 = vld [vmem:[%s292 + $0x28] sm:$0xff]
        %v337 = vld [vmem:[%s292 + $0x30] sm:$0xff]
        %v338 = vld [vmem:[%s292 + $0x38] sm:$0xff]
        %v339 = vpack.c.bf16 %v332, %v331
        %v340 = vpack.c.bf16 %v334, %v333
        %v341 = vpack.c.bf16 %v336, %v335
        %v342 = vpack.c.bf16 %v338, %v337
        %v343 = vld [vmem:[%s296] sm:$0xf]
        %v344 = vld [vmem:[%s296 + $0x4] sm:$0xf]
        %v345 = vld [vmem:[%s296 + $0x8] sm:$0xf]
        %v346 = vld [vmem:[%s296 + $0xc] sm:$0xf]
        %v347 = vld [vmem:[%s296 + $0x10] sm:$0xf]
        %v348 = vld [vmem:[%s296 + $0x14] sm:$0xf]
        %v349 = vld [vmem:[%s296 + $0x18] sm:$0xf]
        %v350 = vld [vmem:[%s296 + $0x1c] sm:$0xf]
        %v351 = vld [vmem:[%s296 + $0x20] sm:$0xf]
        %v352 = vld [vmem:[%s296 + $0x24] sm:$0xf]
        %v353 = vld [vmem:[%s296 + $0x28] sm:$0xf]
        %v354 = vld [vmem:[%s296 + $0x2c] sm:$0xf]
        %v355 = vld [vmem:[%s296 + $0x30] sm:$0xf]
        %v356 = vld [vmem:[%s296 + $0x34] sm:$0xf]
        %v357 = vld [vmem:[%s296 + $0x38] sm:$0xf]
        %v358 = vld [vmem:[%s296 + $0x3c] sm:$0xf]
        %v375 = vunpack.c.l.b16 %v343
        %v376 = vunpack.c.l.b16 %v344
        %v377 = vunpack.c.l.b16 %v345
        %v378 = vunpack.c.l.b16 %v346
        %v379 = vunpack.c.l.b16 %v347
        %v380 = vunpack.c.l.b16 %v348
        %v381 = vunpack.c.l.b16 %v349
        %v382 = vunpack.c.l.b16 %v350
        %v383 = vunpack.c.l.b16 %v351
        %v384 = vunpack.c.l.b16 %v352
        %v385 = vunpack.c.l.b16 %v353
        %v386 = vunpack.c.l.b16 %v354
        %v387 = vunpack.c.l.b16 %v355
        %v388 = vunpack.c.l.b16 %v356
        %v389 = vunpack.c.l.b16 %v357
        %v390 = vunpack.c.l.b16 %v358
        %v391 = vpack.c.b16 %v376, %v375
        %v392 = vpack.c.b16 %v378, %v377
        %v393 = vpack.c.b16 %v380, %v379
        %v394 = vpack.c.b16 %v382, %v381
        %v395 = vpack.c.b16 %v384, %v383
        %v396 = vpack.c.b16 %v386, %v385
        %v397 = vpack.c.b16 %v388, %v387
        %v398 = vpack.c.b16 %v390, %v389
        %407 = vmatprep.subr.bf16.mxu0 0
        %408 = vmatpush1.bf16.msra.mxu0 %v398
        %409 = vmatprep.subr.bf16.mxu0 0
        %410 = vmatpush1.bf16.msra.mxu0 %v397
        %411 = vmatprep.subr.bf16.mxu0 0
        %412 = vmatpush1.bf16.msra.mxu0 %v396
        %413 = vmatprep.subr.bf16.mxu0 0
        %414 = vmatpush1.bf16.msra.mxu0 %v395
        %415 = vmatprep.subr.bf16.mxu0 0
        %416 = vmatpush1.bf16.msra.mxu0 %v394
        %417 = vmatprep.subr.bf16.mxu0 0
        %418 = vmatpush1.bf16.msra.mxu0 %v393
        %419 = vmatprep.subr.bf16.mxu0 0
        %420 = vmatpush1.bf16.msra.mxu0 %v392
        %421 = vmatprep.subr.bf16.mxu0 0
        %422 = vmatpush1.bf16.msra.mxu0 %v391
        %423 = vmatprep.subr.bf16.mxu0 0
        %424 = vmatpush2.bf16.msra.mxu0 0
        %425 = vmatprep.subr.bf16.mxu0 0
        %426 = vmatpush2.bf16.msra.mxu0 0
        %427 = vmatprep.subr.bf16.mxu0 0
        %428 = vmatpush2.bf16.msra.mxu0 0
        %429 = vmatprep.subr.bf16.mxu0 0
        %430 = vmatpush2.bf16.msra.mxu0 0
        %431 = vmatprep.subr.bf16.mxu0 0
        %432 = vmatpush2.bf16.msra.mxu0 0
        %433 = vmatprep.subr.bf16.mxu0 0
        %434 = vmatpush2.bf16.msra.mxu0 0
        %435 = vmatprep.subr.bf16.mxu0 0
        %436 = vmatpush2.bf16.msra.mxu0 0
        %437 = vmatprep.subr.bf16.mxu0 0
        %438 = vmatpush2.bf16.msra.mxu0 0
        %439 = vmatprep.mubr.bf16.mxu0 0
        %440 = vmatmul.mubr.bf16.gmra.mxu0 %v339
        %v441 = vpop.f32.mrf.mxu0
        %v442 = vadd.f32 0.0, %v441
        %v443 = vpop.f32.mrf.mxu0
        %v444 = vpop.f32.mrf.mxu0
        %v445 = vadd.f32 0.0, %v444
        %v446 = vpop.f32.mrf.mxu0
        %447 = vmatprep.mubr.bf16.mxu0 0
        %448 = vmatmul.mubr.bf16.gmra.mxu0 %v340
        %v449 = vpop.f32.mrf.mxu0
        %v450 = vadd.f32 0.0, %v449
        %v451 = vpop.f32.mrf.mxu0
        %v452 = vpop.f32.mrf.mxu0
        %v453 = vadd.f32 0.0, %v452
        %v454 = vpop.f32.mrf.mxu0
        %455 = vmatprep.mubr.bf16.mxu0 0
        %456 = vmatmul.mubr.bf16.gmra.mxu0 %v341
        %v457 = vpop.f32.mrf.mxu0
        %v458 = vadd.f32 0.0, %v457
        %v459 = vpop.f32.mrf.mxu0
        %v460 = vpop.f32.mrf.mxu0
        %v461 = vadd.f32 0.0, %v460
        %v462 = vpop.f32.mrf.mxu0
        %463 = vmatprep.mubr.bf16.mxu0 0
        %464 = vmatmul.mubr.bf16.gmra.mxu0 %v342
        %v465 = vpop.f32.mrf.mxu0
        %v466 = vadd.f32 0.0, %v465
        %v467 = vpop.f32.mrf.mxu0
        %v468 = vpop.f32.mrf.mxu0
        %v469 = vadd.f32 0.0, %v468
        %v470 = vpop.f32.mrf.mxu0
        %471 = vdwg.mxu0
        %473 = vset.pattern.permute.xlu0 0
        %474 = vperm.xlu0 %473, %v314
        %v475 = vpop.permute.xlu0 %474
        %478 = vset.pattern.permute.xlu0 0
        %479 = vperm.xlu0 %478, %v315
        %v480 = vpop.permute.xlu0 %479
        %483 = vset.pattern.permute.xlu0 0
        %484 = vperm.xlu0 %483, %v316
        %v485 = vpop.permute.xlu0 %484
        %488 = vset.pattern.permute.xlu0 0
        %489 = vperm.xlu0 %488, %v317
        %v490 = vpop.permute.xlu0 %489
        %493 = vset.pattern.permute.xlu0 0
        %494 = vperm.xlu0 %493, %v318
        %v495 = vpop.permute.xlu0 %494
        %498 = vset.pattern.permute.xlu0 0
        %499 = vperm.xlu0 %498, %v319
        %v500 = vpop.permute.xlu0 %499
        %503 = vset.pattern.permute.xlu0 0
        %504 = vperm.xlu0 %503, %v320
        %v505 = vpop.permute.xlu0 %504
        %508 = vset.pattern.permute.xlu0 0
        %509 = vperm.xlu0 %508, %v321
        %v510 = vpop.permute.xlu0 %509
        %v512 = vmul.f32 %v442, %v475
        %v513 = vmul.f32 %v445, %v480
        %v514 = vmul.f32 %v450, %v485
        %v515 = vmul.f32 %v453, %v490
        %v516 = vmul.f32 %v458, %v495
        %v517 = vmul.f32 %v461, %v500
        %v518 = vmul.f32 %v466, %v505
        %v519 = vmul.f32 %v469, %v510
        %v520 = vadd.f32 %v512, 0.0
        %v521 = vadd.f32 %v513, 0.0
        %v522 = vadd.f32 %v514, 0.0
        %v523 = vadd.f32 %v515, 0.0
        %v524 = vadd.f32 %v516, 0.0
        %v525 = vadd.f32 %v517, 0.0
        %v526 = vadd.f32 %v518, 0.0
        %v527 = vadd.f32 %v519, 0.0
        %v528 = vld [vmem:[%s292 + $0x1] sm:$0xff]
        %v529 = vld [vmem:[%s292 + $0x9] sm:$0xff]
        %v530 = vld [vmem:[%s292 + $0x11] sm:$0xff]
        %v531 = vld [vmem:[%s292 + $0x19] sm:$0xff]
        %v532 = vld [vmem:[%s292 + $0x21] sm:$0xff]
        %v533 = vld [vmem:[%s292 + $0x29] sm:$0xff]
        %v534 = vld [vmem:[%s292 + $0x31] sm:$0xff]
        %v535 = vld [vmem:[%s292 + $0x39] sm:$0xff]
        %v536 = vpack.c.bf16 %v529, %v528
        %v537 = vpack.c.bf16 %v531, %v530
        %v538 = vpack.c.bf16 %v533, %v532
        %v539 = vpack.c.bf16 %v535, %v534
        %s540 = scalar_lea.vmem %s296, 64
        %v541 = vld [vmem:[%s540] sm:$0xf]
        %v542 = vld [vmem:[%s540 + $0x4] sm:$0xf]
        %v543 = vld [vmem:[%s540 + $0x8] sm:$0xf]
        %v544 = vld [vmem:[%s540 + $0xc] sm:$0xf]
        %v545 = vld [vmem:[%s540 + $0x10] sm:$0xf]
        %v546 = vld [vmem:[%s540 + $0x14] sm:$0xf]
        %v547 = vld [vmem:[%s540 + $0x18] sm:$0xf]
        %v548 = vld [vmem:[%s540 + $0x1c] sm:$0xf]
        %v549 = vld [vmem:[%s540 + $0x20] sm:$0xf]
        %v550 = vld [vmem:[%s540 + $0x24] sm:$0xf]
        %v551 = vld [vmem:[%s540 + $0x28] sm:$0xf]
        %v552 = vld [vmem:[%s540 + $0x2c] sm:$0xf]
        %v553 = vld [vmem:[%s540 + $0x30] sm:$0xf]
        %v554 = vld [vmem:[%s540 + $0x34] sm:$0xf]
        %v555 = vld [vmem:[%s540 + $0x38] sm:$0xf]
        %v556 = vld [vmem:[%s540 + $0x3c] sm:$0xf]
        %v573 = vunpack.c.l.b16 %v541
        %v574 = vunpack.c.l.b16 %v542
        %v575 = vunpack.c.l.b16 %v543
        %v576 = vunpack.c.l.b16 %v544
        %v577 = vunpack.c.l.b16 %v545
        %v578 = vunpack.c.l.b16 %v546
        %v579 = vunpack.c.l.b16 %v547
        %v580 = vunpack.c.l.b16 %v548
        %v581 = vunpack.c.l.b16 %v549
        %v582 = vunpack.c.l.b16 %v550
        %v583 = vunpack.c.l.b16 %v551
        %v584 = vunpack.c.l.b16 %v552
        %v585 = vunpack.c.l.b16 %v553
        %v586 = vunpack.c.l.b16 %v554
        %v587 = vunpack.c.l.b16 %v555
        %v588 = vunpack.c.l.b16 %v556
        %v589 = vpack.c.b16 %v574, %v573
        %v590 = vpack.c.b16 %v576, %v575
        %v591 = vpack.c.b16 %v578, %v577
        %v592 = vpack.c.b16 %v580, %v579
        %v593 = vpack.c.b16 %v582, %v581
        %v594 = vpack.c.b16 %v584, %v583
        %v595 = vpack.c.b16 %v586, %v585
        %v596 = vpack.c.b16 %v588, %v587
        %605 = vmatprep.subr.bf16.mxu0 0
        %606 = vmatpush1.bf16.msra.mxu0 %v596
        %607 = vmatprep.subr.bf16.mxu0 0
        %608 = vmatpush1.bf16.msra.mxu0 %v595
        %609 = vmatprep.subr.bf16.mxu0 0
        %610 = vmatpush1.bf16.msra.mxu0 %v594
        %611 = vmatprep.subr.bf16.mxu0 0
        %612 = vmatpush1.bf16.msra.mxu0 %v593
        %613 = vmatprep.subr.bf16.mxu0 0
        %614 = vmatpush1.bf16.msra.mxu0 %v592
        %615 = vmatprep.subr.bf16.mxu0 0
        %616 = vmatpush1.bf16.msra.mxu0 %v591
        %617 = vmatprep.subr.bf16.mxu0 0
        %618 = vmatpush1.bf16.msra.mxu0 %v590
        %619 = vmatprep.subr.bf16.mxu0 0
        %620 = vmatpush1.bf16.msra.mxu0 %v589
        %621 = vmatprep.subr.bf16.mxu0 0
        %622 = vmatpush2.bf16.msra.mxu0 0
        %623 = vmatprep.subr.bf16.mxu0 0
        %624 = vmatpush2.bf16.msra.mxu0 0
        %625 = vmatprep.subr.bf16.mxu0 0
        %626 = vmatpush2.bf16.msra.mxu0 0
        %627 = vmatprep.subr.bf16.mxu0 0
        %628 = vmatpush2.bf16.msra.mxu0 0
        %629 = vmatprep.subr.bf16.mxu0 0
        %630 = vmatpush2.bf16.msra.mxu0 0
        %631 = vmatprep.subr.bf16.mxu0 0
        %632 = vmatpush2.bf16.msra.mxu0 0
        %633 = vmatprep.subr.bf16.mxu0 0
        %634 = vmatpush2.bf16.msra.mxu0 0
        %635 = vmatprep.subr.bf16.mxu0 0
        %636 = vmatpush2.bf16.msra.mxu0 0
        %637 = vmatprep.mubr.bf16.mxu0 0
        %638 = vmatmul.mubr.bf16.gmra.mxu0 %v536
        %v639 = vpop.f32.mrf.mxu0
        %v640 = vadd.f32 0.0, %v639
        %v641 = vpop.f32.mrf.mxu0
        %v642 = vpop.f32.mrf.mxu0
        %v643 = vadd.f32 0.0, %v642
        %v644 = vpop.f32.mrf.mxu0
        %645 = vmatprep.mubr.bf16.mxu0 0
        %646 = vmatmul.mubr.bf16.gmra.mxu0 %v537
        %v647 = vpop.f32.mrf.mxu0
        %v648 = vadd.f32 0.0, %v647
        %v649 = vpop.f32.mrf.mxu0
        %v650 = vpop.f32.mrf.mxu0
        %v651 = vadd.f32 0.0, %v650
        %v652 = vpop.f32.mrf.mxu0
        %653 = vmatprep.mubr.bf16.mxu0 0
        %654 = vmatmul.mubr.bf16.gmra.mxu0 %v538
        %v655 = vpop.f32.mrf.mxu0
        %v656 = vadd.f32 0.0, %v655
        %v657 = vpop.f32.mrf.mxu0
        %v658 = vpop.f32.mrf.mxu0
        %v659 = vadd.f32 0.0, %v658
        %v660 = vpop.f32.mrf.mxu0
        %661 = vmatprep.mubr.bf16.mxu0 0
        %662 = vmatmul.mubr.bf16.gmra.mxu0 %v539
        %v663 = vpop.f32.mrf.mxu0
        %v664 = vadd.f32 0.0, %v663
        %v665 = vpop.f32.mrf.mxu0
        %v666 = vpop.f32.mrf.mxu0
        %v667 = vadd.f32 0.0, %v666
        %v668 = vpop.f32.mrf.mxu0
        %669 = vdwg.mxu0
        %v670 = vadd.f32 %v520, %v640
        %v671 = vadd.f32 %v521, %v643
        %v672 = vadd.f32 %v522, %v648
        %v673 = vadd.f32 %v523, %v651
        %v674 = vadd.f32 %v524, %v656
        %v675 = vadd.f32 %v525, %v659
        %v676 = vadd.f32 %v526, %v664
        %v677 = vadd.f32 %v527, %v667
        %v678 = vld [vmem:[%s292 + $0x2] sm:$0xff]
        %v679 = vld [vmem:[%s292 + $0xa] sm:$0xff]
        %v680 = vld [vmem:[%s292 + $0x12] sm:$0xff]
        %v681 = vld [vmem:[%s292 + $0x1a] sm:$0xff]
        %v682 = vld [vmem:[%s292 + $0x22] sm:$0xff]
        %v683 = vld [vmem:[%s292 + $0x2a] sm:$0xff]
        %v684 = vld [vmem:[%s292 + $0x32] sm:$0xff]
        %v685 = vld [vmem:[%s292 + $0x3a] sm:$0xff]
        %v686 = vpack.c.bf16 %v679, %v678
        %v687 = vpack.c.bf16 %v681, %v680
        %v688 = vpack.c.bf16 %v683, %v682
        %v689 = vpack.c.bf16 %v685, %v684
        %s690 = scalar_lea.vmem %s296, 128
        %v691 = vld [vmem:[%s690] sm:$0xf]
        %v692 = vld [vmem:[%s690 + $0x4] sm:$0xf]
        %v693 = vld [vmem:[%s690 + $0x8] sm:$0xf]
        %v694 = vld [vmem:[%s690 + $0xc] sm:$0xf]
        %v695 = vld [vmem:[%s690 + $0x10] sm:$0xf]
        %v696 = vld [vmem:[%s690 + $0x14] sm:$0xf]
        %v697 = vld [vmem:[%s690 + $0x18] sm:$0xf]
        %v698 = vld [vmem:[%s690 + $0x1c] sm:$0xf]
        %v699 = vld [vmem:[%s690 + $0x20] sm:$0xf]
        %v700 = vld [vmem:[%s690 + $0x24] sm:$0xf]
        %v701 = vld [vmem:[%s690 + $0x28] sm:$0xf]
        %v702 = vld [vmem:[%s690 + $0x2c] sm:$0xf]
        %v703 = vld [vmem:[%s690 + $0x30] sm:$0xf]
        %v704 = vld [vmem:[%s690 + $0x34] sm:$0xf]
        %v705 = vld [vmem:[%s690 + $0x38] sm:$0xf]
        %v706 = vld [vmem:[%s690 + $0x3c] sm:$0xf]
        %v723 = vunpack.c.l.b16 %v691
        %v724 = vunpack.c.l.b16 %v692
        %v725 = vunpack.c.l.b16 %v693
        %v726 = vunpack.c.l.b16 %v694
        %v727 = vunpack.c.l.b16 %v695
        %v728 = vunpack.c.l.b16 %v696
        %v729 = vunpack.c.l.b16 %v697
        %v730 = vunpack.c.l.b16 %v698
        %v731 = vunpack.c.l.b16 %v699
        %v732 = vunpack.c.l.b16 %v700
        %v733 = vunpack.c.l.b16 %v701
        %v734 = vunpack.c.l.b16 %v702
        %v735 = vunpack.c.l.b16 %v703
        %v736 = vunpack.c.l.b16 %v704
        %v737 = vunpack.c.l.b16 %v705
        %v738 = vunpack.c.l.b16 %v706
        %v739 = vpack.c.b16 %v724, %v723
        %v740 = vpack.c.b16 %v726, %v725
        %v741 = vpack.c.b16 %v728, %v727
        %v742 = vpack.c.b16 %v730, %v729
        %v743 = vpack.c.b16 %v732, %v731
        %v744 = vpack.c.b16 %v734, %v733
        %v745 = vpack.c.b16 %v736, %v735
        %v746 = vpack.c.b16 %v738, %v737
        %755 = vmatprep.subr.bf16.mxu0 0
        %756 = vmatpush1.bf16.msra.mxu0 %v746
        %757 = vmatprep.subr.bf16.mxu0 0
        %758 = vmatpush1.bf16.msra.mxu0 %v745
        %759 = vmatprep.subr.bf16.mxu0 0
        %760 = vmatpush1.bf16.msra.mxu0 %v744
        %761 = vmatprep.subr.bf16.mxu0 0
        %762 = vmatpush1.bf16.msra.mxu0 %v743
        %763 = vmatprep.subr.bf16.mxu0 0
        %764 = vmatpush1.bf16.msra.mxu0 %v742
        %765 = vmatprep.subr.bf16.mxu0 0
        %766 = vmatpush1.bf16.msra.mxu0 %v741
        %767 = vmatprep.subr.bf16.mxu0 0
        %768 = vmatpush1.bf16.msra.mxu0 %v740
        %769 = vmatprep.subr.bf16.mxu0 0
        %770 = vmatpush1.bf16.msra.mxu0 %v739
        %771 = vmatprep.subr.bf16.mxu0 0
        %772 = vmatpush2.bf16.msra.mxu0 0
        %773 = vmatprep.subr.bf16.mxu0 0
        %774 = vmatpush2.bf16.msra.mxu0 0
        %775 = vmatprep.subr.bf16.mxu0 0
        %776 = vmatpush2.bf16.msra.mxu0 0
        %777 = vmatprep.subr.bf16.mxu0 0
        %778 = vmatpush2.bf16.msra.mxu0 0
        %779 = vmatprep.subr.bf16.mxu0 0
        %780 = vmatpush2.bf16.msra.mxu0 0
        %781 = vmatprep.subr.bf16.mxu0 0
        %782 = vmatpush2.bf16.msra.mxu0 0
        %783 = vmatprep.subr.bf16.mxu0 0
        %784 = vmatpush2.bf16.msra.mxu0 0
        %785 = vmatprep.subr.bf16.mxu0 0
        %786 = vmatpush2.bf16.msra.mxu0 0
        %787 = vmatprep.mubr.bf16.mxu0 0
        %788 = vmatmul.mubr.bf16.gmra.mxu0 %v686
        %v789 = vpop.f32.mrf.mxu0
        %v790 = vadd.f32 0.0, %v789
        %v791 = vpop.f32.mrf.mxu0
        %v792 = vpop.f32.mrf.mxu0
        %v793 = vadd.f32 0.0, %v792
        %v794 = vpop.f32.mrf.mxu0
        %795 = vmatprep.mubr.bf16.mxu0 0
        %796 = vmatmul.mubr.bf16.gmra.mxu0 %v687
        %v797 = vpop.f32.mrf.mxu0
        %v798 = vadd.f32 0.0, %v797
        %v799 = vpop.f32.mrf.mxu0
        %v800 = vpop.f32.mrf.mxu0
        %v801 = vadd.f32 0.0, %v800
        %v802 = vpop.f32.mrf.mxu0
        %803 = vmatprep.mubr.bf16.mxu0 0
        %804 = vmatmul.mubr.bf16.gmra.mxu0 %v688
        %v805 = vpop.f32.mrf.mxu0
        %v806 = vadd.f32 0.0, %v805
        %v807 = vpop.f32.mrf.mxu0
        %v808 = vpop.f32.mrf.mxu0
        %v809 = vadd.f32 0.0, %v808
        %v810 = vpop.f32.mrf.mxu0
        %811 = vmatprep.mubr.bf16.mxu0 0
        %812 = vmatmul.mubr.bf16.gmra.mxu0 %v689
        %v813 = vpop.f32.mrf.mxu0
        %v814 = vadd.f32 0.0, %v813
        %v815 = vpop.f32.mrf.mxu0
        %v816 = vpop.f32.mrf.mxu0
        %v817 = vadd.f32 0.0, %v816
        %v818 = vpop.f32.mrf.mxu0
        %819 = vdwg.mxu0
        %821 = vset.pattern.permute.xlu0 0
        %822 = vperm.xlu0 %821, %v323
        %v823 = vpop.permute.xlu0 %822
        %826 = vset.pattern.permute.xlu0 0
        %827 = vperm.xlu0 %826, %v324
        %v828 = vpop.permute.xlu0 %827
        %831 = vset.pattern.permute.xlu0 0
        %832 = vperm.xlu0 %831, %v325
        %v833 = vpop.permute.xlu0 %832
        %836 = vset.pattern.permute.xlu0 0
        %837 = vperm.xlu0 %836, %v326
        %v838 = vpop.permute.xlu0 %837
        %841 = vset.pattern.permute.xlu0 0
        %842 = vperm.xlu0 %841, %v327
        %v843 = vpop.permute.xlu0 %842
        %846 = vset.pattern.permute.xlu0 0
        %847 = vperm.xlu0 %846, %v328
        %v848 = vpop.permute.xlu0 %847
        %851 = vset.pattern.permute.xlu0 0
        %852 = vperm.xlu0 %851, %v329
        %v853 = vpop.permute.xlu0 %852
        %856 = vset.pattern.permute.xlu0 0
        %857 = vperm.xlu0 %856, %v330
        %v858 = vpop.permute.xlu0 %857
        %v860 = vmul.f32 %v790, %v823
        %v861 = vmul.f32 %v793, %v828
        %v862 = vmul.f32 %v798, %v833
        %v863 = vmul.f32 %v801, %v838
        %v864 = vmul.f32 %v806, %v843
        %v865 = vmul.f32 %v809, %v848
        %v866 = vmul.f32 %v814, %v853
        %v867 = vmul.f32 %v817, %v858
        %v868 = vadd.f32 %v670, %v860
        %v869 = vadd.f32 %v671, %v861
        %v870 = vadd.f32 %v672, %v862
        %v871 = vadd.f32 %v673, %v863
        %v872 = vadd.f32 %v674, %v864
        %v873 = vadd.f32 %v675, %v865
        %v874 = vadd.f32 %v676, %v866
        %v875 = vadd.f32 %v677, %v867
        %v876 = vld [vmem:[%s292 + $0x8] sm:$0xff]
        %v877 = vld [vmem:[%s292 + $0x10] sm:$0xff]
        %v878 = vld [vmem:[%s292 + $0x18] sm:$0xff]
        %v879 = vld [vmem:[%s292 + $0x20] sm:$0xff]
        %v880 = vld [vmem:[%s292 + $0x28] sm:$0xff]
        %v881 = vld [vmem:[%s292 + $0x30] sm:$0xff]
        %v882 = vld [vmem:[%s292 + $0x38] sm:$0xff]
        %v883 = vld [vmem:[%s292 + $0x40] sm:$0xff]
        %v884 = vpack.c.bf16 %v877, %v876
        %v885 = vpack.c.bf16 %v879, %v878
        %v886 = vpack.c.bf16 %v881, %v880
        %v887 = vpack.c.bf16 %v883, %v882
        %s888 = scalar_lea.vmem %s296, 192
        %v889 = vld [vmem:[%s888] sm:$0xf]
        %v890 = vld [vmem:[%s888 + $0x4] sm:$0xf]
        %v891 = vld [vmem:[%s888 + $0x8] sm:$0xf]
        %v892 = vld [vmem:[%s888 + $0xc] sm:$0xf]
        %v893 = vld [vmem:[%s888 + $0x10] sm:$0xf]
        %v894 = vld [vmem:[%s888 + $0x14] sm:$0xf]
        %v895 = vld [vmem:[%s888 + $0x18] sm:$0xf]
        %v896 = vld [vmem:[%s888 + $0x1c] sm:$0xf]
        %v897 = vld [vmem:[%s888 + $0x20] sm:$0xf]
        %v898 = vld [vmem:[%s888 + $0x24] sm:$0xf]
        %v899 = vld [vmem:[%s888 + $0x28] sm:$0xf]
        %v900 = vld [vmem:[%s888 + $0x2c] sm:$0xf]
        %v901 = vld [vmem:[%s888 + $0x30] sm:$0xf]
        %v902 = vld [vmem:[%s888 + $0x34] sm:$0xf]
        %v903 = vld [vmem:[%s888 + $0x38] sm:$0xf]
        %v904 = vld [vmem:[%s888 + $0x3c] sm:$0xf]
        %v921 = vunpack.c.l.b16 %v889
        %v922 = vunpack.c.l.b16 %v890
        %v923 = vunpack.c.l.b16 %v891
        %v924 = vunpack.c.l.b16 %v892
        %v925 = vunpack.c.l.b16 %v893
        %v926 = vunpack.c.l.b16 %v894
        %v927 = vunpack.c.l.b16 %v895
        %v928 = vunpack.c.l.b16 %v896
        %v929 = vunpack.c.l.b16 %v897
        %v930 = vunpack.c.l.b16 %v898
        %v931 = vunpack.c.l.b16 %v899
        %v932 = vunpack.c.l.b16 %v900
        %v933 = vunpack.c.l.b16 %v901
        %v934 = vunpack.c.l.b16 %v902
        %v935 = vunpack.c.l.b16 %v903
        %v936 = vunpack.c.l.b16 %v904
        %v937 = vpack.c.b16 %v922, %v921
        %v938 = vpack.c.b16 %v924, %v923
        %v939 = vpack.c.b16 %v926, %v925
        %v940 = vpack.c.b16 %v928, %v927
        %v941 = vpack.c.b16 %v930, %v929
        %v942 = vpack.c.b16 %v932, %v931
        %v943 = vpack.c.b16 %v934, %v933
        %v944 = vpack.c.b16 %v936, %v935
        %953 = vmatprep.subr.bf16.mxu0 0
        %954 = vmatpush1.bf16.msra.mxu0 %v944
        %955 = vmatprep.subr.bf16.mxu0 0
        %956 = vmatpush1.bf16.msra.mxu0 %v943
        %957 = vmatprep.subr.bf16.mxu0 0
        %958 = vmatpush1.bf16.msra.mxu0 %v942
        %959 = vmatprep.subr.bf16.mxu0 0
        %960 = vmatpush1.bf16.msra.mxu0 %v941
        %961 = vmatprep.subr.bf16.mxu0 0
        %962 = vmatpush1.bf16.msra.mxu0 %v940
        %963 = vmatprep.subr.bf16.mxu0 0
        %964 = vmatpush1.bf16.msra.mxu0 %v939
        %965 = vmatprep.subr.bf16.mxu0 0
        %966 = vmatpush1.bf16.msra.mxu0 %v938
        %967 = vmatprep.subr.bf16.mxu0 0
        %968 = vmatpush1.bf16.msra.mxu0 %v937
        %969 = vmatprep.subr.bf16.mxu0 0
        %970 = vmatpush2.bf16.msra.mxu0 0
        %971 = vmatprep.subr.bf16.mxu0 0
        %972 = vmatpush2.bf16.msra.mxu0 0
        %973 = vmatprep.subr.bf16.mxu0 0
        %974 = vmatpush2.bf16.msra.mxu0 0
        %975 = vmatprep.subr.bf16.mxu0 0
        %976 = vmatpush2.bf16.msra.mxu0 0
        %977 = vmatprep.subr.bf16.mxu0 0
        %978 = vmatpush2.bf16.msra.mxu0 0
        %979 = vmatprep.subr.bf16.mxu0 0
        %980 = vmatpush2.bf16.msra.mxu0 0
        %981 = vmatprep.subr.bf16.mxu0 0
        %982 = vmatpush2.bf16.msra.mxu0 0
        %983 = vmatprep.subr.bf16.mxu0 0
        %984 = vmatpush2.bf16.msra.mxu0 0
        %985 = vmatprep.mubr.bf16.mxu0 0
        %986 = vmatmul.mubr.bf16.gmra.mxu0 %v884
        %v987 = vpop.f32.mrf.mxu0
        %v988 = vadd.f32 0.0, %v987
        %v989 = vpop.f32.mrf.mxu0
        %v990 = vpop.f32.mrf.mxu0
        %v991 = vadd.f32 0.0, %v990
        %v992 = vpop.f32.mrf.mxu0
        %993 = vmatprep.mubr.bf16.mxu0 0
        %994 = vmatmul.mubr.bf16.gmra.mxu0 %v885
        %v995 = vpop.f32.mrf.mxu0
        %v996 = vadd.f32 0.0, %v995
        %v997 = vpop.f32.mrf.mxu0
        %v998 = vpop.f32.mrf.mxu0
        %v999 = vadd.f32 0.0, %v998
        %v1000 = vpop.f32.mrf.mxu0
        %1001 = vmatprep.mubr.bf16.mxu0 0
        %1002 = vmatmul.mubr.bf16.gmra.mxu0 %v886
        %v1003 = vpop.f32.mrf.mxu0
        %v1004 = vadd.f32 0.0, %v1003
        %v1005 = vpop.f32.mrf.mxu0
        %v1006 = vpop.f32.mrf.mxu0
        %v1007 = vadd.f32 0.0, %v1006
        %v1008 = vpop.f32.mrf.mxu0
        %1009 = vmatprep.mubr.bf16.mxu0 0
        %1010 = vmatmul.mubr.bf16.gmra.mxu0 %v887
        %v1011 = vpop.f32.mrf.mxu0
        %v1012 = vadd.f32 0.0, %v1011
        %v1013 = vpop.f32.mrf.mxu0
        %v1014 = vpop.f32.mrf.mxu0
        %v1015 = vadd.f32 0.0, %v1014
        %v1016 = vpop.f32.mrf.mxu0
        %1017 = vdwg.mxu0
        %v1018 = vmul.f32 %v988, %v475
        %v1019 = vmul.f32 %v991, %v480
        %v1020 = vmul.f32 %v996, %v485
        %v1021 = vmul.f32 %v999, %v490
        %v1022 = vmul.f32 %v1004, %v495
        %v1023 = vmul.f32 %v1007, %v500
        %v1024 = vmul.f32 %v1012, %v505
        %v1025 = vmul.f32 %v1015, %v510
        %v1026 = vadd.f32 %v868, %v1018
        %v1027 = vadd.f32 %v869, %v1019
        %v1028 = vadd.f32 %v870, %v1020
        %v1029 = vadd.f32 %v871, %v1021
        %v1030 = vadd.f32 %v872, %v1022
        %v1031 = vadd.f32 %v873, %v1023
        %v1032 = vadd.f32 %v874, %v1024
        %v1033 = vadd.f32 %v875, %v1025
        %v1034 = vld [vmem:[%s292 + $0x9] sm:$0xff]
        %v1035 = vld [vmem:[%s292 + $0x11] sm:$0xff]
        %v1036 = vld [vmem:[%s292 + $0x19] sm:$0xff]
        %v1037 = vld [vmem:[%s292 + $0x21] sm:$0xff]
        %v1038 = vld [vmem:[%s292 + $0x29] sm:$0xff]
        %v1039 = vld [vmem:[%s292 + $0x31] sm:$0xff]
        %v1040 = vld [vmem:[%s292 + $0x39] sm:$0xff]
        %v1041 = vld [vmem:[%s292 + $0x41] sm:$0xff]
        %v1042 = vpack.c.bf16 %v1035, %v1034
        %v1043 = vpack.c.bf16 %v1037, %v1036
        %v1044 = vpack.c.bf16 %v1039, %v1038
        %v1045 = vpack.c.bf16 %v1041, %v1040
        %s1046 = scalar_lea.vmem %s296, 256
        %v1047 = vld [vmem:[%s1046] sm:$0xf]
        %v1048 = vld [vmem:[%s1046 + $0x4] sm:$0xf]
        %v1049 = vld [vmem:[%s1046 + $0x8] sm:$0xf]
        %v1050 = vld [vmem:[%s1046 + $0xc] sm:$0xf]
        %v1051 = vld [vmem:[%s1046 + $0x10] sm:$0xf]
        %v1052 = vld [vmem:[%s1046 + $0x14] sm:$0xf]
        %v1053 = vld [vmem:[%s1046 + $0x18] sm:$0xf]
        %v1054 = vld [vmem:[%s1046 + $0x1c] sm:$0xf]
        %v1055 = vld [vmem:[%s1046 + $0x20] sm:$0xf]
        %v1056 = vld [vmem:[%s1046 + $0x24] sm:$0xf]
        %v1057 = vld [vmem:[%s1046 + $0x28] sm:$0xf]
        %v1058 = vld [vmem:[%s1046 + $0x2c] sm:$0xf]
        %v1059 = vld [vmem:[%s1046 + $0x30] sm:$0xf]
        %v1060 = vld [vmem:[%s1046 + $0x34] sm:$0xf]
        %v1061 = vld [vmem:[%s1046 + $0x38] sm:$0xf]
        %v1062 = vld [vmem:[%s1046 + $0x3c] sm:$0xf]
        %v1079 = vunpack.c.l.b16 %v1047
        %v1080 = vunpack.c.l.b16 %v1048
        %v1081 = vunpack.c.l.b16 %v1049
        %v1082 = vunpack.c.l.b16 %v1050
        %v1083 = vunpack.c.l.b16 %v1051
        %v1084 = vunpack.c.l.b16 %v1052
        %v1085 = vunpack.c.l.b16 %v1053
        %v1086 = vunpack.c.l.b16 %v1054
        %v1087 = vunpack.c.l.b16 %v1055
        %v1088 = vunpack.c.l.b16 %v1056
        %v1089 = vunpack.c.l.b16 %v1057
        %v1090 = vunpack.c.l.b16 %v1058
        %v1091 = vunpack.c.l.b16 %v1059
        %v1092 = vunpack.c.l.b16 %v1060
        %v1093 = vunpack.c.l.b16 %v1061
        %v1094 = vunpack.c.l.b16 %v1062
        %v1095 = vpack.c.b16 %v1080, %v1079
        %v1096 = vpack.c.b16 %v1082, %v1081
        %v1097 = vpack.c.b16 %v1084, %v1083
        %v1098 = vpack.c.b16 %v1086, %v1085
        %v1099 = vpack.c.b16 %v1088, %v1087
        %v1100 = vpack.c.b16 %v1090, %v1089
        %v1101 = vpack.c.b16 %v1092, %v1091
        %v1102 = vpack.c.b16 %v1094, %v1093
        %1111 = vmatprep.subr.bf16.mxu0 0
        %1112 = vmatpush1.bf16.msra.mxu0 %v1102
        %1113 = vmatprep.subr.bf16.mxu0 0
        %1114 = vmatpush1.bf16.msra.mxu0 %v1101
        %1115 = vmatprep.subr.bf16.mxu0 0
        %1116 = vmatpush1.bf16.msra.mxu0 %v1100
        %1117 = vmatprep.subr.bf16.mxu0 0
        %1118 = vmatpush1.bf16.msra.mxu0 %v1099
        %1119 = vmatprep.subr.bf16.mxu0 0
        %1120 = vmatpush1.bf16.msra.mxu0 %v1098
        %1121 = vmatprep.subr.bf16.mxu0 0
        %1122 = vmatpush1.bf16.msra.mxu0 %v1097
        %1123 = vmatprep.subr.bf16.mxu0 0
        %1124 = vmatpush1.bf16.msra.mxu0 %v1096
        %1125 = vmatprep.subr.bf16.mxu0 0
        %1126 = vmatpush1.bf16.msra.mxu0 %v1095
        %1127 = vmatprep.subr.bf16.mxu0 0
        %1128 = vmatpush2.bf16.msra.mxu0 0
        %1129 = vmatprep.subr.bf16.mxu0 0
        %1130 = vmatpush2.bf16.msra.mxu0 0
        %1131 = vmatprep.subr.bf16.mxu0 0
        %1132 = vmatpush2.bf16.msra.mxu0 0
        %1133 = vmatprep.subr.bf16.mxu0 0
        %1134 = vmatpush2.bf16.msra.mxu0 0
        %1135 = vmatprep.subr.bf16.mxu0 0
        %1136 = vmatpush2.bf16.msra.mxu0 0
        %1137 = vmatprep.subr.bf16.mxu0 0
        %1138 = vmatpush2.bf16.msra.mxu0 0
        %1139 = vmatprep.subr.bf16.mxu0 0
        %1140 = vmatpush2.bf16.msra.mxu0 0
        %1141 = vmatprep.subr.bf16.mxu0 0
        %1142 = vmatpush2.bf16.msra.mxu0 0
        %1143 = vmatprep.mubr.bf16.mxu0 0
        %1144 = vmatmul.mubr.bf16.gmra.mxu0 %v1042
        %v1145 = vpop.f32.mrf.mxu0
        %v1146 = vadd.f32 0.0, %v1145
        %v1147 = vpop.f32.mrf.mxu0
        %v1148 = vpop.f32.mrf.mxu0
        %v1149 = vadd.f32 0.0, %v1148
        %v1150 = vpop.f32.mrf.mxu0
        %1151 = vmatprep.mubr.bf16.mxu0 0
        %1152 = vmatmul.mubr.bf16.gmra.mxu0 %v1043
        %v1153 = vpop.f32.mrf.mxu0
        %v1154 = vadd.f32 0.0, %v1153
        %v1155 = vpop.f32.mrf.mxu0
        %v1156 = vpop.f32.mrf.mxu0
        %v1157 = vadd.f32 0.0, %v1156
        %v1158 = vpop.f32.mrf.mxu0
        %1159 = vmatprep.mubr.bf16.mxu0 0
        %1160 = vmatmul.mubr.bf16.gmra.mxu0 %v1044
        %v1161 = vpop.f32.mrf.mxu0
        %v1162 = vadd.f32 0.0, %v1161
        %v1163 = vpop.f32.mrf.mxu0
        %v1164 = vpop.f32.mrf.mxu0
        %v1165 = vadd.f32 0.0, %v1164
        %v1166 = vpop.f32.mrf.mxu0
        %1167 = vmatprep.mubr.bf16.mxu0 0
        %1168 = vmatmul.mubr.bf16.gmra.mxu0 %v1045
        %v1169 = vpop.f32.mrf.mxu0
        %v1170 = vadd.f32 0.0, %v1169
        %v1171 = vpop.f32.mrf.mxu0
        %v1172 = vpop.f32.mrf.mxu0
        %v1173 = vadd.f32 0.0, %v1172
        %v1174 = vpop.f32.mrf.mxu0
        %1175 = vdwg.mxu0
        %v1176 = vadd.f32 %v1026, %v1146
        %v1177 = vadd.f32 %v1027, %v1149
        %v1178 = vadd.f32 %v1028, %v1154
        %v1179 = vadd.f32 %v1029, %v1157
        %v1180 = vadd.f32 %v1030, %v1162
        %v1181 = vadd.f32 %v1031, %v1165
        %v1182 = vadd.f32 %v1032, %v1170
        %v1183 = vadd.f32 %v1033, %v1173
        %v1184 = vld [vmem:[%s292 + $0xa] sm:$0xff]
        %v1185 = vld [vmem:[%s292 + $0x12] sm:$0xff]
        %v1186 = vld [vmem:[%s292 + $0x1a] sm:$0xff]
        %v1187 = vld [vmem:[%s292 + $0x22] sm:$0xff]
        %v1188 = vld [vmem:[%s292 + $0x2a] sm:$0xff]
        %v1189 = vld [vmem:[%s292 + $0x32] sm:$0xff]
        %v1190 = vld [vmem:[%s292 + $0x3a] sm:$0xff]
        %v1191 = vld [vmem:[%s292 + $0x42] sm:$0xff]
        %v1192 = vpack.c.bf16 %v1185, %v1184
        %v1193 = vpack.c.bf16 %v1187, %v1186
        %v1194 = vpack.c.bf16 %v1189, %v1188
        %v1195 = vpack.c.bf16 %v1191, %v1190
        %s1196 = scalar_lea.vmem %s296, 320
        %v1197 = vld [vmem:[%s1196] sm:$0xf]
        %v1198 = vld [vmem:[%s1196 + $0x4] sm:$0xf]
        %v1199 = vld [vmem:[%s1196 + $0x8] sm:$0xf]
        %v1200 = vld [vmem:[%s1196 + $0xc] sm:$0xf]
        %v1201 = vld [vmem:[%s1196 + $0x10] sm:$0xf]
        %v1202 = vld [vmem:[%s1196 + $0x14] sm:$0xf]
        %v1203 = vld [vmem:[%s1196 + $0x18] sm:$0xf]
        %v1204 = vld [vmem:[%s1196 + $0x1c] sm:$0xf]
        %v1205 = vld [vmem:[%s1196 + $0x20] sm:$0xf]
        %v1206 = vld [vmem:[%s1196 + $0x24] sm:$0xf]
        %v1207 = vld [vmem:[%s1196 + $0x28] sm:$0xf]
        %v1208 = vld [vmem:[%s1196 + $0x2c] sm:$0xf]
        %v1209 = vld [vmem:[%s1196 + $0x30] sm:$0xf]
        %v1210 = vld [vmem:[%s1196 + $0x34] sm:$0xf]
        %v1211 = vld [vmem:[%s1196 + $0x38] sm:$0xf]
        %v1212 = vld [vmem:[%s1196 + $0x3c] sm:$0xf]
        %v1229 = vunpack.c.l.b16 %v1197
        %v1230 = vunpack.c.l.b16 %v1198
        %v1231 = vunpack.c.l.b16 %v1199
        %v1232 = vunpack.c.l.b16 %v1200
        %v1233 = vunpack.c.l.b16 %v1201
        %v1234 = vunpack.c.l.b16 %v1202
        %v1235 = vunpack.c.l.b16 %v1203
        %v1236 = vunpack.c.l.b16 %v1204
        %v1237 = vunpack.c.l.b16 %v1205
        %v1238 = vunpack.c.l.b16 %v1206
        %v1239 = vunpack.c.l.b16 %v1207
        %v1240 = vunpack.c.l.b16 %v1208
        %v1241 = vunpack.c.l.b16 %v1209
        %v1242 = vunpack.c.l.b16 %v1210
        %v1243 = vunpack.c.l.b16 %v1211
        %v1244 = vunpack.c.l.b16 %v1212
        %v1245 = vpack.c.b16 %v1230, %v1229
        %v1246 = vpack.c.b16 %v1232, %v1231
        %v1247 = vpack.c.b16 %v1234, %v1233
        %v1248 = vpack.c.b16 %v1236, %v1235
        %v1249 = vpack.c.b16 %v1238, %v1237
        %v1250 = vpack.c.b16 %v1240, %v1239
        %v1251 = vpack.c.b16 %v1242, %v1241
        %v1252 = vpack.c.b16 %v1244, %v1243
        %1261 = vmatprep.subr.bf16.mxu0 0
        %1262 = vmatpush1.bf16.msra.mxu0 %v1252
        %1263 = vmatprep.subr.bf16.mxu0 0
        %1264 = vmatpush1.bf16.msra.mxu0 %v1251
        %1265 = vmatprep.subr.bf16.mxu0 0
        %1266 = vmatpush1.bf16.msra.mxu0 %v1250
        %1267 = vmatprep.subr.bf16.mxu0 0
        %1268 = vmatpush1.bf16.msra.mxu0 %v1249
        %1269 = vmatprep.subr.bf16.mxu0 0
        %1270 = vmatpush1.bf16.msra.mxu0 %v1248
        %1271 = vmatprep.subr.bf16.mxu0 0
        %1272 = vmatpush1.bf16.msra.mxu0 %v1247
        %1273 = vmatprep.subr.bf16.mxu0 0
        %1274 = vmatpush1.bf16.msra.mxu0 %v1246
        %1275 = vmatprep.subr.bf16.mxu0 0
        %1276 = vmatpush1.bf16.msra.mxu0 %v1245
        %1277 = vmatprep.subr.bf16.mxu0 0
        %1278 = vmatpush2.bf16.msra.mxu0 0
        %1279 = vmatprep.subr.bf16.mxu0 0
        %1280 = vmatpush2.bf16.msra.mxu0 0
        %1281 = vmatprep.subr.bf16.mxu0 0
        %1282 = vmatpush2.bf16.msra.mxu0 0
        %1283 = vmatprep.subr.bf16.mxu0 0
        %1284 = vmatpush2.bf16.msra.mxu0 0
        %1285 = vmatprep.subr.bf16.mxu0 0
        %1286 = vmatpush2.bf16.msra.mxu0 0
        %1287 = vmatprep.subr.bf16.mxu0 0
        %1288 = vmatpush2.bf16.msra.mxu0 0
        %1289 = vmatprep.subr.bf16.mxu0 0
        %1290 = vmatpush2.bf16.msra.mxu0 0
        %1291 = vmatprep.subr.bf16.mxu0 0
        %1292 = vmatpush2.bf16.msra.mxu0 0
        %1293 = vmatprep.mubr.bf16.mxu0 0
        %1294 = vmatmul.mubr.bf16.gmra.mxu0 %v1192
        %v1295 = vpop.f32.mrf.mxu0
        %v1296 = vadd.f32 0.0, %v1295
        %v1297 = vpop.f32.mrf.mxu0
        %v1298 = vpop.f32.mrf.mxu0
        %v1299 = vadd.f32 0.0, %v1298
        %v1300 = vpop.f32.mrf.mxu0
        %1301 = vmatprep.mubr.bf16.mxu0 0
        %1302 = vmatmul.mubr.bf16.gmra.mxu0 %v1193
        %v1303 = vpop.f32.mrf.mxu0
        %v1304 = vadd.f32 0.0, %v1303
        %v1305 = vpop.f32.mrf.mxu0
        %v1306 = vpop.f32.mrf.mxu0
        %v1307 = vadd.f32 0.0, %v1306
        %v1308 = vpop.f32.mrf.mxu0
        %1309 = vmatprep.mubr.bf16.mxu0 0
        %1310 = vmatmul.mubr.bf16.gmra.mxu0 %v1194
        %v1311 = vpop.f32.mrf.mxu0
        %v1312 = vadd.f32 0.0, %v1311
        %v1313 = vpop.f32.mrf.mxu0
        %v1314 = vpop.f32.mrf.mxu0
        %v1315 = vadd.f32 0.0, %v1314
        %v1316 = vpop.f32.mrf.mxu0
        %1317 = vmatprep.mubr.bf16.mxu0 0
        %1318 = vmatmul.mubr.bf16.gmra.mxu0 %v1195
        %v1319 = vpop.f32.mrf.mxu0
        %v1320 = vadd.f32 0.0, %v1319
        %v1321 = vpop.f32.mrf.mxu0
        %v1322 = vpop.f32.mrf.mxu0
        %v1323 = vadd.f32 0.0, %v1322
        %v1324 = vpop.f32.mrf.mxu0
        %1325 = vdwg.mxu0
        %v1326 = vmul.f32 %v1296, %v823
        %v1327 = vmul.f32 %v1299, %v828
        %v1328 = vmul.f32 %v1304, %v833
        %v1329 = vmul.f32 %v1307, %v838
        %v1330 = vmul.f32 %v1312, %v843
        %v1331 = vmul.f32 %v1315, %v848
        %v1332 = vmul.f32 %v1320, %v853
        %v1333 = vmul.f32 %v1323, %v858
        %v1334 = vadd.f32 %v1176, %v1326
        %v1335 = vadd.f32 %v1177, %v1327
        %v1336 = vadd.f32 %v1178, %v1328
        %v1337 = vadd.f32 %v1179, %v1329
        %v1338 = vadd.f32 %v1180, %v1330
        %v1339 = vadd.f32 %v1181, %v1331
        %v1340 = vadd.f32 %v1182, %v1332
        %v1341 = vadd.f32 %v1183, %v1333
        %v1342 = vld [vmem:[%s292 + $0x10] sm:$0xff]
        %v1343 = vld [vmem:[%s292 + $0x18] sm:$0xff]
        %v1344 = vld [vmem:[%s292 + $0x20] sm:$0xff]
        %v1345 = vld [vmem:[%s292 + $0x28] sm:$0xff]
        %v1346 = vld [vmem:[%s292 + $0x30] sm:$0xff]
        %v1347 = vld [vmem:[%s292 + $0x38] sm:$0xff]
        %v1348 = vld [vmem:[%s292 + $0x40] sm:$0xff]
        %v1349 = vld [vmem:[%s292 + $0x48] sm:$0xff]
        %v1350 = vpack.c.bf16 %v1343, %v1342
        %v1351 = vpack.c.bf16 %v1345, %v1344
        %v1352 = vpack.c.bf16 %v1347, %v1346
        %v1353 = vpack.c.bf16 %v1349, %v1348
        %s1354 = scalar_lea.vmem %s296, 384
        %v1355 = vld [vmem:[%s1354] sm:$0xf]
        %v1356 = vld [vmem:[%s1354 + $0x4] sm:$0xf]
        %v1357 = vld [vmem:[%s1354 + $0x8] sm:$0xf]
        %v1358 = vld [vmem:[%s1354 + $0xc] sm:$0xf]
        %v1359 = vld [vmem:[%s1354 + $0x10] sm:$0xf]
        %v1360 = vld [vmem:[%s1354 + $0x14] sm:$0xf]
        %v1361 = vld [vmem:[%s1354 + $0x18] sm:$0xf]
        %v1362 = vld [vmem:[%s1354 + $0x1c] sm:$0xf]
        %v1363 = vld [vmem:[%s1354 + $0x20] sm:$0xf]
        %v1364 = vld [vmem:[%s1354 + $0x24] sm:$0xf]
        %v1365 = vld [vmem:[%s1354 + $0x28] sm:$0xf]
        %v1366 = vld [vmem:[%s1354 + $0x2c] sm:$0xf]
        %v1367 = vld [vmem:[%s1354 + $0x30] sm:$0xf]
        %v1368 = vld [vmem:[%s1354 + $0x34] sm:$0xf]
        %v1369 = vld [vmem:[%s1354 + $0x38] sm:$0xf]
        %v1370 = vld [vmem:[%s1354 + $0x3c] sm:$0xf]
        %v1387 = vunpack.c.l.b16 %v1355
        %v1388 = vunpack.c.l.b16 %v1356
        %v1389 = vunpack.c.l.b16 %v1357
        %v1390 = vunpack.c.l.b16 %v1358
        %v1391 = vunpack.c.l.b16 %v1359
        %v1392 = vunpack.c.l.b16 %v1360
        %v1393 = vunpack.c.l.b16 %v1361
        %v1394 = vunpack.c.l.b16 %v1362
        %v1395 = vunpack.c.l.b16 %v1363
        %v1396 = vunpack.c.l.b16 %v1364
        %v1397 = vunpack.c.l.b16 %v1365
        %v1398 = vunpack.c.l.b16 %v1366
        %v1399 = vunpack.c.l.b16 %v1367
        %v1400 = vunpack.c.l.b16 %v1368
        %v1401 = vunpack.c.l.b16 %v1369
        %v1402 = vunpack.c.l.b16 %v1370
        %v1403 = vpack.c.b16 %v1388, %v1387
        %v1404 = vpack.c.b16 %v1390, %v1389
        %v1405 = vpack.c.b16 %v1392, %v1391
        %v1406 = vpack.c.b16 %v1394, %v1393
        %v1407 = vpack.c.b16 %v1396, %v1395
        %v1408 = vpack.c.b16 %v1398, %v1397
        %v1409 = vpack.c.b16 %v1400, %v1399
        %v1410 = vpack.c.b16 %v1402, %v1401
        %1419 = vmatprep.subr.bf16.mxu0 0
        %1420 = vmatpush1.bf16.msra.mxu0 %v1410
        %1421 = vmatprep.subr.bf16.mxu0 0
        %1422 = vmatpush1.bf16.msra.mxu0 %v1409
        %1423 = vmatprep.subr.bf16.mxu0 0
        %1424 = vmatpush1.bf16.msra.mxu0 %v1408
        %1425 = vmatprep.subr.bf16.mxu0 0
        %1426 = vmatpush1.bf16.msra.mxu0 %v1407
        %1427 = vmatprep.subr.bf16.mxu0 0
        %1428 = vmatpush1.bf16.msra.mxu0 %v1406
        %1429 = vmatprep.subr.bf16.mxu0 0
        %1430 = vmatpush1.bf16.msra.mxu0 %v1405
        %1431 = vmatprep.subr.bf16.mxu0 0
        %1432 = vmatpush1.bf16.msra.mxu0 %v1404
        %1433 = vmatprep.subr.bf16.mxu0 0
        %1434 = vmatpush1.bf16.msra.mxu0 %v1403
        %1435 = vmatprep.subr.bf16.mxu0 0
        %1436 = vmatpush2.bf16.msra.mxu0 0
        %1437 = vmatprep.subr.bf16.mxu0 0
        %1438 = vmatpush2.bf16.msra.mxu0 0
        %1439 = vmatprep.subr.bf16.mxu0 0
        %1440 = vmatpush2.bf16.msra.mxu0 0
        %1441 = vmatprep.subr.bf16.mxu0 0
        %1442 = vmatpush2.bf16.msra.mxu0 0
        %1443 = vmatprep.subr.bf16.mxu0 0
        %1444 = vmatpush2.bf16.msra.mxu0 0
        %1445 = vmatprep.subr.bf16.mxu0 0
        %1446 = vmatpush2.bf16.msra.mxu0 0
        %1447 = vmatprep.subr.bf16.mxu0 0
        %1448 = vmatpush2.bf16.msra.mxu0 0
        %1449 = vmatprep.subr.bf16.mxu0 0
        %1450 = vmatpush2.bf16.msra.mxu0 0
        %1451 = vmatprep.mubr.bf16.mxu0 0
        %1452 = vmatmul.mubr.bf16.gmra.mxu0 %v1350
        %v1453 = vpop.f32.mrf.mxu0
        %v1454 = vadd.f32 0.0, %v1453
        %v1455 = vpop.f32.mrf.mxu0
        %v1456 = vpop.f32.mrf.mxu0
        %v1457 = vadd.f32 0.0, %v1456
        %v1458 = vpop.f32.mrf.mxu0
        %1459 = vmatprep.mubr.bf16.mxu0 0
        %1460 = vmatmul.mubr.bf16.gmra.mxu0 %v1351
        %v1461 = vpop.f32.mrf.mxu0
        %v1462 = vadd.f32 0.0, %v1461
        %v1463 = vpop.f32.mrf.mxu0
        %v1464 = vpop.f32.mrf.mxu0
        %v1465 = vadd.f32 0.0, %v1464
        %v1466 = vpop.f32.mrf.mxu0
        %1467 = vmatprep.mubr.bf16.mxu0 0
        %1468 = vmatmul.mubr.bf16.gmra.mxu0 %v1352
        %v1469 = vpop.f32.mrf.mxu0
        %v1470 = vadd.f32 0.0, %v1469
        %v1471 = vpop.f32.mrf.mxu0
        %v1472 = vpop.f32.mrf.mxu0
        %v1473 = vadd.f32 0.0, %v1472
        %v1474 = vpop.f32.mrf.mxu0
        %1475 = vmatprep.mubr.bf16.mxu0 0
        %1476 = vmatmul.mubr.bf16.gmra.mxu0 %v1353
        %v1477 = vpop.f32.mrf.mxu0
        %v1478 = vadd.f32 0.0, %v1477
        %v1479 = vpop.f32.mrf.mxu0
        %v1480 = vpop.f32.mrf.mxu0
        %v1481 = vadd.f32 0.0, %v1480
        %v1482 = vpop.f32.mrf.mxu0
        %1483 = vdwg.mxu0
        %v1484 = vmul.f32 %v1454, %v475
        %v1485 = vmul.f32 %v1457, %v480
        %v1486 = vmul.f32 %v1462, %v485
        %v1487 = vmul.f32 %v1465, %v490
        %v1488 = vmul.f32 %v1470, %v495
        %v1489 = vmul.f32 %v1473, %v500
        %v1490 = vmul.f32 %v1478, %v505
        %v1491 = vmul.f32 %v1481, %v510
        %v1492 = vadd.f32 %v1334, %v1484
        %v1493 = vadd.f32 %v1335, %v1485
        %v1494 = vadd.f32 %v1336, %v1486
        %v1495 = vadd.f32 %v1337, %v1487
        %v1496 = vadd.f32 %v1338, %v1488
        %v1497 = vadd.f32 %v1339, %v1489
        %v1498 = vadd.f32 %v1340, %v1490
        %v1499 = vadd.f32 %v1341, %v1491
        %v1500 = vld [vmem:[%s292 + $0x11] sm:$0xff]
        %v1501 = vld [vmem:[%s292 + $0x19] sm:$0xff]
        %v1502 = vld [vmem:[%s292 + $0x21] sm:$0xff]
        %v1503 = vld [vmem:[%s292 + $0x29] sm:$0xff]
        %v1504 = vld [vmem:[%s292 + $0x31] sm:$0xff]
        %v1505 = vld [vmem:[%s292 + $0x39] sm:$0xff]
        %v1506 = vld [vmem:[%s292 + $0x41] sm:$0xff]
        %v1507 = vld [vmem:[%s292 + $0x49] sm:$0xff]
        %v1508 = vpack.c.bf16 %v1501, %v1500
        %v1509 = vpack.c.bf16 %v1503, %v1502
        %v1510 = vpack.c.bf16 %v1505, %v1504
        %v1511 = vpack.c.bf16 %v1507, %v1506
        %s1512 = scalar_lea.vmem %s296, 448
        %v1513 = vld [vmem:[%s1512] sm:$0xf]
        %v1514 = vld [vmem:[%s1512 + $0x4] sm:$0xf]
        %v1515 = vld [vmem:[%s1512 + $0x8] sm:$0xf]
        %v1516 = vld [vmem:[%s1512 + $0xc] sm:$0xf]
        %v1517 = vld [vmem:[%s1512 + $0x10] sm:$0xf]
        %v1518 = vld [vmem:[%s1512 + $0x14] sm:$0xf]
        %v1519 = vld [vmem:[%s1512 + $0x18] sm:$0xf]
        %v1520 = vld [vmem:[%s1512 + $0x1c] sm:$0xf]
        %v1521 = vld [vmem:[%s1512 + $0x20] sm:$0xf]
        %v1522 = vld [vmem:[%s1512 + $0x24] sm:$0xf]
        %v1523 = vld [vmem:[%s1512 + $0x28] sm:$0xf]
        %v1524 = vld [vmem:[%s1512 + $0x2c] sm:$0xf]
        %v1525 = vld [vmem:[%s1512 + $0x30] sm:$0xf]
        %v1526 = vld [vmem:[%s1512 + $0x34] sm:$0xf]
        %v1527 = vld [vmem:[%s1512 + $0x38] sm:$0xf]
        %v1528 = vld [vmem:[%s1512 + $0x3c] sm:$0xf]
        %v1545 = vunpack.c.l.b16 %v1513
        %v1546 = vunpack.c.l.b16 %v1514
        %v1547 = vunpack.c.l.b16 %v1515
        %v1548 = vunpack.c.l.b16 %v1516
        %v1549 = vunpack.c.l.b16 %v1517
        %v1550 = vunpack.c.l.b16 %v1518
        %v1551 = vunpack.c.l.b16 %v1519
        %v1552 = vunpack.c.l.b16 %v1520
        %v1553 = vunpack.c.l.b16 %v1521
        %v1554 = vunpack.c.l.b16 %v1522
        %v1555 = vunpack.c.l.b16 %v1523
        %v1556 = vunpack.c.l.b16 %v1524
        %v1557 = vunpack.c.l.b16 %v1525
        %v1558 = vunpack.c.l.b16 %v1526
        %v1559 = vunpack.c.l.b16 %v1527
        %v1560 = vunpack.c.l.b16 %v1528
        %v1561 = vpack.c.b16 %v1546, %v1545
        %v1562 = vpack.c.b16 %v1548, %v1547
        %v1563 = vpack.c.b16 %v1550, %v1549
        %v1564 = vpack.c.b16 %v1552, %v1551
        %v1565 = vpack.c.b16 %v1554, %v1553
        %v1566 = vpack.c.b16 %v1556, %v1555
        %v1567 = vpack.c.b16 %v1558, %v1557
        %v1568 = vpack.c.b16 %v1560, %v1559
        %1577 = vmatprep.subr.bf16.mxu0 0
        %1578 = vmatpush1.bf16.msra.mxu0 %v1568
        %1579 = vmatprep.subr.bf16.mxu0 0
        %1580 = vmatpush1.bf16.msra.mxu0 %v1567
        %1581 = vmatprep.subr.bf16.mxu0 0
        %1582 = vmatpush1.bf16.msra.mxu0 %v1566
        %1583 = vmatprep.subr.bf16.mxu0 0
        %1584 = vmatpush1.bf16.msra.mxu0 %v1565
        %1585 = vmatprep.subr.bf16.mxu0 0
        %1586 = vmatpush1.bf16.msra.mxu0 %v1564
        %1587 = vmatprep.subr.bf16.mxu0 0
        %1588 = vmatpush1.bf16.msra.mxu0 %v1563
        %1589 = vmatprep.subr.bf16.mxu0 0
        %1590 = vmatpush1.bf16.msra.mxu0 %v1562
        %1591 = vmatprep.subr.bf16.mxu0 0
        %1592 = vmatpush1.bf16.msra.mxu0 %v1561
        %1593 = vmatprep.subr.bf16.mxu0 0
        %1594 = vmatpush2.bf16.msra.mxu0 0
        %1595 = vmatprep.subr.bf16.mxu0 0
        %1596 = vmatpush2.bf16.msra.mxu0 0
        %1597 = vmatprep.subr.bf16.mxu0 0
        %1598 = vmatpush2.bf16.msra.mxu0 0
        %1599 = vmatprep.subr.bf16.mxu0 0
        %1600 = vmatpush2.bf16.msra.mxu0 0
        %1601 = vmatprep.subr.bf16.mxu0 0
        %1602 = vmatpush2.bf16.msra.mxu0 0
        %1603 = vmatprep.subr.bf16.mxu0 0
        %1604 = vmatpush2.bf16.msra.mxu0 0
        %1605 = vmatprep.subr.bf16.mxu0 0
        %1606 = vmatpush2.bf16.msra.mxu0 0
        %1607 = vmatprep.subr.bf16.mxu0 0
        %1608 = vmatpush2.bf16.msra.mxu0 0
        %1609 = vmatprep.mubr.bf16.mxu0 0
        %1610 = vmatmul.mubr.bf16.gmra.mxu0 %v1508
        %v1611 = vpop.f32.mrf.mxu0
        %v1612 = vadd.f32 0.0, %v1611
        %v1613 = vpop.f32.mrf.mxu0
        %v1614 = vpop.f32.mrf.mxu0
        %v1615 = vadd.f32 0.0, %v1614
        %v1616 = vpop.f32.mrf.mxu0
        %1617 = vmatprep.mubr.bf16.mxu0 0
        %1618 = vmatmul.mubr.bf16.gmra.mxu0 %v1509
        %v1619 = vpop.f32.mrf.mxu0
        %v1620 = vadd.f32 0.0, %v1619
        %v1621 = vpop.f32.mrf.mxu0
        %v1622 = vpop.f32.mrf.mxu0
        %v1623 = vadd.f32 0.0, %v1622
        %v1624 = vpop.f32.mrf.mxu0
        %1625 = vmatprep.mubr.bf16.mxu0 0
        %1626 = vmatmul.mubr.bf16.gmra.mxu0 %v1510
        %v1627 = vpop.f32.mrf.mxu0
        %v1628 = vadd.f32 0.0, %v1627
        %v1629 = vpop.f32.mrf.mxu0
        %v1630 = vpop.f32.mrf.mxu0
        %v1631 = vadd.f32 0.0, %v1630
        %v1632 = vpop.f32.mrf.mxu0
        %1633 = vmatprep.mubr.bf16.mxu0 0
        %1634 = vmatmul.mubr.bf16.gmra.mxu0 %v1511
        %v1635 = vpop.f32.mrf.mxu0
        %v1636 = vadd.f32 0.0, %v1635
        %v1637 = vpop.f32.mrf.mxu0
        %v1638 = vpop.f32.mrf.mxu0
        %v1639 = vadd.f32 0.0, %v1638
        %v1640 = vpop.f32.mrf.mxu0
        %1641 = vdwg.mxu0
        %v1642 = vadd.f32 %v1492, %v1612
        %v1643 = vadd.f32 %v1493, %v1615
        %v1644 = vadd.f32 %v1494, %v1620
        %v1645 = vadd.f32 %v1495, %v1623
        %v1646 = vadd.f32 %v1496, %v1628
        %v1647 = vadd.f32 %v1497, %v1631
        %v1648 = vadd.f32 %v1498, %v1636
        %v1649 = vadd.f32 %v1499, %v1639
        %v1650 = vld [vmem:[%s292 + $0x12] sm:$0xff]
        %v1651 = vld [vmem:[%s292 + $0x1a] sm:$0xff]
        %v1652 = vld [vmem:[%s292 + $0x22] sm:$0xff]
        %v1653 = vld [vmem:[%s292 + $0x2a] sm:$0xff]
        %v1654 = vld [vmem:[%s292 + $0x32] sm:$0xff]
        %v1655 = vld [vmem:[%s292 + $0x3a] sm:$0xff]
        %v1656 = vld [vmem:[%s292 + $0x42] sm:$0xff]
        %v1657 = vld [vmem:[%s292 + $0x4a] sm:$0xff]
        %v1658 = vpack.c.bf16 %v1651, %v1650
        %v1659 = vpack.c.bf16 %v1653, %v1652
        %v1660 = vpack.c.bf16 %v1655, %v1654
        %v1661 = vpack.c.bf16 %v1657, %v1656
        %s1662 = scalar_lea.vmem %s296, 512
        %v1663 = vld [vmem:[%s1662] sm:$0xf]
        %v1664 = vld [vmem:[%s1662 + $0x4] sm:$0xf]
        %v1665 = vld [vmem:[%s1662 + $0x8] sm:$0xf]
        %v1666 = vld [vmem:[%s1662 + $0xc] sm:$0xf]
        %v1667 = vld [vmem:[%s1662 + $0x10] sm:$0xf]
        %v1668 = vld [vmem:[%s1662 + $0x14] sm:$0xf]
        %v1669 = vld [vmem:[%s1662 + $0x18] sm:$0xf]
        %v1670 = vld [vmem:[%s1662 + $0x1c] sm:$0xf]
        %v1671 = vld [vmem:[%s1662 + $0x20] sm:$0xf]
        %v1672 = vld [vmem:[%s1662 + $0x24] sm:$0xf]
        %v1673 = vld [vmem:[%s1662 + $0x28] sm:$0xf]
        %v1674 = vld [vmem:[%s1662 + $0x2c] sm:$0xf]
        %v1675 = vld [vmem:[%s1662 + $0x30] sm:$0xf]
        %v1676 = vld [vmem:[%s1662 + $0x34] sm:$0xf]
        %v1677 = vld [vmem:[%s1662 + $0x38] sm:$0xf]
        %v1678 = vld [vmem:[%s1662 + $0x3c] sm:$0xf]
        %v1695 = vunpack.c.l.b16 %v1663
        %v1696 = vunpack.c.l.b16 %v1664
        %v1697 = vunpack.c.l.b16 %v1665
        %v1698 = vunpack.c.l.b16 %v1666
        %v1699 = vunpack.c.l.b16 %v1667
        %v1700 = vunpack.c.l.b16 %v1668
        %v1701 = vunpack.c.l.b16 %v1669
        %v1702 = vunpack.c.l.b16 %v1670
        %v1703 = vunpack.c.l.b16 %v1671
        %v1704 = vunpack.c.l.b16 %v1672
        %v1705 = vunpack.c.l.b16 %v1673
        %v1706 = vunpack.c.l.b16 %v1674
        %v1707 = vunpack.c.l.b16 %v1675
        %v1708 = vunpack.c.l.b16 %v1676
        %v1709 = vunpack.c.l.b16 %v1677
        %v1710 = vunpack.c.l.b16 %v1678
        %v1711 = vpack.c.b16 %v1696, %v1695
        %v1712 = vpack.c.b16 %v1698, %v1697
        %v1713 = vpack.c.b16 %v1700, %v1699
        %v1714 = vpack.c.b16 %v1702, %v1701
        %v1715 = vpack.c.b16 %v1704, %v1703
        %v1716 = vpack.c.b16 %v1706, %v1705
        %v1717 = vpack.c.b16 %v1708, %v1707
        %v1718 = vpack.c.b16 %v1710, %v1709
        %1727 = vmatprep.subr.bf16.mxu0 0
        %1728 = vmatpush1.bf16.msra.mxu0 %v1718
        %1729 = vmatprep.subr.bf16.mxu0 0
        %1730 = vmatpush1.bf16.msra.mxu0 %v1717
        %1731 = vmatprep.subr.bf16.mxu0 0
        %1732 = vmatpush1.bf16.msra.mxu0 %v1716
        %1733 = vmatprep.subr.bf16.mxu0 0
        %1734 = vmatpush1.bf16.msra.mxu0 %v1715
        %1735 = vmatprep.subr.bf16.mxu0 0
        %1736 = vmatpush1.bf16.msra.mxu0 %v1714
        %1737 = vmatprep.subr.bf16.mxu0 0
        %1738 = vmatpush1.bf16.msra.mxu0 %v1713
        %1739 = vmatprep.subr.bf16.mxu0 0
        %1740 = vmatpush1.bf16.msra.mxu0 %v1712
        %1741 = vmatprep.subr.bf16.mxu0 0
        %1742 = vmatpush1.bf16.msra.mxu0 %v1711
        %1743 = vmatprep.subr.bf16.mxu0 0
        %1744 = vmatpush2.bf16.msra.mxu0 0
        %1745 = vmatprep.subr.bf16.mxu0 0
        %1746 = vmatpush2.bf16.msra.mxu0 0
        %1747 = vmatprep.subr.bf16.mxu0 0
        %1748 = vmatpush2.bf16.msra.mxu0 0
        %1749 = vmatprep.subr.bf16.mxu0 0
        %1750 = vmatpush2.bf16.msra.mxu0 0
        %1751 = vmatprep.subr.bf16.mxu0 0
        %1752 = vmatpush2.bf16.msra.mxu0 0
        %1753 = vmatprep.subr.bf16.mxu0 0
        %1754 = vmatpush2.bf16.msra.mxu0 0
        %1755 = vmatprep.subr.bf16.mxu0 0
        %1756 = vmatpush2.bf16.msra.mxu0 0
        %1757 = vmatprep.subr.bf16.mxu0 0
        %1758 = vmatpush2.bf16.msra.mxu0 0
        %1759 = vmatprep.mubr.bf16.mxu0 0
        %1760 = vmatmul.mubr.bf16.gmra.mxu0 %v1658
        %v1761 = vpop.f32.mrf.mxu0
        %v1762 = vadd.f32 0.0, %v1761
        %v1763 = vpop.f32.mrf.mxu0
        %v1764 = vpop.f32.mrf.mxu0
        %v1765 = vadd.f32 0.0, %v1764
        %v1766 = vpop.f32.mrf.mxu0
        %1767 = vmatprep.mubr.bf16.mxu0 0
        %1768 = vmatmul.mubr.bf16.gmra.mxu0 %v1659
        %v1769 = vpop.f32.mrf.mxu0
        %v1770 = vadd.f32 0.0, %v1769
        %v1771 = vpop.f32.mrf.mxu0
        %v1772 = vpop.f32.mrf.mxu0
        %v1773 = vadd.f32 0.0, %v1772
        %v1774 = vpop.f32.mrf.mxu0
        %1775 = vmatprep.mubr.bf16.mxu0 0
        %1776 = vmatmul.mubr.bf16.gmra.mxu0 %v1660
        %v1777 = vpop.f32.mrf.mxu0
        %v1778 = vadd.f32 0.0, %v1777
        %v1779 = vpop.f32.mrf.mxu0
        %v1780 = vpop.f32.mrf.mxu0
        %v1781 = vadd.f32 0.0, %v1780
        %v1782 = vpop.f32.mrf.mxu0
        %1783 = vmatprep.mubr.bf16.mxu0 0
        %1784 = vmatmul.mubr.bf16.gmra.mxu0 %v1661
        %v1785 = vpop.f32.mrf.mxu0
        %v1786 = vadd.f32 0.0, %v1785
        %v1787 = vpop.f32.mrf.mxu0
        %v1788 = vpop.f32.mrf.mxu0
        %v1789 = vadd.f32 0.0, %v1788
        %v1790 = vpop.f32.mrf.mxu0
        %1791 = vdwg.mxu0
        %v1792 = vmul.f32 %v1762, %v823
        %v1793 = vmul.f32 %v1765, %v828
        %v1794 = vmul.f32 %v1770, %v833
        %v1795 = vmul.f32 %v1773, %v838
        %v1796 = vmul.f32 %v1778, %v843
        %v1797 = vmul.f32 %v1781, %v848
        %v1798 = vmul.f32 %v1786, %v853
        %v1799 = vmul.f32 %v1789, %v858
        %v1800 = vadd.f32 %v1642, %v1792
        %v1801 = vadd.f32 %v1643, %v1793
        %v1802 = vadd.f32 %v1644, %v1794
        %v1803 = vadd.f32 %v1645, %v1795
        %v1804 = vadd.f32 %v1646, %v1796
        %v1805 = vadd.f32 %v1647, %v1797
        %v1806 = vadd.f32 %v1648, %v1798
        %v1807 = vadd.f32 %v1649, %v1799
        %v1808 = vld [vmem:[#allocation2] sm:$0x1]
        %v1810 = vlaneseq
        %v1811 = vshrl.u32 %v1810, 7
        %v1812 = vsub.s32 0, %v1811
        %v1813 = vrot.slane %v1808, %v1812
        %v1815 = vadd.f32 %v1800, %v1813
        %v1816 = vadd.f32 %v1801, %v1813
        %v1817 = vadd.f32 %v1802, %v1813
        %v1818 = vadd.f32 %v1803, %v1813
        %v1819 = vadd.f32 %v1804, %v1813
        %v1820 = vadd.f32 %v1805, %v1813
        %v1821 = vadd.f32 %v1806, %v1813
        %v1822 = vadd.f32 %v1807, %v1813
        %v1823 = vld [vmem:[%s304] sm:$0xf]
        %v1824 = vld [vmem:[%s304 + $0x4] sm:$0xf]
        %v1825 = vld [vmem:[%s304 + $0x8] sm:$0xf]
        %v1826 = vld [vmem:[%s304 + $0xc] sm:$0xf]
        %v1827 = vld [vmem:[%s304 + $0x10] sm:$0xf]
        %v1828 = vld [vmem:[%s304 + $0x14] sm:$0xf]
        %v1829 = vld [vmem:[%s304 + $0x18] sm:$0xf]
        %v1830 = vld [vmem:[%s304 + $0x1c] sm:$0xf]
        %v1831 = vunpack.c.l.bf16 %v1823
        %v1832 = vunpack.c.l.bf16 %v1824
        %v1833 = vunpack.c.l.bf16 %v1825
        %v1834 = vunpack.c.l.bf16 %v1826
        %v1835 = vunpack.c.l.bf16 %v1827
        %v1836 = vunpack.c.l.bf16 %v1828
        %v1837 = vunpack.c.l.bf16 %v1829
        %v1838 = vunpack.c.l.bf16 %v1830
        %v1839 = vadd.f32 %v1815, %v1831
        %v1840 = vadd.f32 %v1816, %v1832
        %v1841 = vadd.f32 %v1817, %v1833
        %v1842 = vadd.f32 %v1818, %v1834
        %v1843 = vadd.f32 %v1819, %v1835
        %v1844 = vadd.f32 %v1820, %v1836
        %v1845 = vadd.f32 %v1821, %v1837
        %v1846 = vadd.f32 %v1822, %v1838
        %v1847 = vmax.f32 %v1839, 0.0
        %v1848 = vmax.f32 %v1840, 0.0
        %v1849 = vmax.f32 %v1841, 0.0
        %v1850 = vmax.f32 %v1842, 0.0
        %v1851 = vmax.f32 %v1843, 0.0
        %v1852 = vmax.f32 %v1844, 0.0
        %v1853 = vmax.f32 %v1845, 0.0
        %v1854 = vmax.f32 %v1846, 0.0
        %v1855 = vpack.c.bf16 %v1848, %v1847
        %v1856 = vpack.c.bf16 %v1850, %v1849
        %v1857 = vpack.c.bf16 %v1852, %v1851
        %v1858 = vpack.c.bf16 %v1854, %v1853
        %v1863 = vunpack.c.l.b16 %v1855
        %v1864 = vunpack.c.h.b16 %v1855
        %v1865 = vunpack.c.l.b16 %v1856
        %v1866 = vunpack.c.h.b16 %v1856
        %v1867 = vunpack.c.l.b16 %v1857
        %v1868 = vunpack.c.h.b16 %v1857
        %v1869 = vunpack.c.l.b16 %v1858
        %v1870 = vunpack.c.h.b16 %v1858
        %v1871 = vpack.c.b16 %v1863, %v1863
        %v1872 = vpack.c.b16 %v1864, %v1864
        %v1873 = vpack.c.b16 %v1865, %v1865
        %v1874 = vpack.c.b16 %v1866, %v1866
        %v1875 = vpack.c.b16 %v1867, %v1867
        %v1876 = vpack.c.b16 %v1868, %v1868
        %v1877 = vpack.c.b16 %v1869, %v1869
        %v1878 = vpack.c.b16 %v1870, %v1870
        %1887 = vst [vmem:[%s312] sm:$0xf] %v1871
        %1888 = vst [vmem:[%s312 + $0x4] sm:$0xf] %v1872
        %1889 = vst [vmem:[%s312 + $0x8] sm:$0xf] %v1873
        %1890 = vst [vmem:[%s312 + $0xc] sm:$0xf] %v1874
        %1891 = vst [vmem:[%s312 + $0x10] sm:$0xf] %v1875
        %1892 = vst [vmem:[%s312 + $0x14] sm:$0xf] %v1876
        %1893 = vst [vmem:[%s312 + $0x18] sm:$0xf] %v1877
        %1894 = vst [vmem:[%s312 + $0x1c] sm:$0xf] %v1878
        %p1895 = scmp.lt.s32.totalorder %s22, 1
        %s1896 = scalar_select %p1895, %s22, 1
        %p1897 = scmp.lt.s32.totalorder %s21, 0
        %s1898 = scalar_select %p1897, %s21, 0
        %s1899 = smul.addr %s1896, 8
        %s1900 = sadd.s32 %s1898, %s1899
        %s1901 = smul.addr %s1900, 4
        %s1902 = scalar_lea.vmem %s5, %s1901
        // Predicated region
        $region45: #{stage2_forward.7} parent=39 // pred_check
          %p1903 = pneg %p176
        $region46: #{stage2_forward.7} parent=39 // pred_check_branch
          %1905 = sbr.rel (%p1903) target = $region48
        $region47: #{stage2_forward.7} parent=39 // pred_region
          _
        $region48: #{stage2_forward.7} parent=39 // pred_fallthru
          _
      $region40: #{stage2_forward.7} parent=5 // pred_fallthru
        _
      %p1906 = scmp.le.s32.totalorder 2, %s12
      // Predicated region
      $region49: #{stage2_forward.7} parent=5 // pred_check
        %p1907 = pneg %p1906
      $region50: #{stage2_forward.7} parent=5 // pred_check_branch
        %1909 = sbr.rel (%p1907) target = $region52
      $region51: #{stage2_forward.7} parent=5 // pred_region
        %s1910 = ssub.s32 %s12, 2
        // Predicated region
        $region53: #{stage2_forward.7} parent=51 // pred_check
          %p1911 = pneg %p182
        $region54: #{stage2_forward.7} parent=51 // pred_check_branch
          %1913 = sbr.rel (%p1911) target = $region56
        $region55: #{stage2_forward.7} parent=51 // pred_region
          %p1914 = scmp.lt.s32.totalorder %s24, 1
          %s1915 = scalar_select %p1914, %s24, 1
          %p1916 = scmp.lt.s32.totalorder %s23, 0
          %s1917 = scalar_select %p1916, %s23, 0
          %s1918 = smul.addr %s1915, 8
          %s1919 = sadd.s32 %s1917, %s1918
          %s1920 = smul.addr %s1919, 4
          %s1921 = scalar_lea.vmem %s5, %s1920
        $region56: #{stage2_forward.7} parent=51 // pred_fallthru
          _
      $region52: #{stage2_forward.7} parent=5 // pred_fallthru
        _
    $region6: #{stage2_forward.7} parent=1 // loop_footer
      %s16 = sadd.s32 1, %s12
    $region7: #{stage2_forward.7} parent=1 // loop_footer_branch
      %11 = sbr.rel target = $region3
    $region8: #{stage2_forward.7} parent=1 // loop_exit
      _
    %1922 = vsyncpa [#allocation3], 1
    %s1923 = scalar_lea.sflag [#allocation3], 1
    %1924 = vsyncpa %s1923, 1

// kernel: stage2_forward.9
$region0: #{stage2_forward.9}
  #allocation0 [shape = 'u32[]', space=smem, size = 0x4, offset = 0x4, fixed_abs, tag = 'smem constant byte address 0x4 - core index']
  #allocation1 [shape = 'u32[144,128]{1,0:T(1,128)}', space=vmem, size = 0x12000, scoped, tag = 'internal scratch']
  %s0 = inlined_call_operand.vmem [shape: f32[2,82,128], index: 0, kind: input, shape index: {}]
  %s1 = inlined_call_operand.vmem [shape: bf16[9,128,128], index: 1, kind: input, shape index: {}]
  %s2 = inlined_call_operand.vmem [shape: f32[1,128], index: 2, kind: input, shape index: {}]
  %s3 = inlined_call_operand.vmem [shape: f32[2,64,1], index: 3, kind: input, shape index: {}]
  %s4 = inlined_call_operand.vmem [shape: bf16[2,64,128], index: 4, kind: input, shape index: {}]
  %s5 = inlined_call_operand.vmem [shape: bf16[2,64,128], index: 5, kind: output, shape index: {}]
  %s6 = sld [smem:[#allocation0]]
  $region53: #{stage2_forward.9} parent=0
    _
  %s8 = ssub.s32 1, %s6
  %s9 = scalar_select 0, %s8, %s6
  loop: start=0, step=1, limit=4
  $region2: #{stage2_forward.9} parent=0 // loop_pre_header
    _
  $region3: #{stage2_forward.9} parent=0 // loop_header
    %s11 = sphi 0, %s15
    %p12 = scmp.ge.s32.totalorder %s11, 4
    %s18 = sphi 0, %s30
    %s19 = sphi 0, %s26
    %s20 = sphi 0, %s18
    %s21 = sphi 0, %s19
    %s22 = sphi 0, %s20
    %s23 = sphi 0, %s21
    %s33 = sphi 0, %s35
    %s36 = sphi 0, %s33
    %s37 = sphi 0, %s36
    %s53 = sphi 0, %s37
    %s59 = sphi 0, %s61
    %s62 = sphi 0, %s59
    %s63 = sphi 0, %s62
    %s79 = sphi 0, %s63
    %s85 = sphi 0, %s87
    %s88 = sphi 0, %s85
    %s89 = sphi 0, %s88
    %s105 = sphi 0, %s89
    %s109 = sphi 0, %s109
    %s111 = sphi 0, %s109
    %s112 = sphi 0, %s111
    %s126 = sphi 0, %s112
    %s134 = sphi 0, %s136
    %s137 = sphi 0, %s134
    %s138 = sphi 0, %s137
    %s154 = sphi 0, %s138
    %s162 = sphi 0, %s164
    %s165 = sphi 0, %s162
    %s166 = sphi 0, %s165
    %s182 = sphi 0, %s166
  $region4: #{stage2_forward.9} parent=0 // loop_header_branch
    %14 = sbr.rel (%p12) target = $region8
  $region5: #{stage2_forward.9} parent=0 // loop_body
    %s16 = ssub.s32 %s11, 1
    %s17 = ssub.s32 %s11, 2
    %s24 = sadd.s32 1, %s19
    %p25 = scmp.ge.s32.totalorder %s24, 2
    %s26 = scalar_select %p25, 0, %s24
    %s27 = sadd.s32 1, %s18
    %s28 = scalar_select %p25, %s27, %s18
    %p29 = scmp.ge.s32.totalorder %s28, 1
    %s30 = scalar_select %p29, 0, %s28
    %s31 = ssub.s32 %s19, %s26
    %p32 = scmp.eq.s32.totalorder %s31, 0
    %s34 = sadd.s32 %s33, 1
    %s35 = scalar_select %p32, %s33, %s34
    %p38 = pneg %p32
    %p39 = scmp.eq.s32.totalorder %s11, 1
    %p40 = por %p38, %p39
    %p41 = scmp.ne.s32.totalorder %s33, %s36
    %p42 = scmp.eq.s32.totalorder %s11, 0
    %p43 = por %p41, %p42
    %p44 = scmp.ne.s32.totalorder %s33, %s36
    %p45 = scmp.eq.s32.totalorder %s16, 1
    %p46 = por %p44, %p45
    %p47 = scmp.ne.s32.totalorder %s36, %s37
    %p48 = scmp.eq.s32.totalorder %s16, 0
    %p49 = por %p47, %p48
    %p50 = scmp.ne.s32.totalorder %s36, %s37
    %p51 = scmp.eq.s32.totalorder %s17, 1
    %p52 = por %p50, %p51
    %p54 = scmp.ne.s32.totalorder %s37, %s53
    %p55 = scmp.eq.s32.totalorder %s17, 0
    %p56 = por %p54, %p55
    %s57 = ssub.s32 %s18, %s30
    %p58 = scmp.eq.s32.totalorder %s57, 0
    %s60 = sadd.s32 %s59, 1
    %s61 = scalar_select %p58, %s59, %s60
    %p64 = pneg %p58
    %p65 = scmp.eq.s32.totalorder %s11, 1
    %p66 = por %p64, %p65
    %p67 = scmp.ne.s32.totalorder %s59, %s62
    %p68 = scmp.eq.s32.totalorder %s11, 0
    %p69 = por %p67, %p68
    %p70 = scmp.ne.s32.totalorder %s59, %s62
    %p71 = scmp.eq.s32.totalorder %s16, 1
    %p72 = por %p70, %p71
    %p73 = scmp.ne.s32.totalorder %s62, %s63
    %p74 = scmp.eq.s32.totalorder %s16, 0
    %p75 = por %p73, %p74
    %p76 = scmp.ne.s32.totalorder %s62, %s63
    %p77 = scmp.eq.s32.totalorder %s17, 1
    %p78 = por %p76, %p77
    %p80 = scmp.ne.s32.totalorder %s63, %s79
    %p81 = scmp.eq.s32.totalorder %s17, 0
    %p82 = por %p80, %p81
    %s83 = ssub.s32 %s18, %s30
    %p84 = scmp.eq.s32.totalorder %s83, 0
    %s86 = sadd.s32 %s85, 1
    %s87 = scalar_select %p84, %s85, %s86
    %p90 = pneg %p84
    %p91 = scmp.eq.s32.totalorder %s11, 1
    %p92 = por %p90, %p91
    %p93 = scmp.ne.s32.totalorder %s85, %s88
    %p94 = scmp.eq.s32.totalorder %s11, 0
    %p95 = por %p93, %p94
    %p96 = scmp.ne.s32.totalorder %s85, %s88
    %p97 = scmp.eq.s32.totalorder %s16, 1
    %p98 = por %p96, %p97
    %p99 = scmp.ne.s32.totalorder %s88, %s89
    %p100 = scmp.eq.s32.totalorder %s16, 0
    %p101 = por %p99, %p100
    %p102 = scmp.ne.s32.totalorder %s88, %s89
    %p103 = scmp.eq.s32.totalorder %s17, 1
    %p104 = por %p102, %p103
    %p106 = scmp.ne.s32.totalorder %s89, %s105
    %p107 = scmp.eq.s32.totalorder %s17, 0
    %p108 = por %p106, %p107
    %s110 = sadd.s32 %s109, 1
    %p113 = scmp.eq.s32.totalorder %s11, 1
    %p114 = scmp.ne.s32.totalorder %s109, %s111
    %p115 = scmp.eq.s32.totalorder %s11, 0
    %p116 = por %p114, %p115
    %p117 = scmp.ne.s32.totalorder %s109, %s111
    %p118 = scmp.eq.s32.totalorder %s16, 1
    %p119 = por %p117, %p118
    %p120 = scmp.ne.s32.totalorder %s111, %s112
    %p121 = scmp.eq.s32.totalorder %s16, 0
    %p122 = por %p120, %p121
    %p123 = scmp.ne.s32.totalorder %s111, %s112
    %p124 = scmp.eq.s32.totalorder %s17, 1
    %p125 = por %p123, %p124
    %p127 = scmp.ne.s32.totalorder %s112, %s126
    %p128 = scmp.eq.s32.totalorder %s17, 0
    %p129 = por %p127, %p128
    %s130 = ssub.s32 %s19, %s26
    %s131 = ssub.s32 %s18, %s30
    %s132 = sor.u32 %s130, %s131
    %p133 = scmp.eq.s32.totalorder %s132, 0
    %s135 = sadd.s32 %s134, 1
    %s136 = scalar_select %p133, %s134, %s135
    %p139 = pneg %p133
    %p140 = scmp.eq.s32.totalorder %s11, 1
    %p141 = por %p139, %p140
    %p142 = scmp.ne.s32.totalorder %s134, %s137
    %p143 = scmp.eq.s32.totalorder %s11, 0
    %p144 = por %p142, %p143
    %p145 = scmp.ne.s32.totalorder %s134, %s137
    %p146 = scmp.eq.s32.totalorder %s16, 1
    %p147 = por %p145, %p146
    %p148 = scmp.ne.s32.totalorder %s137, %s138
    %p149 = scmp.eq.s32.totalorder %s16, 0
    %p150 = por %p148, %p149
    %p151 = scmp.ne.s32.totalorder %s137, %s138
    %p152 = scmp.eq.s32.totalorder %s17, 1
    %p153 = por %p151, %p152
    %p155 = scmp.ne.s32.totalorder %s138, %s154
    %p156 = scmp.eq.s32.totalorder %s17, 0
    %p157 = por %p155, %p156
    %s158 = ssub.s32 %s19, %s26
    %s159 = ssub.s32 %s18, %s30
    %s160 = sor.u32 %s158, %s159
    %p161 = scmp.eq.s32.totalorder %s160, 0
    %s163 = sadd.s32 %s162, 1
    %s164 = scalar_select %p161, %s162, %s163
    %p167 = pneg %p161
    %p168 = scmp.eq.s32.totalorder %s11, 1
    %p169 = por %p167, %p168
    %p170 = scmp.ne.s32.totalorder %s162, %s165
    %p171 = scmp.eq.s32.totalorder %s11, 0
    %p172 = por %p170, %p171
    %p173 = scmp.ne.s32.totalorder %s162, %s165
    %p174 = scmp.eq.s32.totalorder %s16, 1
    %p175 = por %p173, %p174
    %p176 = scmp.ne.s32.totalorder %s165, %s166
    %p177 = scmp.eq.s32.totalorder %s16, 0
    %p178 = por %p176, %p177
    %p179 = scmp.ne.s32.totalorder %s165, %s166
    %p180 = scmp.eq.s32.totalorder %s17, 1
    %p181 = por %p179, %p180
    %p183 = scmp.ne.s32.totalorder %s166, %s182
    %p184 = scmp.eq.s32.totalorder %s17, 0
    %p185 = por %p183, %p184
    %p186 = scmp.le.s32.totalorder 1, %s11
    %p187 = scmp.lt.s32.totalorder %s11, 3
    %p188 = pnand %p186, %p187
    %p189 = pneg %p188
    // Predicated region
    $region9: #{stage2_forward.9} parent=5 // pred_check
      _
    $region10: #{stage2_forward.9} parent=5 // pred_check_branch
      %191 = sbr.rel (%p188) target = $region12
    $region11: #{stage2_forward.9} parent=5 // pred_region
      %s192 = ssub.s32 %s11, 1
      // Predicated region
      $region13: #{stage2_forward.9} parent=11 // pred_check
        %p193 = pneg %p75
      $region14: #{stage2_forward.9} parent=11 // pred_check_branch
        %195 = sbr.rel (%p193) target = $region16
      $region15: #{stage2_forward.9} parent=11 // pred_region
        %p196 = scmp.lt.s32.totalorder %s20, 0
        %s197 = scalar_select %p196, %s20, 0
        %s198 = smul.addr %s197, 4
        %s199 = scalar_lea.vmem %s1, %s198
      $region16: #{stage2_forward.9} parent=11 // pred_fallthru
        _
      // Predicated region
      $region17: #{stage2_forward.9} parent=11 // pred_check
        %p200 = pneg %p101
      $region18: #{stage2_forward.9} parent=11 // pred_check_branch
        %202 = sbr.rel (%p200) target = $region20
      $region19: #{stage2_forward.9} parent=11 // pred_region
        %p203 = scmp.lt.s32.totalorder %s20, 0
        %s204 = scalar_select %p203, %s20, 0
        %s205 = scalar_lea.vmem %s2, %s204
      $region20: #{stage2_forward.9} parent=11 // pred_fallthru
        _
      // Predicated region
      $region21: #{stage2_forward.9} parent=11 // pred_check
        %p206 = pneg %p122
      $region22: #{stage2_forward.9} parent=11 // pred_check_branch
        %208 = sbr.rel (%p206) target = $region24
      $region23: #{stage2_forward.9} parent=11 // pred_region
        _
      $region24: #{stage2_forward.9} parent=11 // pred_fallthru
        _
    $region12: #{stage2_forward.9} parent=5 // pred_fallthru
      _
    %p209 = scmp.lt.s32.totalorder %s11, 2
    // Predicated region
    $region25: #{stage2_forward.9} parent=5 // pred_check
      %p210 = pneg %p209
    $region26: #{stage2_forward.9} parent=5 // pred_check_branch
      %212 = sbr.rel (%p210) target = $region28
    $region27: #{stage2_forward.9} parent=5 // pred_region
      // Predicated region
      $region29: #{stage2_forward.9} parent=27 // pred_check
        %p213 = pneg %p43
      $region30: #{stage2_forward.9} parent=27 // pred_check_branch
        %215 = sbr.rel (%p213) target = $region32
      $region31: #{stage2_forward.9} parent=27 // pred_region
        %p216 = scmp.lt.s32.totalorder %s19, 1
        %s217 = scalar_select %p216, %s19, 1
        %s218 = smul.addr %s217, 11
        %s219 = smul.addr %s218, 8
        %s220 = scalar_lea.vmem %s0, %s219
      $region32: #{stage2_forward.9} parent=27 // pred_fallthru
        _
      // Predicated region
      $region33: #{stage2_forward.9} parent=27 // pred_check
        %p221 = pneg %p144
      $region34: #{stage2_forward.9} parent=27 // pred_check_branch
        %223 = sbr.rel (%p221) target = $region36
      $region35: #{stage2_forward.9} parent=27 // pred_region
        %p224 = scmp.lt.s32.totalorder %s19, 1
        %s225 = scalar_select %p224, %s19, 1
        %p226 = scmp.lt.s32.totalorder %s18, 0
        %s227 = scalar_select %p226, %s18, 0
        %s228 = smul.addr %s225, 8
        %s229 = sadd.s32 %s227, %s228
        %s230 = smul.addr %s229, 4
        %s231 = scalar_lea.vmem %s4, %s230
      $region36: #{stage2_forward.9} parent=27 // pred_fallthru
        _
    $region28: #{stage2_forward.9} parent=5 // pred_fallthru
      _
    %p232 = scmp.le.s32.totalorder 1, %s11
    %p233 = scmp.lt.s32.totalorder %s11, 3
    %p234 = pnand %p232, %p233
    %p235 = pneg %p234
    // Predicated region
    $region37: #{stage2_forward.9} parent=5 // pred_check
      _
    $region38: #{stage2_forward.9} parent=5 // pred_check_branch
      %237 = sbr.rel (%p234) target = $region40
    $region39: #{stage2_forward.9} parent=5 // pred_region
      %s238 = ssub.s32 %s11, 1
      %p239 = scmp.lt.s32.totalorder %s21, 1
      %s240 = scalar_select %p239, %s21, 1
      %s241 = smul.addr %s240, 11
      %s242 = smul.addr %s241, 8
      %s243 = scalar_lea.vmem %s0, %s242
      %p244 = pneg %p49
      %p245 = pneg %p46
      %p246 = scmp.lt.s32.totalorder %s20, 0
      %s247 = scalar_select %p246, %s20, 0
      %s248 = smul.addr %s247, 4
      %s249 = scalar_lea.vmem %s1, %s248
      %p250 = pneg %p75
      %p251 = pneg %p72
      %p252 = scmp.lt.s32.totalorder %s20, 0
      %s253 = scalar_select %p252, %s20, 0
      %s254 = scalar_lea.vmem %s2, %s253
      %p255 = pneg %p101
      %p256 = pneg %p98
      %p257 = pneg %p122
      %p258 = pneg %p119
      %p259 = scmp.lt.s32.totalorder %s21, 1
      %s260 = scalar_select %p259, %s21, 1
      %p261 = scmp.lt.s32.totalorder %s20, 0
      %s262 = scalar_select %p261, %s20, 0
      %s263 = smul.addr %s260, 8
      %s264 = sadd.s32 %s262, %s263
      %s265 = smul.addr %s264, 4
      %s266 = scalar_lea.vmem %s4, %s265
      %p267 = pneg %p150
      %p268 = pneg %p147
      %p269 = pneg %p178
      %p270 = pneg %p175
      %p271 = scmp.lt.s32.totalorder %s21, 1
      %s272 = scalar_select %p271, %s21, 1
      %p273 = scmp.lt.s32.totalorder %s20, 0
      %s274 = scalar_select %p273, %s20, 0
      %s275 = smul.addr %s272, 8
      %s276 = sadd.s32 %s274, %s275
      %s277 = smul.addr %s276, 4
      %s278 = scalar_lea.vmem %s5, %s277
      %p279 = scmp.lt.s32.totalorder %s21, 1
      %s280 = scalar_select %p279, %s21, 1
      %s281 = smul.addr %s280, 11
      %s282 = smul.addr %s281, 8
      %s283 = scalar_lea.vmem %s0, %s282
      %p284 = scmp.lt.s32.totalorder %s20, 0
      %s285 = scalar_select %p284, %s20, 0
      %s286 = smul.addr %s285, 4
      %s287 = scalar_lea.vmem %s1, %s286
      %p288 = scmp.lt.s32.totalorder %s20, 0
      %s289 = scalar_select %p288, %s20, 0
      %s290 = scalar_lea.vmem %s2, %s289
      %p291 = scmp.lt.s32.totalorder %s21, 1
      %s292 = scalar_select %p291, %s21, 1
      %p293 = scmp.lt.s32.totalorder %s20, 0
      %s294 = scalar_select %p293, %s20, 0
      %s295 = smul.addr %s292, 8
      %s296 = sadd.s32 %s294, %s295
      %s297 = smul.addr %s296, 4
      %s298 = scalar_lea.vmem %s4, %s297
      %p299 = scmp.lt.s32.totalorder %s21, 1
      %s300 = scalar_select %p299, %s21, 1
      %p301 = scmp.lt.s32.totalorder %s20, 0
      %s302 = scalar_select %p301, %s20, 0
      %s303 = smul.addr %s300, 8
      %s304 = sadd.s32 %s302, %s303
      %s305 = smul.addr %s304, 4
      %s306 = scalar_lea.vmem %s5, %s305
      %v308 = vld [vmem:[%s3] sm:$0xff]
      %v309 = vld [vmem:[%s3 + $0x8] sm:$0xff]
      %v310 = vld [vmem:[%s3 + $0x10] sm:$0xff]
      %v311 = vld [vmem:[%s3 + $0x18] sm:$0xff]
      %v312 = vld [vmem:[%s3 + $0x20] sm:$0xff]
      %v313 = vld [vmem:[%s3 + $0x28] sm:$0xff]
      %v314 = vld [vmem:[%s3 + $0x30] sm:$0xff]
      %v315 = vld [vmem:[%s3 + $0x38] sm:$0xff]
      %s316 = scalar_lea.vmem %s3, 64
      %v317 = vld [vmem:[%s316] sm:$0xff]
      %v318 = vld [vmem:[%s316 + $0x8] sm:$0xff]
      %v319 = vld [vmem:[%s316 + $0x10] sm:$0xff]
      %v320 = vld [vmem:[%s316 + $0x18] sm:$0xff]
      %v321 = vld [vmem:[%s316 + $0x20] sm:$0xff]
      %v322 = vld [vmem:[%s316 + $0x28] sm:$0xff]
      %v323 = vld [vmem:[%s316 + $0x30] sm:$0xff]
      %v324 = vld [vmem:[%s316 + $0x38] sm:$0xff]
      %v325 = vld [vmem:[%s283] sm:$0xff]
      %v326 = vld [vmem:[%s283 + $0x8] sm:$0xff]
      %v327 = vld [vmem:[%s283 + $0x10] sm:$0xff]
      %v328 = vld [vmem:[%s283 + $0x18] sm:$0xff]
      %v329 = vld [vmem:[%s283 + $0x20] sm:$0xff]
      %v330 = vld [vmem:[%s283 + $0x28] sm:$0xff]
      %v331 = vld [vmem:[%s283 + $0x30] sm:$0xff]
      %v332 = vld [vmem:[%s283 + $0x38] sm:$0xff]
      %v333 = vpack.c.bf16 %v326, %v325
      %v334 = vpack.c.bf16 %v328, %v327
      %v335 = vpack.c.bf16 %v330, %v329
      %v336 = vpack.c.bf16 %v332, %v331
      %v337 = vld [vmem:[%s287] sm:$0xf]
      %v338 = vld [vmem:[%s287 + $0x4] sm:$0xf]
      %v339 = vld [vmem:[%s287 + $0x8] sm:$0xf]
      %v340 = vld [vmem:[%s287 + $0xc] sm:$0xf]
      %v341 = vld [vmem:[%s287 + $0x10] sm:$0xf]
      %v342 = vld [vmem:[%s287 + $0x14] sm:$0xf]
      %v343 = vld [vmem:[%s287 + $0x18] sm:$0xf]
      %v344 = vld [vmem:[%s287 + $0x1c] sm:$0xf]
      %v345 = vld [vmem:[%s287 + $0x20] sm:$0xf]
      %v346 = vld [vmem:[%s287 + $0x24] sm:$0xf]
      %v347 = vld [vmem:[%s287 + $0x28] sm:$0xf]
      %v348 = vld [vmem:[%s287 + $0x2c] sm:$0xf]
      %v349 = vld [vmem:[%s287 + $0x30] sm:$0xf]
      %v350 = vld [vmem:[%s287 + $0x34] sm:$0xf]
      %v351 = vld [vmem:[%s287 + $0x38] sm:$0xf]
      %v352 = vld [vmem:[%s287 + $0x3c] sm:$0xf]
      %v369 = vunpack.c.l.b16 %v337
      %v370 = vunpack.c.l.b16 %v338
      %v371 = vunpack.c.l.b16 %v339
      %v372 = vunpack.c.l.b16 %v340
      %v373 = vunpack.c.l.b16 %v341
      %v374 = vunpack.c.l.b16 %v342
      %v375 = vunpack.c.l.b16 %v343
      %v376 = vunpack.c.l.b16 %v344
      %v377 = vunpack.c.l.b16 %v345
      %v378 = vunpack.c.l.b16 %v346
      %v379 = vunpack.c.l.b16 %v347
      %v380 = vunpack.c.l.b16 %v348
      %v381 = vunpack.c.l.b16 %v349
      %v382 = vunpack.c.l.b16 %v350
      %v383 = vunpack.c.l.b16 %v351
      %v384 = vunpack.c.l.b16 %v352
      %v385 = vpack.c.b16 %v370, %v369
      %v386 = vpack.c.b16 %v372, %v371
      %v387 = vpack.c.b16 %v374, %v373
      %v388 = vpack.c.b16 %v376, %v375
      %v389 = vpack.c.b16 %v378, %v377
      %v390 = vpack.c.b16 %v380, %v379
      %v391 = vpack.c.b16 %v382, %v381
      %v392 = vpack.c.b16 %v384, %v383
      %401 = vmatprep.subr.bf16.mxu0 0
      %402 = vmatpush1.bf16.msra.mxu0 %v392
      %403 = vmatprep.subr.bf16.mxu0 0
      %404 = vmatpush1.bf16.msra.mxu0 %v391
      %405 = vmatprep.subr.bf16.mxu0 0
      %406 = vmatpush1.bf16.msra.mxu0 %v390
      %407 = vmatprep.subr.bf16.mxu0 0
      %408 = vmatpush1.bf16.msra.mxu0 %v389
      %409 = vmatprep.subr.bf16.mxu0 0
      %410 = vmatpush1.bf16.msra.mxu0 %v388
      %411 = vmatprep.subr.bf16.mxu0 0
      %412 = vmatpush1.bf16.msra.mxu0 %v387
      %413 = vmatprep.subr.bf16.mxu0 0
      %414 = vmatpush1.bf16.msra.mxu0 %v386
      %415 = vmatprep.subr.bf16.mxu0 0
      %416 = vmatpush1.bf16.msra.mxu0 %v385
      %417 = vmatprep.subr.bf16.mxu0 0
      %418 = vmatpush2.bf16.msra.mxu0 0
      %419 = vmatprep.subr.bf16.mxu0 0
      %420 = vmatpush2.bf16.msra.mxu0 0
      %421 = vmatprep.subr.bf16.mxu0 0
      %422 = vmatpush2.bf16.msra.mxu0 0
      %423 = vmatprep.subr.bf16.mxu0 0
      %424 = vmatpush2.bf16.msra.mxu0 0
      %425 = vmatprep.subr.bf16.mxu0 0
      %426 = vmatpush2.bf16.msra.mxu0 0
      %427 = vmatprep.subr.bf16.mxu0 0
      %428 = vmatpush2.bf16.msra.mxu0 0
      %429 = vmatprep.subr.bf16.mxu0 0
      %430 = vmatpush2.bf16.msra.mxu0 0
      %431 = vmatprep.subr.bf16.mxu0 0
      %432 = vmatpush2.bf16.msra.mxu0 0
      %433 = vmatprep.mubr.bf16.mxu0 0
      %434 = vmatmul.mubr.bf16.gmra.mxu0 %v333
      %v435 = vpop.f32.mrf.mxu0
      %v436 = vadd.f32 0.0, %v435
      %v437 = vpop.f32.mrf.mxu0
      %v438 = vpop.f32.mrf.mxu0
      %v439 = vadd.f32 0.0, %v438
      %v440 = vpop.f32.mrf.mxu0
      %441 = vmatprep.mubr.bf16.mxu0 0
      %442 = vmatmul.mubr.bf16.gmra.mxu0 %v334
      %v443 = vpop.f32.mrf.mxu0
      %v444 = vadd.f32 0.0, %v443
      %v445 = vpop.f32.mrf.mxu0
      %v446 = vpop.f32.mrf.mxu0
      %v447 = vadd.f32 0.0, %v446
      %v448 = vpop.f32.mrf.mxu0
      %449 = vmatprep.mubr.bf16.mxu0 0
      %450 = vmatmul.mubr.bf16.gmra.mxu0 %v335
      %v451 = vpop.f32.mrf.mxu0
      %v452 = vadd.f32 0.0, %v451
      %v453 = vpop.f32.mrf.mxu0
      %v454 = vpop.f32.mrf.mxu0
      %v455 = vadd.f32 0.0, %v454
      %v456 = vpop.f32.mrf.mxu0
      %457 = vmatprep.mubr.bf16.mxu0 0
      %458 = vmatmul.mubr.bf16.gmra.mxu0 %v336
      %v459 = vpop.f32.mrf.mxu0
      %v460 = vadd.f32 0.0, %v459
      %v461 = vpop.f32.mrf.mxu0
      %v462 = vpop.f32.mrf.mxu0
      %v463 = vadd.f32 0.0, %v462
      %v464 = vpop.f32.mrf.mxu0
      %465 = vdwg.mxu0
      %467 = vset.pattern.permute.xlu0 0
      %468 = vperm.xlu0 %467, %v308
      %v469 = vpop.permute.xlu0 %468
      %472 = vset.pattern.permute.xlu0 0
      %473 = vperm.xlu0 %472, %v309
      %v474 = vpop.permute.xlu0 %473
      %477 = vset.pattern.permute.xlu0 0
      %478 = vperm.xlu0 %477, %v310
      %v479 = vpop.permute.xlu0 %478
      %482 = vset.pattern.permute.xlu0 0
      %483 = vperm.xlu0 %482, %v311
      %v484 = vpop.permute.xlu0 %483
      %487 = vset.pattern.permute.xlu0 0
      %488 = vperm.xlu0 %487, %v312
      %v489 = vpop.permute.xlu0 %488
      %492 = vset.pattern.permute.xlu0 0
      %493 = vperm.xlu0 %492, %v313
      %v494 = vpop.permute.xlu0 %493
      %497 = vset.pattern.permute.xlu0 0
      %498 = vperm.xlu0 %497, %v314
      %v499 = vpop.permute.xlu0 %498
      %502 = vset.pattern.permute.xlu0 0
      %503 = vperm.xlu0 %502, %v315
      %v504 = vpop.permute.xlu0 %503
      %v506 = vmul.f32 %v436, %v469
      %v507 = vmul.f32 %v439, %v474
      %v508 = vmul.f32 %v444, %v479
      %v509 = vmul.f32 %v447, %v484
      %v510 = vmul.f32 %v452, %v489
      %v511 = vmul.f32 %v455, %v494
      %v512 = vmul.f32 %v460, %v499
      %v513 = vmul.f32 %v463, %v504
      %v514 = vadd.f32 %v506, 0.0
      %v515 = vadd.f32 %v507, 0.0
      %v516 = vadd.f32 %v508, 0.0
      %v517 = vadd.f32 %v509, 0.0
      %v518 = vadd.f32 %v510, 0.0
      %v519 = vadd.f32 %v511, 0.0
      %v520 = vadd.f32 %v512, 0.0
      %v521 = vadd.f32 %v513, 0.0
      %v522 = vld [vmem:[%s283 + $0x1] sm:$0xff]
      %v523 = vld [vmem:[%s283 + $0x9] sm:$0xff]
      %v524 = vld [vmem:[%s283 + $0x11] sm:$0xff]
      %v525 = vld [vmem:[%s283 + $0x19] sm:$0xff]
      %v526 = vld [vmem:[%s283 + $0x21] sm:$0xff]
      %v527 = vld [vmem:[%s283 + $0x29] sm:$0xff]
      %v528 = vld [vmem:[%s283 + $0x31] sm:$0xff]
      %v529 = vld [vmem:[%s283 + $0x39] sm:$0xff]
      %v530 = vpack.c.bf16 %v523, %v522
      %v531 = vpack.c.bf16 %v525, %v524
      %v532 = vpack.c.bf16 %v527, %v526
      %v533 = vpack.c.bf16 %v529, %v528
      %s534 = scalar_lea.vmem %s287, 64
      %v535 = vld [vmem:[%s534] sm:$0xf]
      %v536 = vld [vmem:[%s534 + $0x4] sm:$0xf]
      %v537 = vld [vmem:[%s534 + $0x8] sm:$0xf]
      %v538 = vld [vmem:[%s534 + $0xc] sm:$0xf]
      %v539 = vld [vmem:[%s534 + $0x10] sm:$0xf]
      %v540 = vld [vmem:[%s534 + $0x14] sm:$0xf]
      %v541 = vld [vmem:[%s534 + $0x18] sm:$0xf]
      %v542 = vld [vmem:[%s534 + $0x1c] sm:$0xf]
      %v543 = vld [vmem:[%s534 + $0x20] sm:$0xf]
      %v544 = vld [vmem:[%s534 + $0x24] sm:$0xf]
      %v545 = vld [vmem:[%s534 + $0x28] sm:$0xf]
      %v546 = vld [vmem:[%s534 + $0x2c] sm:$0xf]
      %v547 = vld [vmem:[%s534 + $0x30] sm:$0xf]
      %v548 = vld [vmem:[%s534 + $0x34] sm:$0xf]
      %v549 = vld [vmem:[%s534 + $0x38] sm:$0xf]
      %v550 = vld [vmem:[%s534 + $0x3c] sm:$0xf]
      %v567 = vunpack.c.l.b16 %v535
      %v568 = vunpack.c.l.b16 %v536
      %v569 = vunpack.c.l.b16 %v537
      %v570 = vunpack.c.l.b16 %v538
      %v571 = vunpack.c.l.b16 %v539
      %v572 = vunpack.c.l.b16 %v540
      %v573 = vunpack.c.l.b16 %v541
      %v574 = vunpack.c.l.b16 %v542
      %v575 = vunpack.c.l.b16 %v543
      %v576 = vunpack.c.l.b16 %v544
      %v577 = vunpack.c.l.b16 %v545
      %v578 = vunpack.c.l.b16 %v546
      %v579 = vunpack.c.l.b16 %v547
      %v580 = vunpack.c.l.b16 %v548
      %v581 = vunpack.c.l.b16 %v549
      %v582 = vunpack.c.l.b16 %v550
      %v583 = vpack.c.b16 %v568, %v567
      %v584 = vpack.c.b16 %v570, %v569
      %v585 = vpack.c.b16 %v572, %v571
      %v586 = vpack.c.b16 %v574, %v573
      %v587 = vpack.c.b16 %v576, %v575
      %v588 = vpack.c.b16 %v578, %v577
      %v589 = vpack.c.b16 %v580, %v579
      %v590 = vpack.c.b16 %v582, %v581
      %599 = vmatprep.subr.bf16.mxu0 0
      %600 = vmatpush1.bf16.msra.mxu0 %v590
      %601 = vmatprep.subr.bf16.mxu0 0
      %602 = vmatpush1.bf16.msra.mxu0 %v589
      %603 = vmatprep.subr.bf16.mxu0 0
      %604 = vmatpush1.bf16.msra.mxu0 %v588
      %605 = vmatprep.subr.bf16.mxu0 0
      %606 = vmatpush1.bf16.msra.mxu0 %v587
      %607 = vmatprep.subr.bf16.mxu0 0
      %608 = vmatpush1.bf16.msra.mxu0 %v586
      %609 = vmatprep.subr.bf16.mxu0 0
      %610 = vmatpush1.bf16.msra.mxu0 %v585
      %611 = vmatprep.subr.bf16.mxu0 0
      %612 = vmatpush1.bf16.msra.mxu0 %v584
      %613 = vmatprep.subr.bf16.mxu0 0
      %614 = vmatpush1.bf16.msra.mxu0 %v583
      %615 = vmatprep.subr.bf16.mxu0 0
      %616 = vmatpush2.bf16.msra.mxu0 0
      %617 = vmatprep.subr.bf16.mxu0 0
      %618 = vmatpush2.bf16.msra.mxu0 0
      %619 = vmatprep.subr.bf16.mxu0 0
      %620 = vmatpush2.bf16.msra.mxu0 0
      %621 = vmatprep.subr.bf16.mxu0 0
      %622 = vmatpush2.bf16.msra.mxu0 0
      %623 = vmatprep.subr.bf16.mxu0 0
      %624 = vmatpush2.bf16.msra.mxu0 0
      %625 = vmatprep.subr.bf16.mxu0 0
      %626 = vmatpush2.bf16.msra.mxu0 0
      %627 = vmatprep.subr.bf16.mxu0 0
      %628 = vmatpush2.bf16.msra.mxu0 0
      %629 = vmatprep.subr.bf16.mxu0 0
      %630 = vmatpush2.bf16.msra.mxu0 0
      %631 = vmatprep.mubr.bf16.mxu0 0
      %632 = vmatmul.mubr.bf16.gmra.mxu0 %v530
      %v633 = vpop.f32.mrf.mxu0
      %v634 = vadd.f32 0.0, %v633
      %v635 = vpop.f32.mrf.mxu0
      %v636 = vpop.f32.mrf.mxu0
      %v637 = vadd.f32 0.0, %v636
      %v638 = vpop.f32.mrf.mxu0
      %639 = vmatprep.mubr.bf16.mxu0 0
      %640 = vmatmul.mubr.bf16.gmra.mxu0 %v531
      %v641 = vpop.f32.mrf.mxu0
      %v642 = vadd.f32 0.0, %v641
      %v643 = vpop.f32.mrf.mxu0
      %v644 = vpop.f32.mrf.mxu0
      %v645 = vadd.f32 0.0, %v644
      %v646 = vpop.f32.mrf.mxu0
      %647 = vmatprep.mubr.bf16.mxu0 0
      %648 = vmatmul.mubr.bf16.gmra.mxu0 %v532
      %v649 = vpop.f32.mrf.mxu0
      %v650 = vadd.f32 0.0, %v649
      %v651 = vpop.f32.mrf.mxu0
      %v652 = vpop.f32.mrf.mxu0
      %v653 = vadd.f32 0.0, %v652
      %v654 = vpop.f32.mrf.mxu0
      %655 = vmatprep.mubr.bf16.mxu0 0
      %656 = vmatmul.mubr.bf16.gmra.mxu0 %v533
      %v657 = vpop.f32.mrf.mxu0
      %v658 = vadd.f32 0.0, %v657
      %v659 = vpop.f32.mrf.mxu0
      %v660 = vpop.f32.mrf.mxu0
      %v661 = vadd.f32 0.0, %v660
      %v662 = vpop.f32.mrf.mxu0
      %663 = vdwg.mxu0
      %v664 = vadd.f32 %v514, %v634
      %v665 = vadd.f32 %v515, %v637
      %v666 = vadd.f32 %v516, %v642
      %v667 = vadd.f32 %v517, %v645
      %v668 = vadd.f32 %v518, %v650
      %v669 = vadd.f32 %v519, %v653
      %v670 = vadd.f32 %v520, %v658
      %v671 = vadd.f32 %v521, %v661
      %v672 = vld [vmem:[%s283 + $0x2] sm:$0xff]
      %v673 = vld [vmem:[%s283 + $0xa] sm:$0xff]
      %v674 = vld [vmem:[%s283 + $0x12] sm:$0xff]
      %v675 = vld [vmem:[%s283 + $0x1a] sm:$0xff]
      %v676 = vld [vmem:[%s283 + $0x22] sm:$0xff]
      %v677 = vld [vmem:[%s283 + $0x2a] sm:$0xff]
      %v678 = vld [vmem:[%s283 + $0x32] sm:$0xff]
      %v679 = vld [vmem:[%s283 + $0x3a] sm:$0xff]
      %v680 = vpack.c.bf16 %v673, %v672
      %v681 = vpack.c.bf16 %v675, %v674
      %v682 = vpack.c.bf16 %v677, %v676
      %v683 = vpack.c.bf16 %v679, %v678
      %s684 = scalar_lea.vmem %s287, 128
      %v685 = vld [vmem:[%s684] sm:$0xf]
      %v686 = vld [vmem:[%s684 + $0x4] sm:$0xf]
      %v687 = vld [vmem:[%s684 + $0x8] sm:$0xf]
      %v688 = vld [vmem:[%s684 + $0xc] sm:$0xf]
      %v689 = vld [vmem:[%s684 + $0x10] sm:$0xf]
      %v690 = vld [vmem:[%s684 + $0x14] sm:$0xf]
      %v691 = vld [vmem:[%s684 + $0x18] sm:$0xf]
      %v692 = vld [vmem:[%s684 + $0x1c] sm:$0xf]
      %v693 = vld [vmem:[%s684 + $0x20] sm:$0xf]
      %v694 = vld [vmem:[%s684 + $0x24] sm:$0xf]
      %v695 = vld [vmem:[%s684 + $0x28] sm:$0xf]
      %v696 = vld [vmem:[%s684 + $0x2c] sm:$0xf]
      %v697 = vld [vmem:[%s684 + $0x30] sm:$0xf]
      %v698 = vld [vmem:[%s684 + $0x34] sm:$0xf]
      %v699 = vld [vmem:[%s684 + $0x38] sm:$0xf]
      %v700 = vld [vmem:[%s684 + $0x3c] sm:$0xf]
      %v717 = vunpack.c.l.b16 %v685
      %v718 = vunpack.c.l.b16 %v686
      %v719 = vunpack.c.l.b16 %v687
      %v720 = vunpack.c.l.b16 %v688
      %v721 = vunpack.c.l.b16 %v689
      %v722 = vunpack.c.l.b16 %v690
      %v723 = vunpack.c.l.b16 %v691
      %v724 = vunpack.c.l.b16 %v692
      %v725 = vunpack.c.l.b16 %v693
      %v726 = vunpack.c.l.b16 %v694
      %v727 = vunpack.c.l.b16 %v695
      %v728 = vunpack.c.l.b16 %v696
      %v729 = vunpack.c.l.b16 %v697
      %v730 = vunpack.c.l.b16 %v698
      %v731 = vunpack.c.l.b16 %v699
      %v732 = vunpack.c.l.b16 %v700
      %v733 = vpack.c.b16 %v718, %v717
      %v734 = vpack.c.b16 %v720, %v719
      %v735 = vpack.c.b16 %v722, %v721
      %v736 = vpack.c.b16 %v724, %v723
      %v737 = vpack.c.b16 %v726, %v725
      %v738 = vpack.c.b16 %v728, %v727
      %v739 = vpack.c.b16 %v730, %v729
      %v740 = vpack.c.b16 %v732, %v731
      %749 = vmatprep.subr.bf16.mxu0 0
      %750 = vmatpush1.bf16.msra.mxu0 %v740
      %751 = vmatprep.subr.bf16.mxu0 0
      %752 = vmatpush1.bf16.msra.mxu0 %v739
      %753 = vmatprep.subr.bf16.mxu0 0
      %754 = vmatpush1.bf16.msra.mxu0 %v738
      %755 = vmatprep.subr.bf16.mxu0 0
      %756 = vmatpush1.bf16.msra.mxu0 %v737
      %757 = vmatprep.subr.bf16.mxu0 0
      %758 = vmatpush1.bf16.msra.mxu0 %v736
      %759 = vmatprep.subr.bf16.mxu0 0
      %760 = vmatpush1.bf16.msra.mxu0 %v735
      %761 = vmatprep.subr.bf16.mxu0 0
      %762 = vmatpush1.bf16.msra.mxu0 %v734
      %763 = vmatprep.subr.bf16.mxu0 0
      %764 = vmatpush1.bf16.msra.mxu0 %v733
      %765 = vmatprep.subr.bf16.mxu0 0
      %766 = vmatpush2.bf16.msra.mxu0 0
      %767 = vmatprep.subr.bf16.mxu0 0
      %768 = vmatpush2.bf16.msra.mxu0 0
      %769 = vmatprep.subr.bf16.mxu0 0
      %770 = vmatpush2.bf16.msra.mxu0 0
      %771 = vmatprep.subr.bf16.mxu0 0
      %772 = vmatpush2.bf16.msra.mxu0 0
      %773 = vmatprep.subr.bf16.mxu0 0
      %774 = vmatpush2.bf16.msra.mxu0 0
      %775 = vmatprep.subr.bf16.mxu0 0
      %776 = vmatpush2.bf16.msra.mxu0 0
      %777 = vmatprep.subr.bf16.mxu0 0
      %778 = vmatpush2.bf16.msra.mxu0 0
      %779 = vmatprep.subr.bf16.mxu0 0
      %780 = vmatpush2.bf16.msra.mxu0 0
      %781 = vmatprep.mubr.bf16.mxu0 0
      %782 = vmatmul.mubr.bf16.gmra.mxu0 %v680
      %v783 = vpop.f32.mrf.mxu0
      %v784 = vadd.f32 0.0, %v783
      %v785 = vpop.f32.mrf.mxu0
      %v786 = vpop.f32.mrf.mxu0
      %v787 = vadd.f32 0.0, %v786
      %v788 = vpop.f32.mrf.mxu0
      %789 = vmatprep.mubr.bf16.mxu0 0
      %790 = vmatmul.mubr.bf16.gmra.mxu0 %v681
      %v791 = vpop.f32.mrf.mxu0
      %v792 = vadd.f32 0.0, %v791
      %v793 = vpop.f32.mrf.mxu0
      %v794 = vpop.f32.mrf.mxu0
      %v795 = vadd.f32 0.0, %v794
      %v796 = vpop.f32.mrf.mxu0
      %797 = vmatprep.mubr.bf16.mxu0 0
      %798 = vmatmul.mubr.bf16.gmra.mxu0 %v682
      %v799 = vpop.f32.mrf.mxu0
      %v800 = vadd.f32 0.0, %v799
      %v801 = vpop.f32.mrf.mxu0
      %v802 = vpop.f32.mrf.mxu0
      %v803 = vadd.f32 0.0, %v802
      %v804 = vpop.f32.mrf.mxu0
      %805 = vmatprep.mubr.bf16.mxu0 0
      %806 = vmatmul.mubr.bf16.gmra.mxu0 %v683
      %v807 = vpop.f32.mrf.mxu0
      %v808 = vadd.f32 0.0, %v807
      %v809 = vpop.f32.mrf.mxu0
      %v810 = vpop.f32.mrf.mxu0
      %v811 = vadd.f32 0.0, %v810
      %v812 = vpop.f32.mrf.mxu0
      %813 = vdwg.mxu0
      %815 = vset.pattern.permute.xlu0 0
      %816 = vperm.xlu0 %815, %v317
      %v817 = vpop.permute.xlu0 %816
      %820 = vset.pattern.permute.xlu0 0
      %821 = vperm.xlu0 %820, %v318
      %v822 = vpop.permute.xlu0 %821
      %825 = vset.pattern.permute.xlu0 0
      %826 = vperm.xlu0 %825, %v319
      %v827 = vpop.permute.xlu0 %826
      %830 = vset.pattern.permute.xlu0 0
      %831 = vperm.xlu0 %830, %v320
      %v832 = vpop.permute.xlu0 %831
      %835 = vset.pattern.permute.xlu0 0
      %836 = vperm.xlu0 %835, %v321
      %v837 = vpop.permute.xlu0 %836
      %840 = vset.pattern.permute.xlu0 0
      %841 = vperm.xlu0 %840, %v322
      %v842 = vpop.permute.xlu0 %841
      %845 = vset.pattern.permute.xlu0 0
      %846 = vperm.xlu0 %845, %v323
      %v847 = vpop.permute.xlu0 %846
      %850 = vset.pattern.permute.xlu0 0
      %851 = vperm.xlu0 %850, %v324
      %v852 = vpop.permute.xlu0 %851
      %v854 = vmul.f32 %v784, %v817
      %v855 = vmul.f32 %v787, %v822
      %v856 = vmul.f32 %v792, %v827
      %v857 = vmul.f32 %v795, %v832
      %v858 = vmul.f32 %v800, %v837
      %v859 = vmul.f32 %v803, %v842
      %v860 = vmul.f32 %v808, %v847
      %v861 = vmul.f32 %v811, %v852
      %v862 = vadd.f32 %v664, %v854
      %v863 = vadd.f32 %v665, %v855
      %v864 = vadd.f32 %v666, %v856
      %v865 = vadd.f32 %v667, %v857
      %v866 = vadd.f32 %v668, %v858
      %v867 = vadd.f32 %v669, %v859
      %v868 = vadd.f32 %v670, %v860
      %v869 = vadd.f32 %v671, %v861
      %v870 = vld [vmem:[%s283 + $0x8] sm:$0xff]
      %v871 = vld [vmem:[%s283 + $0x10] sm:$0xff]
      %v872 = vld [vmem:[%s283 + $0x18] sm:$0xff]
      %v873 = vld [vmem:[%s283 + $0x20] sm:$0xff]
      %v874 = vld [vmem:[%s283 + $0x28] sm:$0xff]
      %v875 = vld [vmem:[%s283 + $0x30] sm:$0xff]
      %v876 = vld [vmem:[%s283 + $0x38] sm:$0xff]
      %v877 = vld [vmem:[%s283 + $0x40] sm:$0xff]
      %v878 = vpack.c.bf16 %v871, %v870
      %v879 = vpack.c.bf16 %v873, %v872
      %v880 = vpack.c.bf16 %v875, %v874
      %v881 = vpack.c.bf16 %v877, %v876
      %s882 = scalar_lea.vmem %s287, 192
      %v883 = vld [vmem:[%s882] sm:$0xf]
      %v884 = vld [vmem:[%s882 + $0x4] sm:$0xf]
      %v885 = vld [vmem:[%s882 + $0x8] sm:$0xf]
      %v886 = vld [vmem:[%s882 + $0xc] sm:$0xf]
      %v887 = vld [vmem:[%s882 + $0x10] sm:$0xf]
      %v888 = vld [vmem:[%s882 + $0x14] sm:$0xf]
      %v889 = vld [vmem:[%s882 + $0x18] sm:$0xf]
      %v890 = vld [vmem:[%s882 + $0x1c] sm:$0xf]
      %v891 = vld [vmem:[%s882 + $0x20] sm:$0xf]
      %v892 = vld [vmem:[%s882 + $0x24] sm:$0xf]
      %v893 = vld [vmem:[%s882 + $0x28] sm:$0xf]
      %v894 = vld [vmem:[%s882 + $0x2c] sm:$0xf]
      %v895 = vld [vmem:[%s882 + $0x30] sm:$0xf]
      %v896 = vld [vmem:[%s882 + $0x34] sm:$0xf]
      %v897 = vld [vmem:[%s882 + $0x38] sm:$0xf]
      %v898 = vld [vmem:[%s882 + $0x3c] sm:$0xf]
      %v915 = vunpack.c.l.b16 %v883
      %v916 = vunpack.c.l.b16 %v884
      %v917 = vunpack.c.l.b16 %v885
      %v918 = vunpack.c.l.b16 %v886
      %v919 = vunpack.c.l.b16 %v887
      %v920 = vunpack.c.l.b16 %v888
      %v921 = vunpack.c.l.b16 %v889
      %v922 = vunpack.c.l.b16 %v890
      %v923 = vunpack.c.l.b16 %v891
      %v924 = vunpack.c.l.b16 %v892
      %v925 = vunpack.c.l.b16 %v893
      %v926 = vunpack.c.l.b16 %v894
      %v927 = vunpack.c.l.b16 %v895
      %v928 = vunpack.c.l.b16 %v896
      %v929 = vunpack.c.l.b16 %v897
      %v930 = vunpack.c.l.b16 %v898
      %v931 = vpack.c.b16 %v916, %v915
      %v932 = vpack.c.b16 %v918, %v917
      %v933 = vpack.c.b16 %v920, %v919
      %v934 = vpack.c.b16 %v922, %v921
      %v935 = vpack.c.b16 %v924, %v923
      %v936 = vpack.c.b16 %v926, %v925
      %v937 = vpack.c.b16 %v928, %v927
      %v938 = vpack.c.b16 %v930, %v929
      %947 = vmatprep.subr.bf16.mxu0 0
      %948 = vmatpush1.bf16.msra.mxu0 %v938
      %949 = vmatprep.subr.bf16.mxu0 0
      %950 = vmatpush1.bf16.msra.mxu0 %v937
      %951 = vmatprep.subr.bf16.mxu0 0
      %952 = vmatpush1.bf16.msra.mxu0 %v936
      %953 = vmatprep.subr.bf16.mxu0 0
      %954 = vmatpush1.bf16.msra.mxu0 %v935
      %955 = vmatprep.subr.bf16.mxu0 0
      %956 = vmatpush1.bf16.msra.mxu0 %v934
      %957 = vmatprep.subr.bf16.mxu0 0
      %958 = vmatpush1.bf16.msra.mxu0 %v933
      %959 = vmatprep.subr.bf16.mxu0 0
      %960 = vmatpush1.bf16.msra.mxu0 %v932
      %961 = vmatprep.subr.bf16.mxu0 0
      %962 = vmatpush1.bf16.msra.mxu0 %v931
      %963 = vmatprep.subr.bf16.mxu0 0
      %964 = vmatpush2.bf16.msra.mxu0 0
      %965 = vmatprep.subr.bf16.mxu0 0
      %966 = vmatpush2.bf16.msra.mxu0 0
      %967 = vmatprep.subr.bf16.mxu0 0
      %968 = vmatpush2.bf16.msra.mxu0 0
      %969 = vmatprep.subr.bf16.mxu0 0
      %970 = vmatpush2.bf16.msra.mxu0 0
      %971 = vmatprep.subr.bf16.mxu0 0
      %972 = vmatpush2.bf16.msra.mxu0 0
      %973 = vmatprep.subr.bf16.mxu0 0
      %974 = vmatpush2.bf16.msra.mxu0 0
      %975 = vmatprep.subr.bf16.mxu0 0
      %976 = vmatpush2.bf16.msra.mxu0 0
      %977 = vmatprep.subr.bf16.mxu0 0
      %978 = vmatpush2.bf16.msra.mxu0 0
      %979 = vmatprep.mubr.bf16.mxu0 0
      %980 = vmatmul.mubr.bf16.gmra.mxu0 %v878
      %v981 = vpop.f32.mrf.mxu0
      %v982 = vadd.f32 0.0, %v981
      %v983 = vpop.f32.mrf.mxu0
      %v984 = vpop.f32.mrf.mxu0
      %v985 = vadd.f32 0.0, %v984
      %v986 = vpop.f32.mrf.mxu0
      %987 = vmatprep.mubr.bf16.mxu0 0
      %988 = vmatmul.mubr.bf16.gmra.mxu0 %v879
      %v989 = vpop.f32.mrf.mxu0
      %v990 = vadd.f32 0.0, %v989
      %v991 = vpop.f32.mrf.mxu0
      %v992 = vpop.f32.mrf.mxu0
      %v993 = vadd.f32 0.0, %v992
      %v994 = vpop.f32.mrf.mxu0
      %995 = vmatprep.mubr.bf16.mxu0 0
      %996 = vmatmul.mubr.bf16.gmra.mxu0 %v880
      %v997 = vpop.f32.mrf.mxu0
      %v998 = vadd.f32 0.0, %v997
      %v999 = vpop.f32.mrf.mxu0
      %v1000 = vpop.f32.mrf.mxu0
      %v1001 = vadd.f32 0.0, %v1000
      %v1002 = vpop.f32.mrf.mxu0
      %1003 = vmatprep.mubr.bf16.mxu0 0
      %1004 = vmatmul.mubr.bf16.gmra.mxu0 %v881
      %v1005 = vpop.f32.mrf.mxu0
      %v1006 = vadd.f32 0.0, %v1005
      %v1007 = vpop.f32.mrf.mxu0
      %v1008 = vpop.f32.mrf.mxu0
      %v1009 = vadd.f32 0.0, %v1008
      %v1010 = vpop.f32.mrf.mxu0
      %1011 = vdwg.mxu0
      %v1012 = vmul.f32 %v982, %v469
      %v1013 = vmul.f32 %v985, %v474
      %v1014 = vmul.f32 %v990, %v479
      %v1015 = vmul.f32 %v993, %v484
      %v1016 = vmul.f32 %v998, %v489
      %v1017 = vmul.f32 %v1001, %v494
      %v1018 = vmul.f32 %v1006, %v499
      %v1019 = vmul.f32 %v1009, %v504
      %v1020 = vadd.f32 %v862, %v1012
      %v1021 = vadd.f32 %v863, %v1013
      %v1022 = vadd.f32 %v864, %v1014
      %v1023 = vadd.f32 %v865, %v1015
      %v1024 = vadd.f32 %v866, %v1016
      %v1025 = vadd.f32 %v867, %v1017
      %v1026 = vadd.f32 %v868, %v1018
      %v1027 = vadd.f32 %v869, %v1019
      %v1028 = vld [vmem:[%s283 + $0x9] sm:$0xff]
      %v1029 = vld [vmem:[%s283 + $0x11] sm:$0xff]
      %v1030 = vld [vmem:[%s283 + $0x19] sm:$0xff]
      %v1031 = vld [vmem:[%s283 + $0x21] sm:$0xff]
      %v1032 = vld [vmem:[%s283 + $0x29] sm:$0xff]
      %v1033 = vld [vmem:[%s283 + $0x31] sm:$0xff]
      %v1034 = vld [vmem:[%s283 + $0x39] sm:$0xff]
      %v1035 = vld [vmem:[%s283 + $0x41] sm:$0xff]
      %v1036 = vpack.c.bf16 %v1029, %v1028
      %v1037 = vpack.c.bf16 %v1031, %v1030
      %v1038 = vpack.c.bf16 %v1033, %v1032
      %v1039 = vpack.c.bf16 %v1035, %v1034
      %s1040 = scalar_lea.vmem %s287, 256
      %v1041 = vld [vmem:[%s1040] sm:$0xf]
      %v1042 = vld [vmem:[%s1040 + $0x4] sm:$0xf]
      %v1043 = vld [vmem:[%s1040 + $0x8] sm:$0xf]
      %v1044 = vld [vmem:[%s1040 + $0xc] sm:$0xf]
      %v1045 = vld [vmem:[%s1040 + $0x10] sm:$0xf]
      %v1046 = vld [vmem:[%s1040 + $0x14] sm:$0xf]
      %v1047 = vld [vmem:[%s1040 + $0x18] sm:$0xf]
      %v1048 = vld [vmem:[%s1040 + $0x1c] sm:$0xf]
      %v1049 = vld [vmem:[%s1040 + $0x20] sm:$0xf]
      %v1050 = vld [vmem:[%s1040 + $0x24] sm:$0xf]
      %v1051 = vld [vmem:[%s1040 + $0x28] sm:$0xf]
      %v1052 = vld [vmem:[%s1040 + $0x2c] sm:$0xf]
      %v1053 = vld [vmem:[%s1040 + $0x30] sm:$0xf]
      %v1054 = vld [vmem:[%s1040 + $0x34] sm:$0xf]
      %v1055 = vld [vmem:[%s1040 + $0x38] sm:$0xf]
      %v1056 = vld [vmem:[%s1040 + $0x3c] sm:$0xf]
      %v1073 = vunpack.c.l.b16 %v1041
      %v1074 = vunpack.c.l.b16 %v1042
      %v1075 = vunpack.c.l.b16 %v1043
      %v1076 = vunpack.c.l.b16 %v1044
      %v1077 = vunpack.c.l.b16 %v1045
      %v1078 = vunpack.c.l.b16 %v1046
      %v1079 = vunpack.c.l.b16 %v1047
      %v1080 = vunpack.c.l.b16 %v1048
      %v1081 = vunpack.c.l.b16 %v1049
      %v1082 = vunpack.c.l.b16 %v1050
      %v1083 = vunpack.c.l.b16 %v1051
      %v1084 = vunpack.c.l.b16 %v1052
      %v1085 = vunpack.c.l.b16 %v1053
      %v1086 = vunpack.c.l.b16 %v1054
      %v1087 = vunpack.c.l.b16 %v1055
      %v1088 = vunpack.c.l.b16 %v1056
      %v1089 = vpack.c.b16 %v1074, %v1073
      %v1090 = vpack.c.b16 %v1076, %v1075
      %v1091 = vpack.c.b16 %v1078, %v1077
      %v1092 = vpack.c.b16 %v1080, %v1079
      %v1093 = vpack.c.b16 %v1082, %v1081
      %v1094 = vpack.c.b16 %v1084, %v1083
      %v1095 = vpack.c.b16 %v1086, %v1085
      %v1096 = vpack.c.b16 %v1088, %v1087
      %1105 = vmatprep.subr.bf16.mxu0 0
      %1106 = vmatpush1.bf16.msra.mxu0 %v1096
      %1107 = vmatprep.subr.bf16.mxu0 0
      %1108 = vmatpush1.bf16.msra.mxu0 %v1095
      %1109 = vmatprep.subr.bf16.mxu0 0
      %1110 = vmatpush1.bf16.msra.mxu0 %v1094
      %1111 = vmatprep.subr.bf16.mxu0 0
      %1112 = vmatpush1.bf16.msra.mxu0 %v1093
      %1113 = vmatprep.subr.bf16.mxu0 0
      %1114 = vmatpush1.bf16.msra.mxu0 %v1092
      %1115 = vmatprep.subr.bf16.mxu0 0
      %1116 = vmatpush1.bf16.msra.mxu0 %v1091
      %1117 = vmatprep.subr.bf16.mxu0 0
      %1118 = vmatpush1.bf16.msra.mxu0 %v1090
      %1119 = vmatprep.subr.bf16.mxu0 0
      %1120 = vmatpush1.bf16.msra.mxu0 %v1089
      %1121 = vmatprep.subr.bf16.mxu0 0
      %1122 = vmatpush2.bf16.msra.mxu0 0
      %1123 = vmatprep.subr.bf16.mxu0 0
      %1124 = vmatpush2.bf16.msra.mxu0 0
      %1125 = vmatprep.subr.bf16.mxu0 0
      %1126 = vmatpush2.bf16.msra.mxu0 0
      %1127 = vmatprep.subr.bf16.mxu0 0
      %1128 = vmatpush2.bf16.msra.mxu0 0
      %1129 = vmatprep.subr.bf16.mxu0 0
      %1130 = vmatpush2.bf16.msra.mxu0 0
      %1131 = vmatprep.subr.bf16.mxu0 0
      %1132 = vmatpush2.bf16.msra.mxu0 0
      %1133 = vmatprep.subr.bf16.mxu0 0
      %1134 = vmatpush2.bf16.msra.mxu0 0
      %1135 = vmatprep.subr.bf16.mxu0 0
      %1136 = vmatpush2.bf16.msra.mxu0 0
      %1137 = vmatprep.mubr.bf16.mxu0 0
      %1138 = vmatmul.mubr.bf16.gmra.mxu0 %v1036
      %v1139 = vpop.f32.mrf.mxu0
      %v1140 = vadd.f32 0.0, %v1139
      %v1141 = vpop.f32.mrf.mxu0
      %v1142 = vpop.f32.mrf.mxu0
      %v1143 = vadd.f32 0.0, %v1142
      %v1144 = vpop.f32.mrf.mxu0
      %1145 = vmatprep.mubr.bf16.mxu0 0
      %1146 = vmatmul.mubr.bf16.gmra.mxu0 %v1037
      %v1147 = vpop.f32.mrf.mxu0
      %v1148 = vadd.f32 0.0, %v1147
      %v1149 = vpop.f32.mrf.mxu0
      %v1150 = vpop.f32.mrf.mxu0
      %v1151 = vadd.f32 0.0, %v1150
      %v1152 = vpop.f32.mrf.mxu0
      %1153 = vmatprep.mubr.bf16.mxu0 0
      %1154 = vmatmul.mubr.bf16.gmra.mxu0 %v1038
      %v1155 = vpop.f32.mrf.mxu0
      %v1156 = vadd.f32 0.0, %v1155
      %v1157 = vpop.f32.mrf.mxu0
      %v1158 = vpop.f32.mrf.mxu0
      %v1159 = vadd.f32 0.0, %v1158
      %v1160 = vpop.f32.mrf.mxu0
      %1161 = vmatprep.mubr.bf16.mxu0 0
      %1162 = vmatmul.mubr.bf16.gmra.mxu0 %v1039
      %v1163 = vpop.f32.mrf.mxu0
      %v1164 = vadd.f32 0.0, %v1163
      %v1165 = vpop.f32.mrf.mxu0
      %v1166 = vpop.f32.mrf.mxu0
      %v1167 = vadd.f32 0.0, %v1166
      %v1168 = vpop.f32.mrf.mxu0
      %1169 = vdwg.mxu0
      %v1170 = vadd.f32 %v1020, %v1140
      %v1171 = vadd.f32 %v1021, %v1143
      %v1172 = vadd.f32 %v1022, %v1148
      %v1173 = vadd.f32 %v1023, %v1151
      %v1174 = vadd.f32 %v1024, %v1156
      %v1175 = vadd.f32 %v1025, %v1159
      %v1176 = vadd.f32 %v1026, %v1164
      %v1177 = vadd.f32 %v1027, %v1167
      %v1178 = vld [vmem:[%s283 + $0xa] sm:$0xff]
      %v1179 = vld [vmem:[%s283 + $0x12] sm:$0xff]
      %v1180 = vld [vmem:[%s283 + $0x1a] sm:$0xff]
      %v1181 = vld [vmem:[%s283 + $0x22] sm:$0xff]
      %v1182 = vld [vmem:[%s283 + $0x2a] sm:$0xff]
      %v1183 = vld [vmem:[%s283 + $0x32] sm:$0xff]
      %v1184 = vld [vmem:[%s283 + $0x3a] sm:$0xff]
      %v1185 = vld [vmem:[%s283 + $0x42] sm:$0xff]
      %v1186 = vpack.c.bf16 %v1179, %v1178
      %v1187 = vpack.c.bf16 %v1181, %v1180
      %v1188 = vpack.c.bf16 %v1183, %v1182
      %v1189 = vpack.c.bf16 %v1185, %v1184
      %s1190 = scalar_lea.vmem %s287, 320
      %v1191 = vld [vmem:[%s1190] sm:$0xf]
      %v1192 = vld [vmem:[%s1190 + $0x4] sm:$0xf]
      %v1193 = vld [vmem:[%s1190 + $0x8] sm:$0xf]
      %v1194 = vld [vmem:[%s1190 + $0xc] sm:$0xf]
      %v1195 = vld [vmem:[%s1190 + $0x10] sm:$0xf]
      %v1196 = vld [vmem:[%s1190 + $0x14] sm:$0xf]
      %v1197 = vld [vmem:[%s1190 + $0x18] sm:$0xf]
      %v1198 = vld [vmem:[%s1190 + $0x1c] sm:$0xf]
      %v1199 = vld [vmem:[%s1190 + $0x20] sm:$0xf]
      %v1200 = vld [vmem:[%s1190 + $0x24] sm:$0xf]
      %v1201 = vld [vmem:[%s1190 + $0x28] sm:$0xf]
      %v1202 = vld [vmem:[%s1190 + $0x2c] sm:$0xf]
      %v1203 = vld [vmem:[%s1190 + $0x30] sm:$0xf]
      %v1204 = vld [vmem:[%s1190 + $0x34] sm:$0xf]
      %v1205 = vld [vmem:[%s1190 + $0x38] sm:$0xf]
      %v1206 = vld [vmem:[%s1190 + $0x3c] sm:$0xf]
      %v1223 = vunpack.c.l.b16 %v1191
      %v1224 = vunpack.c.l.b16 %v1192
      %v1225 = vunpack.c.l.b16 %v1193
      %v1226 = vunpack.c.l.b16 %v1194
      %v1227 = vunpack.c.l.b16 %v1195
      %v1228 = vunpack.c.l.b16 %v1196
      %v1229 = vunpack.c.l.b16 %v1197
      %v1230 = vunpack.c.l.b16 %v1198
      %v1231 = vunpack.c.l.b16 %v1199
      %v1232 = vunpack.c.l.b16 %v1200
      %v1233 = vunpack.c.l.b16 %v1201
      %v1234 = vunpack.c.l.b16 %v1202
      %v1235 = vunpack.c.l.b16 %v1203
      %v1236 = vunpack.c.l.b16 %v1204
      %v1237 = vunpack.c.l.b16 %v1205
      %v1238 = vunpack.c.l.b16 %v1206
      %v1239 = vpack.c.b16 %v1224, %v1223
      %v1240 = vpack.c.b16 %v1226, %v1225
      %v1241 = vpack.c.b16 %v1228, %v1227
      %v1242 = vpack.c.b16 %v1230, %v1229
      %v1243 = vpack.c.b16 %v1232, %v1231
      %v1244 = vpack.c.b16 %v1234, %v1233
      %v1245 = vpack.c.b16 %v1236, %v1235
      %v1246 = vpack.c.b16 %v1238, %v1237
      %1255 = vmatprep.subr.bf16.mxu0 0
      %1256 = vmatpush1.bf16.msra.mxu0 %v1246
      %1257 = vmatprep.subr.bf16.mxu0 0
      %1258 = vmatpush1.bf16.msra.mxu0 %v1245
      %1259 = vmatprep.subr.bf16.mxu0 0
      %1260 = vmatpush1.bf16.msra.mxu0 %v1244
      %1261 = vmatprep.subr.bf16.mxu0 0
      %1262 = vmatpush1.bf16.msra.mxu0 %v1243
      %1263 = vmatprep.subr.bf16.mxu0 0
      %1264 = vmatpush1.bf16.msra.mxu0 %v1242
      %1265 = vmatprep.subr.bf16.mxu0 0
      %1266 = vmatpush1.bf16.msra.mxu0 %v1241
      %1267 = vmatprep.subr.bf16.mxu0 0
      %1268 = vmatpush1.bf16.msra.mxu0 %v1240
      %1269 = vmatprep.subr.bf16.mxu0 0
      %1270 = vmatpush1.bf16.msra.mxu0 %v1239
      %1271 = vmatprep.subr.bf16.mxu0 0
      %1272 = vmatpush2.bf16.msra.mxu0 0
      %1273 = vmatprep.subr.bf16.mxu0 0
      %1274 = vmatpush2.bf16.msra.mxu0 0
      %1275 = vmatprep.subr.bf16.mxu0 0
      %1276 = vmatpush2.bf16.msra.mxu0 0
      %1277 = vmatprep.subr.bf16.mxu0 0
      %1278 = vmatpush2.bf16.msra.mxu0 0
      %1279 = vmatprep.subr.bf16.mxu0 0
      %1280 = vmatpush2.bf16.msra.mxu0 0
      %1281 = vmatprep.subr.bf16.mxu0 0
      %1282 = vmatpush2.bf16.msra.mxu0 0
      %1283 = vmatprep.subr.bf16.mxu0 0
      %1284 = vmatpush2.bf16.msra.mxu0 0
      %1285 = vmatprep.subr.bf16.mxu0 0
      %1286 = vmatpush2.bf16.msra.mxu0 0
      %1287 = vmatprep.mubr.bf16.mxu0 0
      %1288 = vmatmul.mubr.bf16.gmra.mxu0 %v1186
      %v1289 = vpop.f32.mrf.mxu0
      %v1290 = vadd.f32 0.0, %v1289
      %v1291 = vpop.f32.mrf.mxu0
      %v1292 = vpop.f32.mrf.mxu0
      %v1293 = vadd.f32 0.0, %v1292
      %v1294 = vpop.f32.mrf.mxu0
      %1295 = vmatprep.mubr.bf16.mxu0 0
      %1296 = vmatmul.mubr.bf16.gmra.mxu0 %v1187
      %v1297 = vpop.f32.mrf.mxu0
      %v1298 = vadd.f32 0.0, %v1297
      %v1299 = vpop.f32.mrf.mxu0
      %v1300 = vpop.f32.mrf.mxu0
      %v1301 = vadd.f32 0.0, %v1300
      %v1302 = vpop.f32.mrf.mxu0
      %1303 = vmatprep.mubr.bf16.mxu0 0
      %1304 = vmatmul.mubr.bf16.gmra.mxu0 %v1188
      %v1305 = vpop.f32.mrf.mxu0
      %v1306 = vadd.f32 0.0, %v1305
      %v1307 = vpop.f32.mrf.mxu0
      %v1308 = vpop.f32.mrf.mxu0
      %v1309 = vadd.f32 0.0, %v1308
      %v1310 = vpop.f32.mrf.mxu0
      %1311 = vmatprep.mubr.bf16.mxu0 0
      %1312 = vmatmul.mubr.bf16.gmra.mxu0 %v1189
      %v1313 = vpop.f32.mrf.mxu0
      %v1314 = vadd.f32 0.0, %v1313
      %v1315 = vpop.f32.mrf.mxu0
      %v1316 = vpop.f32.mrf.mxu0
      %v1317 = vadd.f32 0.0, %v1316
      %v1318 = vpop.f32.mrf.mxu0
      %1319 = vdwg.mxu0
      %v1320 = vmul.f32 %v1290, %v817
      %v1321 = vmul.f32 %v1293, %v822
      %v1322 = vmul.f32 %v1298, %v827
      %v1323 = vmul.f32 %v1301, %v832
      %v1324 = vmul.f32 %v1306, %v837
      %v1325 = vmul.f32 %v1309, %v842
      %v1326 = vmul.f32 %v1314, %v847
      %v1327 = vmul.f32 %v1317, %v852
      %v1328 = vadd.f32 %v1170, %v1320
      %v1329 = vadd.f32 %v1171, %v1321
      %v1330 = vadd.f32 %v1172, %v1322
      %v1331 = vadd.f32 %v1173, %v1323
      %v1332 = vadd.f32 %v1174, %v1324
      %v1333 = vadd.f32 %v1175, %v1325
      %v1334 = vadd.f32 %v1176, %v1326
      %v1335 = vadd.f32 %v1177, %v1327
      %v1336 = vld [vmem:[%s283 + $0x10] sm:$0xff]
      %v1337 = vld [vmem:[%s283 + $0x18] sm:$0xff]
      %v1338 = vld [vmem:[%s283 + $0x20] sm:$0xff]
      %v1339 = vld [vmem:[%s283 + $0x28] sm:$0xff]
      %v1340 = vld [vmem:[%s283 + $0x30] sm:$0xff]
      %v1341 = vld [vmem:[%s283 + $0x38] sm:$0xff]
      %v1342 = vld [vmem:[%s283 + $0x40] sm:$0xff]
      %v1343 = vld [vmem:[%s283 + $0x48] sm:$0xff]
      %v1344 = vpack.c.bf16 %v1337, %v1336
      %v1345 = vpack.c.bf16 %v1339, %v1338
      %v1346 = vpack.c.bf16 %v1341, %v1340
      %v1347 = vpack.c.bf16 %v1343, %v1342
      %s1348 = scalar_lea.vmem %s287, 384
      %v1349 = vld [vmem:[%s1348] sm:$0xf]
      %v1350 = vld [vmem:[%s1348 + $0x4] sm:$0xf]
      %v1351 = vld [vmem:[%s1348 + $0x8] sm:$0xf]
      %v1352 = vld [vmem:[%s1348 + $0xc] sm:$0xf]
      %v1353 = vld [vmem:[%s1348 + $0x10] sm:$0xf]
      %v1354 = vld [vmem:[%s1348 + $0x14] sm:$0xf]
      %v1355 = vld [vmem:[%s1348 + $0x18] sm:$0xf]
      %v1356 = vld [vmem:[%s1348 + $0x1c] sm:$0xf]
      %v1357 = vld [vmem:[%s1348 + $0x20] sm:$0xf]
      %v1358 = vld [vmem:[%s1348 + $0x24] sm:$0xf]
      %v1359 = vld [vmem:[%s1348 + $0x28] sm:$0xf]
      %v1360 = vld [vmem:[%s1348 + $0x2c] sm:$0xf]
      %v1361 = vld [vmem:[%s1348 + $0x30] sm:$0xf]
      %v1362 = vld [vmem:[%s1348 + $0x34] sm:$0xf]
      %v1363 = vld [vmem:[%s1348 + $0x38] sm:$0xf]
      %v1364 = vld [vmem:[%s1348 + $0x3c] sm:$0xf]
      %v1381 = vunpack.c.l.b16 %v1349
      %v1382 = vunpack.c.l.b16 %v1350
      %v1383 = vunpack.c.l.b16 %v1351
      %v1384 = vunpack.c.l.b16 %v1352
      %v1385 = vunpack.c.l.b16 %v1353
      %v1386 = vunpack.c.l.b16 %v1354
      %v1387 = vunpack.c.l.b16 %v1355
      %v1388 = vunpack.c.l.b16 %v1356
      %v1389 = vunpack.c.l.b16 %v1357
      %v1390 = vunpack.c.l.b16 %v1358
      %v1391 = vunpack.c.l.b16 %v1359
      %v1392 = vunpack.c.l.b16 %v1360
      %v1393 = vunpack.c.l.b16 %v1361
      %v1394 = vunpack.c.l.b16 %v1362
      %v1395 = vunpack.c.l.b16 %v1363
      %v1396 = vunpack.c.l.b16 %v1364
      %v1397 = vpack.c.b16 %v1382, %v1381
      %v1398 = vpack.c.b16 %v1384, %v1383
      %v1399 = vpack.c.b16 %v1386, %v1385
      %v1400 = vpack.c.b16 %v1388, %v1387
      %v1401 = vpack.c.b16 %v1390, %v1389
      %v1402 = vpack.c.b16 %v1392, %v1391
      %v1403 = vpack.c.b16 %v1394, %v1393
      %v1404 = vpack.c.b16 %v1396, %v1395
      %1413 = vmatprep.subr.bf16.mxu0 0
      %1414 = vmatpush1.bf16.msra.mxu0 %v1404
      %1415 = vmatprep.subr.bf16.mxu0 0
      %1416 = vmatpush1.bf16.msra.mxu0 %v1403
      %1417 = vmatprep.subr.bf16.mxu0 0
      %1418 = vmatpush1.bf16.msra.mxu0 %v1402
      %1419 = vmatprep.subr.bf16.mxu0 0
      %1420 = vmatpush1.bf16.msra.mxu0 %v1401
      %1421 = vmatprep.subr.bf16.mxu0 0
      %1422 = vmatpush1.bf16.msra.mxu0 %v1400
      %1423 = vmatprep.subr.bf16.mxu0 0
      %1424 = vmatpush1.bf16.msra.mxu0 %v1399
      %1425 = vmatprep.subr.bf16.mxu0 0
      %1426 = vmatpush1.bf16.msra.mxu0 %v1398
      %1427 = vmatprep.subr.bf16.mxu0 0
      %1428 = vmatpush1.bf16.msra.mxu0 %v1397
      %1429 = vmatprep.subr.bf16.mxu0 0
      %1430 = vmatpush2.bf16.msra.mxu0 0
      %1431 = vmatprep.subr.bf16.mxu0 0
      %1432 = vmatpush2.bf16.msra.mxu0 0
      %1433 = vmatprep.subr.bf16.mxu0 0
      %1434 = vmatpush2.bf16.msra.mxu0 0
      %1435 = vmatprep.subr.bf16.mxu0 0
      %1436 = vmatpush2.bf16.msra.mxu0 0
      %1437 = vmatprep.subr.bf16.mxu0 0
      %1438 = vmatpush2.bf16.msra.mxu0 0
      %1439 = vmatprep.subr.bf16.mxu0 0
      %1440 = vmatpush2.bf16.msra.mxu0 0
      %1441 = vmatprep.subr.bf16.mxu0 0
      %1442 = vmatpush2.bf16.msra.mxu0 0
      %1443 = vmatprep.subr.bf16.mxu0 0
      %1444 = vmatpush2.bf16.msra.mxu0 0
      %1445 = vmatprep.mubr.bf16.mxu0 0
      %1446 = vmatmul.mubr.bf16.gmra.mxu0 %v1344
      %v1447 = vpop.f32.mrf.mxu0
      %v1448 = vadd.f32 0.0, %v1447
      %v1449 = vpop.f32.mrf.mxu0
      %v1450 = vpop.f32.mrf.mxu0
      %v1451 = vadd.f32 0.0, %v1450
      %v1452 = vpop.f32.mrf.mxu0
      %1453 = vmatprep.mubr.bf16.mxu0 0
      %1454 = vmatmul.mubr.bf16.gmra.mxu0 %v1345
      %v1455 = vpop.f32.mrf.mxu0
      %v1456 = vadd.f32 0.0, %v1455
      %v1457 = vpop.f32.mrf.mxu0
      %v1458 = vpop.f32.mrf.mxu0
      %v1459 = vadd.f32 0.0, %v1458
      %v1460 = vpop.f32.mrf.mxu0
      %1461 = vmatprep.mubr.bf16.mxu0 0
      %1462 = vmatmul.mubr.bf16.gmra.mxu0 %v1346
      %v1463 = vpop.f32.mrf.mxu0
      %v1464 = vadd.f32 0.0, %v1463
      %v1465 = vpop.f32.mrf.mxu0
      %v1466 = vpop.f32.mrf.mxu0
      %v1467 = vadd.f32 0.0, %v1466
      %v1468 = vpop.f32.mrf.mxu0
      %1469 = vmatprep.mubr.bf16.mxu0 0
      %1470 = vmatmul.mubr.bf16.gmra.mxu0 %v1347
      %v1471 = vpop.f32.mrf.mxu0
      %v1472 = vadd.f32 0.0, %v1471
      %v1473 = vpop.f32.mrf.mxu0
      %v1474 = vpop.f32.mrf.mxu0
      %v1475 = vadd.f32 0.0, %v1474
      %v1476 = vpop.f32.mrf.mxu0
      %1477 = vdwg.mxu0
      %v1478 = vmul.f32 %v1448, %v469
      %v1479 = vmul.f32 %v1451, %v474
      %v1480 = vmul.f32 %v1456, %v479
      %v1481 = vmul.f32 %v1459, %v484
      %v1482 = vmul.f32 %v1464, %v489
      %v1483 = vmul.f32 %v1467, %v494
      %v1484 = vmul.f32 %v1472, %v499
      %v1485 = vmul.f32 %v1475, %v504
      %v1486 = vadd.f32 %v1328, %v1478
      %v1487 = vadd.f32 %v1329, %v1479
      %v1488 = vadd.f32 %v1330, %v1480
      %v1489 = vadd.f32 %v1331, %v1481
      %v1490 = vadd.f32 %v1332, %v1482
      %v1491 = vadd.f32 %v1333, %v1483
      %v1492 = vadd.f32 %v1334, %v1484
      %v1493 = vadd.f32 %v1335, %v1485
      %v1494 = vld [vmem:[%s283 + $0x11] sm:$0xff]
      %v1495 = vld [vmem:[%s283 + $0x19] sm:$0xff]
      %v1496 = vld [vmem:[%s283 + $0x21] sm:$0xff]
      %v1497 = vld [vmem:[%s283 + $0x29] sm:$0xff]
      %v1498 = vld [vmem:[%s283 + $0x31] sm:$0xff]
      %v1499 = vld [vmem:[%s283 + $0x39] sm:$0xff]
      %v1500 = vld [vmem:[%s283 + $0x41] sm:$0xff]
      %v1501 = vld [vmem:[%s283 + $0x49] sm:$0xff]
      %v1502 = vpack.c.bf16 %v1495, %v1494
      %v1503 = vpack.c.bf16 %v1497, %v1496
      %v1504 = vpack.c.bf16 %v1499, %v1498
      %v1505 = vpack.c.bf16 %v1501, %v1500
      %s1506 = scalar_lea.vmem %s287, 448
      %v1507 = vld [vmem:[%s1506] sm:$0xf]
      %v1508 = vld [vmem:[%s1506 + $0x4] sm:$0xf]
      %v1509 = vld [vmem:[%s1506 + $0x8] sm:$0xf]
      %v1510 = vld [vmem:[%s1506 + $0xc] sm:$0xf]
      %v1511 = vld [vmem:[%s1506 + $0x10] sm:$0xf]
      %v1512 = vld [vmem:[%s1506 + $0x14] sm:$0xf]
      %v1513 = vld [vmem:[%s1506 + $0x18] sm:$0xf]
      %v1514 = vld [vmem:[%s1506 + $0x1c] sm:$0xf]
      %v1515 = vld [vmem:[%s1506 + $0x20] sm:$0xf]
      %v1516 = vld [vmem:[%s1506 + $0x24] sm:$0xf]
      %v1517 = vld [vmem:[%s1506 + $0x28] sm:$0xf]
      %v1518 = vld [vmem:[%s1506 + $0x2c] sm:$0xf]
      %v1519 = vld [vmem:[%s1506 + $0x30] sm:$0xf]
      %v1520 = vld [vmem:[%s1506 + $0x34] sm:$0xf]
      %v1521 = vld [vmem:[%s1506 + $0x38] sm:$0xf]
      %v1522 = vld [vmem:[%s1506 + $0x3c] sm:$0xf]
      %v1539 = vunpack.c.l.b16 %v1507
      %v1540 = vunpack.c.l.b16 %v1508
      %v1541 = vunpack.c.l.b16 %v1509
      %v1542 = vunpack.c.l.b16 %v1510
      %v1543 = vunpack.c.l.b16 %v1511
      %v1544 = vunpack.c.l.b16 %v1512
      %v1545 = vunpack.c.l.b16 %v1513
      %v1546 = vunpack.c.l.b16 %v1514
      %v1547 = vunpack.c.l.b16 %v1515
      %v1548 = vunpack.c.l.b16 %v1516
      %v1549 = vunpack.c.l.b16 %v1517
      %v1550 = vunpack.c.l.b16 %v1518
      %v1551 = vunpack.c.l.b16 %v1519
      %v1552 = vunpack.c.l.b16 %v1520
      %v1553 = vunpack.c.l.b16 %v1521
      %v1554 = vunpack.c.l.b16 %v1522
      %v1555 = vpack.c.b16 %v1540, %v1539
      %v1556 = vpack.c.b16 %v1542, %v1541
      %v1557 = vpack.c.b16 %v1544, %v1543
      %v1558 = vpack.c.b16 %v1546, %v1545
      %v1559 = vpack.c.b16 %v1548, %v1547
      %v1560 = vpack.c.b16 %v1550, %v1549
      %v1561 = vpack.c.b16 %v1552, %v1551
      %v1562 = vpack.c.b16 %v1554, %v1553
      %1571 = vmatprep.subr.bf16.mxu0 0
      %1572 = vmatpush1.bf16.msra.mxu0 %v1562
      %1573 = vmatprep.subr.bf16.mxu0 0
      %1574 = vmatpush1.bf16.msra.mxu0 %v1561
      %1575 = vmatprep.subr.bf16.mxu0 0
      %1576 = vmatpush1.bf16.msra.mxu0 %v1560
      %1577 = vmatprep.subr.bf16.mxu0 0
      %1578 = vmatpush1.bf16.msra.mxu0 %v1559
      %1579 = vmatprep.subr.bf16.mxu0 0
      %1580 = vmatpush1.bf16.msra.mxu0 %v1558
      %1581 = vmatprep.subr.bf16.mxu0 0
      %1582 = vmatpush1.bf16.msra.mxu0 %v1557
      %1583 = vmatprep.subr.bf16.mxu0 0
      %1584 = vmatpush1.bf16.msra.mxu0 %v1556
      %1585 = vmatprep.subr.bf16.mxu0 0
      %1586 = vmatpush1.bf16.msra.mxu0 %v1555
      %1587 = vmatprep.subr.bf16.mxu0 0
      %1588 = vmatpush2.bf16.msra.mxu0 0
      %1589 = vmatprep.subr.bf16.mxu0 0
      %1590 = vmatpush2.bf16.msra.mxu0 0
      %1591 = vmatprep.subr.bf16.mxu0 0
      %1592 = vmatpush2.bf16.msra.mxu0 0
      %1593 = vmatprep.subr.bf16.mxu0 0
      %1594 = vmatpush2.bf16.msra.mxu0 0
      %1595 = vmatprep.subr.bf16.mxu0 0
      %1596 = vmatpush2.bf16.msra.mxu0 0
      %1597 = vmatprep.subr.bf16.mxu0 0
      %1598 = vmatpush2.bf16.msra.mxu0 0
      %1599 = vmatprep.subr.bf16.mxu0 0
      %1600 = vmatpush2.bf16.msra.mxu0 0
      %1601 = vmatprep.subr.bf16.mxu0 0
      %1602 = vmatpush2.bf16.msra.mxu0 0
      %1603 = vmatprep.mubr.bf16.mxu0 0
      %1604 = vmatmul.mubr.bf16.gmra.mxu0 %v1502
      %v1605 = vpop.f32.mrf.mxu0
      %v1606 = vadd.f32 0.0, %v1605
      %v1607 = vpop.f32.mrf.mxu0
      %v1608 = vpop.f32.mrf.mxu0
      %v1609 = vadd.f32 0.0, %v1608
      %v1610 = vpop.f32.mrf.mxu0
      %1611 = vmatprep.mubr.bf16.mxu0 0
      %1612 = vmatmul.mubr.bf16.gmra.mxu0 %v1503
      %v1613 = vpop.f32.mrf.mxu0
      %v1614 = vadd.f32 0.0, %v1613
      %v1615 = vpop.f32.mrf.mxu0
      %v1616 = vpop.f32.mrf.mxu0
      %v1617 = vadd.f32 0.0, %v1616
      %v1618 = vpop.f32.mrf.mxu0
      %1619 = vmatprep.mubr.bf16.mxu0 0
      %1620 = vmatmul.mubr.bf16.gmra.mxu0 %v1504
      %v1621 = vpop.f32.mrf.mxu0
      %v1622 = vadd.f32 0.0, %v1621
      %v1623 = vpop.f32.mrf.mxu0
      %v1624 = vpop.f32.mrf.mxu0
      %v1625 = vadd.f32 0.0, %v1624
      %v1626 = vpop.f32.mrf.mxu0
      %1627 = vmatprep.mubr.bf16.mxu0 0
      %1628 = vmatmul.mubr.bf16.gmra.mxu0 %v1505
      %v1629 = vpop.f32.mrf.mxu0
      %v1630 = vadd.f32 0.0, %v1629
      %v1631 = vpop.f32.mrf.mxu0
      %v1632 = vpop.f32.mrf.mxu0
      %v1633 = vadd.f32 0.0, %v1632
      %v1634 = vpop.f32.mrf.mxu0
      %1635 = vdwg.mxu0
      %v1636 = vadd.f32 %v1486, %v1606
      %v1637 = vadd.f32 %v1487, %v1609
      %v1638 = vadd.f32 %v1488, %v1614
      %v1639 = vadd.f32 %v1489, %v1617
      %v1640 = vadd.f32 %v1490, %v1622
      %v1641 = vadd.f32 %v1491, %v1625
      %v1642 = vadd.f32 %v1492, %v1630
      %v1643 = vadd.f32 %v1493, %v1633
      %v1644 = vld [vmem:[%s283 + $0x12] sm:$0xff]
      %v1645 = vld [vmem:[%s283 + $0x1a] sm:$0xff]
      %v1646 = vld [vmem:[%s283 + $0x22] sm:$0xff]
      %v1647 = vld [vmem:[%s283 + $0x2a] sm:$0xff]
      %v1648 = vld [vmem:[%s283 + $0x32] sm:$0xff]
      %v1649 = vld [vmem:[%s283 + $0x3a] sm:$0xff]
      %v1650 = vld [vmem:[%s283 + $0x42] sm:$0xff]
      %v1651 = vld [vmem:[%s283 + $0x4a] sm:$0xff]
      %v1652 = vpack.c.bf16 %v1645, %v1644
      %v1653 = vpack.c.bf16 %v1647, %v1646
      %v1654 = vpack.c.bf16 %v1649, %v1648
      %v1655 = vpack.c.bf16 %v1651, %v1650
      %s1656 = scalar_lea.vmem %s287, 512
      %v1657 = vld [vmem:[%s1656] sm:$0xf]
      %v1658 = vld [vmem:[%s1656 + $0x4] sm:$0xf]
      %v1659 = vld [vmem:[%s1656 + $0x8] sm:$0xf]
      %v1660 = vld [vmem:[%s1656 + $0xc] sm:$0xf]
      %v1661 = vld [vmem:[%s1656 + $0x10] sm:$0xf]
      %v1662 = vld [vmem:[%s1656 + $0x14] sm:$0xf]
      %v1663 = vld [vmem:[%s1656 + $0x18] sm:$0xf]
      %v1664 = vld [vmem:[%s1656 + $0x1c] sm:$0xf]
      %v1665 = vld [vmem:[%s1656 + $0x20] sm:$0xf]
      %v1666 = vld [vmem:[%s1656 + $0x24] sm:$0xf]
      %v1667 = vld [vmem:[%s1656 + $0x28] sm:$0xf]
      %v1668 = vld [vmem:[%s1656 + $0x2c] sm:$0xf]
      %v1669 = vld [vmem:[%s1656 + $0x30] sm:$0xf]
      %v1670 = vld [vmem:[%s1656 + $0x34] sm:$0xf]
      %v1671 = vld [vmem:[%s1656 + $0x38] sm:$0xf]
      %v1672 = vld [vmem:[%s1656 + $0x3c] sm:$0xf]
      %v1689 = vunpack.c.l.b16 %v1657
      %v1690 = vunpack.c.l.b16 %v1658
      %v1691 = vunpack.c.l.b16 %v1659
      %v1692 = vunpack.c.l.b16 %v1660
      %v1693 = vunpack.c.l.b16 %v1661
      %v1694 = vunpack.c.l.b16 %v1662
      %v1695 = vunpack.c.l.b16 %v1663
      %v1696 = vunpack.c.l.b16 %v1664
      %v1697 = vunpack.c.l.b16 %v1665
      %v1698 = vunpack.c.l.b16 %v1666
      %v1699 = vunpack.c.l.b16 %v1667
      %v1700 = vunpack.c.l.b16 %v1668
      %v1701 = vunpack.c.l.b16 %v1669
      %v1702 = vunpack.c.l.b16 %v1670
      %v1703 = vunpack.c.l.b16 %v1671
      %v1704 = vunpack.c.l.b16 %v1672
      %v1705 = vpack.c.b16 %v1690, %v1689
      %v1706 = vpack.c.b16 %v1692, %v1691
      %v1707 = vpack.c.b16 %v1694, %v1693
      %v1708 = vpack.c.b16 %v1696, %v1695
      %v1709 = vpack.c.b16 %v1698, %v1697
      %v1710 = vpack.c.b16 %v1700, %v1699
      %v1711 = vpack.c.b16 %v1702, %v1701
      %v1712 = vpack.c.b16 %v1704, %v1703
      %1721 = vmatprep.subr.bf16.mxu0 0
      %1722 = vmatpush1.bf16.msra.mxu0 %v1712
      %1723 = vmatprep.subr.bf16.mxu0 0
      %1724 = vmatpush1.bf16.msra.mxu0 %v1711
      %1725 = vmatprep.subr.bf16.mxu0 0
      %1726 = vmatpush1.bf16.msra.mxu0 %v1710
      %1727 = vmatprep.subr.bf16.mxu0 0
      %1728 = vmatpush1.bf16.msra.mxu0 %v1709
      %1729 = vmatprep.subr.bf16.mxu0 0
      %1730 = vmatpush1.bf16.msra.mxu0 %v1708
      %1731 = vmatprep.subr.bf16.mxu0 0
      %1732 = vmatpush1.bf16.msra.mxu0 %v1707
      %1733 = vmatprep.subr.bf16.mxu0 0
      %1734 = vmatpush1.bf16.msra.mxu0 %v1706
      %1735 = vmatprep.subr.bf16.mxu0 0
      %1736 = vmatpush1.bf16.msra.mxu0 %v1705
      %1737 = vmatprep.subr.bf16.mxu0 0
      %1738 = vmatpush2.bf16.msra.mxu0 0
      %1739 = vmatprep.subr.bf16.mxu0 0
      %1740 = vmatpush2.bf16.msra.mxu0 0
      %1741 = vmatprep.subr.bf16.mxu0 0
      %1742 = vmatpush2.bf16.msra.mxu0 0
      %1743 = vmatprep.subr.bf16.mxu0 0
      %1744 = vmatpush2.bf16.msra.mxu0 0
      %1745 = vmatprep.subr.bf16.mxu0 0
      %1746 = vmatpush2.bf16.msra.mxu0 0
      %1747 = vmatprep.subr.bf16.mxu0 0
      %1748 = vmatpush2.bf16.msra.mxu0 0
      %1749 = vmatprep.subr.bf16.mxu0 0
      %1750 = vmatpush2.bf16.msra.mxu0 0
      %1751 = vmatprep.subr.bf16.mxu0 0
      %1752 = vmatpush2.bf16.msra.mxu0 0
      %1753 = vmatprep.mubr.bf16.mxu0 0
      %1754 = vmatmul.mubr.bf16.gmra.mxu0 %v1652
      %v1755 = vpop.f32.mrf.mxu0
      %v1756 = vadd.f32 0.0, %v1755
      %v1757 = vpop.f32.mrf.mxu0
      %v1758 = vpop.f32.mrf.mxu0
      %v1759 = vadd.f32 0.0, %v1758
      %v1760 = vpop.f32.mrf.mxu0
      %1761 = vmatprep.mubr.bf16.mxu0 0
      %1762 = vmatmul.mubr.bf16.gmra.mxu0 %v1653
      %v1763 = vpop.f32.mrf.mxu0
      %v1764 = vadd.f32 0.0, %v1763
      %v1765 = vpop.f32.mrf.mxu0
      %v1766 = vpop.f32.mrf.mxu0
      %v1767 = vadd.f32 0.0, %v1766
      %v1768 = vpop.f32.mrf.mxu0
      %1769 = vmatprep.mubr.bf16.mxu0 0
      %1770 = vmatmul.mubr.bf16.gmra.mxu0 %v1654
      %v1771 = vpop.f32.mrf.mxu0
      %v1772 = vadd.f32 0.0, %v1771
      %v1773 = vpop.f32.mrf.mxu0
      %v1774 = vpop.f32.mrf.mxu0
      %v1775 = vadd.f32 0.0, %v1774
      %v1776 = vpop.f32.mrf.mxu0
      %1777 = vmatprep.mubr.bf16.mxu0 0
      %1778 = vmatmul.mubr.bf16.gmra.mxu0 %v1655
      %v1779 = vpop.f32.mrf.mxu0
      %v1780 = vadd.f32 0.0, %v1779
      %v1781 = vpop.f32.mrf.mxu0
      %v1782 = vpop.f32.mrf.mxu0
      %v1783 = vadd.f32 0.0, %v1782
      %v1784 = vpop.f32.mrf.mxu0
      %1785 = vdwg.mxu0
      %v1786 = vmul.f32 %v1756, %v817
      %v1787 = vmul.f32 %v1759, %v822
      %v1788 = vmul.f32 %v1764, %v827
      %v1789 = vmul.f32 %v1767, %v832
      %v1790 = vmul.f32 %v1772, %v837
      %v1791 = vmul.f32 %v1775, %v842
      %v1792 = vmul.f32 %v1780, %v847
      %v1793 = vmul.f32 %v1783, %v852
      %v1794 = vadd.f32 %v1636, %v1786
      %v1795 = vadd.f32 %v1637, %v1787
      %v1796 = vadd.f32 %v1638, %v1788
      %v1797 = vadd.f32 %v1639, %v1789
      %v1798 = vadd.f32 %v1640, %v1790
      %v1799 = vadd.f32 %v1641, %v1791
      %v1800 = vadd.f32 %v1642, %v1792
      %v1801 = vadd.f32 %v1643, %v1793
      %v1802 = vld [vmem:[%s290] sm:$0x1]
      %v1804 = vlaneseq
      %v1805 = vshrl.u32 %v1804, 7
      %v1806 = vsub.s32 0, %v1805
      %v1807 = vrot.slane %v1802, %v1806
      %v1809 = vadd.f32 %v1794, %v1807
      %v1810 = vadd.f32 %v1795, %v1807
      %v1811 = vadd.f32 %v1796, %v1807
      %v1812 = vadd.f32 %v1797, %v1807
      %v1813 = vadd.f32 %v1798, %v1807
      %v1814 = vadd.f32 %v1799, %v1807
      %v1815 = vadd.f32 %v1800, %v1807
      %v1816 = vadd.f32 %v1801, %v1807
      %v1817 = vld [vmem:[%s298] sm:$0xf]
      %v1818 = vld [vmem:[%s298 + $0x4] sm:$0xf]
      %v1819 = vld [vmem:[%s298 + $0x8] sm:$0xf]
      %v1820 = vld [vmem:[%s298 + $0xc] sm:$0xf]
      %v1821 = vld [vmem:[%s298 + $0x10] sm:$0xf]
      %v1822 = vld [vmem:[%s298 + $0x14] sm:$0xf]
      %v1823 = vld [vmem:[%s298 + $0x18] sm:$0xf]
      %v1824 = vld [vmem:[%s298 + $0x1c] sm:$0xf]
      %v1825 = vunpack.c.l.bf16 %v1817
      %v1826 = vunpack.c.l.bf16 %v1818
      %v1827 = vunpack.c.l.bf16 %v1819
      %v1828 = vunpack.c.l.bf16 %v1820
      %v1829 = vunpack.c.l.bf16 %v1821
      %v1830 = vunpack.c.l.bf16 %v1822
      %v1831 = vunpack.c.l.bf16 %v1823
      %v1832 = vunpack.c.l.bf16 %v1824
      %v1833 = vadd.f32 %v1809, %v1825
      %v1834 = vadd.f32 %v1810, %v1826
      %v1835 = vadd.f32 %v1811, %v1827
      %v1836 = vadd.f32 %v1812, %v1828
      %v1837 = vadd.f32 %v1813, %v1829
      %v1838 = vadd.f32 %v1814, %v1830
      %v1839 = vadd.f32 %v1815, %v1831
      %v1840 = vadd.f32 %v1816, %v1832
      %v1841 = vmax.f32 %v1833, 0.0
      %v1842 = vmax.f32 %v1834, 0.0
      %v1843 = vmax.f32 %v1835, 0.0
      %v1844 = vmax.f32 %v1836, 0.0
      %v1845 = vmax.f32 %v1837, 0.0
      %v1846 = vmax.f32 %v1838, 0.0
      %v1847 = vmax.f32 %v1839, 0.0
      %v1848 = vmax.f32 %v1840, 0.0
      %v1849 = vpack.c.bf16 %v1842, %v1841
      %v1850 = vpack.c.bf16 %v1844, %v1843
      %v1851 = vpack.c.bf16 %v1846, %v1845
      %v1852 = vpack.c.bf16 %v1848, %v1847
      %v1857 = vunpack.c.l.b16 %v1849
      %v1858 = vunpack.c.h.b16 %v1849
      %v1859 = vunpack.c.l.b16 %v1850
      %v1860 = vunpack.c.h.b16 %v1850
      %v1861 = vunpack.c.l.b16 %v1851
      %v1862 = vunpack.c.h.b16 %v1851
      %v1863 = vunpack.c.l.b16 %v1852
      %v1864 = vunpack.c.h.b16 %v1852
      %v1865 = vpack.c.b16 %v1857, %v1857
      %v1866 = vpack.c.b16 %v1858, %v1858
      %v1867 = vpack.c.b16 %v1859, %v1859
      %v1868 = vpack.c.b16 %v1860, %v1860
      %v1869 = vpack.c.b16 %v1861, %v1861
      %v1870 = vpack.c.b16 %v1862, %v1862
      %v1871 = vpack.c.b16 %v1863, %v1863
      %v1872 = vpack.c.b16 %v1864, %v1864
      %1881 = vst [vmem:[%s306] sm:$0xf] %v1865
      %1882 = vst [vmem:[%s306 + $0x4] sm:$0xf] %v1866
      %1883 = vst [vmem:[%s306 + $0x8] sm:$0xf] %v1867
      %1884 = vst [vmem:[%s306 + $0xc] sm:$0xf] %v1868
      %1885 = vst [vmem:[%s306 + $0x10] sm:$0xf] %v1869
      %1886 = vst [vmem:[%s306 + $0x14] sm:$0xf] %v1870
      %1887 = vst [vmem:[%s306 + $0x18] sm:$0xf] %v1871
      %1888 = vst [vmem:[%s306 + $0x1c] sm:$0xf] %v1872
      %p1889 = scmp.lt.s32.totalorder %s21, 1
      %s1890 = scalar_select %p1889, %s21, 1
      %p1891 = scmp.lt.s32.totalorder %s20, 0
      %s1892 = scalar_select %p1891, %s20, 0
      %s1893 = smul.addr %s1890, 8
      %s1894 = sadd.s32 %s1892, %s1893
      %s1895 = smul.addr %s1894, 4
      %s1896 = scalar_lea.vmem %s5, %s1895
      // Predicated region
      $region41: #{stage2_forward.9} parent=39 // pred_check
        %p1897 = pneg %p175
      $region42: #{stage2_forward.9} parent=39 // pred_check_branch
        %1899 = sbr.rel (%p1897) target = $region44
      $region43: #{stage2_forward.9} parent=39 // pred_region
        _
      $region44: #{stage2_forward.9} parent=39 // pred_fallthru
        _
    $region40: #{stage2_forward.9} parent=5 // pred_fallthru
      _
    %p1900 = scmp.le.s32.totalorder 2, %s11
    // Predicated region
    $region45: #{stage2_forward.9} parent=5 // pred_check
      %p1901 = pneg %p1900
    $region46: #{stage2_forward.9} parent=5 // pred_check_branch
      %1903 = sbr.rel (%p1901) target = $region48
    $region47: #{stage2_forward.9} parent=5 // pred_region
      %s1904 = ssub.s32 %s11, 2
      // Predicated region
      $region49: #{stage2_forward.9} parent=47 // pred_check
        %p1905 = pneg %p181
      $region50: #{stage2_forward.9} parent=47 // pred_check_branch
        %1907 = sbr.rel (%p1905) target = $region52
      $region51: #{stage2_forward.9} parent=47 // pred_region
        %p1908 = scmp.lt.s32.totalorder %s23, 1
        %s1909 = scalar_select %p1908, %s23, 1
        %p1910 = scmp.lt.s32.totalorder %s22, 0
        %s1911 = scalar_select %p1910, %s22, 0
        %s1912 = smul.addr %s1909, 8
        %s1913 = sadd.s32 %s1911, %s1912
        %s1914 = smul.addr %s1913, 4
        %s1915 = scalar_lea.vmem %s5, %s1914
      $region52: #{stage2_forward.9} parent=47 // pred_fallthru
        _
    $region48: #{stage2_forward.9} parent=5 // pred_fallthru
      _
  $region6: #{stage2_forward.9} parent=0 // loop_footer
    %s15 = sadd.s32 1, %s11
  $region7: #{stage2_forward.9} parent=0 // loop_footer_branch
    %10 = sbr.rel target = $region3
  $region8: #{stage2_forward.9} parent=0 // loop_exit
    _

// kernel: stage2_forward.8
$region0: #{stage2_forward.8}
  #allocation0 [shape = 'u32[]', space=smem, size = 0x4, offset = 0x4, fixed_abs, tag = 'smem constant byte address 0x4 - core index']
  #allocation1 [shape = 'u32[144,128]{1,0:T(1,128)}', space=vmem, size = 0x12000, scoped, tag = 'internal scratch']
  %s0 = inlined_call_operand.vmem [shape: f32[2,82,128], index: 0, kind: input, shape index: {}]
  %s1 = inlined_call_operand.vmem [shape: bf16[9,128,128], index: 1, kind: input, shape index: {}]
  %s2 = inlined_call_operand.vmem [shape: f32[1,128], index: 2, kind: input, shape index: {}]
  %s3 = inlined_call_operand.vmem [shape: f32[2,64,1], index: 3, kind: input, shape index: {}]
  %s4 = inlined_call_operand.vmem [shape: bf16[2,64,128], index: 4, kind: output, shape index: {}]
  %s5 = sld [smem:[#allocation0]]
  $region49: #{stage2_forward.8} parent=0
    _
  %s7 = ssub.s32 1, %s5
  %s8 = scalar_select 0, %s7, %s5
  loop: start=0, step=1, limit=4
  $region2: #{stage2_forward.8} parent=0 // loop_pre_header
    _
  $region3: #{stage2_forward.8} parent=0 // loop_header
    %s10 = sphi 0, %s14
    %p11 = scmp.ge.s32.totalorder %s10, 4
    %s17 = sphi 0, %s29
    %s18 = sphi 0, %s25
    %s19 = sphi 0, %s17
    %s20 = sphi 0, %s18
    %s21 = sphi 0, %s19
    %s22 = sphi 0, %s20
    %s32 = sphi 0, %s34
    %s35 = sphi 0, %s32
    %s36 = sphi 0, %s35
    %s52 = sphi 0, %s36
    %s58 = sphi 0, %s60
    %s61 = sphi 0, %s58
    %s62 = sphi 0, %s61
    %s78 = sphi 0, %s62
    %s84 = sphi 0, %s86
    %s87 = sphi 0, %s84
    %s88 = sphi 0, %s87
    %s104 = sphi 0, %s88
    %s108 = sphi 0, %s108
    %s110 = sphi 0, %s108
    %s111 = sphi 0, %s110
    %s125 = sphi 0, %s111
    %s133 = sphi 0, %s135
    %s136 = sphi 0, %s133
    %s137 = sphi 0, %s136
    %s153 = sphi 0, %s137
  $region4: #{stage2_forward.8} parent=0 // loop_header_branch
    %13 = sbr.rel (%p11) target = $region8
  $region5: #{stage2_forward.8} parent=0 // loop_body
    %s15 = ssub.s32 %s10, 1
    %s16 = ssub.s32 %s10, 2
    %s23 = sadd.s32 1, %s18
    %p24 = scmp.ge.s32.totalorder %s23, 2
    %s25 = scalar_select %p24, 0, %s23
    %s26 = sadd.s32 1, %s17
    %s27 = scalar_select %p24, %s26, %s17
    %p28 = scmp.ge.s32.totalorder %s27, 1
    %s29 = scalar_select %p28, 0, %s27
    %s30 = ssub.s32 %s18, %s25
    %p31 = scmp.eq.s32.totalorder %s30, 0
    %s33 = sadd.s32 %s32, 1
    %s34 = scalar_select %p31, %s32, %s33
    %p37 = pneg %p31
    %p38 = scmp.eq.s32.totalorder %s10, 1
    %p39 = por %p37, %p38
    %p40 = scmp.ne.s32.totalorder %s32, %s35
    %p41 = scmp.eq.s32.totalorder %s10, 0
    %p42 = por %p40, %p41
    %p43 = scmp.ne.s32.totalorder %s32, %s35
    %p44 = scmp.eq.s32.totalorder %s15, 1
    %p45 = por %p43, %p44
    %p46 = scmp.ne.s32.totalorder %s35, %s36
    %p47 = scmp.eq.s32.totalorder %s15, 0
    %p48 = por %p46, %p47
    %p49 = scmp.ne.s32.totalorder %s35, %s36
    %p50 = scmp.eq.s32.totalorder %s16, 1
    %p51 = por %p49, %p50
    %p53 = scmp.ne.s32.totalorder %s36, %s52
    %p54 = scmp.eq.s32.totalorder %s16, 0
    %p55 = por %p53, %p54
    %s56 = ssub.s32 %s17, %s29
    %p57 = scmp.eq.s32.totalorder %s56, 0
    %s59 = sadd.s32 %s58, 1
    %s60 = scalar_select %p57, %s58, %s59
    %p63 = pneg %p57
    %p64 = scmp.eq.s32.totalorder %s10, 1
    %p65 = por %p63, %p64
    %p66 = scmp.ne.s32.totalorder %s58, %s61
    %p67 = scmp.eq.s32.totalorder %s10, 0
    %p68 = por %p66, %p67
    %p69 = scmp.ne.s32.totalorder %s58, %s61
    %p70 = scmp.eq.s32.totalorder %s15, 1
    %p71 = por %p69, %p70
    %p72 = scmp.ne.s32.totalorder %s61, %s62
    %p73 = scmp.eq.s32.totalorder %s15, 0
    %p74 = por %p72, %p73
    %p75 = scmp.ne.s32.totalorder %s61, %s62
    %p76 = scmp.eq.s32.totalorder %s16, 1
    %p77 = por %p75, %p76
    %p79 = scmp.ne.s32.totalorder %s62, %s78
    %p80 = scmp.eq.s32.totalorder %s16, 0
    %p81 = por %p79, %p80
    %s82 = ssub.s32 %s17, %s29
    %p83 = scmp.eq.s32.totalorder %s82, 0
    %s85 = sadd.s32 %s84, 1
    %s86 = scalar_select %p83, %s84, %s85
    %p89 = pneg %p83
    %p90 = scmp.eq.s32.totalorder %s10, 1
    %p91 = por %p89, %p90
    %p92 = scmp.ne.s32.totalorder %s84, %s87
    %p93 = scmp.eq.s32.totalorder %s10, 0
    %p94 = por %p92, %p93
    %p95 = scmp.ne.s32.totalorder %s84, %s87
    %p96 = scmp.eq.s32.totalorder %s15, 1
    %p97 = por %p95, %p96
    %p98 = scmp.ne.s32.totalorder %s87, %s88
    %p99 = scmp.eq.s32.totalorder %s15, 0
    %p100 = por %p98, %p99
    %p101 = scmp.ne.s32.totalorder %s87, %s88
    %p102 = scmp.eq.s32.totalorder %s16, 1
    %p103 = por %p101, %p102
    %p105 = scmp.ne.s32.totalorder %s88, %s104
    %p106 = scmp.eq.s32.totalorder %s16, 0
    %p107 = por %p105, %p106
    %s109 = sadd.s32 %s108, 1
    %p112 = scmp.eq.s32.totalorder %s10, 1
    %p113 = scmp.ne.s32.totalorder %s108, %s110
    %p114 = scmp.eq.s32.totalorder %s10, 0
    %p115 = por %p113, %p114
    %p116 = scmp.ne.s32.totalorder %s108, %s110
    %p117 = scmp.eq.s32.totalorder %s15, 1
    %p118 = por %p116, %p117
    %p119 = scmp.ne.s32.totalorder %s110, %s111
    %p120 = scmp.eq.s32.totalorder %s15, 0
    %p121 = por %p119, %p120
    %p122 = scmp.ne.s32.totalorder %s110, %s111
    %p123 = scmp.eq.s32.totalorder %s16, 1
    %p124 = por %p122, %p123
    %p126 = scmp.ne.s32.totalorder %s111, %s125
    %p127 = scmp.eq.s32.totalorder %s16, 0
    %p128 = por %p126, %p127
    %s129 = ssub.s32 %s18, %s25
    %s130 = ssub.s32 %s17, %s29
    %s131 = sor.u32 %s129, %s130
    %p132 = scmp.eq.s32.totalorder %s131, 0
    %s134 = sadd.s32 %s133, 1
    %s135 = scalar_select %p132, %s133, %s134
    %p138 = pneg %p132
    %p139 = scmp.eq.s32.totalorder %s10, 1
    %p140 = por %p138, %p139
    %p141 = scmp.ne.s32.totalorder %s133, %s136
    %p142 = scmp.eq.s32.totalorder %s10, 0
    %p143 = por %p141, %p142
    %p144 = scmp.ne.s32.totalorder %s133, %s136
    %p145 = scmp.eq.s32.totalorder %s15, 1
    %p146 = por %p144, %p145
    %p147 = scmp.ne.s32.totalorder %s136, %s137
    %p148 = scmp.eq.s32.totalorder %s15, 0
    %p149 = por %p147, %p148
    %p150 = scmp.ne.s32.totalorder %s136, %s137
    %p151 = scmp.eq.s32.totalorder %s16, 1
    %p152 = por %p150, %p151
    %p154 = scmp.ne.s32.totalorder %s137, %s153
    %p155 = scmp.eq.s32.totalorder %s16, 0
    %p156 = por %p154, %p155
    %p157 = scmp.le.s32.totalorder 1, %s10
    %p158 = scmp.lt.s32.totalorder %s10, 3
    %p159 = pnand %p157, %p158
    %p160 = pneg %p159
    // Predicated region
    $region9: #{stage2_forward.8} parent=5 // pred_check
      _
    $region10: #{stage2_forward.8} parent=5 // pred_check_branch
      %162 = sbr.rel (%p159) target = $region12
    $region11: #{stage2_forward.8} parent=5 // pred_region
      %s163 = ssub.s32 %s10, 1
      // Predicated region
      $region13: #{stage2_forward.8} parent=11 // pred_check
        %p164 = pneg %p74
      $region14: #{stage2_forward.8} parent=11 // pred_check_branch
        %166 = sbr.rel (%p164) target = $region16
      $region15: #{stage2_forward.8} parent=11 // pred_region
        %p167 = scmp.lt.s32.totalorder %s19, 0
        %s168 = scalar_select %p167, %s19, 0
        %s169 = smul.addr %s168, 4
        %s170 = scalar_lea.vmem %s1, %s169
      $region16: #{stage2_forward.8} parent=11 // pred_fallthru
        _
      // Predicated region
      $region17: #{stage2_forward.8} parent=11 // pred_check
        %p171 = pneg %p100
      $region18: #{stage2_forward.8} parent=11 // pred_check_branch
        %173 = sbr.rel (%p171) target = $region20
      $region19: #{stage2_forward.8} parent=11 // pred_region
        %p174 = scmp.lt.s32.totalorder %s19, 0
        %s175 = scalar_select %p174, %s19, 0
        %s176 = scalar_lea.vmem %s2, %s175
      $region20: #{stage2_forward.8} parent=11 // pred_fallthru
        _
      // Predicated region
      $region21: #{stage2_forward.8} parent=11 // pred_check
        %p177 = pneg %p121
      $region22: #{stage2_forward.8} parent=11 // pred_check_branch
        %179 = sbr.rel (%p177) target = $region24
      $region23: #{stage2_forward.8} parent=11 // pred_region
        _
      $region24: #{stage2_forward.8} parent=11 // pred_fallthru
        _
    $region12: #{stage2_forward.8} parent=5 // pred_fallthru
      _
    %p180 = scmp.lt.s32.totalorder %s10, 2
    // Predicated region
    $region25: #{stage2_forward.8} parent=5 // pred_check
      %p181 = pneg %p180
    $region26: #{stage2_forward.8} parent=5 // pred_check_branch
      %183 = sbr.rel (%p181) target = $region28
    $region27: #{stage2_forward.8} parent=5 // pred_region
      // Predicated region
      $region29: #{stage2_forward.8} parent=27 // pred_check
        %p184 = pneg %p42
      $region30: #{stage2_forward.8} parent=27 // pred_check_branch
        %186 = sbr.rel (%p184) target = $region32
      $region31: #{stage2_forward.8} parent=27 // pred_region
        %p187 = scmp.lt.s32.totalorder %s18, 1
        %s188 = scalar_select %p187, %s18, 1
        %s189 = smul.addr %s188, 11
        %s190 = smul.addr %s189, 8
        %s191 = scalar_lea.vmem %s0, %s190
      $region32: #{stage2_forward.8} parent=27 // pred_fallthru
        _
    $region28: #{stage2_forward.8} parent=5 // pred_fallthru
      _
    %p192 = scmp.le.s32.totalorder 1, %s10
    %p193 = scmp.lt.s32.totalorder %s10, 3
    %p194 = pnand %p192, %p193
    %p195 = pneg %p194
    // Predicated region
    $region33: #{stage2_forward.8} parent=5 // pred_check
      _
    $region34: #{stage2_forward.8} parent=5 // pred_check_branch
      %197 = sbr.rel (%p194) target = $region36
    $region35: #{stage2_forward.8} parent=5 // pred_region
      %s198 = ssub.s32 %s10, 1
      %p199 = scmp.lt.s32.totalorder %s20, 1
      %s200 = scalar_select %p199, %s20, 1
      %s201 = smul.addr %s200, 11
      %s202 = smul.addr %s201, 8
      %s203 = scalar_lea.vmem %s0, %s202
      %p204 = pneg %p48
      %p205 = pneg %p45
      %p206 = scmp.lt.s32.totalorder %s19, 0
      %s207 = scalar_select %p206, %s19, 0
      %s208 = smul.addr %s207, 4
      %s209 = scalar_lea.vmem %s1, %s208
      %p210 = pneg %p74
      %p211 = pneg %p71
      %p212 = scmp.lt.s32.totalorder %s19, 0
      %s213 = scalar_select %p212, %s19, 0
      %s214 = scalar_lea.vmem %s2, %s213
      %p215 = pneg %p100
      %p216 = pneg %p97
      %p217 = pneg %p121
      %p218 = pneg %p118
      %p219 = pneg %p149
      %p220 = pneg %p146
      %p221 = scmp.lt.s32.totalorder %s20, 1
      %s222 = scalar_select %p221, %s20, 1
      %p223 = scmp.lt.s32.totalorder %s19, 0
      %s224 = scalar_select %p223, %s19, 0
      %s225 = smul.addr %s222, 8
      %s226 = sadd.s32 %s224, %s225
      %s227 = smul.addr %s226, 4
      %s228 = scalar_lea.vmem %s4, %s227
      %p229 = scmp.lt.s32.totalorder %s20, 1
      %s230 = scalar_select %p229, %s20, 1
      %s231 = smul.addr %s230, 11
      %s232 = smul.addr %s231, 8
      %s233 = scalar_lea.vmem %s0, %s232
      %p234 = scmp.lt.s32.totalorder %s19, 0
      %s235 = scalar_select %p234, %s19, 0
      %s236 = smul.addr %s235, 4
      %s237 = scalar_lea.vmem %s1, %s236
      %p238 = scmp.lt.s32.totalorder %s19, 0
      %s239 = scalar_select %p238, %s19, 0
      %s240 = scalar_lea.vmem %s2, %s239
      %p241 = scmp.lt.s32.totalorder %s20, 1
      %s242 = scalar_select %p241, %s20, 1
      %p243 = scmp.lt.s32.totalorder %s19, 0
      %s244 = scalar_select %p243, %s19, 0
      %s245 = smul.addr %s242, 8
      %s246 = sadd.s32 %s244, %s245
      %s247 = smul.addr %s246, 4
      %s248 = scalar_lea.vmem %s4, %s247
      %v250 = vld [vmem:[%s3] sm:$0xff]
      %v251 = vld [vmem:[%s3 + $0x8] sm:$0xff]
      %v252 = vld [vmem:[%s3 + $0x10] sm:$0xff]
      %v253 = vld [vmem:[%s3 + $0x18] sm:$0xff]
      %v254 = vld [vmem:[%s3 + $0x20] sm:$0xff]
      %v255 = vld [vmem:[%s3 + $0x28] sm:$0xff]
      %v256 = vld [vmem:[%s3 + $0x30] sm:$0xff]
      %v257 = vld [vmem:[%s3 + $0x38] sm:$0xff]
      %s258 = scalar_lea.vmem %s3, 64
      %v259 = vld [vmem:[%s258] sm:$0xff]
      %v260 = vld [vmem:[%s258 + $0x8] sm:$0xff]
      %v261 = vld [vmem:[%s258 + $0x10] sm:$0xff]
      %v262 = vld [vmem:[%s258 + $0x18] sm:$0xff]
      %v263 = vld [vmem:[%s258 + $0x20] sm:$0xff]
      %v264 = vld [vmem:[%s258 + $0x28] sm:$0xff]
      %v265 = vld [vmem:[%s258 + $0x30] sm:$0xff]
      %v266 = vld [vmem:[%s258 + $0x38] sm:$0xff]
      %v267 = vld [vmem:[%s233] sm:$0xff]
      %v268 = vld [vmem:[%s233 + $0x8] sm:$0xff]
      %v269 = vld [vmem:[%s233 + $0x10] sm:$0xff]
      %v270 = vld [vmem:[%s233 + $0x18] sm:$0xff]
      %v271 = vld [vmem:[%s233 + $0x20] sm:$0xff]
      %v272 = vld [vmem:[%s233 + $0x28] sm:$0xff]
      %v273 = vld [vmem:[%s233 + $0x30] sm:$0xff]
      %v274 = vld [vmem:[%s233 + $0x38] sm:$0xff]
      %v275 = vpack.c.bf16 %v268, %v267
      %v276 = vpack.c.bf16 %v270, %v269
      %v277 = vpack.c.bf16 %v272, %v271
      %v278 = vpack.c.bf16 %v274, %v273
      %v279 = vld [vmem:[%s237] sm:$0xf]
      %v280 = vld [vmem:[%s237 + $0x4] sm:$0xf]
      %v281 = vld [vmem:[%s237 + $0x8] sm:$0xf]
      %v282 = vld [vmem:[%s237 + $0xc] sm:$0xf]
      %v283 = vld [vmem:[%s237 + $0x10] sm:$0xf]
      %v284 = vld [vmem:[%s237 + $0x14] sm:$0xf]
      %v285 = vld [vmem:[%s237 + $0x18] sm:$0xf]
      %v286 = vld [vmem:[%s237 + $0x1c] sm:$0xf]
      %v287 = vld [vmem:[%s237 + $0x20] sm:$0xf]
      %v288 = vld [vmem:[%s237 + $0x24] sm:$0xf]
      %v289 = vld [vmem:[%s237 + $0x28] sm:$0xf]
      %v290 = vld [vmem:[%s237 + $0x2c] sm:$0xf]
      %v291 = vld [vmem:[%s237 + $0x30] sm:$0xf]
      %v292 = vld [vmem:[%s237 + $0x34] sm:$0xf]
      %v293 = vld [vmem:[%s237 + $0x38] sm:$0xf]
      %v294 = vld [vmem:[%s237 + $0x3c] sm:$0xf]
      %v311 = vunpack.c.l.b16 %v279
      %v312 = vunpack.c.l.b16 %v280
      %v313 = vunpack.c.l.b16 %v281
      %v314 = vunpack.c.l.b16 %v282
      %v315 = vunpack.c.l.b16 %v283
      %v316 = vunpack.c.l.b16 %v284
      %v317 = vunpack.c.l.b16 %v285
      %v318 = vunpack.c.l.b16 %v286
      %v319 = vunpack.c.l.b16 %v287
      %v320 = vunpack.c.l.b16 %v288
      %v321 = vunpack.c.l.b16 %v289
      %v322 = vunpack.c.l.b16 %v290
      %v323 = vunpack.c.l.b16 %v291
      %v324 = vunpack.c.l.b16 %v292
      %v325 = vunpack.c.l.b16 %v293
      %v326 = vunpack.c.l.b16 %v294
      %v327 = vpack.c.b16 %v312, %v311
      %v328 = vpack.c.b16 %v314, %v313
      %v329 = vpack.c.b16 %v316, %v315
      %v330 = vpack.c.b16 %v318, %v317
      %v331 = vpack.c.b16 %v320, %v319
      %v332 = vpack.c.b16 %v322, %v321
      %v333 = vpack.c.b16 %v324, %v323
      %v334 = vpack.c.b16 %v326, %v325
      %343 = vmatprep.subr.bf16.mxu0 0
      %344 = vmatpush1.bf16.msra.mxu0 %v334
      %345 = vmatprep.subr.bf16.mxu0 0
      %346 = vmatpush1.bf16.msra.mxu0 %v333
      %347 = vmatprep.subr.bf16.mxu0 0
      %348 = vmatpush1.bf16.msra.mxu0 %v332
      %349 = vmatprep.subr.bf16.mxu0 0
      %350 = vmatpush1.bf16.msra.mxu0 %v331
      %351 = vmatprep.subr.bf16.mxu0 0
      %352 = vmatpush1.bf16.msra.mxu0 %v330
      %353 = vmatprep.subr.bf16.mxu0 0
      %354 = vmatpush1.bf16.msra.mxu0 %v329
      %355 = vmatprep.subr.bf16.mxu0 0
      %356 = vmatpush1.bf16.msra.mxu0 %v328
      %357 = vmatprep.subr.bf16.mxu0 0
      %358 = vmatpush1.bf16.msra.mxu0 %v327
      %359 = vmatprep.subr.bf16.mxu0 0
      %360 = vmatpush2.bf16.msra.mxu0 0
      %361 = vmatprep.subr.bf16.mxu0 0
      %362 = vmatpush2.bf16.msra.mxu0 0
      %363 = vmatprep.subr.bf16.mxu0 0
      %364 = vmatpush2.bf16.msra.mxu0 0
      %365 = vmatprep.subr.bf16.mxu0 0
      %366 = vmatpush2.bf16.msra.mxu0 0
      %367 = vmatprep.subr.bf16.mxu0 0
      %368 = vmatpush2.bf16.msra.mxu0 0
      %369 = vmatprep.subr.bf16.mxu0 0
      %370 = vmatpush2.bf16.msra.mxu0 0
      %371 = vmatprep.subr.bf16.mxu0 0
      %372 = vmatpush2.bf16.msra.mxu0 0
      %373 = vmatprep.subr.bf16.mxu0 0
      %374 = vmatpush2.bf16.msra.mxu0 0
      %375 = vmatprep.mubr.bf16.mxu0 0
      %376 = vmatmul.mubr.bf16.gmra.mxu0 %v275
      %v377 = vpop.f32.mrf.mxu0
      %v378 = vadd.f32 0.0, %v377
      %v379 = vpop.f32.mrf.mxu0
      %v380 = vpop.f32.mrf.mxu0
      %v381 = vadd.f32 0.0, %v380
      %v382 = vpop.f32.mrf.mxu0
      %383 = vmatprep.mubr.bf16.mxu0 0
      %384 = vmatmul.mubr.bf16.gmra.mxu0 %v276
      %v385 = vpop.f32.mrf.mxu0
      %v386 = vadd.f32 0.0, %v385
      %v387 = vpop.f32.mrf.mxu0
      %v388 = vpop.f32.mrf.mxu0
      %v389 = vadd.f32 0.0, %v388
      %v390 = vpop.f32.mrf.mxu0
      %391 = vmatprep.mubr.bf16.mxu0 0
      %392 = vmatmul.mubr.bf16.gmra.mxu0 %v277
      %v393 = vpop.f32.mrf.mxu0
      %v394 = vadd.f32 0.0, %v393
      %v395 = vpop.f32.mrf.mxu0
      %v396 = vpop.f32.mrf.mxu0
      %v397 = vadd.f32 0.0, %v396
      %v398 = vpop.f32.mrf.mxu0
      %399 = vmatprep.mubr.bf16.mxu0 0
      %400 = vmatmul.mubr.bf16.gmra.mxu0 %v278
      %v401 = vpop.f32.mrf.mxu0
      %v402 = vadd.f32 0.0, %v401
      %v403 = vpop.f32.mrf.mxu0
      %v404 = vpop.f32.mrf.mxu0
      %v405 = vadd.f32 0.0, %v404
      %v406 = vpop.f32.mrf.mxu0
      %407 = vdwg.mxu0
      %409 = vset.pattern.permute.xlu0 0
      %410 = vperm.xlu0 %409, %v250
      %v411 = vpop.permute.xlu0 %410
      %414 = vset.pattern.permute.xlu0 0
      %415 = vperm.xlu0 %414, %v251
      %v416 = vpop.permute.xlu0 %415
      %419 = vset.pattern.permute.xlu0 0
      %420 = vperm.xlu0 %419, %v252
      %v421 = vpop.permute.xlu0 %420
      %424 = vset.pattern.permute.xlu0 0
      %425 = vperm.xlu0 %424, %v253
      %v426 = vpop.permute.xlu0 %425
      %429 = vset.pattern.permute.xlu0 0
      %430 = vperm.xlu0 %429, %v254
      %v431 = vpop.permute.xlu0 %430
      %434 = vset.pattern.permute.xlu0 0
      %435 = vperm.xlu0 %434, %v255
      %v436 = vpop.permute.xlu0 %435
      %439 = vset.pattern.permute.xlu0 0
      %440 = vperm.xlu0 %439, %v256
      %v441 = vpop.permute.xlu0 %440
      %444 = vset.pattern.permute.xlu0 0
      %445 = vperm.xlu0 %444, %v257
      %v446 = vpop.permute.xlu0 %445
      %v448 = vmul.f32 %v378, %v411
      %v449 = vmul.f32 %v381, %v416
      %v450 = vmul.f32 %v386, %v421
      %v451 = vmul.f32 %v389, %v426
      %v452 = vmul.f32 %v394, %v431
      %v453 = vmul.f32 %v397, %v436
      %v454 = vmul.f32 %v402, %v441
      %v455 = vmul.f32 %v405, %v446
      %v456 = vadd.f32 %v448, 0.0
      %v457 = vadd.f32 %v449, 0.0
      %v458 = vadd.f32 %v450, 0.0
      %v459 = vadd.f32 %v451, 0.0
      %v460 = vadd.f32 %v452, 0.0
      %v461 = vadd.f32 %v453, 0.0
      %v462 = vadd.f32 %v454, 0.0
      %v463 = vadd.f32 %v455, 0.0
      %v464 = vld [vmem:[%s233 + $0x1] sm:$0xff]
      %v465 = vld [vmem:[%s233 + $0x9] sm:$0xff]
      %v466 = vld [vmem:[%s233 + $0x11] sm:$0xff]
      %v467 = vld [vmem:[%s233 + $0x19] sm:$0xff]
      %v468 = vld [vmem:[%s233 + $0x21] sm:$0xff]
      %v469 = vld [vmem:[%s233 + $0x29] sm:$0xff]
      %v470 = vld [vmem:[%s233 + $0x31] sm:$0xff]
      %v471 = vld [vmem:[%s233 + $0x39] sm:$0xff]
      %v472 = vpack.c.bf16 %v465, %v464
      %v473 = vpack.c.bf16 %v467, %v466
      %v474 = vpack.c.bf16 %v469, %v468
      %v475 = vpack.c.bf16 %v471, %v470
      %s476 = scalar_lea.vmem %s237, 64
      %v477 = vld [vmem:[%s476] sm:$0xf]
      %v478 = vld [vmem:[%s476 + $0x4] sm:$0xf]
      %v479 = vld [vmem:[%s476 + $0x8] sm:$0xf]
      %v480 = vld [vmem:[%s476 + $0xc] sm:$0xf]
      %v481 = vld [vmem:[%s476 + $0x10] sm:$0xf]
      %v482 = vld [vmem:[%s476 + $0x14] sm:$0xf]
      %v483 = vld [vmem:[%s476 + $0x18] sm:$0xf]
      %v484 = vld [vmem:[%s476 + $0x1c] sm:$0xf]
      %v485 = vld [vmem:[%s476 + $0x20] sm:$0xf]
      %v486 = vld [vmem:[%s476 + $0x24] sm:$0xf]
      %v487 = vld [vmem:[%s476 + $0x28] sm:$0xf]
      %v488 = vld [vmem:[%s476 + $0x2c] sm:$0xf]
      %v489 = vld [vmem:[%s476 + $0x30] sm:$0xf]
      %v490 = vld [vmem:[%s476 + $0x34] sm:$0xf]
      %v491 = vld [vmem:[%s476 + $0x38] sm:$0xf]
      %v492 = vld [vmem:[%s476 + $0x3c] sm:$0xf]
      %v509 = vunpack.c.l.b16 %v477
      %v510 = vunpack.c.l.b16 %v478
      %v511 = vunpack.c.l.b16 %v479
      %v512 = vunpack.c.l.b16 %v480
      %v513 = vunpack.c.l.b16 %v481
      %v514 = vunpack.c.l.b16 %v482
      %v515 = vunpack.c.l.b16 %v483
      %v516 = vunpack.c.l.b16 %v484
      %v517 = vunpack.c.l.b16 %v485
      %v518 = vunpack.c.l.b16 %v486
      %v519 = vunpack.c.l.b16 %v487
      %v520 = vunpack.c.l.b16 %v488
      %v521 = vunpack.c.l.b16 %v489
      %v522 = vunpack.c.l.b16 %v490
      %v523 = vunpack.c.l.b16 %v491
      %v524 = vunpack.c.l.b16 %v492
      %v525 = vpack.c.b16 %v510, %v509
      %v526 = vpack.c.b16 %v512, %v511
      %v527 = vpack.c.b16 %v514, %v513
      %v528 = vpack.c.b16 %v516, %v515
      %v529 = vpack.c.b16 %v518, %v517
      %v530 = vpack.c.b16 %v520, %v519
      %v531 = vpack.c.b16 %v522, %v521
      %v532 = vpack.c.b16 %v524, %v523
      %541 = vmatprep.subr.bf16.mxu0 0
      %542 = vmatpush1.bf16.msra.mxu0 %v532
      %543 = vmatprep.subr.bf16.mxu0 0
      %544 = vmatpush1.bf16.msra.mxu0 %v531
      %545 = vmatprep.subr.bf16.mxu0 0
      %546 = vmatpush1.bf16.msra.mxu0 %v530
      %547 = vmatprep.subr.bf16.mxu0 0
      %548 = vmatpush1.bf16.msra.mxu0 %v529
      %549 = vmatprep.subr.bf16.mxu0 0
      %550 = vmatpush1.bf16.msra.mxu0 %v528
      %551 = vmatprep.subr.bf16.mxu0 0
      %552 = vmatpush1.bf16.msra.mxu0 %v527
      %553 = vmatprep.subr.bf16.mxu0 0
      %554 = vmatpush1.bf16.msra.mxu0 %v526
      %555 = vmatprep.subr.bf16.mxu0 0
      %556 = vmatpush1.bf16.msra.mxu0 %v525
      %557 = vmatprep.subr.bf16.mxu0 0
      %558 = vmatpush2.bf16.msra.mxu0 0
      %559 = vmatprep.subr.bf16.mxu0 0
      %560 = vmatpush2.bf16.msra.mxu0 0
      %561 = vmatprep.subr.bf16.mxu0 0
      %562 = vmatpush2.bf16.msra.mxu0 0
      %563 = vmatprep.subr.bf16.mxu0 0
      %564 = vmatpush2.bf16.msra.mxu0 0
      %565 = vmatprep.subr.bf16.mxu0 0
      %566 = vmatpush2.bf16.msra.mxu0 0
      %567 = vmatprep.subr.bf16.mxu0 0
      %568 = vmatpush2.bf16.msra.mxu0 0
      %569 = vmatprep.subr.bf16.mxu0 0
      %570 = vmatpush2.bf16.msra.mxu0 0
      %571 = vmatprep.subr.bf16.mxu0 0
      %572 = vmatpush2.bf16.msra.mxu0 0
      %573 = vmatprep.mubr.bf16.mxu0 0
      %574 = vmatmul.mubr.bf16.gmra.mxu0 %v472
      %v575 = vpop.f32.mrf.mxu0
      %v576 = vadd.f32 0.0, %v575
      %v577 = vpop.f32.mrf.mxu0
      %v578 = vpop.f32.mrf.mxu0
      %v579 = vadd.f32 0.0, %v578
      %v580 = vpop.f32.mrf.mxu0
      %581 = vmatprep.mubr.bf16.mxu0 0
      %582 = vmatmul.mubr.bf16.gmra.mxu0 %v473
      %v583 = vpop.f32.mrf.mxu0
      %v584 = vadd.f32 0.0, %v583
      %v585 = vpop.f32.mrf.mxu0
      %v586 = vpop.f32.mrf.mxu0
      %v587 = vadd.f32 0.0, %v586
      %v588 = vpop.f32.mrf.mxu0
      %589 = vmatprep.mubr.bf16.mxu0 0
      %590 = vmatmul.mubr.bf16.gmra.mxu0 %v474
      %v591 = vpop.f32.mrf.mxu0
      %v592 = vadd.f32 0.0, %v591
      %v593 = vpop.f32.mrf.mxu0
      %v594 = vpop.f32.mrf.mxu0
      %v595 = vadd.f32 0.0, %v594
      %v596 = vpop.f32.mrf.mxu0
      %597 = vmatprep.mubr.bf16.mxu0 0
      %598 = vmatmul.mubr.bf16.gmra.mxu0 %v475
      %v599 = vpop.f32.mrf.mxu0
      %v600 = vadd.f32 0.0, %v599
      %v601 = vpop.f32.mrf.mxu0
      %v602 = vpop.f32.mrf.mxu0
      %v603 = vadd.f32 0.0, %v602
      %v604 = vpop.f32.mrf.mxu0
      %605 = vdwg.mxu0
      %v606 = vadd.f32 %v456, %v576
      %v607 = vadd.f32 %v457, %v579
      %v608 = vadd.f32 %v458, %v584
      %v609 = vadd.f32 %v459, %v587
      %v610 = vadd.f32 %v460, %v592
      %v611 = vadd.f32 %v461, %v595
      %v612 = vadd.f32 %v462, %v600
      %v613 = vadd.f32 %v463, %v603
      %v614 = vld [vmem:[%s233 + $0x2] sm:$0xff]
      %v615 = vld [vmem:[%s233 + $0xa] sm:$0xff]
      %v616 = vld [vmem:[%s233 + $0x12] sm:$0xff]
      %v617 = vld [vmem:[%s233 + $0x1a] sm:$0xff]
      %v618 = vld [vmem:[%s233 + $0x22] sm:$0xff]
      %v619 = vld [vmem:[%s233 + $0x2a] sm:$0xff]
      %v620 = vld [vmem:[%s233 + $0x32] sm:$0xff]
      %v621 = vld [vmem:[%s233 + $0x3a] sm:$0xff]
      %v622 = vpack.c.bf16 %v615, %v614
      %v623 = vpack.c.bf16 %v617, %v616
      %v624 = vpack.c.bf16 %v619, %v618
      %v625 = vpack.c.bf16 %v621, %v620
      %s626 = scalar_lea.vmem %s237, 128
      %v627 = vld [vmem:[%s626] sm:$0xf]
      %v628 = vld [vmem:[%s626 + $0x4] sm:$0xf]
      %v629 = vld [vmem:[%s626 + $0x8] sm:$0xf]
      %v630 = vld [vmem:[%s626 + $0xc] sm:$0xf]
      %v631 = vld [vmem:[%s626 + $0x10] sm:$0xf]
      %v632 = vld [vmem:[%s626 + $0x14] sm:$0xf]
      %v633 = vld [vmem:[%s626 + $0x18] sm:$0xf]
      %v634 = vld [vmem:[%s626 + $0x1c] sm:$0xf]
      %v635 = vld [vmem:[%s626 + $0x20] sm:$0xf]
      %v636 = vld [vmem:[%s626 + $0x24] sm:$0xf]
      %v637 = vld [vmem:[%s626 + $0x28] sm:$0xf]
      %v638 = vld [vmem:[%s626 + $0x2c] sm:$0xf]
      %v639 = vld [vmem:[%s626 + $0x30] sm:$0xf]
      %v640 = vld [vmem:[%s626 + $0x34] sm:$0xf]
      %v641 = vld [vmem:[%s626 + $0x38] sm:$0xf]
      %v642 = vld [vmem:[%s626 + $0x3c] sm:$0xf]
      %v659 = vunpack.c.l.b16 %v627
      %v660 = vunpack.c.l.b16 %v628
      %v661 = vunpack.c.l.b16 %v629
      %v662 = vunpack.c.l.b16 %v630
      %v663 = vunpack.c.l.b16 %v631
      %v664 = vunpack.c.l.b16 %v632
      %v665 = vunpack.c.l.b16 %v633
      %v666 = vunpack.c.l.b16 %v634
      %v667 = vunpack.c.l.b16 %v635
      %v668 = vunpack.c.l.b16 %v636
      %v669 = vunpack.c.l.b16 %v637
      %v670 = vunpack.c.l.b16 %v638
      %v671 = vunpack.c.l.b16 %v639
      %v672 = vunpack.c.l.b16 %v640
      %v673 = vunpack.c.l.b16 %v641
      %v674 = vunpack.c.l.b16 %v642
      %v675 = vpack.c.b16 %v660, %v659
      %v676 = vpack.c.b16 %v662, %v661
      %v677 = vpack.c.b16 %v664, %v663
      %v678 = vpack.c.b16 %v666, %v665
      %v679 = vpack.c.b16 %v668, %v667
      %v680 = vpack.c.b16 %v670, %v669
      %v681 = vpack.c.b16 %v672, %v671
      %v682 = vpack.c.b16 %v674, %v673
      %691 = vmatprep.subr.bf16.mxu0 0
      %692 = vmatpush1.bf16.msra.mxu0 %v682
      %693 = vmatprep.subr.bf16.mxu0 0
      %694 = vmatpush1.bf16.msra.mxu0 %v681
      %695 = vmatprep.subr.bf16.mxu0 0
      %696 = vmatpush1.bf16.msra.mxu0 %v680
      %697 = vmatprep.subr.bf16.mxu0 0
      %698 = vmatpush1.bf16.msra.mxu0 %v679
      %699 = vmatprep.subr.bf16.mxu0 0
      %700 = vmatpush1.bf16.msra.mxu0 %v678
      %701 = vmatprep.subr.bf16.mxu0 0
      %702 = vmatpush1.bf16.msra.mxu0 %v677
      %703 = vmatprep.subr.bf16.mxu0 0
      %704 = vmatpush1.bf16.msra.mxu0 %v676
      %705 = vmatprep.subr.bf16.mxu0 0
      %706 = vmatpush1.bf16.msra.mxu0 %v675
      %707 = vmatprep.subr.bf16.mxu0 0
      %708 = vmatpush2.bf16.msra.mxu0 0
      %709 = vmatprep.subr.bf16.mxu0 0
      %710 = vmatpush2.bf16.msra.mxu0 0
      %711 = vmatprep.subr.bf16.mxu0 0
      %712 = vmatpush2.bf16.msra.mxu0 0
      %713 = vmatprep.subr.bf16.mxu0 0
      %714 = vmatpush2.bf16.msra.mxu0 0
      %715 = vmatprep.subr.bf16.mxu0 0
      %716 = vmatpush2.bf16.msra.mxu0 0
      %717 = vmatprep.subr.bf16.mxu0 0
      %718 = vmatpush2.bf16.msra.mxu0 0
      %719 = vmatprep.subr.bf16.mxu0 0
      %720 = vmatpush2.bf16.msra.mxu0 0
      %721 = vmatprep.subr.bf16.mxu0 0
      %722 = vmatpush2.bf16.msra.mxu0 0
      %723 = vmatprep.mubr.bf16.mxu0 0
      %724 = vmatmul.mubr.bf16.gmra.mxu0 %v622
      %v725 = vpop.f32.mrf.mxu0
      %v726 = vadd.f32 0.0, %v725
      %v727 = vpop.f32.mrf.mxu0
      %v728 = vpop.f32.mrf.mxu0
      %v729 = vadd.f32 0.0, %v728
      %v730 = vpop.f32.mrf.mxu0
      %731 = vmatprep.mubr.bf16.mxu0 0
      %732 = vmatmul.mubr.bf16.gmra.mxu0 %v623
      %v733 = vpop.f32.mrf.mxu0
      %v734 = vadd.f32 0.0, %v733
      %v735 = vpop.f32.mrf.mxu0
      %v736 = vpop.f32.mrf.mxu0
      %v737 = vadd.f32 0.0, %v736
      %v738 = vpop.f32.mrf.mxu0
      %739 = vmatprep.mubr.bf16.mxu0 0
      %740 = vmatmul.mubr.bf16.gmra.mxu0 %v624
      %v741 = vpop.f32.mrf.mxu0
      %v742 = vadd.f32 0.0, %v741
      %v743 = vpop.f32.mrf.mxu0
      %v744 = vpop.f32.mrf.mxu0
      %v745 = vadd.f32 0.0, %v744
      %v746 = vpop.f32.mrf.mxu0
      %747 = vmatprep.mubr.bf16.mxu0 0
      %748 = vmatmul.mubr.bf16.gmra.mxu0 %v625
      %v749 = vpop.f32.mrf.mxu0
      %v750 = vadd.f32 0.0, %v749
      %v751 = vpop.f32.mrf.mxu0
      %v752 = vpop.f32.mrf.mxu0
      %v753 = vadd.f32 0.0, %v752
      %v754 = vpop.f32.mrf.mxu0
      %755 = vdwg.mxu0
      %757 = vset.pattern.permute.xlu0 0
      %758 = vperm.xlu0 %757, %v259
      %v759 = vpop.permute.xlu0 %758
      %762 = vset.pattern.permute.xlu0 0
      %763 = vperm.xlu0 %762, %v260
      %v764 = vpop.permute.xlu0 %763
      %767 = vset.pattern.permute.xlu0 0
      %768 = vperm.xlu0 %767, %v261
      %v769 = vpop.permute.xlu0 %768
      %772 = vset.pattern.permute.xlu0 0
      %773 = vperm.xlu0 %772, %v262
      %v774 = vpop.permute.xlu0 %773
      %777 = vset.pattern.permute.xlu0 0
      %778 = vperm.xlu0 %777, %v263
      %v779 = vpop.permute.xlu0 %778
      %782 = vset.pattern.permute.xlu0 0
      %783 = vperm.xlu0 %782, %v264
      %v784 = vpop.permute.xlu0 %783
      %787 = vset.pattern.permute.xlu0 0
      %788 = vperm.xlu0 %787, %v265
      %v789 = vpop.permute.xlu0 %788
      %792 = vset.pattern.permute.xlu0 0
      %793 = vperm.xlu0 %792, %v266
      %v794 = vpop.permute.xlu0 %793
      %v796 = vmul.f32 %v726, %v759
      %v797 = vmul.f32 %v729, %v764
      %v798 = vmul.f32 %v734, %v769
      %v799 = vmul.f32 %v737, %v774
      %v800 = vmul.f32 %v742, %v779
      %v801 = vmul.f32 %v745, %v784
      %v802 = vmul.f32 %v750, %v789
      %v803 = vmul.f32 %v753, %v794
      %v804 = vadd.f32 %v606, %v796
      %v805 = vadd.f32 %v607, %v797
      %v806 = vadd.f32 %v608, %v798
      %v807 = vadd.f32 %v609, %v799
      %v808 = vadd.f32 %v610, %v800
      %v809 = vadd.f32 %v611, %v801
      %v810 = vadd.f32 %v612, %v802
      %v811 = vadd.f32 %v613, %v803
      %v812 = vld [vmem:[%s233 + $0x8] sm:$0xff]
      %v813 = vld [vmem:[%s233 + $0x10] sm:$0xff]
      %v814 = vld [vmem:[%s233 + $0x18] sm:$0xff]
      %v815 = vld [vmem:[%s233 + $0x20] sm:$0xff]
      %v816 = vld [vmem:[%s233 + $0x28] sm:$0xff]
      %v817 = vld [vmem:[%s233 + $0x30] sm:$0xff]
      %v818 = vld [vmem:[%s233 + $0x38] sm:$0xff]
      %v819 = vld [vmem:[%s233 + $0x40] sm:$0xff]
      %v820 = vpack.c.bf16 %v813, %v812
      %v821 = vpack.c.bf16 %v815, %v814
      %v822 = vpack.c.bf16 %v817, %v816
      %v823 = vpack.c.bf16 %v819, %v818
      %s824 = scalar_lea.vmem %s237, 192
      %v825 = vld [vmem:[%s824] sm:$0xf]
      %v826 = vld [vmem:[%s824 + $0x4] sm:$0xf]
      %v827 = vld [vmem:[%s824 + $0x8] sm:$0xf]
      %v828 = vld [vmem:[%s824 + $0xc] sm:$0xf]
      %v829 = vld [vmem:[%s824 + $0x10] sm:$0xf]
      %v830 = vld [vmem:[%s824 + $0x14] sm:$0xf]
      %v831 = vld [vmem:[%s824 + $0x18] sm:$0xf]
      %v832 = vld [vmem:[%s824 + $0x1c] sm:$0xf]
      %v833 = vld [vmem:[%s824 + $0x20] sm:$0xf]
      %v834 = vld [vmem:[%s824 + $0x24] sm:$0xf]
      %v835 = vld [vmem:[%s824 + $0x28] sm:$0xf]
      %v836 = vld [vmem:[%s824 + $0x2c] sm:$0xf]
      %v837 = vld [vmem:[%s824 + $0x30] sm:$0xf]
      %v838 = vld [vmem:[%s824 + $0x34] sm:$0xf]
      %v839 = vld [vmem:[%s824 + $0x38] sm:$0xf]
      %v840 = vld [vmem:[%s824 + $0x3c] sm:$0xf]
      %v857 = vunpack.c.l.b16 %v825
      %v858 = vunpack.c.l.b16 %v826
      %v859 = vunpack.c.l.b16 %v827
      %v860 = vunpack.c.l.b16 %v828
      %v861 = vunpack.c.l.b16 %v829
      %v862 = vunpack.c.l.b16 %v830
      %v863 = vunpack.c.l.b16 %v831
      %v864 = vunpack.c.l.b16 %v832
      %v865 = vunpack.c.l.b16 %v833
      %v866 = vunpack.c.l.b16 %v834
      %v867 = vunpack.c.l.b16 %v835
      %v868 = vunpack.c.l.b16 %v836
      %v869 = vunpack.c.l.b16 %v837
      %v870 = vunpack.c.l.b16 %v838
      %v871 = vunpack.c.l.b16 %v839
      %v872 = vunpack.c.l.b16 %v840
      %v873 = vpack.c.b16 %v858, %v857
      %v874 = vpack.c.b16 %v860, %v859
      %v875 = vpack.c.b16 %v862, %v861
      %v876 = vpack.c.b16 %v864, %v863
      %v877 = vpack.c.b16 %v866, %v865
      %v878 = vpack.c.b16 %v868, %v867
      %v879 = vpack.c.b16 %v870, %v869
      %v880 = vpack.c.b16 %v872, %v871
      %889 = vmatprep.subr.bf16.mxu0 0
      %890 = vmatpush1.bf16.msra.mxu0 %v880
      %891 = vmatprep.subr.bf16.mxu0 0
      %892 = vmatpush1.bf16.msra.mxu0 %v879
      %893 = vmatprep.subr.bf16.mxu0 0
      %894 = vmatpush1.bf16.msra.mxu0 %v878
      %895 = vmatprep.subr.bf16.mxu0 0
      %896 = vmatpush1.bf16.msra.mxu0 %v877
      %897 = vmatprep.subr.bf16.mxu0 0
      %898 = vmatpush1.bf16.msra.mxu0 %v876
      %899 = vmatprep.subr.bf16.mxu0 0
      %900 = vmatpush1.bf16.msra.mxu0 %v875
      %901 = vmatprep.subr.bf16.mxu0 0
      %902 = vmatpush1.bf16.msra.mxu0 %v874
      %903 = vmatprep.subr.bf16.mxu0 0
      %904 = vmatpush1.bf16.msra.mxu0 %v873
      %905 = vmatprep.subr.bf16.mxu0 0
      %906 = vmatpush2.bf16.msra.mxu0 0
      %907 = vmatprep.subr.bf16.mxu0 0
      %908 = vmatpush2.bf16.msra.mxu0 0
      %909 = vmatprep.subr.bf16.mxu0 0
      %910 = vmatpush2.bf16.msra.mxu0 0
      %911 = vmatprep.subr.bf16.mxu0 0
      %912 = vmatpush2.bf16.msra.mxu0 0
      %913 = vmatprep.subr.bf16.mxu0 0
      %914 = vmatpush2.bf16.msra.mxu0 0
      %915 = vmatprep.subr.bf16.mxu0 0
      %916 = vmatpush2.bf16.msra.mxu0 0
      %917 = vmatprep.subr.bf16.mxu0 0
      %918 = vmatpush2.bf16.msra.mxu0 0
      %919 = vmatprep.subr.bf16.mxu0 0
      %920 = vmatpush2.bf16.msra.mxu0 0
      %921 = vmatprep.mubr.bf16.mxu0 0
      %922 = vmatmul.mubr.bf16.gmra.mxu0 %v820
      %v923 = vpop.f32.mrf.mxu0
      %v924 = vadd.f32 0.0, %v923
      %v925 = vpop.f32.mrf.mxu0
      %v926 = vpop.f32.mrf.mxu0
      %v927 = vadd.f32 0.0, %v926
      %v928 = vpop.f32.mrf.mxu0
      %929 = vmatprep.mubr.bf16.mxu0 0
      %930 = vmatmul.mubr.bf16.gmra.mxu0 %v821
      %v931 = vpop.f32.mrf.mxu0
      %v932 = vadd.f32 0.0, %v931
      %v933 = vpop.f32.mrf.mxu0
      %v934 = vpop.f32.mrf.mxu0
      %v935 = vadd.f32 0.0, %v934
      %v936 = vpop.f32.mrf.mxu0
      %937 = vmatprep.mubr.bf16.mxu0 0
      %938 = vmatmul.mubr.bf16.gmra.mxu0 %v822
      %v939 = vpop.f32.mrf.mxu0
      %v940 = vadd.f32 0.0, %v939
      %v941 = vpop.f32.mrf.mxu0
      %v942 = vpop.f32.mrf.mxu0
      %v943 = vadd.f32 0.0, %v942
      %v944 = vpop.f32.mrf.mxu0
      %945 = vmatprep.mubr.bf16.mxu0 0
      %946 = vmatmul.mubr.bf16.gmra.mxu0 %v823
      %v947 = vpop.f32.mrf.mxu0
      %v948 = vadd.f32 0.0, %v947
      %v949 = vpop.f32.mrf.mxu0
      %v950 = vpop.f32.mrf.mxu0
      %v951 = vadd.f32 0.0, %v950
      %v952 = vpop.f32.mrf.mxu0
      %953 = vdwg.mxu0
      %v954 = vmul.f32 %v924, %v411
      %v955 = vmul.f32 %v927, %v416
      %v956 = vmul.f32 %v932, %v421
      %v957 = vmul.f32 %v935, %v426
      %v958 = vmul.f32 %v940, %v431
      %v959 = vmul.f32 %v943, %v436
      %v960 = vmul.f32 %v948, %v441
      %v961 = vmul.f32 %v951, %v446
      %v962 = vadd.f32 %v804, %v954
      %v963 = vadd.f32 %v805, %v955
      %v964 = vadd.f32 %v806, %v956
      %v965 = vadd.f32 %v807, %v957
      %v966 = vadd.f32 %v808, %v958
      %v967 = vadd.f32 %v809, %v959
      %v968 = vadd.f32 %v810, %v960
      %v969 = vadd.f32 %v811, %v961
      %v970 = vld [vmem:[%s233 + $0x9] sm:$0xff]
      %v971 = vld [vmem:[%s233 + $0x11] sm:$0xff]
      %v972 = vld [vmem:[%s233 + $0x19] sm:$0xff]
      %v973 = vld [vmem:[%s233 + $0x21] sm:$0xff]
      %v974 = vld [vmem:[%s233 + $0x29] sm:$0xff]
      %v975 = vld [vmem:[%s233 + $0x31] sm:$0xff]
      %v976 = vld [vmem:[%s233 + $0x39] sm:$0xff]
      %v977 = vld [vmem:[%s233 + $0x41] sm:$0xff]
      %v978 = vpack.c.bf16 %v971, %v970
      %v979 = vpack.c.bf16 %v973, %v972
      %v980 = vpack.c.bf16 %v975, %v974
      %v981 = vpack.c.bf16 %v977, %v976
      %s982 = scalar_lea.vmem %s237, 256
      %v983 = vld [vmem:[%s982] sm:$0xf]
      %v984 = vld [vmem:[%s982 + $0x4] sm:$0xf]
      %v985 = vld [vmem:[%s982 + $0x8] sm:$0xf]
      %v986 = vld [vmem:[%s982 + $0xc] sm:$0xf]
      %v987 = vld [vmem:[%s982 + $0x10] sm:$0xf]
      %v988 = vld [vmem:[%s982 + $0x14] sm:$0xf]
      %v989 = vld [vmem:[%s982 + $0x18] sm:$0xf]
      %v990 = vld [vmem:[%s982 + $0x1c] sm:$0xf]
      %v991 = vld [vmem:[%s982 + $0x20] sm:$0xf]
      %v992 = vld [vmem:[%s982 + $0x24] sm:$0xf]
      %v993 = vld [vmem:[%s982 + $0x28] sm:$0xf]
      %v994 = vld [vmem:[%s982 + $0x2c] sm:$0xf]
      %v995 = vld [vmem:[%s982 + $0x30] sm:$0xf]
      %v996 = vld [vmem:[%s982 + $0x34] sm:$0xf]
      %v997 = vld [vmem:[%s982 + $0x38] sm:$0xf]
      %v998 = vld [vmem:[%s982 + $0x3c] sm:$0xf]
      %v1015 = vunpack.c.l.b16 %v983
      %v1016 = vunpack.c.l.b16 %v984
      %v1017 = vunpack.c.l.b16 %v985
      %v1018 = vunpack.c.l.b16 %v986
      %v1019 = vunpack.c.l.b16 %v987
      %v1020 = vunpack.c.l.b16 %v988
      %v1021 = vunpack.c.l.b16 %v989
      %v1022 = vunpack.c.l.b16 %v990
      %v1023 = vunpack.c.l.b16 %v991
      %v1024 = vunpack.c.l.b16 %v992
      %v1025 = vunpack.c.l.b16 %v993
      %v1026 = vunpack.c.l.b16 %v994
      %v1027 = vunpack.c.l.b16 %v995
      %v1028 = vunpack.c.l.b16 %v996
      %v1029 = vunpack.c.l.b16 %v997
      %v1030 = vunpack.c.l.b16 %v998
      %v1031 = vpack.c.b16 %v1016, %v1015
      %v1032 = vpack.c.b16 %v1018, %v1017
      %v1033 = vpack.c.b16 %v1020, %v1019
      %v1034 = vpack.c.b16 %v1022, %v1021
      %v1035 = vpack.c.b16 %v1024, %v1023
      %v1036 = vpack.c.b16 %v1026, %v1025
      %v1037 = vpack.c.b16 %v1028, %v1027
      %v1038 = vpack.c.b16 %v1030, %v1029
      %1047 = vmatprep.subr.bf16.mxu0 0
      %1048 = vmatpush1.bf16.msra.mxu0 %v1038
      %1049 = vmatprep.subr.bf16.mxu0 0
      %1050 = vmatpush1.bf16.msra.mxu0 %v1037
      %1051 = vmatprep.subr.bf16.mxu0 0
      %1052 = vmatpush1.bf16.msra.mxu0 %v1036
      %1053 = vmatprep.subr.bf16.mxu0 0
      %1054 = vmatpush1.bf16.msra.mxu0 %v1035
      %1055 = vmatprep.subr.bf16.mxu0 0
      %1056 = vmatpush1.bf16.msra.mxu0 %v1034
      %1057 = vmatprep.subr.bf16.mxu0 0
      %1058 = vmatpush1.bf16.msra.mxu0 %v1033
      %1059 = vmatprep.subr.bf16.mxu0 0
      %1060 = vmatpush1.bf16.msra.mxu0 %v1032
      %1061 = vmatprep.subr.bf16.mxu0 0
      %1062 = vmatpush1.bf16.msra.mxu0 %v1031
      %1063 = vmatprep.subr.bf16.mxu0 0
      %1064 = vmatpush2.bf16.msra.mxu0 0
      %1065 = vmatprep.subr.bf16.mxu0 0
      %1066 = vmatpush2.bf16.msra.mxu0 0
      %1067 = vmatprep.subr.bf16.mxu0 0
      %1068 = vmatpush2.bf16.msra.mxu0 0
      %1069 = vmatprep.subr.bf16.mxu0 0
      %1070 = vmatpush2.bf16.msra.mxu0 0
      %1071 = vmatprep.subr.bf16.mxu0 0
      %1072 = vmatpush2.bf16.msra.mxu0 0
      %1073 = vmatprep.subr.bf16.mxu0 0
      %1074 = vmatpush2.bf16.msra.mxu0 0
      %1075 = vmatprep.subr.bf16.mxu0 0
      %1076 = vmatpush2.bf16.msra.mxu0 0
      %1077 = vmatprep.subr.bf16.mxu0 0
      %1078 = vmatpush2.bf16.msra.mxu0 0
      %1079 = vmatprep.mubr.bf16.mxu0 0
      %1080 = vmatmul.mubr.bf16.gmra.mxu0 %v978
      %v1081 = vpop.f32.mrf.mxu0
      %v1082 = vadd.f32 0.0, %v1081
      %v1083 = vpop.f32.mrf.mxu0
      %v1084 = vpop.f32.mrf.mxu0
      %v1085 = vadd.f32 0.0, %v1084
      %v1086 = vpop.f32.mrf.mxu0
      %1087 = vmatprep.mubr.bf16.mxu0 0
      %1088 = vmatmul.mubr.bf16.gmra.mxu0 %v979
      %v1089 = vpop.f32.mrf.mxu0
      %v1090 = vadd.f32 0.0, %v1089
      %v1091 = vpop.f32.mrf.mxu0
      %v1092 = vpop.f32.mrf.mxu0
      %v1093 = vadd.f32 0.0, %v1092
      %v1094 = vpop.f32.mrf.mxu0
      %1095 = vmatprep.mubr.bf16.mxu0 0
      %1096 = vmatmul.mubr.bf16.gmra.mxu0 %v980
      %v1097 = vpop.f32.mrf.mxu0
      %v1098 = vadd.f32 0.0, %v1097
      %v1099 = vpop.f32.mrf.mxu0
      %v1100 = vpop.f32.mrf.mxu0
      %v1101 = vadd.f32 0.0, %v1100
      %v1102 = vpop.f32.mrf.mxu0
      %1103 = vmatprep.mubr.bf16.mxu0 0
      %1104 = vmatmul.mubr.bf16.gmra.mxu0 %v981
      %v1105 = vpop.f32.mrf.mxu0
      %v1106 = vadd.f32 0.0, %v1105
      %v1107 = vpop.f32.mrf.mxu0
      %v1108 = vpop.f32.mrf.mxu0
      %v1109 = vadd.f32 0.0, %v1108
      %v1110 = vpop.f32.mrf.mxu0
      %1111 = vdwg.mxu0
      %v1112 = vadd.f32 %v962, %v1082
      %v1113 = vadd.f32 %v963, %v1085
      %v1114 = vadd.f32 %v964, %v1090
      %v1115 = vadd.f32 %v965, %v1093
      %v1116 = vadd.f32 %v966, %v1098
      %v1117 = vadd.f32 %v967, %v1101
      %v1118 = vadd.f32 %v968, %v1106
      %v1119 = vadd.f32 %v969, %v1109
      %v1120 = vld [vmem:[%s233 + $0xa] sm:$0xff]
      %v1121 = vld [vmem:[%s233 + $0x12] sm:$0xff]
      %v1122 = vld [vmem:[%s233 + $0x1a] sm:$0xff]
      %v1123 = vld [vmem:[%s233 + $0x22] sm:$0xff]
      %v1124 = vld [vmem:[%s233 + $0x2a] sm:$0xff]
      %v1125 = vld [vmem:[%s233 + $0x32] sm:$0xff]
      %v1126 = vld [vmem:[%s233 + $0x3a] sm:$0xff]
      %v1127 = vld [vmem:[%s233 + $0x42] sm:$0xff]
      %v1128 = vpack.c.bf16 %v1121, %v1120
      %v1129 = vpack.c.bf16 %v1123, %v1122
      %v1130 = vpack.c.bf16 %v1125, %v1124
      %v1131 = vpack.c.bf16 %v1127, %v1126
      %s1132 = scalar_lea.vmem %s237, 320
      %v1133 = vld [vmem:[%s1132] sm:$0xf]
      %v1134 = vld [vmem:[%s1132 + $0x4] sm:$0xf]
      %v1135 = vld [vmem:[%s1132 + $0x8] sm:$0xf]
      %v1136 = vld [vmem:[%s1132 + $0xc] sm:$0xf]
      %v1137 = vld [vmem:[%s1132 + $0x10] sm:$0xf]
      %v1138 = vld [vmem:[%s1132 + $0x14] sm:$0xf]
      %v1139 = vld [vmem:[%s1132 + $0x18] sm:$0xf]
      %v1140 = vld [vmem:[%s1132 + $0x1c] sm:$0xf]
      %v1141 = vld [vmem:[%s1132 + $0x20] sm:$0xf]
      %v1142 = vld [vmem:[%s1132 + $0x24] sm:$0xf]
      %v1143 = vld [vmem:[%s1132 + $0x28] sm:$0xf]
      %v1144 = vld [vmem:[%s1132 + $0x2c] sm:$0xf]
      %v1145 = vld [vmem:[%s1132 + $0x30] sm:$0xf]
      %v1146 = vld [vmem:[%s1132 + $0x34] sm:$0xf]
      %v1147 = vld [vmem:[%s1132 + $0x38] sm:$0xf]
      %v1148 = vld [vmem:[%s1132 + $0x3c] sm:$0xf]
      %v1165 = vunpack.c.l.b16 %v1133
      %v1166 = vunpack.c.l.b16 %v1134
      %v1167 = vunpack.c.l.b16 %v1135
      %v1168 = vunpack.c.l.b16 %v1136
      %v1169 = vunpack.c.l.b16 %v1137
      %v1170 = vunpack.c.l.b16 %v1138
      %v1171 = vunpack.c.l.b16 %v1139
      %v1172 = vunpack.c.l.b16 %v1140
      %v1173 = vunpack.c.l.b16 %v1141
      %v1174 = vunpack.c.l.b16 %v1142
      %v1175 = vunpack.c.l.b16 %v1143
      %v1176 = vunpack.c.l.b16 %v1144
      %v1177 = vunpack.c.l.b16 %v1145
      %v1178 = vunpack.c.l.b16 %v1146
      %v1179 = vunpack.c.l.b16 %v1147
      %v1180 = vunpack.c.l.b16 %v1148
      %v1181 = vpack.c.b16 %v1166, %v1165
      %v1182 = vpack.c.b16 %v1168, %v1167
      %v1183 = vpack.c.b16 %v1170, %v1169
      %v1184 = vpack.c.b16 %v1172, %v1171
      %v1185 = vpack.c.b16 %v1174, %v1173
      %v1186 = vpack.c.b16 %v1176, %v1175
      %v1187 = vpack.c.b16 %v1178, %v1177
      %v1188 = vpack.c.b16 %v1180, %v1179
      %1197 = vmatprep.subr.bf16.mxu0 0
      %1198 = vmatpush1.bf16.msra.mxu0 %v1188
      %1199 = vmatprep.subr.bf16.mxu0 0
      %1200 = vmatpush1.bf16.msra.mxu0 %v1187
      %1201 = vmatprep.subr.bf16.mxu0 0
      %1202 = vmatpush1.bf16.msra.mxu0 %v1186
      %1203 = vmatprep.subr.bf16.mxu0 0
      %1204 = vmatpush1.bf16.msra.mxu0 %v1185
      %1205 = vmatprep.subr.bf16.mxu0 0
      %1206 = vmatpush1.bf16.msra.mxu0 %v1184
      %1207 = vmatprep.subr.bf16.mxu0 0
      %1208 = vmatpush1.bf16.msra.mxu0 %v1183
      %1209 = vmatprep.subr.bf16.mxu0 0
      %1210 = vmatpush1.bf16.msra.mxu0 %v1182
      %1211 = vmatprep.subr.bf16.mxu0 0
      %1212 = vmatpush1.bf16.msra.mxu0 %v1181
      %1213 = vmatprep.subr.bf16.mxu0 0
      %1214 = vmatpush2.bf16.msra.mxu0 0
      %1215 = vmatprep.subr.bf16.mxu0 0
      %1216 = vmatpush2.bf16.msra.mxu0 0
      %1217 = vmatprep.subr.bf16.mxu0 0
      %1218 = vmatpush2.bf16.msra.mxu0 0
      %1219 = vmatprep.subr.bf16.mxu0 0
      %1220 = vmatpush2.bf16.msra.mxu0 0
      %1221 = vmatprep.subr.bf16.mxu0 0
      %1222 = vmatpush2.bf16.msra.mxu0 0
      %1223 = vmatprep.subr.bf16.mxu0 0
      %1224 = vmatpush2.bf16.msra.mxu0 0
      %1225 = vmatprep.subr.bf16.mxu0 0
      %1226 = vmatpush2.bf16.msra.mxu0 0
      %1227 = vmatprep.subr.bf16.mxu0 0
      %1228 = vmatpush2.bf16.msra.mxu0 0
      %1229 = vmatprep.mubr.bf16.mxu0 0
      %1230 = vmatmul.mubr.bf16.gmra.mxu0 %v1128
      %v1231 = vpop.f32.mrf.mxu0
      %v1232 = vadd.f32 0.0, %v1231
      %v1233 = vpop.f32.mrf.mxu0
      %v1234 = vpop.f32.mrf.mxu0
      %v1235 = vadd.f32 0.0, %v1234
      %v1236 = vpop.f32.mrf.mxu0
      %1237 = vmatprep.mubr.bf16.mxu0 0
      %1238 = vmatmul.mubr.bf16.gmra.mxu0 %v1129
      %v1239 = vpop.f32.mrf.mxu0
      %v1240 = vadd.f32 0.0, %v1239
      %v1241 = vpop.f32.mrf.mxu0
      %v1242 = vpop.f32.mrf.mxu0
      %v1243 = vadd.f32 0.0, %v1242
      %v1244 = vpop.f32.mrf.mxu0
      %1245 = vmatprep.mubr.bf16.mxu0 0
      %1246 = vmatmul.mubr.bf16.gmra.mxu0 %v1130
      %v1247 = vpop.f32.mrf.mxu0
      %v1248 = vadd.f32 0.0, %v1247
      %v1249 = vpop.f32.mrf.mxu0
      %v1250 = vpop.f32.mrf.mxu0
      %v1251 = vadd.f32 0.0, %v1250
      %v1252 = vpop.f32.mrf.mxu0
      %1253 = vmatprep.mubr.bf16.mxu0 0
      %1254 = vmatmul.mubr.bf16.gmra.mxu0 %v1131
      %v1255 = vpop.f32.mrf.mxu0
      %v1256 = vadd.f32 0.0, %v1255
      %v1257 = vpop.f32.mrf.mxu0
      %v1258 = vpop.f32.mrf.mxu0
      %v1259 = vadd.f32 0.0, %v1258
      %v1260 = vpop.f32.mrf.mxu0
      %1261 = vdwg.mxu0
      %v1262 = vmul.f32 %v1232, %v759
      %v1263 = vmul.f32 %v1235, %v764
      %v1264 = vmul.f32 %v1240, %v769
      %v1265 = vmul.f32 %v1243, %v774
      %v1266 = vmul.f32 %v1248, %v779
      %v1267 = vmul.f32 %v1251, %v784
      %v1268 = vmul.f32 %v1256, %v789
      %v1269 = vmul.f32 %v1259, %v794
      %v1270 = vadd.f32 %v1112, %v1262
      %v1271 = vadd.f32 %v1113, %v1263
      %v1272 = vadd.f32 %v1114, %v1264
      %v1273 = vadd.f32 %v1115, %v1265
      %v1274 = vadd.f32 %v1116, %v1266
      %v1275 = vadd.f32 %v1117, %v1267
      %v1276 = vadd.f32 %v1118, %v1268
      %v1277 = vadd.f32 %v1119, %v1269
      %v1278 = vld [vmem:[%s233 + $0x10] sm:$0xff]
      %v1279 = vld [vmem:[%s233 + $0x18] sm:$0xff]
      %v1280 = vld [vmem:[%s233 + $0x20] sm:$0xff]
      %v1281 = vld [vmem:[%s233 + $0x28] sm:$0xff]
      %v1282 = vld [vmem:[%s233 + $0x30] sm:$0xff]
      %v1283 = vld [vmem:[%s233 + $0x38] sm:$0xff]
      %v1284 = vld [vmem:[%s233 + $0x40] sm:$0xff]
      %v1285 = vld [vmem:[%s233 + $0x48] sm:$0xff]
      %v1286 = vpack.c.bf16 %v1279, %v1278
      %v1287 = vpack.c.bf16 %v1281, %v1280
      %v1288 = vpack.c.bf16 %v1283, %v1282
      %v1289 = vpack.c.bf16 %v1285, %v1284
      %s1290 = scalar_lea.vmem %s237, 384
      %v1291 = vld [vmem:[%s1290] sm:$0xf]
      %v1292 = vld [vmem:[%s1290 + $0x4] sm:$0xf]
      %v1293 = vld [vmem:[%s1290 + $0x8] sm:$0xf]
      %v1294 = vld [vmem:[%s1290 + $0xc] sm:$0xf]
      %v1295 = vld [vmem:[%s1290 + $0x10] sm:$0xf]
      %v1296 = vld [vmem:[%s1290 + $0x14] sm:$0xf]
      %v1297 = vld [vmem:[%s1290 + $0x18] sm:$0xf]
      %v1298 = vld [vmem:[%s1290 + $0x1c] sm:$0xf]
      %v1299 = vld [vmem:[%s1290 + $0x20] sm:$0xf]
      %v1300 = vld [vmem:[%s1290 + $0x24] sm:$0xf]
      %v1301 = vld [vmem:[%s1290 + $0x28] sm:$0xf]
      %v1302 = vld [vmem:[%s1290 + $0x2c] sm:$0xf]
      %v1303 = vld [vmem:[%s1290 + $0x30] sm:$0xf]
      %v1304 = vld [vmem:[%s1290 + $0x34] sm:$0xf]
      %v1305 = vld [vmem:[%s1290 + $0x38] sm:$0xf]
      %v1306 = vld [vmem:[%s1290 + $0x3c] sm:$0xf]
      %v1323 = vunpack.c.l.b16 %v1291
      %v1324 = vunpack.c.l.b16 %v1292
      %v1325 = vunpack.c.l.b16 %v1293
      %v1326 = vunpack.c.l.b16 %v1294
      %v1327 = vunpack.c.l.b16 %v1295
      %v1328 = vunpack.c.l.b16 %v1296
      %v1329 = vunpack.c.l.b16 %v1297
      %v1330 = vunpack.c.l.b16 %v1298
      %v1331 = vunpack.c.l.b16 %v1299
      %v1332 = vunpack.c.l.b16 %v1300
      %v1333 = vunpack.c.l.b16 %v1301
      %v1334 = vunpack.c.l.b16 %v1302
      %v1335 = vunpack.c.l.b16 %v1303
      %v1336 = vunpack.c.l.b16 %v1304
      %v1337 = vunpack.c.l.b16 %v1305
      %v1338 = vunpack.c.l.b16 %v1306
      %v1339 = vpack.c.b16 %v1324, %v1323
      %v1340 = vpack.c.b16 %v1326, %v1325
      %v1341 = vpack.c.b16 %v1328, %v1327
      %v1342 = vpack.c.b16 %v1330, %v1329
      %v1343 = vpack.c.b16 %v1332, %v1331
      %v1344 = vpack.c.b16 %v1334, %v1333
      %v1345 = vpack.c.b16 %v1336, %v1335
      %v1346 = vpack.c.b16 %v1338, %v1337
      %1355 = vmatprep.subr.bf16.mxu0 0
      %1356 = vmatpush1.bf16.msra.mxu0 %v1346
      %1357 = vmatprep.subr.bf16.mxu0 0
      %1358 = vmatpush1.bf16.msra.mxu0 %v1345
      %1359 = vmatprep.subr.bf16.mxu0 0
      %1360 = vmatpush1.bf16.msra.mxu0 %v1344
      %1361 = vmatprep.subr.bf16.mxu0 0
      %1362 = vmatpush1.bf16.msra.mxu0 %v1343
      %1363 = vmatprep.subr.bf16.mxu0 0
      %1364 = vmatpush1.bf16.msra.mxu0 %v1342
      %1365 = vmatprep.subr.bf16.mxu0 0
      %1366 = vmatpush1.bf16.msra.mxu0 %v1341
      %1367 = vmatprep.subr.bf16.mxu0 0
      %1368 = vmatpush1.bf16.msra.mxu0 %v1340
      %1369 = vmatprep.subr.bf16.mxu0 0
      %1370 = vmatpush1.bf16.msra.mxu0 %v1339
      %1371 = vmatprep.subr.bf16.mxu0 0
      %1372 = vmatpush2.bf16.msra.mxu0 0
      %1373 = vmatprep.subr.bf16.mxu0 0
      %1374 = vmatpush2.bf16.msra.mxu0 0
      %1375 = vmatprep.subr.bf16.mxu0 0
      %1376 = vmatpush2.bf16.msra.mxu0 0
      %1377 = vmatprep.subr.bf16.mxu0 0
      %1378 = vmatpush2.bf16.msra.mxu0 0
      %1379 = vmatprep.subr.bf16.mxu0 0
      %1380 = vmatpush2.bf16.msra.mxu0 0
      %1381 = vmatprep.subr.bf16.mxu0 0
      %1382 = vmatpush2.bf16.msra.mxu0 0
      %1383 = vmatprep.subr.bf16.mxu0 0
      %1384 = vmatpush2.bf16.msra.mxu0 0
      %1385 = vmatprep.subr.bf16.mxu0 0
      %1386 = vmatpush2.bf16.msra.mxu0 0
      %1387 = vmatprep.mubr.bf16.mxu0 0
      %1388 = vmatmul.mubr.bf16.gmra.mxu0 %v1286
      %v1389 = vpop.f32.mrf.mxu0
      %v1390 = vadd.f32 0.0, %v1389
      %v1391 = vpop.f32.mrf.mxu0
      %v1392 = vpop.f32.mrf.mxu0
      %v1393 = vadd.f32 0.0, %v1392
      %v1394 = vpop.f32.mrf.mxu0
      %1395 = vmatprep.mubr.bf16.mxu0 0
      %1396 = vmatmul.mubr.bf16.gmra.mxu0 %v1287
      %v1397 = vpop.f32.mrf.mxu0
      %v1398 = vadd.f32 0.0, %v1397
      %v1399 = vpop.f32.mrf.mxu0
      %v1400 = vpop.f32.mrf.mxu0
      %v1401 = vadd.f32 0.0, %v1400
      %v1402 = vpop.f32.mrf.mxu0
      %1403 = vmatprep.mubr.bf16.mxu0 0
      %1404 = vmatmul.mubr.bf16.gmra.mxu0 %v1288
      %v1405 = vpop.f32.mrf.mxu0
      %v1406 = vadd.f32 0.0, %v1405
      %v1407 = vpop.f32.mrf.mxu0
      %v1408 = vpop.f32.mrf.mxu0
      %v1409 = vadd.f32 0.0, %v1408
      %v1410 = vpop.f32.mrf.mxu0
      %1411 = vmatprep.mubr.bf16.mxu0 0
      %1412 = vmatmul.mubr.bf16.gmra.mxu0 %v1289
      %v1413 = vpop.f32.mrf.mxu0
      %v1414 = vadd.f32 0.0, %v1413
      %v1415 = vpop.f32.mrf.mxu0
      %v1416 = vpop.f32.mrf.mxu0
      %v1417 = vadd.f32 0.0, %v1416
      %v1418 = vpop.f32.mrf.mxu0
      %1419 = vdwg.mxu0
      %v1420 = vmul.f32 %v1390, %v411
      %v1421 = vmul.f32 %v1393, %v416
      %v1422 = vmul.f32 %v1398, %v421
      %v1423 = vmul.f32 %v1401, %v426
      %v1424 = vmul.f32 %v1406, %v431
      %v1425 = vmul.f32 %v1409, %v436
      %v1426 = vmul.f32 %v1414, %v441
      %v1427 = vmul.f32 %v1417, %v446
      %v1428 = vadd.f32 %v1270, %v1420
      %v1429 = vadd.f32 %v1271, %v1421
      %v1430 = vadd.f32 %v1272, %v1422
      %v1431 = vadd.f32 %v1273, %v1423
      %v1432 = vadd.f32 %v1274, %v1424
      %v1433 = vadd.f32 %v1275, %v1425
      %v1434 = vadd.f32 %v1276, %v1426
      %v1435 = vadd.f32 %v1277, %v1427
      %v1436 = vld [vmem:[%s233 + $0x11] sm:$0xff]
      %v1437 = vld [vmem:[%s233 + $0x19] sm:$0xff]
      %v1438 = vld [vmem:[%s233 + $0x21] sm:$0xff]
      %v1439 = vld [vmem:[%s233 + $0x29] sm:$0xff]
      %v1440 = vld [vmem:[%s233 + $0x31] sm:$0xff]
      %v1441 = vld [vmem:[%s233 + $0x39] sm:$0xff]
      %v1442 = vld [vmem:[%s233 + $0x41] sm:$0xff]
      %v1443 = vld [vmem:[%s233 + $0x49] sm:$0xff]
      %v1444 = vpack.c.bf16 %v1437, %v1436
      %v1445 = vpack.c.bf16 %v1439, %v1438
      %v1446 = vpack.c.bf16 %v1441, %v1440
      %v1447 = vpack.c.bf16 %v1443, %v1442
      %s1448 = scalar_lea.vmem %s237, 448
      %v1449 = vld [vmem:[%s1448] sm:$0xf]
      %v1450 = vld [vmem:[%s1448 + $0x4] sm:$0xf]
      %v1451 = vld [vmem:[%s1448 + $0x8] sm:$0xf]
      %v1452 = vld [vmem:[%s1448 + $0xc] sm:$0xf]
      %v1453 = vld [vmem:[%s1448 + $0x10] sm:$0xf]
      %v1454 = vld [vmem:[%s1448 + $0x14] sm:$0xf]
      %v1455 = vld [vmem:[%s1448 + $0x18] sm:$0xf]
      %v1456 = vld [vmem:[%s1448 + $0x1c] sm:$0xf]
      %v1457 = vld [vmem:[%s1448 + $0x20] sm:$0xf]
      %v1458 = vld [vmem:[%s1448 + $0x24] sm:$0xf]
      %v1459 = vld [vmem:[%s1448 + $0x28] sm:$0xf]
      %v1460 = vld [vmem:[%s1448 + $0x2c] sm:$0xf]
      %v1461 = vld [vmem:[%s1448 + $0x30] sm:$0xf]
      %v1462 = vld [vmem:[%s1448 + $0x34] sm:$0xf]
      %v1463 = vld [vmem:[%s1448 + $0x38] sm:$0xf]
      %v1464 = vld [vmem:[%s1448 + $0x3c] sm:$0xf]
      %v1481 = vunpack.c.l.b16 %v1449
      %v1482 = vunpack.c.l.b16 %v1450
      %v1483 = vunpack.c.l.b16 %v1451
      %v1484 = vunpack.c.l.b16 %v1452
      %v1485 = vunpack.c.l.b16 %v1453
      %v1486 = vunpack.c.l.b16 %v1454
      %v1487 = vunpack.c.l.b16 %v1455
      %v1488 = vunpack.c.l.b16 %v1456
      %v1489 = vunpack.c.l.b16 %v1457
      %v1490 = vunpack.c.l.b16 %v1458
      %v1491 = vunpack.c.l.b16 %v1459
      %v1492 = vunpack.c.l.b16 %v1460
      %v1493 = vunpack.c.l.b16 %v1461
      %v1494 = vunpack.c.l.b16 %v1462
      %v1495 = vunpack.c.l.b16 %v1463
      %v1496 = vunpack.c.l.b16 %v1464
      %v1497 = vpack.c.b16 %v1482, %v1481
      %v1498 = vpack.c.b16 %v1484, %v1483
      %v1499 = vpack.c.b16 %v1486, %v1485
      %v1500 = vpack.c.b16 %v1488, %v1487
      %v1501 = vpack.c.b16 %v1490, %v1489
      %v1502 = vpack.c.b16 %v1492, %v1491
      %v1503 = vpack.c.b16 %v1494, %v1493
      %v1504 = vpack.c.b16 %v1496, %v1495
      %1513 = vmatprep.subr.bf16.mxu0 0
      %1514 = vmatpush1.bf16.msra.mxu0 %v1504
      %1515 = vmatprep.subr.bf16.mxu0 0
      %1516 = vmatpush1.bf16.msra.mxu0 %v1503
      %1517 = vmatprep.subr.bf16.mxu0 0
      %1518 = vmatpush1.bf16.msra.mxu0 %v1502
      %1519 = vmatprep.subr.bf16.mxu0 0
      %1520 = vmatpush1.bf16.msra.mxu0 %v1501
      %1521 = vmatprep.subr.bf16.mxu0 0
      %1522 = vmatpush1.bf16.msra.mxu0 %v1500
      %1523 = vmatprep.subr.bf16.mxu0 0
      %1524 = vmatpush1.bf16.msra.mxu0 %v1499
      %1525 = vmatprep.subr.bf16.mxu0 0
      %1526 = vmatpush1.bf16.msra.mxu0 %v1498
      %1527 = vmatprep.subr.bf16.mxu0 0
      %1528 = vmatpush1.bf16.msra.mxu0 %v1497
      %1529 = vmatprep.subr.bf16.mxu0 0
      %1530 = vmatpush2.bf16.msra.mxu0 0
      %1531 = vmatprep.subr.bf16.mxu0 0
      %1532 = vmatpush2.bf16.msra.mxu0 0
      %1533 = vmatprep.subr.bf16.mxu0 0
      %1534 = vmatpush2.bf16.msra.mxu0 0
      %1535 = vmatprep.subr.bf16.mxu0 0
      %1536 = vmatpush2.bf16.msra.mxu0 0
      %1537 = vmatprep.subr.bf16.mxu0 0
      %1538 = vmatpush2.bf16.msra.mxu0 0
      %1539 = vmatprep.subr.bf16.mxu0 0
      %1540 = vmatpush2.bf16.msra.mxu0 0
      %1541 = vmatprep.subr.bf16.mxu0 0
      %1542 = vmatpush2.bf16.msra.mxu0 0
      %1543 = vmatprep.subr.bf16.mxu0 0
      %1544 = vmatpush2.bf16.msra.mxu0 0
      %1545 = vmatprep.mubr.bf16.mxu0 0
      %1546 = vmatmul.mubr.bf16.gmra.mxu0 %v1444
      %v1547 = vpop.f32.mrf.mxu0
      %v1548 = vadd.f32 0.0, %v1547
      %v1549 = vpop.f32.mrf.mxu0
      %v1550 = vpop.f32.mrf.mxu0
      %v1551 = vadd.f32 0.0, %v1550
      %v1552 = vpop.f32.mrf.mxu0
      %1553 = vmatprep.mubr.bf16.mxu0 0
      %1554 = vmatmul.mubr.bf16.gmra.mxu0 %v1445
      %v1555 = vpop.f32.mrf.mxu0
      %v1556 = vadd.f32 0.0, %v1555
      %v1557 = vpop.f32.mrf.mxu0
      %v1558 = vpop.f32.mrf.mxu0
      %v1559 = vadd.f32 0.0, %v1558
      %v1560 = vpop.f32.mrf.mxu0
      %1561 = vmatprep.mubr.bf16.mxu0 0
      %1562 = vmatmul.mubr.bf16.gmra.mxu0 %v1446
      %v1563 = vpop.f32.mrf.mxu0
      %v1564 = vadd.f32 0.0, %v1563
      %v1565 = vpop.f32.mrf.mxu0
      %v1566 = vpop.f32.mrf.mxu0
      %v1567 = vadd.f32 0.0, %v1566
      %v1568 = vpop.f32.mrf.mxu0
      %1569 = vmatprep.mubr.bf16.mxu0 0
      %1570 = vmatmul.mubr.bf16.gmra.mxu0 %v1447
      %v1571 = vpop.f32.mrf.mxu0
      %v1572 = vadd.f32 0.0, %v1571
      %v1573 = vpop.f32.mrf.mxu0
      %v1574 = vpop.f32.mrf.mxu0
      %v1575 = vadd.f32 0.0, %v1574
      %v1576 = vpop.f32.mrf.mxu0
      %1577 = vdwg.mxu0
      %v1578 = vadd.f32 %v1428, %v1548
      %v1579 = vadd.f32 %v1429, %v1551
      %v1580 = vadd.f32 %v1430, %v1556
      %v1581 = vadd.f32 %v1431, %v1559
      %v1582 = vadd.f32 %v1432, %v1564
      %v1583 = vadd.f32 %v1433, %v1567
      %v1584 = vadd.f32 %v1434, %v1572
      %v1585 = vadd.f32 %v1435, %v1575
      %v1586 = vld [vmem:[%s233 + $0x12] sm:$0xff]
      %v1587 = vld [vmem:[%s233 + $0x1a] sm:$0xff]
      %v1588 = vld [vmem:[%s233 + $0x22] sm:$0xff]
      %v1589 = vld [vmem:[%s233 + $0x2a] sm:$0xff]
      %v1590 = vld [vmem:[%s233 + $0x32] sm:$0xff]
      %v1591 = vld [vmem:[%s233 + $0x3a] sm:$0xff]
      %v1592 = vld [vmem:[%s233 + $0x42] sm:$0xff]
      %v1593 = vld [vmem:[%s233 + $0x4a] sm:$0xff]
      %v1594 = vpack.c.bf16 %v1587, %v1586
      %v1595 = vpack.c.bf16 %v1589, %v1588
      %v1596 = vpack.c.bf16 %v1591, %v1590
      %v1597 = vpack.c.bf16 %v1593, %v1592
      %s1598 = scalar_lea.vmem %s237, 512
      %v1599 = vld [vmem:[%s1598] sm:$0xf]
      %v1600 = vld [vmem:[%s1598 + $0x4] sm:$0xf]
      %v1601 = vld [vmem:[%s1598 + $0x8] sm:$0xf]
      %v1602 = vld [vmem:[%s1598 + $0xc] sm:$0xf]
      %v1603 = vld [vmem:[%s1598 + $0x10] sm:$0xf]
      %v1604 = vld [vmem:[%s1598 + $0x14] sm:$0xf]
      %v1605 = vld [vmem:[%s1598 + $0x18] sm:$0xf]
      %v1606 = vld [vmem:[%s1598 + $0x1c] sm:$0xf]
      %v1607 = vld [vmem:[%s1598 + $0x20] sm:$0xf]
      %v1608 = vld [vmem:[%s1598 + $0x24] sm:$0xf]
      %v1609 = vld [vmem:[%s1598 + $0x28] sm:$0xf]
      %v1610 = vld [vmem:[%s1598 + $0x2c] sm:$0xf]
      %v1611 = vld [vmem:[%s1598 + $0x30] sm:$0xf]
      %v1612 = vld [vmem:[%s1598 + $0x34] sm:$0xf]
      %v1613 = vld [vmem:[%s1598 + $0x38] sm:$0xf]
      %v1614 = vld [vmem:[%s1598 + $0x3c] sm:$0xf]
      %v1631 = vunpack.c.l.b16 %v1599
      %v1632 = vunpack.c.l.b16 %v1600
      %v1633 = vunpack.c.l.b16 %v1601
      %v1634 = vunpack.c.l.b16 %v1602
      %v1635 = vunpack.c.l.b16 %v1603
      %v1636 = vunpack.c.l.b16 %v1604
      %v1637 = vunpack.c.l.b16 %v1605
      %v1638 = vunpack.c.l.b16 %v1606
      %v1639 = vunpack.c.l.b16 %v1607
      %v1640 = vunpack.c.l.b16 %v1608
      %v1641 = vunpack.c.l.b16 %v1609
      %v1642 = vunpack.c.l.b16 %v1610
      %v1643 = vunpack.c.l.b16 %v1611
      %v1644 = vunpack.c.l.b16 %v1612
      %v1645 = vunpack.c.l.b16 %v1613
      %v1646 = vunpack.c.l.b16 %v1614
      %v1647 = vpack.c.b16 %v1632, %v1631
      %v1648 = vpack.c.b16 %v1634, %v1633
      %v1649 = vpack.c.b16 %v1636, %v1635
      %v1650 = vpack.c.b16 %v1638, %v1637
      %v1651 = vpack.c.b16 %v1640, %v1639
      %v1652 = vpack.c.b16 %v1642, %v1641
      %v1653 = vpack.c.b16 %v1644, %v1643
      %v1654 = vpack.c.b16 %v1646, %v1645
      %1663 = vmatprep.subr.bf16.mxu0 0
      %1664 = vmatpush1.bf16.msra.mxu0 %v1654
      %1665 = vmatprep.subr.bf16.mxu0 0
      %1666 = vmatpush1.bf16.msra.mxu0 %v1653
      %1667 = vmatprep.subr.bf16.mxu0 0
      %1668 = vmatpush1.bf16.msra.mxu0 %v1652
      %1669 = vmatprep.subr.bf16.mxu0 0
      %1670 = vmatpush1.bf16.msra.mxu0 %v1651
      %1671 = vmatprep.subr.bf16.mxu0 0
      %1672 = vmatpush1.bf16.msra.mxu0 %v1650
      %1673 = vmatprep.subr.bf16.mxu0 0
      %1674 = vmatpush1.bf16.msra.mxu0 %v1649
      %1675 = vmatprep.subr.bf16.mxu0 0
      %1676 = vmatpush1.bf16.msra.mxu0 %v1648
      %1677 = vmatprep.subr.bf16.mxu0 0
      %1678 = vmatpush1.bf16.msra.mxu0 %v1647
      %1679 = vmatprep.subr.bf16.mxu0 0
      %1680 = vmatpush2.bf16.msra.mxu0 0
      %1681 = vmatprep.subr.bf16.mxu0 0
      %1682 = vmatpush2.bf16.msra.mxu0 0
      %1683 = vmatprep.subr.bf16.mxu0 0
      %1684 = vmatpush2.bf16.msra.mxu0 0
      %1685 = vmatprep.subr.bf16.mxu0 0
      %1686 = vmatpush2.bf16.msra.mxu0 0
      %1687 = vmatprep.subr.bf16.mxu0 0
      %1688 = vmatpush2.bf16.msra.mxu0 0
      %1689 = vmatprep.subr.bf16.mxu0 0
      %1690 = vmatpush2.bf16.msra.mxu0 0
      %1691 = vmatprep.subr.bf16.mxu0 0
      %1692 = vmatpush2.bf16.msra.mxu0 0
      %1693 = vmatprep.subr.bf16.mxu0 0
      %1694 = vmatpush2.bf16.msra.mxu0 0
      %1695 = vmatprep.mubr.bf16.mxu0 0
      %1696 = vmatmul.mubr.bf16.gmra.mxu0 %v1594
      %v1697 = vpop.f32.mrf.mxu0
      %v1698 = vadd.f32 0.0, %v1697
      %v1699 = vpop.f32.mrf.mxu0
      %v1700 = vpop.f32.mrf.mxu0
      %v1701 = vadd.f32 0.0, %v1700
      %v1702 = vpop.f32.mrf.mxu0
      %1703 = vmatprep.mubr.bf16.mxu0 0
      %1704 = vmatmul.mubr.bf16.gmra.mxu0 %v1595
      %v1705 = vpop.f32.mrf.mxu0
      %v1706 = vadd.f32 0.0, %v1705
      %v1707 = vpop.f32.mrf.mxu0
      %v1708 = vpop.f32.mrf.mxu0
      %v1709 = vadd.f32 0.0, %v1708
      %v1710 = vpop.f32.mrf.mxu0
      %1711 = vmatprep.mubr.bf16.mxu0 0
      %1712 = vmatmul.mubr.bf16.gmra.mxu0 %v1596
      %v1713 = vpop.f32.mrf.mxu0
      %v1714 = vadd.f32 0.0, %v1713
      %v1715 = vpop.f32.mrf.mxu0
      %v1716 = vpop.f32.mrf.mxu0
      %v1717 = vadd.f32 0.0, %v1716
      %v1718 = vpop.f32.mrf.mxu0
      %1719 = vmatprep.mubr.bf16.mxu0 0
      %1720 = vmatmul.mubr.bf16.gmra.mxu0 %v1597
      %v1721 = vpop.f32.mrf.mxu0
      %v1722 = vadd.f32 0.0, %v1721
      %v1723 = vpop.f32.mrf.mxu0
      %v1724 = vpop.f32.mrf.mxu0
      %v1725 = vadd.f32 0.0, %v1724
      %v1726 = vpop.f32.mrf.mxu0
      %1727 = vdwg.mxu0
      %v1728 = vmul.f32 %v1698, %v759
      %v1729 = vmul.f32 %v1701, %v764
      %v1730 = vmul.f32 %v1706, %v769
      %v1731 = vmul.f32 %v1709, %v774
      %v1732 = vmul.f32 %v1714, %v779
      %v1733 = vmul.f32 %v1717, %v784
      %v1734 = vmul.f32 %v1722, %v789
      %v1735 = vmul.f32 %v1725, %v794
      %v1736 = vadd.f32 %v1578, %v1728
      %v1737 = vadd.f32 %v1579, %v1729
      %v1738 = vadd.f32 %v1580, %v1730
      %v1739 = vadd.f32 %v1581, %v1731
      %v1740 = vadd.f32 %v1582, %v1732
      %v1741 = vadd.f32 %v1583, %v1733
      %v1742 = vadd.f32 %v1584, %v1734
      %v1743 = vadd.f32 %v1585, %v1735
      %v1744 = vld [vmem:[%s240] sm:$0x1]
      %v1746 = vlaneseq
      %v1747 = vshrl.u32 %v1746, 7
      %v1748 = vsub.s32 0, %v1747
      %v1749 = vrot.slane %v1744, %v1748
      %v1751 = vadd.f32 %v1736, %v1749
      %v1752 = vadd.f32 %v1737, %v1749
      %v1753 = vadd.f32 %v1738, %v1749
      %v1754 = vadd.f32 %v1739, %v1749
      %v1755 = vadd.f32 %v1740, %v1749
      %v1756 = vadd.f32 %v1741, %v1749
      %v1757 = vadd.f32 %v1742, %v1749
      %v1758 = vadd.f32 %v1743, %v1749
      %v1759 = vmax.f32 %v1751, 0.0
      %v1760 = vmax.f32 %v1752, 0.0
      %v1761 = vmax.f32 %v1753, 0.0
      %v1762 = vmax.f32 %v1754, 0.0
      %v1763 = vmax.f32 %v1755, 0.0
      %v1764 = vmax.f32 %v1756, 0.0
      %v1765 = vmax.f32 %v1757, 0.0
      %v1766 = vmax.f32 %v1758, 0.0
      %v1767 = vpack.c.bf16 %v1760, %v1759
      %v1768 = vpack.c.bf16 %v1762, %v1761
      %v1769 = vpack.c.bf16 %v1764, %v1763
      %v1770 = vpack.c.bf16 %v1766, %v1765
      %v1775 = vunpack.c.l.b16 %v1767
      %v1776 = vunpack.c.h.b16 %v1767
      %v1777 = vunpack.c.l.b16 %v1768
      %v1778 = vunpack.c.h.b16 %v1768
      %v1779 = vunpack.c.l.b16 %v1769
      %v1780 = vunpack.c.h.b16 %v1769
      %v1781 = vunpack.c.l.b16 %v1770
      %v1782 = vunpack.c.h.b16 %v1770
      %v1783 = vpack.c.b16 %v1775, %v1775
      %v1784 = vpack.c.b16 %v1776, %v1776
      %v1785 = vpack.c.b16 %v1777, %v1777
      %v1786 = vpack.c.b16 %v1778, %v1778
      %v1787 = vpack.c.b16 %v1779, %v1779
      %v1788 = vpack.c.b16 %v1780, %v1780
      %v1789 = vpack.c.b16 %v1781, %v1781
      %v1790 = vpack.c.b16 %v1782, %v1782
      %1799 = vst [vmem:[%s248] sm:$0xf] %v1783
      %1800 = vst [vmem:[%s248 + $0x4] sm:$0xf] %v1784
      %1801 = vst [vmem:[%s248 + $0x8] sm:$0xf] %v1785
      %1802 = vst [vmem:[%s248 + $0xc] sm:$0xf] %v1786
      %1803 = vst [vmem:[%s248 + $0x10] sm:$0xf] %v1787
      %1804 = vst [vmem:[%s248 + $0x14] sm:$0xf] %v1788
      %1805 = vst [vmem:[%s248 + $0x18] sm:$0xf] %v1789
      %1806 = vst [vmem:[%s248 + $0x1c] sm:$0xf] %v1790
      %p1807 = scmp.lt.s32.totalorder %s20, 1
      %s1808 = scalar_select %p1807, %s20, 1
      %p1809 = scmp.lt.s32.totalorder %s19, 0
      %s1810 = scalar_select %p1809, %s19, 0
      %s1811 = smul.addr %s1808, 8
      %s1812 = sadd.s32 %s1810, %s1811
      %s1813 = smul.addr %s1812, 4
      %s1814 = scalar_lea.vmem %s4, %s1813
      // Predicated region
      $region37: #{stage2_forward.8} parent=35 // pred_check
        %p1815 = pneg %p146
      $region38: #{stage2_forward.8} parent=35 // pred_check_branch
        %1817 = sbr.rel (%p1815) target = $region40
      $region39: #{stage2_forward.8} parent=35 // pred_region
        _
      $region40: #{stage2_forward.8} parent=35 // pred_fallthru
        _
    $region36: #{stage2_forward.8} parent=5 // pred_fallthru
      _
    %p1818 = scmp.le.s32.totalorder 2, %s10
    // Predicated region
    $region41: #{stage2_forward.8} parent=5 // pred_check
      %p1819 = pneg %p1818
    $region42: #{stage2_forward.8} parent=5 // pred_check_branch
      %1821 = sbr.rel (%p1819) target = $region44
    $region43: #{stage2_forward.8} parent=5 // pred_region
      %s1822 = ssub.s32 %s10, 2
      // Predicated region
      $region45: #{stage2_forward.8} parent=43 // pred_check
        %p1823 = pneg %p152
      $region46: #{stage2_forward.8} parent=43 // pred_check_branch
        %1825 = sbr.rel (%p1823) target = $region48
      $region47: #{stage2_forward.8} parent=43 // pred_region
        %p1826 = scmp.lt.s32.totalorder %s22, 1
        %s1827 = scalar_select %p1826, %s22, 1
        %p1828 = scmp.lt.s32.totalorder %s21, 0
        %s1829 = scalar_select %p1828, %s21, 0
        %s1830 = smul.addr %s1827, 8
        %s1831 = sadd.s32 %s1829, %s1830
        %s1832 = smul.addr %s1831, 4
        %s1833 = scalar_lea.vmem %s4, %s1832
      $region48: #{stage2_forward.8} parent=43 // pred_fallthru
        _
    $region44: #{stage2_forward.8} parent=5 // pred_fallthru
      _
  $region6: #{stage2_forward.8} parent=0 // loop_footer
    %s14 = sadd.s32 1, %s10
  $region7: #{stage2_forward.8} parent=0 // loop_footer_branch
    %9 = sbr.rel target = $region3
  $region8: #{stage2_forward.8} parent=0 // loop_exit
    _

// kernel: stage2_forward.10
$region0: #{stage2_forward.10}
  #allocation0 [shape = 'u32[]', space=smem, size = 0x4, offset = 0x4, fixed_abs, tag = 'smem constant byte address 0x4 - core index']
  #allocation1 [shape = 'u32[144,128]{1,0:T(1,128)}', space=vmem, size = 0x12000, scoped, tag = 'internal scratch']
  %s0 = inlined_call_operand.vmem [shape: bf16[32,1152], index: 0, kind: input, shape index: {}]
  %s1 = inlined_call_operand.vmem [shape: bf16[1152,256], index: 1, kind: input, shape index: {}]
  %s2 = inlined_call_operand.vmem [shape: f32[1,256], index: 2, kind: input, shape index: {}]
  %s3 = inlined_call_operand.vmem [shape: bf16[128,256], index: 3, kind: input, shape index: {}]
  %s4 = inlined_call_operand.vmem [shape: f32[1,256], index: 4, kind: input, shape index: {}]
  %s5 = inlined_call_operand.vmem [shape: bf16[32,256], index: 5, kind: output, shape index: {0}]
  %s6 = inlined_call_operand.vmem [shape: bf16[32,256], index: 6, kind: output, shape index: {1}]
  %7 = xla_tuple %s5, %s6
  %s8 = sld [smem:[#allocation0]]
  $region61: #{stage2_forward.10} parent=0
    _
  %s10 = ssub.s32 1, %s8
  %s11 = scalar_select 0, %s10, %s8
  loop: start=0, step=1, limit=4
  $region2: #{stage2_forward.10} parent=0 // loop_pre_header
    _
  $region3: #{stage2_forward.10} parent=0 // loop_header
    %s13 = sphi 0, %s17
    %p14 = scmp.ge.s32.totalorder %s13, 4
    %s20 = sphi 0, %s32
    %s21 = sphi 0, %s28
    %s22 = sphi 0, %s20
    %s23 = sphi 0, %s21
    %s24 = sphi 0, %s22
    %s25 = sphi 0, %s23
    %s35 = sphi 0, %s37
    %s38 = sphi 0, %s35
    %s39 = sphi 0, %s38
    %s55 = sphi 0, %s39
    %s61 = sphi 0, %s63
    %s64 = sphi 0, %s61
    %s65 = sphi 0, %s64
    %s81 = sphi 0, %s65
    %s87 = sphi 0, %s89
    %s90 = sphi 0, %s87
    %s91 = sphi 0, %s90
    %s107 = sphi 0, %s91
    %s113 = sphi 0, %s115
    %s116 = sphi 0, %s113
    %s117 = sphi 0, %s116
    %s133 = sphi 0, %s117
    %s139 = sphi 0, %s141
    %s142 = sphi 0, %s139
    %s143 = sphi 0, %s142
    %s159 = sphi 0, %s143
    %s167 = sphi 0, %s169
    %s170 = sphi 0, %s167
    %s171 = sphi 0, %s170
    %s187 = sphi 0, %s171
    %s195 = sphi 0, %s197
    %s198 = sphi 0, %s195
    %s199 = sphi 0, %s198
    %s215 = sphi 0, %s199
  $region4: #{stage2_forward.10} parent=0 // loop_header_branch
    %16 = sbr.rel (%p14) target = $region8
  $region5: #{stage2_forward.10} parent=0 // loop_body
    %s18 = ssub.s32 %s13, 1
    %s19 = ssub.s32 %s13, 2
    %s26 = sadd.s32 1, %s21
    %p27 = scmp.ge.s32.totalorder %s26, 2
    %s28 = scalar_select %p27, 0, %s26
    %s29 = sadd.s32 1, %s20
    %s30 = scalar_select %p27, %s29, %s20
    %p31 = scmp.ge.s32.totalorder %s30, 1
    %s32 = scalar_select %p31, 0, %s30
    %s33 = ssub.s32 %s21, %s28
    %p34 = scmp.eq.s32.totalorder %s33, 0
    %s36 = sadd.s32 %s35, 1
    %s37 = scalar_select %p34, %s35, %s36
    %p40 = pneg %p34
    %p41 = scmp.eq.s32.totalorder %s13, 1
    %p42 = por %p40, %p41
    %p43 = scmp.ne.s32.totalorder %s35, %s38
    %p44 = scmp.eq.s32.totalorder %s13, 0
    %p45 = por %p43, %p44
    %p46 = scmp.ne.s32.totalorder %s35, %s38
    %p47 = scmp.eq.s32.totalorder %s18, 1
    %p48 = por %p46, %p47
    %p49 = scmp.ne.s32.totalorder %s38, %s39
    %p50 = scmp.eq.s32.totalorder %s18, 0
    %p51 = por %p49, %p50
    %p52 = scmp.ne.s32.totalorder %s38, %s39
    %p53 = scmp.eq.s32.totalorder %s19, 1
    %p54 = por %p52, %p53
    %p56 = scmp.ne.s32.totalorder %s39, %s55
    %p57 = scmp.eq.s32.totalorder %s19, 0
    %p58 = por %p56, %p57
    %s59 = ssub.s32 %s20, %s32
    %p60 = scmp.eq.s32.totalorder %s59, 0
    %s62 = sadd.s32 %s61, 1
    %s63 = scalar_select %p60, %s61, %s62
    %p66 = pneg %p60
    %p67 = scmp.eq.s32.totalorder %s13, 1
    %p68 = por %p66, %p67
    %p69 = scmp.ne.s32.totalorder %s61, %s64
    %p70 = scmp.eq.s32.totalorder %s13, 0
    %p71 = por %p69, %p70
    %p72 = scmp.ne.s32.totalorder %s61, %s64
    %p73 = scmp.eq.s32.totalorder %s18, 1
    %p74 = por %p72, %p73
    %p75 = scmp.ne.s32.totalorder %s64, %s65
    %p76 = scmp.eq.s32.totalorder %s18, 0
    %p77 = por %p75, %p76
    %p78 = scmp.ne.s32.totalorder %s64, %s65
    %p79 = scmp.eq.s32.totalorder %s19, 1
    %p80 = por %p78, %p79
    %p82 = scmp.ne.s32.totalorder %s65, %s81
    %p83 = scmp.eq.s32.totalorder %s19, 0
    %p84 = por %p82, %p83
    %s85 = ssub.s32 %s20, %s32
    %p86 = scmp.eq.s32.totalorder %s85, 0
    %s88 = sadd.s32 %s87, 1
    %s89 = scalar_select %p86, %s87, %s88
    %p92 = pneg %p86
    %p93 = scmp.eq.s32.totalorder %s13, 1
    %p94 = por %p92, %p93
    %p95 = scmp.ne.s32.totalorder %s87, %s90
    %p96 = scmp.eq.s32.totalorder %s13, 0
    %p97 = por %p95, %p96
    %p98 = scmp.ne.s32.totalorder %s87, %s90
    %p99 = scmp.eq.s32.totalorder %s18, 1
    %p100 = por %p98, %p99
    %p101 = scmp.ne.s32.totalorder %s90, %s91
    %p102 = scmp.eq.s32.totalorder %s18, 0
    %p103 = por %p101, %p102
    %p104 = scmp.ne.s32.totalorder %s90, %s91
    %p105 = scmp.eq.s32.totalorder %s19, 1
    %p106 = por %p104, %p105
    %p108 = scmp.ne.s32.totalorder %s91, %s107
    %p109 = scmp.eq.s32.totalorder %s19, 0
    %p110 = por %p108, %p109
    %s111 = ssub.s32 %s20, %s32
    %p112 = scmp.eq.s32.totalorder %s111, 0
    %s114 = sadd.s32 %s113, 1
    %s115 = scalar_select %p112, %s113, %s114
    %p118 = pneg %p112
    %p119 = scmp.eq.s32.totalorder %s13, 1
    %p120 = por %p118, %p119
    %p121 = scmp.ne.s32.totalorder %s113, %s116
    %p122 = scmp.eq.s32.totalorder %s13, 0
    %p123 = por %p121, %p122
    %p124 = scmp.ne.s32.totalorder %s113, %s116
    %p125 = scmp.eq.s32.totalorder %s18, 1
    %p126 = por %p124, %p125
    %p127 = scmp.ne.s32.totalorder %s116, %s117
    %p128 = scmp.eq.s32.totalorder %s18, 0
    %p129 = por %p127, %p128
    %p130 = scmp.ne.s32.totalorder %s116, %s117
    %p131 = scmp.eq.s32.totalorder %s19, 1
    %p132 = por %p130, %p131
    %p134 = scmp.ne.s32.totalorder %s117, %s133
    %p135 = scmp.eq.s32.totalorder %s19, 0
    %p136 = por %p134, %p135
    %s137 = ssub.s32 %s20, %s32
    %p138 = scmp.eq.s32.totalorder %s137, 0
    %s140 = sadd.s32 %s139, 1
    %s141 = scalar_select %p138, %s139, %s140
    %p144 = pneg %p138
    %p145 = scmp.eq.s32.totalorder %s13, 1
    %p146 = por %p144, %p145
    %p147 = scmp.ne.s32.totalorder %s139, %s142
    %p148 = scmp.eq.s32.totalorder %s13, 0
    %p149 = por %p147, %p148
    %p150 = scmp.ne.s32.totalorder %s139, %s142
    %p151 = scmp.eq.s32.totalorder %s18, 1
    %p152 = por %p150, %p151
    %p153 = scmp.ne.s32.totalorder %s142, %s143
    %p154 = scmp.eq.s32.totalorder %s18, 0
    %p155 = por %p153, %p154
    %p156 = scmp.ne.s32.totalorder %s142, %s143
    %p157 = scmp.eq.s32.totalorder %s19, 1
    %p158 = por %p156, %p157
    %p160 = scmp.ne.s32.totalorder %s143, %s159
    %p161 = scmp.eq.s32.totalorder %s19, 0
    %p162 = por %p160, %p161
    %s163 = ssub.s32 %s21, %s28
    %s164 = ssub.s32 %s20, %s32
    %s165 = sor.u32 %s163, %s164
    %p166 = scmp.eq.s32.totalorder %s165, 0
    %s168 = sadd.s32 %s167, 1
    %s169 = scalar_select %p166, %s167, %s168
    %p172 = pneg %p166
    %p173 = scmp.eq.s32.totalorder %s13, 1
    %p174 = por %p172, %p173
    %p175 = scmp.ne.s32.totalorder %s167, %s170
    %p176 = scmp.eq.s32.totalorder %s13, 0
    %p177 = por %p175, %p176
    %p178 = scmp.ne.s32.totalorder %s167, %s170
    %p179 = scmp.eq.s32.totalorder %s18, 1
    %p180 = por %p178, %p179
    %p181 = scmp.ne.s32.totalorder %s170, %s171
    %p182 = scmp.eq.s32.totalorder %s18, 0
    %p183 = por %p181, %p182
    %p184 = scmp.ne.s32.totalorder %s170, %s171
    %p185 = scmp.eq.s32.totalorder %s19, 1
    %p186 = por %p184, %p185
    %p188 = scmp.ne.s32.totalorder %s171, %s187
    %p189 = scmp.eq.s32.totalorder %s19, 0
    %p190 = por %p188, %p189
    %s191 = ssub.s32 %s21, %s28
    %s192 = ssub.s32 %s20, %s32
    %s193 = sor.u32 %s191, %s192
    %p194 = scmp.eq.s32.totalorder %s193, 0
    %s196 = sadd.s32 %s195, 1
    %s197 = scalar_select %p194, %s195, %s196
    %p200 = pneg %p194
    %p201 = scmp.eq.s32.totalorder %s13, 1
    %p202 = por %p200, %p201
    %p203 = scmp.ne.s32.totalorder %s195, %s198
    %p204 = scmp.eq.s32.totalorder %s13, 0
    %p205 = por %p203, %p204
    %p206 = scmp.ne.s32.totalorder %s195, %s198
    %p207 = scmp.eq.s32.totalorder %s18, 1
    %p208 = por %p206, %p207
    %p209 = scmp.ne.s32.totalorder %s198, %s199
    %p210 = scmp.eq.s32.totalorder %s18, 0
    %p211 = por %p209, %p210
    %p212 = scmp.ne.s32.totalorder %s198, %s199
    %p213 = scmp.eq.s32.totalorder %s19, 1
    %p214 = por %p212, %p213
    %p216 = scmp.ne.s32.totalorder %s199, %s215
    %p217 = scmp.eq.s32.totalorder %s19, 0
    %p218 = por %p216, %p217
    %p219 = scmp.le.s32.totalorder 1, %s13
    %p220 = scmp.lt.s32.totalorder %s13, 3
    %p221 = pnand %p219, %p220
    %p222 = pneg %p221
    // Predicated region
    $region9: #{stage2_forward.10} parent=5 // pred_check
      _
    $region10: #{stage2_forward.10} parent=5 // pred_check_branch
      %224 = sbr.rel (%p221) target = $region12
    $region11: #{stage2_forward.10} parent=5 // pred_region
      %s225 = ssub.s32 %s13, 1
      // Predicated region
      $region13: #{stage2_forward.10} parent=11 // pred_check
        %p226 = pneg %p77
      $region14: #{stage2_forward.10} parent=11 // pred_check_branch
        %228 = sbr.rel (%p226) target = $region16
      $region15: #{stage2_forward.10} parent=11 // pred_region
        %s229 = smul.u32 2, %s22
        %p230 = scmp.lt.s32.totalorder %s229, 1
        %s231 = scalar_select %p230, %s229, 1
        %s232 = smul.addr %s231, 4
        %s233 = scalar_lea.vmem %s1, %s232
        %s234 = smul.u32 2, %s22
      $region16: #{stage2_forward.10} parent=11 // pred_fallthru
        _
      // Predicated region
      $region17: #{stage2_forward.10} parent=11 // pred_check
        %p235 = pneg %p103
      $region18: #{stage2_forward.10} parent=11 // pred_check_branch
        %237 = sbr.rel (%p235) target = $region20
      $region19: #{stage2_forward.10} parent=11 // pred_region
        %s238 = smul.u32 2, %s22
        %p239 = scmp.lt.s32.totalorder %s238, 1
        %s240 = scalar_select %p239, %s238, 1
        %s241 = scalar_lea.vmem %s2, %s240
        %s242 = smul.u32 2, %s22
      $region20: #{stage2_forward.10} parent=11 // pred_fallthru
        _
      // Predicated region
      $region21: #{stage2_forward.10} parent=11 // pred_check
        %p243 = pneg %p129
      $region22: #{stage2_forward.10} parent=11 // pred_check_branch
        %245 = sbr.rel (%p243) target = $region24
      $region23: #{stage2_forward.10} parent=11 // pred_region
        %s246 = smul.u32 2, %s22
        %p247 = scmp.lt.s32.totalorder %s246, 1
        %s248 = scalar_select %p247, %s246, 1
        %s249 = smul.addr %s248, 4
        %s250 = scalar_lea.vmem %s3, %s249
        %s251 = smul.u32 2, %s22
      $region24: #{stage2_forward.10} parent=11 // pred_fallthru
        _
      // Predicated region
      $region25: #{stage2_forward.10} parent=11 // pred_check
        %p252 = pneg %p155
      $region26: #{stage2_forward.10} parent=11 // pred_check_branch
        %254 = sbr.rel (%p252) target = $region28
      $region27: #{stage2_forward.10} parent=11 // pred_region
        %s255 = smul.u32 2, %s22
        %p256 = scmp.lt.s32.totalorder %s255, 1
        %s257 = scalar_select %p256, %s255, 1
        %s258 = scalar_lea.vmem %s4, %s257
        %s259 = smul.u32 2, %s22
      $region28: #{stage2_forward.10} parent=11 // pred_fallthru
        _
    $region12: #{stage2_forward.10} parent=5 // pred_fallthru
      _
    %p260 = scmp.lt.s32.totalorder %s13, 2
    // Predicated region
    $region29: #{stage2_forward.10} parent=5 // pred_check
      %p261 = pneg %p260
    $region30: #{stage2_forward.10} parent=5 // pred_check_branch
      %263 = sbr.rel (%p261) target = $region32
    $region31: #{stage2_forward.10} parent=5 // pred_region
      // Predicated region
      $region33: #{stage2_forward.10} parent=31 // pred_check
        %p264 = pneg %p45
      $region34: #{stage2_forward.10} parent=31 // pred_check_branch
        %266 = sbr.rel (%p264) target = $region36
      $region35: #{stage2_forward.10} parent=31 // pred_region
        %s267 = smul.u32 2, %s21
        %p268 = scmp.lt.s32.totalorder %s267, 3
        %s269 = scalar_select %p268, %s267, 3
        %s270 = smul.addr %s269, 9
        %s271 = smul.addr %s270, 4
        %s272 = scalar_lea.vmem %s0, %s271
        %s273 = smul.u32 2, %s21
      $region36: #{stage2_forward.10} parent=31 // pred_fallthru
        _
    $region32: #{stage2_forward.10} parent=5 // pred_fallthru
      _
    %p274 = scmp.le.s32.totalorder 1, %s13
    %p275 = scmp.lt.s32.totalorder %s13, 3
    %p276 = pnand %p274, %p275
    %p277 = pneg %p276
    // Predicated region
    $region37: #{stage2_forward.10} parent=5 // pred_check
      _
    $region38: #{stage2_forward.10} parent=5 // pred_check_branch
      %279 = sbr.rel (%p276) target = $region40
    $region39: #{stage2_forward.10} parent=5 // pred_region
      %s280 = ssub.s32 %s13, 1
      %s281 = smul.u32 2, %s23
      %p282 = scmp.lt.s32.totalorder %s281, 3
      %s283 = scalar_select %p282, %s281, 3
      %s284 = smul.addr %s283, 9
      %s285 = smul.addr %s284, 4
      %s286 = scalar_lea.vmem %s0, %s285
      %p287 = pneg %p51
      %p288 = pneg %p48
      %s289 = smul.u32 2, %s22
      %p290 = scmp.lt.s32.totalorder %s289, 1
      %s291 = scalar_select %p290, %s289, 1
      %s292 = smul.addr %s291, 4
      %s293 = scalar_lea.vmem %s1, %s292
      %p294 = pneg %p77
      %p295 = pneg %p74
      %s296 = smul.u32 2, %s22
      %p297 = scmp.lt.s32.totalorder %s296, 1
      %s298 = scalar_select %p297, %s296, 1
      %s299 = scalar_lea.vmem %s2, %s298
      %p300 = pneg %p103
      %p301 = pneg %p100
      %s302 = smul.u32 2, %s22
      %p303 = scmp.lt.s32.totalorder %s302, 1
      %s304 = scalar_select %p303, %s302, 1
      %s305 = smul.addr %s304, 4
      %s306 = scalar_lea.vmem %s3, %s305
      %p307 = pneg %p129
      %p308 = pneg %p126
      %s309 = smul.u32 2, %s22
      %p310 = scmp.lt.s32.totalorder %s309, 1
      %s311 = scalar_select %p310, %s309, 1
      %s312 = scalar_lea.vmem %s4, %s311
      %p313 = pneg %p155
      %p314 = pneg %p152
      %p315 = pneg %p183
      %p316 = pneg %p180
      %s317 = smul.u32 2, %s23
      %s318 = smul.u32 2, %s22
      %p319 = scmp.lt.s32.totalorder %s317, 3
      %s320 = scalar_select %p319, %s317, 3
      %p321 = scmp.lt.s32.totalorder %s318, 1
      %s322 = scalar_select %p321, %s318, 1
      %s323 = smul.addr %s320, 2
      %s324 = sadd.s32 %s322, %s323
      %s325 = smul.addr %s324, 4
      %s326 = scalar_lea.vmem %s5, %s325
      %p327 = pneg %p211
      %p328 = pneg %p208
      %s329 = smul.u32 2, %s23
      %s330 = smul.u32 2, %s22
      %p331 = scmp.lt.s32.totalorder %s329, 3
      %s332 = scalar_select %p331, %s329, 3
      %p333 = scmp.lt.s32.totalorder %s330, 1
      %s334 = scalar_select %p333, %s330, 1
      %s335 = smul.addr %s332, 2
      %s336 = sadd.s32 %s334, %s335
      %s337 = smul.addr %s336, 4
      %s338 = scalar_lea.vmem %s6, %s337
      %s339 = smul.u32 2, %s23
      %p340 = scmp.lt.s32.totalorder %s339, 3
      %s341 = scalar_select %p340, %s339, 3
      %s342 = smul.addr %s341, 9
      %s343 = smul.addr %s342, 4
      %s344 = scalar_lea.vmem %s0, %s343
      %s345 = smul.u32 2, %s23
      %s346 = smul.u32 2, %s22
      %p347 = scmp.lt.s32.totalorder %s346, 1
      %s348 = scalar_select %p347, %s346, 1
      %s349 = smul.addr %s348, 4
      %s350 = scalar_lea.vmem %s1, %s349
      %s351 = smul.u32 2, %s22
      %s352 = smul.u32 2, %s22
      %p353 = scmp.lt.s32.totalorder %s352, 1
      %s354 = scalar_select %p353, %s352, 1
      %s355 = scalar_lea.vmem %s2, %s354
      %s356 = smul.u32 2, %s22
      %s357 = smul.u32 2, %s22
      %p358 = scmp.lt.s32.totalorder %s357, 1
      %s359 = scalar_select %p358, %s357, 1
      %s360 = smul.addr %s359, 4
      %s361 = scalar_lea.vmem %s3, %s360
      %s362 = smul.u32 2, %s22
      %s363 = smul.u32 2, %s22
      %p364 = scmp.lt.s32.totalorder %s363, 1
      %s365 = scalar_select %p364, %s363, 1
      %s366 = scalar_lea.vmem %s4, %s365
      %s367 = smul.u32 2, %s22
      %s368 = smul.u32 2, %s23
      %s369 = smul.u32 2, %s22
      %p370 = scmp.lt.s32.totalorder %s368, 3
      %s371 = scalar_select %p370, %s368, 3
      %p372 = scmp.lt.s32.totalorder %s369, 1
      %s373 = scalar_select %p372, %s369, 1
      %s374 = smul.addr %s371, 2
      %s375 = sadd.s32 %s373, %s374
      %s376 = smul.addr %s375, 4
      %s377 = scalar_lea.vmem %s5, %s376
      %s378 = smul.u32 2, %s23
      %s379 = smul.u32 2, %s22
      %s380 = smul.u32 2, %s23
      %s381 = smul.u32 2, %s22
      %p382 = scmp.lt.s32.totalorder %s380, 3
      %s383 = scalar_select %p382, %s380, 3
      %p384 = scmp.lt.s32.totalorder %s381, 1
      %s385 = scalar_select %p384, %s381, 1
      %s386 = smul.addr %s383, 2
      %s387 = sadd.s32 %s385, %s386
      %s388 = smul.addr %s387, 4
      %s389 = scalar_lea.vmem %s6, %s388
      %s390 = smul.u32 2, %s23
      %s391 = smul.u32 2, %s22
      %v393 = vld [vmem:[%s344] sm:$0xff]
      %v394 = vld [vmem:[%s344 + $0x8] sm:$0xff]
      %v395 = vld [vmem:[%s344 + $0x10] sm:$0xff]
      %v396 = vld [vmem:[%s344 + $0x18] sm:$0xff]
      %v397 = vld [vmem:[%s344 + $0x20] sm:$0xf]
      %v398 = vld [vmem:[%s344 + $0x24] sm:$0xff]
      %v399 = vld [vmem:[%s344 + $0x2c] sm:$0xff]
      %v400 = vld [vmem:[%s344 + $0x34] sm:$0xff]
      %v401 = vld [vmem:[%s344 + $0x3c] sm:$0xff]
      %v402 = vld [vmem:[%s344 + $0x44] sm:$0xf]
      %v403 = vld [vmem:[%s350] sm:$0xff]
      %v404 = vld [vmem:[%s350 + $0x8] sm:$0xff]
      %v405 = vld [vmem:[%s350 + $0x10] sm:$0xff]
      %v406 = vld [vmem:[%s350 + $0x18] sm:$0xff]
      %v407 = vld [vmem:[%s350 + $0x20] sm:$0xff]
      %v408 = vld [vmem:[%s350 + $0x28] sm:$0xff]
      %v409 = vld [vmem:[%s350 + $0x30] sm:$0xff]
      %v410 = vld [vmem:[%s350 + $0x38] sm:$0xff]
      %v411 = vld [vmem:[%s350 + $0x40] sm:$0xff]
      %v412 = vld [vmem:[%s350 + $0x48] sm:$0xff]
      %v413 = vld [vmem:[%s350 + $0x50] sm:$0xff]
      %v414 = vld [vmem:[%s350 + $0x58] sm:$0xff]
      %v415 = vld [vmem:[%s350 + $0x60] sm:$0xff]
      %v416 = vld [vmem:[%s350 + $0x68] sm:$0xff]
      %v417 = vld [vmem:[%s350 + $0x70] sm:$0xff]
      %v418 = vld [vmem:[%s350 + $0x78] sm:$0xff]
      %v419 = vld [vmem:[%s350 + $0x80] sm:$0xff]
      %v420 = vld [vmem:[%s350 + $0x88] sm:$0xff]
      %v421 = vld [vmem:[%s350 + $0x90] sm:$0xff]
      %v422 = vld [vmem:[%s350 + $0x98] sm:$0xff]
      %v423 = vld [vmem:[%s350 + $0xa0] sm:$0xff]
      %v424 = vld [vmem:[%s350 + $0xa8] sm:$0xff]
      %v425 = vld [vmem:[%s350 + $0xb0] sm:$0xff]
      %v426 = vld [vmem:[%s350 + $0xb8] sm:$0xff]
      %v427 = vld [vmem:[%s350 + $0xc0] sm:$0xff]
      %v428 = vld [vmem:[%s350 + $0xc8] sm:$0xff]
      %v429 = vld [vmem:[%s350 + $0xd0] sm:$0xff]
      %v430 = vld [vmem:[%s350 + $0xd8] sm:$0xff]
      %v431 = vld [vmem:[%s350 + $0xe0] sm:$0xff]
      %v432 = vld [vmem:[%s350 + $0xe8] sm:$0xff]
      %v433 = vld [vmem:[%s350 + $0xf0] sm:$0xff]
      %v434 = vld [vmem:[%s350 + $0xf8] sm:$0xff]
      %v435 = vld [vmem:[%s350 + $0x100] sm:$0xff]
      %v436 = vld [vmem:[%s350 + $0x108] sm:$0xff]
      %v437 = vld [vmem:[%s350 + $0x110] sm:$0xff]
      %v438 = vld [vmem:[%s350 + $0x118] sm:$0xff]
      %v439 = vld [vmem:[%s350 + $0x120] sm:$0xff]
      %v440 = vld [vmem:[%s350 + $0x128] sm:$0xff]
      %v441 = vld [vmem:[%s350 + $0x130] sm:$0xff]
      %v442 = vld [vmem:[%s350 + $0x138] sm:$0xff]
      %v443 = vld [vmem:[%s350 + $0x140] sm:$0xff]
      %v444 = vld [vmem:[%s350 + $0x148] sm:$0xff]
      %v445 = vld [vmem:[%s350 + $0x150] sm:$0xff]
      %v446 = vld [vmem:[%s350 + $0x158] sm:$0xff]
      %v447 = vld [vmem:[%s350 + $0x160] sm:$0xff]
      %v448 = vld [vmem:[%s350 + $0x168] sm:$0xff]
      %v449 = vld [vmem:[%s350 + $0x170] sm:$0xff]
      %v450 = vld [vmem:[%s350 + $0x178] sm:$0xff]
      %v451 = vld [vmem:[%s350 + $0x180] sm:$0xff]
      %v452 = vld [vmem:[%s350 + $0x188] sm:$0xff]
      %v453 = vld [vmem:[%s350 + $0x190] sm:$0xff]
      %v454 = vld [vmem:[%s350 + $0x198] sm:$0xff]
      %v455 = vld [vmem:[%s350 + $0x1a0] sm:$0xff]
      %v456 = vld [vmem:[%s350 + $0x1a8] sm:$0xff]
      %v457 = vld [vmem:[%s350 + $0x1b0] sm:$0xff]
      %v458 = vld [vmem:[%s350 + $0x1b8] sm:$0xff]
      %v459 = vld [vmem:[%s350 + $0x1c0] sm:$0xff]
      %v460 = vld [vmem:[%s350 + $0x1c8] sm:$0xff]
      %v461 = vld [vmem:[%s350 + $0x1d0] sm:$0xff]
      %v462 = vld [vmem:[%s350 + $0x1d8] sm:$0xff]
      %v463 = vld [vmem:[%s350 + $0x1e0] sm:$0xff]
      %v464 = vld [vmem:[%s350 + $0x1e8] sm:$0xff]
      %v465 = vld [vmem:[%s350 + $0x1f0] sm:$0xff]
      %v466 = vld [vmem:[%s350 + $0x1f8] sm:$0xff]
      %v467 = vld [vmem:[%s350 + $0x200] sm:$0xff]
      %v468 = vld [vmem:[%s350 + $0x208] sm:$0xff]
      %v469 = vld [vmem:[%s350 + $0x210] sm:$0xff]
      %v470 = vld [vmem:[%s350 + $0x218] sm:$0xff]
      %v471 = vld [vmem:[%s350 + $0x220] sm:$0xff]
      %v472 = vld [vmem:[%s350 + $0x228] sm:$0xff]
      %v473 = vld [vmem:[%s350 + $0x230] sm:$0xff]
      %v474 = vld [vmem:[%s350 + $0x238] sm:$0xff]
      %v475 = vld [vmem:[%s350 + $0x240] sm:$0xff]
      %v476 = vld [vmem:[%s350 + $0x248] sm:$0xff]
      %v477 = vld [vmem:[%s350 + $0x250] sm:$0xff]
      %v478 = vld [vmem:[%s350 + $0x258] sm:$0xff]
      %v479 = vld [vmem:[%s350 + $0x260] sm:$0xff]
      %v480 = vld [vmem:[%s350 + $0x268] sm:$0xff]
      %v481 = vld [vmem:[%s350 + $0x270] sm:$0xff]
      %v482 = vld [vmem:[%s350 + $0x278] sm:$0xff]
      %v483 = vld [vmem:[%s350 + $0x280] sm:$0xff]
      %v484 = vld [vmem:[%s350 + $0x288] sm:$0xff]
      %v485 = vld [vmem:[%s350 + $0x290] sm:$0xff]
      %v486 = vld [vmem:[%s350 + $0x298] sm:$0xff]
      %v487 = vld [vmem:[%s350 + $0x2a0] sm:$0xff]
      %v488 = vld [vmem:[%s350 + $0x2a8] sm:$0xff]
      %v489 = vld [vmem:[%s350 + $0x2b0] sm:$0xff]
      %v490 = vld [vmem:[%s350 + $0x2b8] sm:$0xff]
      %v491 = vld [vmem:[%s350 + $0x2c0] sm:$0xff]
      %v492 = vld [vmem:[%s350 + $0x2c8] sm:$0xff]
      %v493 = vld [vmem:[%s350 + $0x2d0] sm:$0xff]
      %v494 = vld [vmem:[%s350 + $0x2d8] sm:$0xff]
      %v495 = vld [vmem:[%s350 + $0x2e0] sm:$0xff]
      %v496 = vld [vmem:[%s350 + $0x2e8] sm:$0xff]
      %v497 = vld [vmem:[%s350 + $0x2f0] sm:$0xff]
      %v498 = vld [vmem:[%s350 + $0x2f8] sm:$0xff]
      %v499 = vld [vmem:[%s350 + $0x300] sm:$0xff]
      %v500 = vld [vmem:[%s350 + $0x308] sm:$0xff]
      %v501 = vld [vmem:[%s350 + $0x310] sm:$0xff]
      %v502 = vld [vmem:[%s350 + $0x318] sm:$0xff]
      %v503 = vld [vmem:[%s350 + $0x320] sm:$0xff]
      %v504 = vld [vmem:[%s350 + $0x328] sm:$0xff]
      %v505 = vld [vmem:[%s350 + $0x330] sm:$0xff]
      %v506 = vld [vmem:[%s350 + $0x338] sm:$0xff]
      %v507 = vld [vmem:[%s350 + $0x340] sm:$0xff]
      %v508 = vld [vmem:[%s350 + $0x348] sm:$0xff]
      %v509 = vld [vmem:[%s350 + $0x350] sm:$0xff]
      %v510 = vld [vmem:[%s350 + $0x358] sm:$0xff]
      %v511 = vld [vmem:[%s350 + $0x360] sm:$0xff]
      %v512 = vld [vmem:[%s350 + $0x368] sm:$0xff]
      %v513 = vld [vmem:[%s350 + $0x370] sm:$0xff]
      %v514 = vld [vmem:[%s350 + $0x378] sm:$0xff]
      %v515 = vld [vmem:[%s350 + $0x380] sm:$0xff]
      %v516 = vld [vmem:[%s350 + $0x388] sm:$0xff]
      %v517 = vld [vmem:[%s350 + $0x390] sm:$0xff]
      %v518 = vld [vmem:[%s350 + $0x398] sm:$0xff]
      %v519 = vld [vmem:[%s350 + $0x3a0] sm:$0xff]
      %v520 = vld [vmem:[%s350 + $0x3a8] sm:$0xff]
      %v521 = vld [vmem:[%s350 + $0x3b0] sm:$0xff]
      %v522 = vld [vmem:[%s350 + $0x3b8] sm:$0xff]
      %v523 = vld [vmem:[%s350 + $0x3c0] sm:$0xff]
      %v524 = vld [vmem:[%s350 + $0x3c8] sm:$0xff]
      %v525 = vld [vmem:[%s350 + $0x3d0] sm:$0xff]
      %v526 = vld [vmem:[%s350 + $0x3d8] sm:$0xff]
      %v527 = vld [vmem:[%s350 + $0x3e0] sm:$0xff]
      %v528 = vld [vmem:[%s350 + $0x3e8] sm:$0xff]
      %v529 = vld [vmem:[%s350 + $0x3f0] sm:$0xff]
      %v530 = vld [vmem:[%s350 + $0x3f8] sm:$0xff]
      %v531 = vld [vmem:[%s350 + $0x400] sm:$0xff]
      %v532 = vld [vmem:[%s350 + $0x408] sm:$0xff]
      %v533 = vld [vmem:[%s350 + $0x410] sm:$0xff]
      %v534 = vld [vmem:[%s350 + $0x418] sm:$0xff]
      %v535 = vld [vmem:[%s350 + $0x420] sm:$0xff]
      %v536 = vld [vmem:[%s350 + $0x428] sm:$0xff]
      %v537 = vld [vmem:[%s350 + $0x430] sm:$0xff]
      %v538 = vld [vmem:[%s350 + $0x438] sm:$0xff]
      %v539 = vld [vmem:[%s350 + $0x440] sm:$0xff]
      %v540 = vld [vmem:[%s350 + $0x448] sm:$0xff]
      %v541 = vld [vmem:[%s350 + $0x450] sm:$0xff]
      %v542 = vld [vmem:[%s350 + $0x458] sm:$0xff]
      %v543 = vld [vmem:[%s350 + $0x460] sm:$0xff]
      %v544 = vld [vmem:[%s350 + $0x468] sm:$0xff]
      %v545 = vld [vmem:[%s350 + $0x470] sm:$0xff]
      %v546 = vld [vmem:[%s350 + $0x478] sm:$0xff]
      %v547 = vld [vmem:[%s355] sm:$0x3]
      %v549 = vlaneseq
      %v550 = vshrl.u32 %v549, 7
      %v551 = vsub.s32 0, %v550
      %v552 = vrot.slane %v547, %v551
      %v553 = vlaneseq
      %v554 = vshrl.u32 %v553, 7
      %v555 = vsub.s32 1, %v554
      %v556 = vrot.slane %v547, %v555
      %v569 = vunpack.c.l.b16 %v393
      %v570 = vunpack.c.h.b16 %v393
      %v571 = vunpack.c.l.b16 %v394
      %v572 = vunpack.c.h.b16 %v394
      %v573 = vunpack.c.l.b16 %v395
      %v574 = vunpack.c.h.b16 %v395
      %v575 = vunpack.c.l.b16 %v396
      %v576 = vunpack.c.h.b16 %v396
      %v577 = vunpack.c.l.b16 %v397
      %v578 = vunpack.c.l.b16 %v398
      %v579 = vunpack.c.h.b16 %v398
      %v580 = vunpack.c.l.b16 %v399
      %v581 = vunpack.c.h.b16 %v399
      %v582 = vunpack.c.l.b16 %v400
      %v583 = vunpack.c.h.b16 %v400
      %v584 = vunpack.c.l.b16 %v401
      %v585 = vunpack.c.h.b16 %v401
      %v586 = vunpack.c.l.b16 %v402
      %v587 = vpack.c.b16 %v578, %v569
      %v588 = vpack.c.b16 %v579, %v570
      %v589 = vpack.c.b16 %v580, %v571
      %v590 = vpack.c.b16 %v581, %v572
      %v591 = vpack.c.b16 %v582, %v573
      %v592 = vpack.c.b16 %v583, %v574
      %v593 = vpack.c.b16 %v584, %v575
      %v594 = vpack.c.b16 %v585, %v576
      %v595 = vpack.c.b16 %v586, %v577
      %v749 = vunpack.c.l.b16 %v403
      %v750 = vunpack.c.h.b16 %v403
      %v751 = vunpack.c.l.b16 %v404
      %v752 = vunpack.c.h.b16 %v404
      %v753 = vunpack.c.l.b16 %v405
      %v754 = vunpack.c.h.b16 %v405
      %v755 = vunpack.c.l.b16 %v406
      %v756 = vunpack.c.h.b16 %v406
      %v757 = vunpack.c.l.b16 %v407
      %v758 = vunpack.c.h.b16 %v407
      %v759 = vunpack.c.l.b16 %v408
      %v760 = vunpack.c.h.b16 %v408
      %v761 = vunpack.c.l.b16 %v409
      %v762 = vunpack.c.h.b16 %v409
      %v763 = vunpack.c.l.b16 %v410
      %v764 = vunpack.c.h.b16 %v410
      %v765 = vunpack.c.l.b16 %v411
      %v766 = vunpack.c.h.b16 %v411
      %v767 = vunpack.c.l.b16 %v412
      %v768 = vunpack.c.h.b16 %v412
      %v769 = vunpack.c.l.b16 %v413
      %v770 = vunpack.c.h.b16 %v413
      %v771 = vunpack.c.l.b16 %v414
      %v772 = vunpack.c.h.b16 %v414
      %v773 = vunpack.c.l.b16 %v415
      %v774 = vunpack.c.h.b16 %v415
      %v775 = vunpack.c.l.b16 %v416
      %v776 = vunpack.c.h.b16 %v416
      %v777 = vunpack.c.l.b16 %v417
      %v778 = vunpack.c.h.b16 %v417
      %v779 = vunpack.c.l.b16 %v418
      %v780 = vunpack.c.h.b16 %v418
      %v781 = vunpack.c.l.b16 %v419
      %v782 = vunpack.c.h.b16 %v419
      %v783 = vunpack.c.l.b16 %v420
      %v784 = vunpack.c.h.b16 %v420
      %v785 = vunpack.c.l.b16 %v421
      %v786 = vunpack.c.h.b16 %v421
      %v787 = vunpack.c.l.b16 %v422
      %v788 = vunpack.c.h.b16 %v422
      %v789 = vunpack.c.l.b16 %v423
      %v790 = vunpack.c.h.b16 %v423
      %v791 = vunpack.c.l.b16 %v424
      %v792 = vunpack.c.h.b16 %v424
      %v793 = vunpack.c.l.b16 %v425
      %v794 = vunpack.c.h.b16 %v425
      %v795 = vunpack.c.l.b16 %v426
      %v796 = vunpack.c.h.b16 %v426
      %v797 = vunpack.c.l.b16 %v427
      %v798 = vunpack.c.h.b16 %v427
      %v799 = vunpack.c.l.b16 %v428
      %v800 = vunpack.c.h.b16 %v428
      %v801 = vunpack.c.l.b16 %v429
      %v802 = vunpack.c.h.b16 %v429
      %v803 = vunpack.c.l.b16 %v430
      %v804 = vunpack.c.h.b16 %v430
      %v805 = vunpack.c.l.b16 %v431
      %v806 = vunpack.c.h.b16 %v431
      %v807 = vunpack.c.l.b16 %v432
      %v808 = vunpack.c.h.b16 %v432
      %v809 = vunpack.c.l.b16 %v433
      %v810 = vunpack.c.h.b16 %v433
      %v811 = vunpack.c.l.b16 %v434
      %v812 = vunpack.c.h.b16 %v434
      %v813 = vunpack.c.l.b16 %v435
      %v814 = vunpack.c.h.b16 %v435
      %v815 = vunpack.c.l.b16 %v436
      %v816 = vunpack.c.h.b16 %v436
      %v817 = vunpack.c.l.b16 %v437
      %v818 = vunpack.c.h.b16 %v437
      %v819 = vunpack.c.l.b16 %v438
      %v820 = vunpack.c.h.b16 %v438
      %v821 = vunpack.c.l.b16 %v439
      %v822 = vunpack.c.h.b16 %v439
      %v823 = vunpack.c.l.b16 %v440
      %v824 = vunpack.c.h.b16 %v440
      %v825 = vunpack.c.l.b16 %v441
      %v826 = vunpack.c.h.b16 %v441
      %v827 = vunpack.c.l.b16 %v442
      %v828 = vunpack.c.h.b16 %v442
      %v829 = vunpack.c.l.b16 %v443
      %v830 = vunpack.c.h.b16 %v443
      %v831 = vunpack.c.l.b16 %v444
      %v832 = vunpack.c.h.b16 %v444
      %v833 = vunpack.c.l.b16 %v445
      %v834 = vunpack.c.h.b16 %v445
      %v835 = vunpack.c.l.b16 %v446
      %v836 = vunpack.c.h.b16 %v446
      %v837 = vunpack.c.l.b16 %v447
      %v838 = vunpack.c.h.b16 %v447
      %v839 = vunpack.c.l.b16 %v448
      %v840 = vunpack.c.h.b16 %v448
      %v841 = vunpack.c.l.b16 %v449
      %v842 = vunpack.c.h.b16 %v449
      %v843 = vunpack.c.l.b16 %v450
      %v844 = vunpack.c.h.b16 %v450
      %v845 = vunpack.c.l.b16 %v451
      %v846 = vunpack.c.h.b16 %v451
      %v847 = vunpack.c.l.b16 %v452
      %v848 = vunpack.c.h.b16 %v452
      %v849 = vunpack.c.l.b16 %v453
      %v850 = vunpack.c.h.b16 %v453
      %v851 = vunpack.c.l.b16 %v454
      %v852 = vunpack.c.h.b16 %v454
      %v853 = vunpack.c.l.b16 %v455
      %v854 = vunpack.c.h.b16 %v455
      %v855 = vunpack.c.l.b16 %v456
      %v856 = vunpack.c.h.b16 %v456
      %v857 = vunpack.c.l.b16 %v457
      %v858 = vunpack.c.h.b16 %v457
      %v859 = vunpack.c.l.b16 %v458
      %v860 = vunpack.c.h.b16 %v458
      %v861 = vunpack.c.l.b16 %v459
      %v862 = vunpack.c.h.b16 %v459
      %v863 = vunpack.c.l.b16 %v460
      %v864 = vunpack.c.h.b16 %v460
      %v865 = vunpack.c.l.b16 %v461
      %v866 = vunpack.c.h.b16 %v461
      %v867 = vunpack.c.l.b16 %v462
      %v868 = vunpack.c.h.b16 %v462
      %v869 = vunpack.c.l.b16 %v463
      %v870 = vunpack.c.h.b16 %v463
      %v871 = vunpack.c.l.b16 %v464
      %v872 = vunpack.c.h.b16 %v464
      %v873 = vunpack.c.l.b16 %v465
      %v874 = vunpack.c.h.b16 %v465
      %v875 = vunpack.c.l.b16 %v466
      %v876 = vunpack.c.h.b16 %v466
      %v877 = vunpack.c.l.b16 %v467
      %v878 = vunpack.c.h.b16 %v467
      %v879 = vunpack.c.l.b16 %v468
      %v880 = vunpack.c.h.b16 %v468
      %v881 = vunpack.c.l.b16 %v469
      %v882 = vunpack.c.h.b16 %v469
      %v883 = vunpack.c.l.b16 %v470
      %v884 = vunpack.c.h.b16 %v470
      %v885 = vunpack.c.l.b16 %v471
      %v886 = vunpack.c.h.b16 %v471
      %v887 = vunpack.c.l.b16 %v472
      %v888 = vunpack.c.h.b16 %v472
      %v889 = vunpack.c.l.b16 %v473
      %v890 = vunpack.c.h.b16 %v473
      %v891 = vunpack.c.l.b16 %v474
      %v892 = vunpack.c.h.b16 %v474
      %v893 = vunpack.c.l.b16 %v475
      %v894 = vunpack.c.h.b16 %v475
      %v895 = vunpack.c.l.b16 %v476
      %v896 = vunpack.c.h.b16 %v476
      %v897 = vunpack.c.l.b16 %v477
      %v898 = vunpack.c.h.b16 %v477
      %v899 = vunpack.c.l.b16 %v478
      %v900 = vunpack.c.h.b16 %v478
      %v901 = vunpack.c.l.b16 %v479
      %v902 = vunpack.c.h.b16 %v479
      %v903 = vunpack.c.l.b16 %v480
      %v904 = vunpack.c.h.b16 %v480
      %v905 = vunpack.c.l.b16 %v481
      %v906 = vunpack.c.h.b16 %v481
      %v907 = vunpack.c.l.b16 %v482
      %v908 = vunpack.c.h.b16 %v482
      %v909 = vunpack.c.l.b16 %v483
      %v910 = vunpack.c.h.b16 %v483
      %v911 = vunpack.c.l.b16 %v484
      %v912 = vunpack.c.h.b16 %v484
      %v913 = vunpack.c.l.b16 %v485
      %v914 = vunpack.c.h.b16 %v485
      %v915 = vunpack.c.l.b16 %v486
      %v916 = vunpack.c.h.b16 %v486
      %v917 = vunpack.c.l.b16 %v487
      %v918 = vunpack.c.h.b16 %v487
      %v919 = vunpack.c.l.b16 %v488
      %v920 = vunpack.c.h.b16 %v488
      %v921 = vunpack.c.l.b16 %v489
      %v922 = vunpack.c.h.b16 %v489
      %v923 = vunpack.c.l.b16 %v490
      %v924 = vunpack.c.h.b16 %v490
      %v925 = vunpack.c.l.b16 %v491
      %v926 = vunpack.c.h.b16 %v491
      %v927 = vunpack.c.l.b16 %v492
      %v928 = vunpack.c.h.b16 %v492
      %v929 = vunpack.c.l.b16 %v493
      %v930 = vunpack.c.h.b16 %v493
      %v931 = vunpack.c.l.b16 %v494
      %v932 = vunpack.c.h.b16 %v494
      %v933 = vunpack.c.l.b16 %v495
      %v934 = vunpack.c.h.b16 %v495
      %v935 = vunpack.c.l.b16 %v496
      %v936 = vunpack.c.h.b16 %v496
      %v937 = vunpack.c.l.b16 %v497
      %v938 = vunpack.c.h.b16 %v497
      %v939 = vunpack.c.l.b16 %v498
      %v940 = vunpack.c.h.b16 %v498
      %v941 = vunpack.c.l.b16 %v499
      %v942 = vunpack.c.h.b16 %v499
      %v943 = vunpack.c.l.b16 %v500
      %v944 = vunpack.c.h.b16 %v500
      %v945 = vunpack.c.l.b16 %v501
      %v946 = vunpack.c.h.b16 %v501
      %v947 = vunpack.c.l.b16 %v502
      %v948 = vunpack.c.h.b16 %v502
      %v949 = vunpack.c.l.b16 %v503
      %v950 = vunpack.c.h.b16 %v503
      %v951 = vunpack.c.l.b16 %v504
      %v952 = vunpack.c.h.b16 %v504
      %v953 = vunpack.c.l.b16 %v505
      %v954 = vunpack.c.h.b16 %v505
      %v955 = vunpack.c.l.b16 %v506
      %v956 = vunpack.c.h.b16 %v506
      %v957 = vunpack.c.l.b16 %v507
      %v958 = vunpack.c.h.b16 %v507
      %v959 = vunpack.c.l.b16 %v508
      %v960 = vunpack.c.h.b16 %v508
      %v961 = vunpack.c.l.b16 %v509
      %v962 = vunpack.c.h.b16 %v509
      %v963 = vunpack.c.l.b16 %v510
      %v964 = vunpack.c.h.b16 %v510
      %v965 = vunpack.c.l.b16 %v511
      %v966 = vunpack.c.h.b16 %v511
      %v967 = vunpack.c.l.b16 %v512
      %v968 = vunpack.c.h.b16 %v512
      %v969 = vunpack.c.l.b16 %v513
      %v970 = vunpack.c.h.b16 %v513
      %v971 = vunpack.c.l.b16 %v514
      %v972 = vunpack.c.h.b16 %v514
      %v973 = vunpack.c.l.b16 %v515
      %v974 = vunpack.c.h.b16 %v515
      %v975 = vunpack.c.l.b16 %v516
      %v976 = vunpack.c.h.b16 %v516
      %v977 = vunpack.c.l.b16 %v517
      %v978 = vunpack.c.h.b16 %v517
      %v979 = vunpack.c.l.b16 %v518
      %v980 = vunpack.c.h.b16 %v518
      %v981 = vunpack.c.l.b16 %v519
      %v982 = vunpack.c.h.b16 %v519
      %v983 = vunpack.c.l.b16 %v520
      %v984 = vunpack.c.h.b16 %v520
      %v985 = vunpack.c.l.b16 %v521
      %v986 = vunpack.c.h.b16 %v521
      %v987 = vunpack.c.l.b16 %v522
      %v988 = vunpack.c.h.b16 %v522
      %v989 = vunpack.c.l.b16 %v523
      %v990 = vunpack.c.h.b16 %v523
      %v991 = vunpack.c.l.b16 %v524
      %v992 = vunpack.c.h.b16 %v524
      %v993 = vunpack.c.l.b16 %v525
      %v994 = vunpack.c.h.b16 %v525
      %v995 = vunpack.c.l.b16 %v526
      %v996 = vunpack.c.h.b16 %v526
      %v997 = vunpack.c.l.b16 %v527
      %v998 = vunpack.c.h.b16 %v527
      %v999 = vunpack.c.l.b16 %v528
      %v1000 = vunpack.c.h.b16 %v528
      %v1001 = vunpack.c.l.b16 %v529
      %v1002 = vunpack.c.h.b16 %v529
      %v1003 = vunpack.c.l.b16 %v530
      %v1004 = vunpack.c.h.b16 %v530
      %v1005 = vunpack.c.l.b16 %v531
      %v1006 = vunpack.c.h.b16 %v531
      %v1007 = vunpack.c.l.b16 %v532
      %v1008 = vunpack.c.h.b16 %v532
      %v1009 = vunpack.c.l.b16 %v533
      %v1010 = vunpack.c.h.b16 %v533
      %v1011 = vunpack.c.l.b16 %v534
      %v1012 = vunpack.c.h.b16 %v534
      %v1013 = vunpack.c.l.b16 %v535
      %v1014 = vunpack.c.h.b16 %v535
      %v1015 = vunpack.c.l.b16 %v536
      %v1016 = vunpack.c.h.b16 %v536
      %v1017 = vunpack.c.l.b16 %v537
      %v1018 = vunpack.c.h.b16 %v537
      %v1019 = vunpack.c.l.b16 %v538
      %v1020 = vunpack.c.h.b16 %v538
      %v1021 = vunpack.c.l.b16 %v539
      %v1022 = vunpack.c.h.b16 %v539
      %v1023 = vunpack.c.l.b16 %v540
      %v1024 = vunpack.c.h.b16 %v540
      %v1025 = vunpack.c.l.b16 %v541
      %v1026 = vunpack.c.h.b16 %v541
      %v1027 = vunpack.c.l.b16 %v542
      %v1028 = vunpack.c.h.b16 %v542
      %v1029 = vunpack.c.l.b16 %v543
      %v1030 = vunpack.c.h.b16 %v543
      %v1031 = vunpack.c.l.b16 %v544
      %v1032 = vunpack.c.h.b16 %v544
      %v1033 = vunpack.c.l.b16 %v545
      %v1034 = vunpack.c.h.b16 %v545
      %v1035 = vunpack.c.l.b16 %v546
      %v1036 = vunpack.c.h.b16 %v546
      %v1037 = vpack.c.b16 %v751, %v749
      %v1038 = vpack.c.b16 %v752, %v750
      %v1039 = vpack.c.b16 %v755, %v753
      %v1040 = vpack.c.b16 %v756, %v754
      %v1041 = vpack.c.b16 %v759, %v757
      %v1042 = vpack.c.b16 %v760, %v758
      %v1043 = vpack.c.b16 %v763, %v761
      %v1044 = vpack.c.b16 %v764, %v762
      %v1045 = vpack.c.b16 %v767, %v765
      %v1046 = vpack.c.b16 %v768, %v766
      %v1047 = vpack.c.b16 %v771, %v769
      %v1048 = vpack.c.b16 %v772, %v770
      %v1049 = vpack.c.b16 %v775, %v773
      %v1050 = vpack.c.b16 %v776, %v774
      %v1051 = vpack.c.b16 %v779, %v777
      %v1052 = vpack.c.b16 %v780, %v778
      %v1053 = vpack.c.b16 %v783, %v781
      %v1054 = vpack.c.b16 %v784, %v782
      %v1055 = vpack.c.b16 %v787, %v785
      %v1056 = vpack.c.b16 %v788, %v786
      %v1057 = vpack.c.b16 %v791, %v789
      %v1058 = vpack.c.b16 %v792, %v790
      %v1059 = vpack.c.b16 %v795, %v793
      %v1060 = vpack.c.b16 %v796, %v794
      %v1061 = vpack.c.b16 %v799, %v797
      %v1062 = vpack.c.b16 %v800, %v798
      %v1063 = vpack.c.b16 %v803, %v801
      %v1064 = vpack.c.b16 %v804, %v802
      %v1065 = vpack.c.b16 %v807, %v805
      %v1066 = vpack.c.b16 %v808, %v806
      %v1067 = vpack.c.b16 %v811, %v809
      %v1068 = vpack.c.b16 %v812, %v810
      %v1069 = vpack.c.b16 %v815, %v813
      %v1070 = vpack.c.b16 %v816, %v814
      %v1071 = vpack.c.b16 %v819, %v817
      %v1072 = vpack.c.b16 %v820, %v818
      %v1073 = vpack.c.b16 %v823, %v821
      %v1074 = vpack.c.b16 %v824, %v822
      %v1075 = vpack.c.b16 %v827, %v825
      %v1076 = vpack.c.b16 %v828, %v826
      %v1077 = vpack.c.b16 %v831, %v829
      %v1078 = vpack.c.b16 %v832, %v830
      %v1079 = vpack.c.b16 %v835, %v833
      %v1080 = vpack.c.b16 %v836, %v834
      %v1081 = vpack.c.b16 %v839, %v837
      %v1082 = vpack.c.b16 %v840, %v838
      %v1083 = vpack.c.b16 %v843, %v841
      %v1084 = vpack.c.b16 %v844, %v842
      %v1085 = vpack.c.b16 %v847, %v845
      %v1086 = vpack.c.b16 %v848, %v846
      %v1087 = vpack.c.b16 %v851, %v849
      %v1088 = vpack.c.b16 %v852, %v850
      %v1089 = vpack.c.b16 %v855, %v853
      %v1090 = vpack.c.b16 %v856, %v854
      %v1091 = vpack.c.b16 %v859, %v857
      %v1092 = vpack.c.b16 %v860, %v858
      %v1093 = vpack.c.b16 %v863, %v861
      %v1094 = vpack.c.b16 %v864, %v862
      %v1095 = vpack.c.b16 %v867, %v865
      %v1096 = vpack.c.b16 %v868, %v866
      %v1097 = vpack.c.b16 %v871, %v869
      %v1098 = vpack.c.b16 %v872, %v870
      %v1099 = vpack.c.b16 %v875, %v873
      %v1100 = vpack.c.b16 %v876, %v874
      %v1101 = vpack.c.b16 %v879, %v877
      %v1102 = vpack.c.b16 %v880, %v878
      %v1103 = vpack.c.b16 %v883, %v881
      %v1104 = vpack.c.b16 %v884, %v882
      %v1105 = vpack.c.b16 %v887, %v885
      %v1106 = vpack.c.b16 %v888, %v886
      %v1107 = vpack.c.b16 %v891, %v889
      %v1108 = vpack.c.b16 %v892, %v890
      %v1109 = vpack.c.b16 %v895, %v893
      %v1110 = vpack.c.b16 %v896, %v894
      %v1111 = vpack.c.b16 %v899, %v897
      %v1112 = vpack.c.b16 %v900, %v898
      %v1113 = vpack.c.b16 %v903, %v901
      %v1114 = vpack.c.b16 %v904, %v902
      %v1115 = vpack.c.b16 %v907, %v905
      %v1116 = vpack.c.b16 %v908, %v906
      %v1117 = vpack.c.b16 %v911, %v909
      %v1118 = vpack.c.b16 %v912, %v910
      %v1119 = vpack.c.b16 %v915, %v913
      %v1120 = vpack.c.b16 %v916, %v914
      %v1121 = vpack.c.b16 %v919, %v917
      %v1122 = vpack.c.b16 %v920, %v918
      %v1123 = vpack.c.b16 %v923, %v921
      %v1124 = vpack.c.b16 %v924, %v922
      %v1125 = vpack.c.b16 %v927, %v925
      %v1126 = vpack.c.b16 %v928, %v926
      %v1127 = vpack.c.b16 %v931, %v929
      %v1128 = vpack.c.b16 %v932, %v930
      %v1129 = vpack.c.b16 %v935, %v933
      %v1130 = vpack.c.b16 %v936, %v934
      %v1131 = vpack.c.b16 %v939, %v937
      %v1132 = vpack.c.b16 %v940, %v938
      %v1133 = vpack.c.b16 %v943, %v941
      %v1134 = vpack.c.b16 %v944, %v942
      %v1135 = vpack.c.b16 %v947, %v945
      %v1136 = vpack.c.b16 %v948, %v946
      %v1137 = vpack.c.b16 %v951, %v949
      %v1138 = vpack.c.b16 %v952, %v950
      %v1139 = vpack.c.b16 %v955, %v953
      %v1140 = vpack.c.b16 %v956, %v954
      %v1141 = vpack.c.b16 %v959, %v957
      %v1142 = vpack.c.b16 %v960, %v958
      %v1143 = vpack.c.b16 %v963, %v961
      %v1144 = vpack.c.b16 %v964, %v962
      %v1145 = vpack.c.b16 %v967, %v965
      %v1146 = vpack.c.b16 %v968, %v966
      %v1147 = vpack.c.b16 %v971, %v969
      %v1148 = vpack.c.b16 %v972, %v970
      %v1149 = vpack.c.b16 %v975, %v973
      %v1150 = vpack.c.b16 %v976, %v974
      %v1151 = vpack.c.b16 %v979, %v977
      %v1152 = vpack.c.b16 %v980, %v978
      %v1153 = vpack.c.b16 %v983, %v981
      %v1154 = vpack.c.b16 %v984, %v982
      %v1155 = vpack.c.b16 %v987, %v985
      %v1156 = vpack.c.b16 %v988, %v986
      %v1157 = vpack.c.b16 %v991, %v989
      %v1158 = vpack.c.b16 %v992, %v990
      %v1159 = vpack.c.b16 %v995, %v993
      %v1160 = vpack.c.b16 %v996, %v994
      %v1161 = vpack.c.b16 %v999, %v997
      %v1162 = vpack.c.b16 %v1000, %v998
      %v1163 = vpack.c.b16 %v1003, %v1001
      %v1164 = vpack.c.b16 %v1004, %v1002
      %v1165 = vpack.c.b16 %v1007, %v1005
      %v1166 = vpack.c.b16 %v1008, %v1006
      %v1167 = vpack.c.b16 %v1011, %v1009
      %v1168 = vpack.c.b16 %v1012, %v1010
      %v1169 = vpack.c.b16 %v1015, %v1013
      %v1170 = vpack.c.b16 %v1016, %v1014
      %v1171 = vpack.c.b16 %v1019, %v1017
      %v1172 = vpack.c.b16 %v1020, %v1018
      %v1173 = vpack.c.b16 %v1023, %v1021
      %v1174 = vpack.c.b16 %v1024, %v1022
      %v1175 = vpack.c.b16 %v1027, %v1025
      %v1176 = vpack.c.b16 %v1028, %v1026
      %v1177 = vpack.c.b16 %v1031, %v1029
      %v1178 = vpack.c.b16 %v1032, %v1030
      %v1179 = vpack.c.b16 %v1035, %v1033
      %v1180 = vpack.c.b16 %v1036, %v1034
      %1325 = vmatprep.subr.bf16.mxu0 %v1052
      %1326 = vmatpush1.bf16.msra.mxu0 %v1051
      %1327 = vmatprep.subr.bf16.mxu0 %v1050
      %1328 = vmatpush1.bf16.msra.mxu0 %v1049
      %1329 = vmatprep.subr.bf16.mxu0 %v1048
      %1330 = vmatpush1.bf16.msra.mxu0 %v1047
      %1331 = vmatprep.subr.bf16.mxu0 %v1046
      %1332 = vmatpush1.bf16.msra.mxu0 %v1045
      %1333 = vmatprep.subr.bf16.mxu0 %v1044
      %1334 = vmatpush1.bf16.msra.mxu0 %v1043
      %1335 = vmatprep.subr.bf16.mxu0 %v1042
      %1336 = vmatpush1.bf16.msra.mxu0 %v1041
      %1337 = vmatprep.subr.bf16.mxu0 %v1040
      %1338 = vmatpush1.bf16.msra.mxu0 %v1039
      %1339 = vmatprep.subr.bf16.mxu0 %v1038
      %1340 = vmatpush1.bf16.msra.mxu0 %v1037
      %1341 = vmatprep.subr.bf16.mxu0 %v1068
      %1342 = vmatpush2.bf16.msra.mxu0 %v1067
      %1343 = vmatprep.subr.bf16.mxu0 %v1066
      %1344 = vmatpush2.bf16.msra.mxu0 %v1065
      %1345 = vmatprep.subr.bf16.mxu0 %v1064
      %1346 = vmatpush2.bf16.msra.mxu0 %v1063
      %1347 = vmatprep.subr.bf16.mxu0 %v1062
      %1348 = vmatpush2.bf16.msra.mxu0 %v1061
      %1349 = vmatprep.subr.bf16.mxu0 %v1060
      %1350 = vmatpush2.bf16.msra.mxu0 %v1059
      %1351 = vmatprep.subr.bf16.mxu0 %v1058
      %1352 = vmatpush2.bf16.msra.mxu0 %v1057
      %1353 = vmatprep.subr.bf16.mxu0 %v1056
      %1354 = vmatpush2.bf16.msra.mxu0 %v1055
      %1355 = vmatprep.subr.bf16.mxu0 %v1054
      %1356 = vmatpush2.bf16.msra.mxu0 %v1053
      %1357 = vmatprep.mubr.bf16.mxu0 %v588
      %1358 = vmatmul.mubr.bf16.gmra.mxu0 %v587
      %v1359 = vpop.f32.mrf.mxu0
      %v1360 = vadd.f32 %v552, %v1359
      %v1361 = vpop.f32.mrf.mxu0
      %v1362 = vadd.f32 %v556, %v1361
      %v1363 = vpop.f32.mrf.mxu0
      %v1364 = vadd.f32 %v552, %v1363
      %v1365 = vpop.f32.mrf.mxu0
      %v1366 = vadd.f32 %v556, %v1365
      %1367 = vdwg.mxu0
      %1368 = vmatprep.subr.bf16.mxu0 %v1084
      %1369 = vmatpush1.bf16.msra.mxu0 %v1083
      %1370 = vmatprep.subr.bf16.mxu0 %v1082
      %1371 = vmatpush1.bf16.msra.mxu0 %v1081
      %1372 = vmatprep.subr.bf16.mxu0 %v1080
      %1373 = vmatpush1.bf16.msra.mxu0 %v1079
      %1374 = vmatprep.subr.bf16.mxu0 %v1078
      %1375 = vmatpush1.bf16.msra.mxu0 %v1077
      %1376 = vmatprep.subr.bf16.mxu0 %v1076
      %1377 = vmatpush1.bf16.msra.mxu0 %v1075
      %1378 = vmatprep.subr.bf16.mxu0 %v1074
      %1379 = vmatpush1.bf16.msra.mxu0 %v1073
      %1380 = vmatprep.subr.bf16.mxu0 %v1072
      %1381 = vmatpush1.bf16.msra.mxu0 %v1071
      %1382 = vmatprep.subr.bf16.mxu0 %v1070
      %1383 = vmatpush1.bf16.msra.mxu0 %v1069
      %1384 = vmatprep.subr.bf16.mxu0 %v1100
      %1385 = vmatpush2.bf16.msra.mxu0 %v1099
      %1386 = vmatprep.subr.bf16.mxu0 %v1098
      %1387 = vmatpush2.bf16.msra.mxu0 %v1097
      %1388 = vmatprep.subr.bf16.mxu0 %v1096
      %1389 = vmatpush2.bf16.msra.mxu0 %v1095
      %1390 = vmatprep.subr.bf16.mxu0 %v1094
      %1391 = vmatpush2.bf16.msra.mxu0 %v1093
      %1392 = vmatprep.subr.bf16.mxu0 %v1092
      %1393 = vmatpush2.bf16.msra.mxu0 %v1091
      %1394 = vmatprep.subr.bf16.mxu0 %v1090
      %1395 = vmatpush2.bf16.msra.mxu0 %v1089
      %1396 = vmatprep.subr.bf16.mxu0 %v1088
      %1397 = vmatpush2.bf16.msra.mxu0 %v1087
      %1398 = vmatprep.subr.bf16.mxu0 %v1086
      %1399 = vmatpush2.bf16.msra.mxu0 %v1085
      %1400 = vmatprep.mubr.bf16.mxu0 %v590
      %1401 = vmatmul.mubr.bf16.gmra.mxu0 %v589
      %v1402 = vpop.f32.mrf.mxu0
      %v1403 = vadd.f32 %v1360, %v1402
      %v1404 = vpop.f32.mrf.mxu0
      %v1405 = vadd.f32 %v1362, %v1404
      %v1406 = vpop.f32.mrf.mxu0
      %v1407 = vadd.f32 %v1364, %v1406
      %v1408 = vpop.f32.mrf.mxu0
      %v1409 = vadd.f32 %v1366, %v1408
      %1410 = vdwg.mxu0
      %1411 = vmatprep.subr.bf16.mxu0 %v1116
      %1412 = vmatpush1.bf16.msra.mxu0 %v1115
      %1413 = vmatprep.subr.bf16.mxu0 %v1114
      %1414 = vmatpush1.bf16.msra.mxu0 %v1113
      %1415 = vmatprep.subr.bf16.mxu0 %v1112
      %1416 = vmatpush1.bf16.msra.mxu0 %v1111
      %1417 = vmatprep.subr.bf16.mxu0 %v1110
      %1418 = vmatpush1.bf16.msra.mxu0 %v1109
      %1419 = vmatprep.subr.bf16.mxu0 %v1108
      %1420 = vmatpush1.bf16.msra.mxu0 %v1107
      %1421 = vmatprep.subr.bf16.mxu0 %v1106
      %1422 = vmatpush1.bf16.msra.mxu0 %v1105
      %1423 = vmatprep.subr.bf16.mxu0 %v1104
      %1424 = vmatpush1.bf16.msra.mxu0 %v1103
      %1425 = vmatprep.subr.bf16.mxu0 %v1102
      %1426 = vmatpush1.bf16.msra.mxu0 %v1101
      %1427 = vmatprep.subr.bf16.mxu0 %v1132
      %1428 = vmatpush2.bf16.msra.mxu0 %v1131
      %1429 = vmatprep.subr.bf16.mxu0 %v1130
      %1430 = vmatpush2.bf16.msra.mxu0 %v1129
      %1431 = vmatprep.subr.bf16.mxu0 %v1128
      %1432 = vmatpush2.bf16.msra.mxu0 %v1127
      %1433 = vmatprep.subr.bf16.mxu0 %v1126
      %1434 = vmatpush2.bf16.msra.mxu0 %v1125
      %1435 = vmatprep.subr.bf16.mxu0 %v1124
      %1436 = vmatpush2.bf16.msra.mxu0 %v1123
      %1437 = vmatprep.subr.bf16.mxu0 %v1122
      %1438 = vmatpush2.bf16.msra.mxu0 %v1121
      %1439 = vmatprep.subr.bf16.mxu0 %v1120
      %1440 = vmatpush2.bf16.msra.mxu0 %v1119
      %1441 = vmatprep.subr.bf16.mxu0 %v1118
      %1442 = vmatpush2.bf16.msra.mxu0 %v1117
      %1443 = vmatprep.mubr.bf16.mxu0 %v592
      %1444 = vmatmul.mubr.bf16.gmra.mxu0 %v591
      %v1445 = vpop.f32.mrf.mxu0
      %v1446 = vadd.f32 %v1403, %v1445
      %v1447 = vpop.f32.mrf.mxu0
      %v1448 = vadd.f32 %v1405, %v1447
      %v1449 = vpop.f32.mrf.mxu0
      %v1450 = vadd.f32 %v1407, %v1449
      %v1451 = vpop.f32.mrf.mxu0
      %v1452 = vadd.f32 %v1409, %v1451
      %1453 = vdwg.mxu0
      %1454 = vmatprep.subr.bf16.mxu0 %v1148
      %1455 = vmatpush1.bf16.msra.mxu0 %v1147
      %1456 = vmatprep.subr.bf16.mxu0 %v1146
      %1457 = vmatpush1.bf16.msra.mxu0 %v1145
      %1458 = vmatprep.subr.bf16.mxu0 %v1144
      %1459 = vmatpush1.bf16.msra.mxu0 %v1143
      %1460 = vmatprep.subr.bf16.mxu0 %v1142
      %1461 = vmatpush1.bf16.msra.mxu0 %v1141
      %1462 = vmatprep.subr.bf16.mxu0 %v1140
      %1463 = vmatpush1.bf16.msra.mxu0 %v1139
      %1464 = vmatprep.subr.bf16.mxu0 %v1138
      %1465 = vmatpush1.bf16.msra.mxu0 %v1137
      %1466 = vmatprep.subr.bf16.mxu0 %v1136
      %1467 = vmatpush1.bf16.msra.mxu0 %v1135
      %1468 = vmatprep.subr.bf16.mxu0 %v1134
      %1469 = vmatpush1.bf16.msra.mxu0 %v1133
      %1470 = vmatprep.subr.bf16.mxu0 %v1164
      %1471 = vmatpush2.bf16.msra.mxu0 %v1163
      %1472 = vmatprep.subr.bf16.mxu0 %v1162
      %1473 = vmatpush2.bf16.msra.mxu0 %v1161
      %1474 = vmatprep.subr.bf16.mxu0 %v1160
      %1475 = vmatpush2.bf16.msra.mxu0 %v1159
      %1476 = vmatprep.subr.bf16.mxu0 %v1158
      %1477 = vmatpush2.bf16.msra.mxu0 %v1157
      %1478 = vmatprep.subr.bf16.mxu0 %v1156
      %1479 = vmatpush2.bf16.msra.mxu0 %v1155
      %1480 = vmatprep.subr.bf16.mxu0 %v1154
      %1481 = vmatpush2.bf16.msra.mxu0 %v1153
      %1482 = vmatprep.subr.bf16.mxu0 %v1152
      %1483 = vmatpush2.bf16.msra.mxu0 %v1151
      %1484 = vmatprep.subr.bf16.mxu0 %v1150
      %1485 = vmatpush2.bf16.msra.mxu0 %v1149
      %1486 = vmatprep.mubr.bf16.mxu0 %v594
      %1487 = vmatmul.mubr.bf16.gmra.mxu0 %v593
      %v1488 = vpop.f32.mrf.mxu0
      %v1489 = vadd.f32 %v1446, %v1488
      %v1490 = vpop.f32.mrf.mxu0
      %v1491 = vadd.f32 %v1448, %v1490
      %v1492 = vpop.f32.mrf.mxu0
      %v1493 = vadd.f32 %v1450, %v1492
      %v1494 = vpop.f32.mrf.mxu0
      %v1495 = vadd.f32 %v1452, %v1494
      %1496 = vdwg.mxu0
      %1497 = vmatprep.subr.bf16.mxu0 %v1180
      %1498 = vmatpush1.bf16.msra.mxu0 %v1179
      %1499 = vmatprep.subr.bf16.mxu0 %v1178
      %1500 = vmatpush1.bf16.msra.mxu0 %v1177
      %1501 = vmatprep.subr.bf16.mxu0 %v1176
      %1502 = vmatpush1.bf16.msra.mxu0 %v1175
      %1503 = vmatprep.subr.bf16.mxu0 %v1174
      %1504 = vmatpush1.bf16.msra.mxu0 %v1173
      %1505 = vmatprep.subr.bf16.mxu0 %v1172
      %1506 = vmatpush1.bf16.msra.mxu0 %v1171
      %1507 = vmatprep.subr.bf16.mxu0 %v1170
      %1508 = vmatpush1.bf16.msra.mxu0 %v1169
      %1509 = vmatprep.subr.bf16.mxu0 %v1168
      %1510 = vmatpush1.bf16.msra.mxu0 %v1167
      %1511 = vmatprep.subr.bf16.mxu0 %v1166
      %1512 = vmatpush1.bf16.msra.mxu0 %v1165
      %1513 = vmatprep.subr.bf16.mxu0 0
      %1514 = vmatpush2.bf16.msra.mxu0 0
      %1515 = vmatprep.subr.bf16.mxu0 0
      %1516 = vmatpush2.bf16.msra.mxu0 0
      %1517 = vmatprep.subr.bf16.mxu0 0
      %1518 = vmatpush2.bf16.msra.mxu0 0
      %1519 = vmatprep.subr.bf16.mxu0 0
      %1520 = vmatpush2.bf16.msra.mxu0 0
      %1521 = vmatprep.subr.bf16.mxu0 0
      %1522 = vmatpush2.bf16.msra.mxu0 0
      %1523 = vmatprep.subr.bf16.mxu0 0
      %1524 = vmatpush2.bf16.msra.mxu0 0
      %1525 = vmatprep.subr.bf16.mxu0 0
      %1526 = vmatpush2.bf16.msra.mxu0 0
      %1527 = vmatprep.subr.bf16.mxu0 0
      %1528 = vmatpush2.bf16.msra.mxu0 0
      %1529 = vmatprep.mubr.bf16.mxu0 0
      %1530 = vmatmul.mubr.bf16.gmra.mxu0 %v595
      %v1531 = vpop.f32.mrf.mxu0
      %v1532 = vadd.f32 %v1489, %v1531
      %v1533 = vpop.f32.mrf.mxu0
      %v1534 = vadd.f32 %v1491, %v1533
      %v1535 = vpop.f32.mrf.mxu0
      %v1536 = vadd.f32 %v1493, %v1535
      %v1537 = vpop.f32.mrf.mxu0
      %v1538 = vadd.f32 %v1495, %v1537
      %1539 = vdwg.mxu0
      %v1540 = vmax.f32 %v1532, 0.0
      %v1541 = vmax.f32 %v1534, 0.0
      %v1542 = vmax.f32 %v1536, 0.0
      %v1543 = vmax.f32 %v1538, 0.0
      %v1544 = vpack.c.bf16 %v1542, %v1540
      %v1545 = vpack.c.bf16 %v1543, %v1541
      %v1548 = vunpack.c.l.b16 %v1544
      %v1549 = vunpack.c.l.b16 %v1545
      %v1550 = vunpack.c.h.b16 %v1544
      %v1551 = vunpack.c.h.b16 %v1545
      %v1552 = vpack.c.b16 %v1549, %v1548
      %v1553 = vpack.c.b16 %v1551, %v1550
      %1556 = vst [vmem:[%s377] sm:$0xff] %v1552
      %1557 = vst [vmem:[%s377 + $0x8] sm:$0xff] %v1553
      %v1558 = vld [vmem:[%s361] sm:$0xff]
      %v1559 = vld [vmem:[%s361 + $0x8] sm:$0xff]
      %v1560 = vld [vmem:[%s361 + $0x10] sm:$0xff]
      %v1561 = vld [vmem:[%s361 + $0x18] sm:$0xff]
      %v1562 = vld [vmem:[%s361 + $0x20] sm:$0xff]
      %v1563 = vld [vmem:[%s361 + $0x28] sm:$0xff]
      %v1564 = vld [vmem:[%s361 + $0x30] sm:$0xff]
      %v1565 = vld [vmem:[%s361 + $0x38] sm:$0xff]
      %v1566 = vld [vmem:[%s361 + $0x40] sm:$0xff]
      %v1567 = vld [vmem:[%s361 + $0x48] sm:$0xff]
      %v1568 = vld [vmem:[%s361 + $0x50] sm:$0xff]
      %v1569 = vld [vmem:[%s361 + $0x58] sm:$0xff]
      %v1570 = vld [vmem:[%s361 + $0x60] sm:$0xff]
      %v1571 = vld [vmem:[%s361 + $0x68] sm:$0xff]
      %v1572 = vld [vmem:[%s361 + $0x70] sm:$0xff]
      %v1573 = vld [vmem:[%s361 + $0x78] sm:$0xff]
      %v1574 = vld [vmem:[%s366] sm:$0x3]
      %v1576 = vlaneseq
      %v1577 = vshrl.u32 %v1576, 7
      %v1578 = vsub.s32 0, %v1577
      %v1579 = vrot.slane %v1574, %v1578
      %v1580 = vlaneseq
      %v1581 = vshrl.u32 %v1580, 7
      %v1582 = vsub.s32 1, %v1581
      %v1583 = vrot.slane %v1574, %v1582
      %v1602 = vunpack.c.l.b16 %v1558
      %v1603 = vunpack.c.h.b16 %v1558
      %v1604 = vunpack.c.l.b16 %v1559
      %v1605 = vunpack.c.h.b16 %v1559
      %v1606 = vunpack.c.l.b16 %v1560
      %v1607 = vunpack.c.h.b16 %v1560
      %v1608 = vunpack.c.l.b16 %v1561
      %v1609 = vunpack.c.h.b16 %v1561
      %v1610 = vunpack.c.l.b16 %v1562
      %v1611 = vunpack.c.h.b16 %v1562
      %v1612 = vunpack.c.l.b16 %v1563
      %v1613 = vunpack.c.h.b16 %v1563
      %v1614 = vunpack.c.l.b16 %v1564
      %v1615 = vunpack.c.h.b16 %v1564
      %v1616 = vunpack.c.l.b16 %v1565
      %v1617 = vunpack.c.h.b16 %v1565
      %v1618 = vunpack.c.l.b16 %v1566
      %v1619 = vunpack.c.h.b16 %v1566
      %v1620 = vunpack.c.l.b16 %v1567
      %v1621 = vunpack.c.h.b16 %v1567
      %v1622 = vunpack.c.l.b16 %v1568
      %v1623 = vunpack.c.h.b16 %v1568
      %v1624 = vunpack.c.l.b16 %v1569
      %v1625 = vunpack.c.h.b16 %v1569
      %v1626 = vunpack.c.l.b16 %v1570
      %v1627 = vunpack.c.h.b16 %v1570
      %v1628 = vunpack.c.l.b16 %v1571
      %v1629 = vunpack.c.h.b16 %v1571
      %v1630 = vunpack.c.l.b16 %v1572
      %v1631 = vunpack.c.h.b16 %v1572
      %v1632 = vunpack.c.l.b16 %v1573
      %v1633 = vunpack.c.h.b16 %v1573
      %v1634 = vpack.c.b16 %v1604, %v1602
      %v1635 = vpack.c.b16 %v1605, %v1603
      %v1636 = vpack.c.b16 %v1608, %v1606
      %v1637 = vpack.c.b16 %v1609, %v1607
      %v1638 = vpack.c.b16 %v1612, %v1610
      %v1639 = vpack.c.b16 %v1613, %v1611
      %v1640 = vpack.c.b16 %v1616, %v1614
      %v1641 = vpack.c.b16 %v1617, %v1615
      %v1642 = vpack.c.b16 %v1620, %v1618
      %v1643 = vpack.c.b16 %v1621, %v1619
      %v1644 = vpack.c.b16 %v1624, %v1622
      %v1645 = vpack.c.b16 %v1625, %v1623
      %v1646 = vpack.c.b16 %v1628, %v1626
      %v1647 = vpack.c.b16 %v1629, %v1627
      %v1648 = vpack.c.b16 %v1632, %v1630
      %v1649 = vpack.c.b16 %v1633, %v1631
      %1666 = vmatprep.subr.bf16.mxu0 %v1649
      %1667 = vmatpush1.bf16.msra.mxu0 %v1648
      %1668 = vmatprep.subr.bf16.mxu0 %v1647
      %1669 = vmatpush1.bf16.msra.mxu0 %v1646
      %1670 = vmatprep.subr.bf16.mxu0 %v1645
      %1671 = vmatpush1.bf16.msra.mxu0 %v1644
      %1672 = vmatprep.subr.bf16.mxu0 %v1643
      %1673 = vmatpush1.bf16.msra.mxu0 %v1642
      %1674 = vmatprep.subr.bf16.mxu0 %v1641
      %1675 = vmatpush1.bf16.msra.mxu0 %v1640
      %1676 = vmatprep.subr.bf16.mxu0 %v1639
      %1677 = vmatpush1.bf16.msra.mxu0 %v1638
      %1678 = vmatprep.subr.bf16.mxu0 %v1637
      %1679 = vmatpush1.bf16.msra.mxu0 %v1636
      %1680 = vmatprep.subr.bf16.mxu0 %v1635
      %1681 = vmatpush1.bf16.msra.mxu0 %v1634
      %1682 = vmatprep.subr.bf16.mxu0 0
      %1683 = vmatpush2.bf16.msra.mxu0 0
      %1684 = vmatprep.subr.bf16.mxu0 0
      %1685 = vmatpush2.bf16.msra.mxu0 0
      %1686 = vmatprep.subr.bf16.mxu0 0
      %1687 = vmatpush2.bf16.msra.mxu0 0
      %1688 = vmatprep.subr.bf16.mxu0 0
      %1689 = vmatpush2.bf16.msra.mxu0 0
      %1690 = vmatprep.subr.bf16.mxu0 0
      %1691 = vmatpush2.bf16.msra.mxu0 0
      %1692 = vmatprep.subr.bf16.mxu0 0
      %1693 = vmatpush2.bf16.msra.mxu0 0
      %1694 = vmatprep.subr.bf16.mxu0 0
      %1695 = vmatpush2.bf16.msra.mxu0 0
      %1696 = vmatprep.subr.bf16.mxu0 0
      %1697 = vmatpush2.bf16.msra.mxu0 0
      %1698 = vmatprep.mubr.bf16.mxu0 0
      %1699 = vmatmul.mubr.bf16.gmra.mxu0 %v591
      %v1700 = vpop.f32.mrf.mxu0
      %v1701 = vadd.f32 %v1579, %v1700
      %v1702 = vpop.f32.mrf.mxu0
      %v1703 = vadd.f32 %v1583, %v1702
      %v1704 = vpop.f32.mrf.mxu0
      %v1705 = vadd.f32 %v1579, %v1704
      %v1706 = vpop.f32.mrf.mxu0
      %v1707 = vadd.f32 %v1583, %v1706
      %1708 = vdwg.mxu0
      %v1709 = vpack.c.bf16 %v1705, %v1701
      %v1710 = vpack.c.bf16 %v1707, %v1703
      %v1713 = vunpack.c.l.b16 %v1709
      %v1714 = vunpack.c.l.b16 %v1710
      %v1715 = vunpack.c.h.b16 %v1709
      %v1716 = vunpack.c.h.b16 %v1710
      %v1717 = vpack.c.b16 %v1714, %v1713
      %v1718 = vpack.c.b16 %v1716, %v1715
      %1721 = vst [vmem:[%s389] sm:$0xff] %v1717
      %1722 = vst [vmem:[%s389 + $0x8] sm:$0xff] %v1718
      %s1723 = smul.u32 2, %s23
      %s1724 = smul.u32 2, %s22
      %p1725 = scmp.lt.s32.totalorder %s1723, 3
      %s1726 = scalar_select %p1725, %s1723, 3
      %p1727 = scmp.lt.s32.totalorder %s1724, 1
      %s1728 = scalar_select %p1727, %s1724, 1
      %s1729 = smul.addr %s1726, 2
      %s1730 = sadd.s32 %s1728, %s1729
      %s1731 = smul.addr %s1730, 4
      %s1732 = scalar_lea.vmem %s5, %s1731
      %s1733 = smul.u32 2, %s23
      %s1734 = smul.u32 2, %s22
      %p1735 = scmp.lt.s32.totalorder %s1733, 3
      %s1736 = scalar_select %p1735, %s1733, 3
      %p1737 = scmp.lt.s32.totalorder %s1734, 1
      %s1738 = scalar_select %p1737, %s1734, 1
      %s1739 = smul.addr %s1736, 2
      %s1740 = sadd.s32 %s1738, %s1739
      %s1741 = smul.addr %s1740, 4
      %s1742 = scalar_lea.vmem %s6, %s1741
      // Predicated region
      $region41: #{stage2_forward.10} parent=39 // pred_check
        %p1743 = pneg %p180
      $region42: #{stage2_forward.10} parent=39 // pred_check_branch
        %1745 = sbr.rel (%p1743) target = $region44
      $region43: #{stage2_forward.10} parent=39 // pred_region
        %s1746 = smul.u32 2, %s23
        %s1747 = smul.u32 2, %s22
      $region44: #{stage2_forward.10} parent=39 // pred_fallthru
        _
      // Predicated region
      $region45: #{stage2_forward.10} parent=39 // pred_check
        %p1748 = pneg %p208
      $region46: #{stage2_forward.10} parent=39 // pred_check_branch
        %1750 = sbr.rel (%p1748) target = $region48
      $region47: #{stage2_forward.10} parent=39 // pred_region
        %s1751 = smul.u32 2, %s23
        %s1752 = smul.u32 2, %s22
      $region48: #{stage2_forward.10} parent=39 // pred_fallthru
        _
    $region40: #{stage2_forward.10} parent=5 // pred_fallthru
      _
    %p1753 = scmp.le.s32.totalorder 2, %s13
    // Predicated region
    $region49: #{stage2_forward.10} parent=5 // pred_check
      %p1754 = pneg %p1753
    $region50: #{stage2_forward.10} parent=5 // pred_check_branch
      %1756 = sbr.rel (%p1754) target = $region52
    $region51: #{stage2_forward.10} parent=5 // pred_region
      %s1757 = ssub.s32 %s13, 2
      // Predicated region
      $region53: #{stage2_forward.10} parent=51 // pred_check
        %p1758 = pneg %p186
      $region54: #{stage2_forward.10} parent=51 // pred_check_branch
        %1760 = sbr.rel (%p1758) target = $region56
      $region55: #{stage2_forward.10} parent=51 // pred_region
        %s1761 = smul.u32 2, %s25
        %s1762 = smul.u32 2, %s24
        %p1763 = scmp.lt.s32.totalorder %s1761, 3
        %s1764 = scalar_select %p1763, %s1761, 3
        %p1765 = scmp.lt.s32.totalorder %s1762, 1
        %s1766 = scalar_select %p1765, %s1762, 1
        %s1767 = smul.addr %s1764, 2
        %s1768 = sadd.s32 %s1766, %s1767
        %s1769 = smul.addr %s1768, 4
        %s1770 = scalar_lea.vmem %s5, %s1769
      $region56: #{stage2_forward.10} parent=51 // pred_fallthru
        _
      // Predicated region
      $region57: #{stage2_forward.10} parent=51 // pred_check
        %p1771 = pneg %p214
      $region58: #{stage2_forward.10} parent=51 // pred_check_branch
        %1773 = sbr.rel (%p1771) target = $region60
      $region59: #{stage2_forward.10} parent=51 // pred_region
        %s1774 = smul.u32 2, %s25
        %s1775 = smul.u32 2, %s24
        %p1776 = scmp.lt.s32.totalorder %s1774, 3
        %s1777 = scalar_select %p1776, %s1774, 3
        %p1778 = scmp.lt.s32.totalorder %s1775, 1
        %s1779 = scalar_select %p1778, %s1775, 1
        %s1780 = smul.addr %s1777, 2
        %s1781 = sadd.s32 %s1779, %s1780
        %s1782 = smul.addr %s1781, 4
        %s1783 = scalar_lea.vmem %s6, %s1782
      $region60: #{stage2_forward.10} parent=51 // pred_fallthru
        _
    $region52: #{stage2_forward.10} parent=5 // pred_fallthru
      _
  $region6: #{stage2_forward.10} parent=0 // loop_footer
    %s17 = sadd.s32 1, %s13
  $region7: #{stage2_forward.10} parent=0 // loop_footer_branch
    %12 = sbr.rel target = $region3
  $region8: #{stage2_forward.10} parent=0 // loop_exit
    _

// kernel: stage2_forward.11
$region0: #{stage2_forward.11}
  #allocation0 [shape = 'u32[]', space=smem, size = 0x4, offset = 0x4, fixed_abs, tag = 'smem constant byte address 0x4 - core index']
  #allocation1 [shape = 'u32[144,128]{1,0:T(1,128)}', space=vmem, size = 0x12000, scoped, tag = 'internal scratch']
  %s0 = inlined_call_operand.vmem [shape: f32[2,26,256], index: 0, kind: input, shape index: {}]
  %s1 = inlined_call_operand.vmem [shape: bf16[9,256,256], index: 1, kind: input, shape index: {}]
  %s2 = inlined_call_operand.vmem [shape: f32[1,256], index: 2, kind: input, shape index: {}]
  %s3 = inlined_call_operand.vmem [shape: f32[2,16,1], index: 3, kind: input, shape index: {}]
  %s4 = inlined_call_operand.vmem [shape: bf16[2,16,256], index: 4, kind: input, shape index: {}]
  %s5 = inlined_call_operand.vmem [shape: f32[2,16,256], index: 5, kind: output, shape index: {}]
  %s6 = sld [smem:[#allocation0]]
  $region53: #{stage2_forward.11} parent=0
    _
  %s8 = ssub.s32 1, %s6
  %s9 = scalar_select 0, %s8, %s6
  loop: start=0, step=1, limit=4
  $region2: #{stage2_forward.11} parent=0 // loop_pre_header
    _
  $region3: #{stage2_forward.11} parent=0 // loop_header
    %s11 = sphi 0, %s15
    %p12 = scmp.ge.s32.totalorder %s11, 4
    %s18 = sphi 0, %s30
    %s19 = sphi 0, %s26
    %s20 = sphi 0, %s18
    %s21 = sphi 0, %s19
    %s22 = sphi 0, %s20
    %s23 = sphi 0, %s21
    %s33 = sphi 0, %s35
    %s36 = sphi 0, %s33
    %s37 = sphi 0, %s36
    %s53 = sphi 0, %s37
    %s59 = sphi 0, %s61
    %s62 = sphi 0, %s59
    %s63 = sphi 0, %s62
    %s79 = sphi 0, %s63
    %s85 = sphi 0, %s87
    %s88 = sphi 0, %s85
    %s89 = sphi 0, %s88
    %s105 = sphi 0, %s89
    %s109 = sphi 0, %s109
    %s111 = sphi 0, %s109
    %s112 = sphi 0, %s111
    %s126 = sphi 0, %s112
    %s134 = sphi 0, %s136
    %s137 = sphi 0, %s134
    %s138 = sphi 0, %s137
    %s154 = sphi 0, %s138
    %s162 = sphi 0, %s164
    %s165 = sphi 0, %s162
    %s166 = sphi 0, %s165
    %s182 = sphi 0, %s166
  $region4: #{stage2_forward.11} parent=0 // loop_header_branch
    %14 = sbr.rel (%p12) target = $region8
  $region5: #{stage2_forward.11} parent=0 // loop_body
    %s16 = ssub.s32 %s11, 1
    %s17 = ssub.s32 %s11, 2
    %s24 = sadd.s32 1, %s19
    %p25 = scmp.ge.s32.totalorder %s24, 2
    %s26 = scalar_select %p25, 0, %s24
    %s27 = sadd.s32 1, %s18
    %s28 = scalar_select %p25, %s27, %s18
    %p29 = scmp.ge.s32.totalorder %s28, 1
    %s30 = scalar_select %p29, 0, %s28
    %s31 = ssub.s32 %s19, %s26
    %p32 = scmp.eq.s32.totalorder %s31, 0
    %s34 = sadd.s32 %s33, 1
    %s35 = scalar_select %p32, %s33, %s34
    %p38 = pneg %p32
    %p39 = scmp.eq.s32.totalorder %s11, 1
    %p40 = por %p38, %p39
    %p41 = scmp.ne.s32.totalorder %s33, %s36
    %p42 = scmp.eq.s32.totalorder %s11, 0
    %p43 = por %p41, %p42
    %p44 = scmp.ne.s32.totalorder %s33, %s36
    %p45 = scmp.eq.s32.totalorder %s16, 1
    %p46 = por %p44, %p45
    %p47 = scmp.ne.s32.totalorder %s36, %s37
    %p48 = scmp.eq.s32.totalorder %s16, 0
    %p49 = por %p47, %p48
    %p50 = scmp.ne.s32.totalorder %s36, %s37
    %p51 = scmp.eq.s32.totalorder %s17, 1
    %p52 = por %p50, %p51
    %p54 = scmp.ne.s32.totalorder %s37, %s53
    %p55 = scmp.eq.s32.totalorder %s17, 0
    %p56 = por %p54, %p55
    %s57 = ssub.s32 %s18, %s30
    %p58 = scmp.eq.s32.totalorder %s57, 0
    %s60 = sadd.s32 %s59, 1
    %s61 = scalar_select %p58, %s59, %s60
    %p64 = pneg %p58
    %p65 = scmp.eq.s32.totalorder %s11, 1
    %p66 = por %p64, %p65
    %p67 = scmp.ne.s32.totalorder %s59, %s62
    %p68 = scmp.eq.s32.totalorder %s11, 0
    %p69 = por %p67, %p68
    %p70 = scmp.ne.s32.totalorder %s59, %s62
    %p71 = scmp.eq.s32.totalorder %s16, 1
    %p72 = por %p70, %p71
    %p73 = scmp.ne.s32.totalorder %s62, %s63
    %p74 = scmp.eq.s32.totalorder %s16, 0
    %p75 = por %p73, %p74
    %p76 = scmp.ne.s32.totalorder %s62, %s63
    %p77 = scmp.eq.s32.totalorder %s17, 1
    %p78 = por %p76, %p77
    %p80 = scmp.ne.s32.totalorder %s63, %s79
    %p81 = scmp.eq.s32.totalorder %s17, 0
    %p82 = por %p80, %p81
    %s83 = ssub.s32 %s18, %s30
    %p84 = scmp.eq.s32.totalorder %s83, 0
    %s86 = sadd.s32 %s85, 1
    %s87 = scalar_select %p84, %s85, %s86
    %p90 = pneg %p84
    %p91 = scmp.eq.s32.totalorder %s11, 1
    %p92 = por %p90, %p91
    %p93 = scmp.ne.s32.totalorder %s85, %s88
    %p94 = scmp.eq.s32.totalorder %s11, 0
    %p95 = por %p93, %p94
    %p96 = scmp.ne.s32.totalorder %s85, %s88
    %p97 = scmp.eq.s32.totalorder %s16, 1
    %p98 = por %p96, %p97
    %p99 = scmp.ne.s32.totalorder %s88, %s89
    %p100 = scmp.eq.s32.totalorder %s16, 0
    %p101 = por %p99, %p100
    %p102 = scmp.ne.s32.totalorder %s88, %s89
    %p103 = scmp.eq.s32.totalorder %s17, 1
    %p104 = por %p102, %p103
    %p106 = scmp.ne.s32.totalorder %s89, %s105
    %p107 = scmp.eq.s32.totalorder %s17, 0
    %p108 = por %p106, %p107
    %s110 = sadd.s32 %s109, 1
    %p113 = scmp.eq.s32.totalorder %s11, 1
    %p114 = scmp.ne.s32.totalorder %s109, %s111
    %p115 = scmp.eq.s32.totalorder %s11, 0
    %p116 = por %p114, %p115
    %p117 = scmp.ne.s32.totalorder %s109, %s111
    %p118 = scmp.eq.s32.totalorder %s16, 1
    %p119 = por %p117, %p118
    %p120 = scmp.ne.s32.totalorder %s111, %s112
    %p121 = scmp.eq.s32.totalorder %s16, 0
    %p122 = por %p120, %p121
    %p123 = scmp.ne.s32.totalorder %s111, %s112
    %p124 = scmp.eq.s32.totalorder %s17, 1
    %p125 = por %p123, %p124
    %p127 = scmp.ne.s32.totalorder %s112, %s126
    %p128 = scmp.eq.s32.totalorder %s17, 0
    %p129 = por %p127, %p128
    %s130 = ssub.s32 %s19, %s26
    %s131 = ssub.s32 %s18, %s30
    %s132 = sor.u32 %s130, %s131
    %p133 = scmp.eq.s32.totalorder %s132, 0
    %s135 = sadd.s32 %s134, 1
    %s136 = scalar_select %p133, %s134, %s135
    %p139 = pneg %p133
    %p140 = scmp.eq.s32.totalorder %s11, 1
    %p141 = por %p139, %p140
    %p142 = scmp.ne.s32.totalorder %s134, %s137
    %p143 = scmp.eq.s32.totalorder %s11, 0
    %p144 = por %p142, %p143
    %p145 = scmp.ne.s32.totalorder %s134, %s137
    %p146 = scmp.eq.s32.totalorder %s16, 1
    %p147 = por %p145, %p146
    %p148 = scmp.ne.s32.totalorder %s137, %s138
    %p149 = scmp.eq.s32.totalorder %s16, 0
    %p150 = por %p148, %p149
    %p151 = scmp.ne.s32.totalorder %s137, %s138
    %p152 = scmp.eq.s32.totalorder %s17, 1
    %p153 = por %p151, %p152
    %p155 = scmp.ne.s32.totalorder %s138, %s154
    %p156 = scmp.eq.s32.totalorder %s17, 0
    %p157 = por %p155, %p156
    %s158 = ssub.s32 %s19, %s26
    %s159 = ssub.s32 %s18, %s30
    %s160 = sor.u32 %s158, %s159
    %p161 = scmp.eq.s32.totalorder %s160, 0
    %s163 = sadd.s32 %s162, 1
    %s164 = scalar_select %p161, %s162, %s163
    %p167 = pneg %p161
    %p168 = scmp.eq.s32.totalorder %s11, 1
    %p169 = por %p167, %p168
    %p170 = scmp.ne.s32.totalorder %s162, %s165
    %p171 = scmp.eq.s32.totalorder %s11, 0
    %p172 = por %p170, %p171
    %p173 = scmp.ne.s32.totalorder %s162, %s165
    %p174 = scmp.eq.s32.totalorder %s16, 1
    %p175 = por %p173, %p174
    %p176 = scmp.ne.s32.totalorder %s165, %s166
    %p177 = scmp.eq.s32.totalorder %s16, 0
    %p178 = por %p176, %p177
    %p179 = scmp.ne.s32.totalorder %s165, %s166
    %p180 = scmp.eq.s32.totalorder %s17, 1
    %p181 = por %p179, %p180
    %p183 = scmp.ne.s32.totalorder %s166, %s182
    %p184 = scmp.eq.s32.totalorder %s17, 0
    %p185 = por %p183, %p184
    %p186 = scmp.le.s32.totalorder 1, %s11
    %p187 = scmp.lt.s32.totalorder %s11, 3
    %p188 = pnand %p186, %p187
    %p189 = pneg %p188
    // Predicated region
    $region9: #{stage2_forward.11} parent=5 // pred_check
      _
    $region10: #{stage2_forward.11} parent=5 // pred_check_branch
      %191 = sbr.rel (%p188) target = $region12
    $region11: #{stage2_forward.11} parent=5 // pred_region
      %s192 = ssub.s32 %s11, 1
      // Predicated region
      $region13: #{stage2_forward.11} parent=11 // pred_check
        %p193 = pneg %p75
      $region14: #{stage2_forward.11} parent=11 // pred_check_branch
        %195 = sbr.rel (%p193) target = $region16
      $region15: #{stage2_forward.11} parent=11 // pred_region
        %s196 = smul.u32 2, %s20
        %p197 = scmp.lt.s32.totalorder %s196, 1
        %s198 = scalar_select %p197, %s196, 1
        %s199 = smul.addr %s198, 4
        %s200 = scalar_lea.vmem %s1, %s199
        %s201 = smul.u32 2, %s20
      $region16: #{stage2_forward.11} parent=11 // pred_fallthru
        _
      // Predicated region
      $region17: #{stage2_forward.11} parent=11 // pred_check
        %p202 = pneg %p101
      $region18: #{stage2_forward.11} parent=11 // pred_check_branch
        %204 = sbr.rel (%p202) target = $region20
      $region19: #{stage2_forward.11} parent=11 // pred_region
        %s205 = smul.u32 2, %s20
        %p206 = scmp.lt.s32.totalorder %s205, 1
        %s207 = scalar_select %p206, %s205, 1
        %s208 = scalar_lea.vmem %s2, %s207
        %s209 = smul.u32 2, %s20
      $region20: #{stage2_forward.11} parent=11 // pred_fallthru
        _
      // Predicated region
      $region21: #{stage2_forward.11} parent=11 // pred_check
        %p210 = pneg %p122
      $region22: #{stage2_forward.11} parent=11 // pred_check_branch
        %212 = sbr.rel (%p210) target = $region24
      $region23: #{stage2_forward.11} parent=11 // pred_region
        _
      $region24: #{stage2_forward.11} parent=11 // pred_fallthru
        _
    $region12: #{stage2_forward.11} parent=5 // pred_fallthru
      _
    %p213 = scmp.lt.s32.totalorder %s11, 2
    // Predicated region
    $region25: #{stage2_forward.11} parent=5 // pred_check
      %p214 = pneg %p213
    $region26: #{stage2_forward.11} parent=5 // pred_check_branch
      %216 = sbr.rel (%p214) target = $region28
    $region27: #{stage2_forward.11} parent=5 // pred_region
      // Predicated region
      $region29: #{stage2_forward.11} parent=27 // pred_check
        %p217 = pneg %p43
      $region30: #{stage2_forward.11} parent=27 // pred_check_branch
        %219 = sbr.rel (%p217) target = $region32
      $region31: #{stage2_forward.11} parent=27 // pred_region
        %p220 = scmp.lt.s32.totalorder %s19, 1
        %s221 = scalar_select %p220, %s19, 1
        %s222 = smul.addr %s221, 8
        %s223 = smul.addr %s222, 8
        %s224 = scalar_lea.vmem %s0, %s223
      $region32: #{stage2_forward.11} parent=27 // pred_fallthru
        _
      // Predicated region
      $region33: #{stage2_forward.11} parent=27 // pred_check
        %p225 = pneg %p144
      $region34: #{stage2_forward.11} parent=27 // pred_check_branch
        %227 = sbr.rel (%p225) target = $region36
      $region35: #{stage2_forward.11} parent=27 // pred_region
        %s228 = smul.u32 2, %s18
        %p229 = scmp.lt.s32.totalorder %s19, 1
        %s230 = scalar_select %p229, %s19, 1
        %p231 = scmp.lt.s32.totalorder %s228, 1
        %s232 = scalar_select %p231, %s228, 1
        %s233 = smul.addr %s230, 4
        %s234 = sadd.s32 %s232, %s233
        %s235 = smul.addr %s234, 4
        %s236 = scalar_lea.vmem %s4, %s235
        %s237 = smul.u32 2, %s18
      $region36: #{stage2_forward.11} parent=27 // pred_fallthru
        _
    $region28: #{stage2_forward.11} parent=5 // pred_fallthru
      _
    %p238 = scmp.le.s32.totalorder 1, %s11
    %p239 = scmp.lt.s32.totalorder %s11, 3
    %p240 = pnand %p238, %p239
    %p241 = pneg %p240
    // Predicated region
    $region37: #{stage2_forward.11} parent=5 // pred_check
      _
    $region38: #{stage2_forward.11} parent=5 // pred_check_branch
      %243 = sbr.rel (%p240) target = $region40
    $region39: #{stage2_forward.11} parent=5 // pred_region
      %s244 = ssub.s32 %s11, 1
      %p245 = scmp.lt.s32.totalorder %s21, 1
      %s246 = scalar_select %p245, %s21, 1
      %s247 = smul.addr %s246, 8
      %s248 = smul.addr %s247, 8
      %s249 = scalar_lea.vmem %s0, %s248
      %p250 = pneg %p49
      %p251 = pneg %p46
      %s252 = smul.u32 2, %s20
      %p253 = scmp.lt.s32.totalorder %s252, 1
      %s254 = scalar_select %p253, %s252, 1
      %s255 = smul.addr %s254, 4
      %s256 = scalar_lea.vmem %s1, %s255
      %p257 = pneg %p75
      %p258 = pneg %p72
      %s259 = smul.u32 2, %s20
      %p260 = scmp.lt.s32.totalorder %s259, 1
      %s261 = scalar_select %p260, %s259, 1
      %s262 = scalar_lea.vmem %s2, %s261
      %p263 = pneg %p101
      %p264 = pneg %p98
      %p265 = pneg %p122
      %p266 = pneg %p119
      %s267 = smul.u32 2, %s20
      %p268 = scmp.lt.s32.totalorder %s21, 1
      %s269 = scalar_select %p268, %s21, 1
      %p270 = scmp.lt.s32.totalorder %s267, 1
      %s271 = scalar_select %p270, %s267, 1
      %s272 = smul.addr %s269, 4
      %s273 = sadd.s32 %s271, %s272
      %s274 = smul.addr %s273, 4
      %s275 = scalar_lea.vmem %s4, %s274
      %p276 = pneg %p150
      %p277 = pneg %p147
      %p278 = pneg %p178
      %p279 = pneg %p175
      %s280 = smul.u32 2, %s20
      %p281 = scmp.lt.s32.totalorder %s21, 1
      %s282 = scalar_select %p281, %s21, 1
      %p283 = scmp.lt.s32.totalorder %s280, 1
      %s284 = scalar_select %p283, %s280, 1
      %s285 = smul.addr %s282, 4
      %s286 = sadd.s32 %s284, %s285
      %s287 = smul.addr %s286, 8
      %s288 = scalar_lea.vmem %s5, %s287
      %p289 = scmp.lt.s32.totalorder %s21, 1
      %s290 = scalar_select %p289, %s21, 1
      %s291 = smul.addr %s290, 8
      %s292 = smul.addr %s291, 8
      %s293 = scalar_lea.vmem %s0, %s292
      %s294 = smul.u32 2, %s20
      %p295 = scmp.lt.s32.totalorder %s294, 1
      %s296 = scalar_select %p295, %s294, 1
      %s297 = smul.addr %s296, 4
      %s298 = scalar_lea.vmem %s1, %s297
      %s299 = smul.u32 2, %s20
      %s300 = smul.u32 2, %s20
      %p301 = scmp.lt.s32.totalorder %s300, 1
      %s302 = scalar_select %p301, %s300, 1
      %s303 = scalar_lea.vmem %s2, %s302
      %s304 = smul.u32 2, %s20
      %s305 = smul.u32 2, %s20
      %p306 = scmp.lt.s32.totalorder %s21, 1
      %s307 = scalar_select %p306, %s21, 1
      %p308 = scmp.lt.s32.totalorder %s305, 1
      %s309 = scalar_select %p308, %s305, 1
      %s310 = smul.addr %s307, 4
      %s311 = sadd.s32 %s309, %s310
      %s312 = smul.addr %s311, 4
      %s313 = scalar_lea.vmem %s4, %s312
      %s314 = smul.u32 2, %s20
      %s315 = smul.u32 2, %s20
      %p316 = scmp.lt.s32.totalorder %s21, 1
      %s317 = scalar_select %p316, %s21, 1
      %p318 = scmp.lt.s32.totalorder %s315, 1
      %s319 = scalar_select %p318, %s315, 1
      %s320 = smul.addr %s317, 4
      %s321 = sadd.s32 %s319, %s320
      %s322 = smul.addr %s321, 8
      %s323 = scalar_lea.vmem %s5, %s322
      %s324 = smul.u32 2, %s20
      %v325 = vld [vmem:[%s3] sm:$0xff]
      %v326 = vld [vmem:[%s3 + $0x8] sm:$0xff]
      %s327 = scalar_lea.vmem %s3, 16
      %v328 = vld [vmem:[%s327] sm:$0xff]
      %v329 = vld [vmem:[%s327 + $0x8] sm:$0xff]
      %v330 = vld [vmem:[%s293] sm:$0xff]
      %v331 = vld [vmem:[%s293 + $0x8] sm:$0xff]
      %v332 = vld [vmem:[%s293 + $0x10] sm:$0xff]
      %v333 = vld [vmem:[%s293 + $0x18] sm:$0xff]
      %v334 = vpack.c.bf16 %v332, %v330
      %v335 = vpack.c.bf16 %v333, %v331
      %v336 = vld [vmem:[%s298] sm:$0xff]
      %v337 = vld [vmem:[%s298 + $0x8] sm:$0xff]
      %v338 = vld [vmem:[%s298 + $0x10] sm:$0xff]
      %v339 = vld [vmem:[%s298 + $0x18] sm:$0xff]
      %v340 = vld [vmem:[%s298 + $0x20] sm:$0xff]
      %v341 = vld [vmem:[%s298 + $0x28] sm:$0xff]
      %v342 = vld [vmem:[%s298 + $0x30] sm:$0xff]
      %v343 = vld [vmem:[%s298 + $0x38] sm:$0xff]
      %v344 = vld [vmem:[%s298 + $0x40] sm:$0xff]
      %v345 = vld [vmem:[%s298 + $0x48] sm:$0xff]
      %v346 = vld [vmem:[%s298 + $0x50] sm:$0xff]
      %v347 = vld [vmem:[%s298 + $0x58] sm:$0xff]
      %v348 = vld [vmem:[%s298 + $0x60] sm:$0xff]
      %v349 = vld [vmem:[%s298 + $0x68] sm:$0xff]
      %v350 = vld [vmem:[%s298 + $0x70] sm:$0xff]
      %v351 = vld [vmem:[%s298 + $0x78] sm:$0xff]
      %v352 = vld [vmem:[%s298 + $0x80] sm:$0xff]
      %v353 = vld [vmem:[%s298 + $0x88] sm:$0xff]
      %v354 = vld [vmem:[%s298 + $0x90] sm:$0xff]
      %v355 = vld [vmem:[%s298 + $0x98] sm:$0xff]
      %v356 = vld [vmem:[%s298 + $0xa0] sm:$0xff]
      %v357 = vld [vmem:[%s298 + $0xa8] sm:$0xff]
      %v358 = vld [vmem:[%s298 + $0xb0] sm:$0xff]
      %v359 = vld [vmem:[%s298 + $0xb8] sm:$0xff]
      %v360 = vld [vmem:[%s298 + $0xc0] sm:$0xff]
      %v361 = vld [vmem:[%s298 + $0xc8] sm:$0xff]
      %v362 = vld [vmem:[%s298 + $0xd0] sm:$0xff]
      %v363 = vld [vmem:[%s298 + $0xd8] sm:$0xff]
      %v364 = vld [vmem:[%s298 + $0xe0] sm:$0xff]
      %v365 = vld [vmem:[%s298 + $0xe8] sm:$0xff]
      %v366 = vld [vmem:[%s298 + $0xf0] sm:$0xff]
      %v367 = vld [vmem:[%s298 + $0xf8] sm:$0xff]
      %v400 = vunpack.c.l.b16 %v336
      %v401 = vunpack.c.h.b16 %v336
      %v402 = vunpack.c.l.b16 %v337
      %v403 = vunpack.c.h.b16 %v337
      %v404 = vunpack.c.l.b16 %v338
      %v405 = vunpack.c.h.b16 %v338
      %v406 = vunpack.c.l.b16 %v339
      %v407 = vunpack.c.h.b16 %v339
      %v408 = vunpack.c.l.b16 %v340
      %v409 = vunpack.c.h.b16 %v340
      %v410 = vunpack.c.l.b16 %v341
      %v411 = vunpack.c.h.b16 %v341
      %v412 = vunpack.c.l.b16 %v342
      %v413 = vunpack.c.h.b16 %v342
      %v414 = vunpack.c.l.b16 %v343
      %v415 = vunpack.c.h.b16 %v343
      %v416 = vunpack.c.l.b16 %v344
      %v417 = vunpack.c.h.b16 %v344
      %v418 = vunpack.c.l.b16 %v345
      %v419 = vunpack.c.h.b16 %v345
      %v420 = vunpack.c.l.b16 %v346
      %v421 = vunpack.c.h.b16 %v346
      %v422 = vunpack.c.l.b16 %v347
      %v423 = vunpack.c.h.b16 %v347
      %v424 = vunpack.c.l.b16 %v348
      %v425 = vunpack.c.h.b16 %v348
      %v426 = vunpack.c.l.b16 %v349
      %v427 = vunpack.c.h.b16 %v349
      %v428 = vunpack.c.l.b16 %v350
      %v429 = vunpack.c.h.b16 %v350
      %v430 = vunpack.c.l.b16 %v351
      %v431 = vunpack.c.h.b16 %v351
      %v432 = vunpack.c.l.b16 %v352
      %v433 = vunpack.c.h.b16 %v352
      %v434 = vunpack.c.l.b16 %v353
      %v435 = vunpack.c.h.b16 %v353
      %v436 = vunpack.c.l.b16 %v354
      %v437 = vunpack.c.h.b16 %v354
      %v438 = vunpack.c.l.b16 %v355
      %v439 = vunpack.c.h.b16 %v355
      %v440 = vunpack.c.l.b16 %v356
      %v441 = vunpack.c.h.b16 %v356
      %v442 = vunpack.c.l.b16 %v357
      %v443 = vunpack.c.h.b16 %v357
      %v444 = vunpack.c.l.b16 %v358
      %v445 = vunpack.c.h.b16 %v358
      %v446 = vunpack.c.l.b16 %v359
      %v447 = vunpack.c.h.b16 %v359
      %v448 = vunpack.c.l.b16 %v360
      %v449 = vunpack.c.h.b16 %v360
      %v450 = vunpack.c.l.b16 %v361
      %v451 = vunpack.c.h.b16 %v361
      %v452 = vunpack.c.l.b16 %v362
      %v453 = vunpack.c.h.b16 %v362
      %v454 = vunpack.c.l.b16 %v363
      %v455 = vunpack.c.h.b16 %v363
      %v456 = vunpack.c.l.b16 %v364
      %v457 = vunpack.c.h.b16 %v364
      %v458 = vunpack.c.l.b16 %v365
      %v459 = vunpack.c.h.b16 %v365
      %v460 = vunpack.c.l.b16 %v366
      %v461 = vunpack.c.h.b16 %v366
      %v462 = vunpack.c.l.b16 %v367
      %v463 = vunpack.c.h.b16 %v367
      %v464 = vpack.c.b16 %v402, %v400
      %v465 = vpack.c.b16 %v403, %v401
      %v466 = vpack.c.b16 %v406, %v404
      %v467 = vpack.c.b16 %v407, %v405
      %v468 = vpack.c.b16 %v410, %v408
      %v469 = vpack.c.b16 %v411, %v409
      %v470 = vpack.c.b16 %v414, %v412
      %v471 = vpack.c.b16 %v415, %v413
      %v472 = vpack.c.b16 %v418, %v416
      %v473 = vpack.c.b16 %v419, %v417
      %v474 = vpack.c.b16 %v422, %v420
      %v475 = vpack.c.b16 %v423, %v421
      %v476 = vpack.c.b16 %v426, %v424
      %v477 = vpack.c.b16 %v427, %v425
      %v478 = vpack.c.b16 %v430, %v428
      %v479 = vpack.c.b16 %v431, %v429
      %v480 = vpack.c.b16 %v434, %v432
      %v481 = vpack.c.b16 %v435, %v433
      %v482 = vpack.c.b16 %v438, %v436
      %v483 = vpack.c.b16 %v439, %v437
      %v484 = vpack.c.b16 %v442, %v440
      %v485 = vpack.c.b16 %v443, %v441
      %v486 = vpack.c.b16 %v446, %v444
      %v487 = vpack.c.b16 %v447, %v445
      %v488 = vpack.c.b16 %v450, %v448
      %v489 = vpack.c.b16 %v451, %v449
      %v490 = vpack.c.b16 %v454, %v452
      %v491 = vpack.c.b16 %v455, %v453
      %v492 = vpack.c.b16 %v458, %v456
      %v493 = vpack.c.b16 %v459, %v457
      %v494 = vpack.c.b16 %v462, %v460
      %v495 = vpack.c.b16 %v463, %v461
      %528 = vmatprep.subr.bf16.mxu0 %v479
      %529 = vmatpush1.bf16.msra.mxu0 %v478
      %530 = vmatprep.subr.bf16.mxu0 %v477
      %531 = vmatpush1.bf16.msra.mxu0 %v476
      %532 = vmatprep.subr.bf16.mxu0 %v475
      %533 = vmatpush1.bf16.msra.mxu0 %v474
      %534 = vmatprep.subr.bf16.mxu0 %v473
      %535 = vmatpush1.bf16.msra.mxu0 %v472
      %536 = vmatprep.subr.bf16.mxu0 %v471
      %537 = vmatpush1.bf16.msra.mxu0 %v470
      %538 = vmatprep.subr.bf16.mxu0 %v469
      %539 = vmatpush1.bf16.msra.mxu0 %v468
      %540 = vmatprep.subr.bf16.mxu0 %v467
      %541 = vmatpush1.bf16.msra.mxu0 %v466
      %542 = vmatprep.subr.bf16.mxu0 %v465
      %543 = vmatpush1.bf16.msra.mxu0 %v464
      %544 = vmatprep.subr.bf16.mxu0 %v495
      %545 = vmatpush2.bf16.msra.mxu0 %v494
      %546 = vmatprep.subr.bf16.mxu0 %v493
      %547 = vmatpush2.bf16.msra.mxu0 %v492
      %548 = vmatprep.subr.bf16.mxu0 %v491
      %549 = vmatpush2.bf16.msra.mxu0 %v490
      %550 = vmatprep.subr.bf16.mxu0 %v489
      %551 = vmatpush2.bf16.msra.mxu0 %v488
      %552 = vmatprep.subr.bf16.mxu0 %v487
      %553 = vmatpush2.bf16.msra.mxu0 %v486
      %554 = vmatprep.subr.bf16.mxu0 %v485
      %555 = vmatpush2.bf16.msra.mxu0 %v484
      %556 = vmatprep.subr.bf16.mxu0 %v483
      %557 = vmatpush2.bf16.msra.mxu0 %v482
      %558 = vmatprep.subr.bf16.mxu0 %v481
      %559 = vmatpush2.bf16.msra.mxu0 %v480
      %560 = vmatprep.mubr.bf16.mxu0 %v335
      %561 = vmatmul.mubr.bf16.gmra.mxu0 %v334
      %v562 = vpop.f32.mrf.mxu0
      %v563 = vadd.f32 0.0, %v562
      %v564 = vpop.f32.mrf.mxu0
      %v565 = vadd.f32 0.0, %v564
      %v566 = vpop.f32.mrf.mxu0
      %v567 = vadd.f32 0.0, %v566
      %v568 = vpop.f32.mrf.mxu0
      %v569 = vadd.f32 0.0, %v568
      %570 = vdwg.mxu0
      %572 = vset.pattern.permute.xlu0 0
      %573 = vperm.xlu0 %572, %v325
      %v574 = vpop.permute.xlu0 %573
      %577 = vset.pattern.permute.xlu0 0
      %578 = vperm.xlu0 %577, %v326
      %v579 = vpop.permute.xlu0 %578
      %v581 = vmul.f32 %v563, %v574
      %v582 = vmul.f32 %v565, %v574
      %v583 = vmul.f32 %v567, %v579
      %v584 = vmul.f32 %v569, %v579
      %v585 = vadd.f32 %v581, 0.0
      %v586 = vadd.f32 %v582, 0.0
      %v587 = vadd.f32 %v583, 0.0
      %v588 = vadd.f32 %v584, 0.0
      %v589 = vld [vmem:[%s293] sm:$0xfe]
      %v590 = vld [vmem:[%s293 + $0x8] sm:$0xfe]
      %v591 = vld [vmem:[%s293 + $0x10] sm:$0xff]
      %v592 = vld [vmem:[%s293 + $0x18] sm:$0xff]
      %v593 = vld [vmem:[%s293 + $0x20] sm:$0x1]
      %v594 = vld [vmem:[%s293 + $0x28] sm:$0x1]
      %v595 = vpack.c.bf16 %v591, %v589
      %v596 = vpack.c.bf16 %v592, %v590
      %v597 = vpack.c.bf16 %v593, %v593
      %v598 = vpack.c.bf16 %v594, %v594
      %s599 = scalar_lea.vmem %s298, 256
      %v600 = vld [vmem:[%s599] sm:$0xff]
      %v601 = vld [vmem:[%s599 + $0x8] sm:$0xff]
      %v602 = vld [vmem:[%s599 + $0x10] sm:$0xff]
      %v603 = vld [vmem:[%s599 + $0x18] sm:$0xff]
      %v604 = vld [vmem:[%s599 + $0x20] sm:$0xff]
      %v605 = vld [vmem:[%s599 + $0x28] sm:$0xff]
      %v606 = vld [vmem:[%s599 + $0x30] sm:$0xff]
      %v607 = vld [vmem:[%s599 + $0x38] sm:$0xff]
      %v608 = vld [vmem:[%s599 + $0x40] sm:$0xff]
      %v609 = vld [vmem:[%s599 + $0x48] sm:$0xff]
      %v610 = vld [vmem:[%s599 + $0x50] sm:$0xff]
      %v611 = vld [vmem:[%s599 + $0x58] sm:$0xff]
      %v612 = vld [vmem:[%s599 + $0x60] sm:$0xff]
      %v613 = vld [vmem:[%s599 + $0x68] sm:$0xff]
      %v614 = vld [vmem:[%s599 + $0x70] sm:$0xff]
      %v615 = vld [vmem:[%s599 + $0x78] sm:$0xff]
      %v616 = vld [vmem:[%s599 + $0x80] sm:$0xff]
      %v617 = vld [vmem:[%s599 + $0x88] sm:$0xff]
      %v618 = vld [vmem:[%s599 + $0x90] sm:$0xff]
      %v619 = vld [vmem:[%s599 + $0x98] sm:$0xff]
      %v620 = vld [vmem:[%s599 + $0xa0] sm:$0xff]
      %v621 = vld [vmem:[%s599 + $0xa8] sm:$0xff]
      %v622 = vld [vmem:[%s599 + $0xb0] sm:$0xff]
      %v623 = vld [vmem:[%s599 + $0xb8] sm:$0xff]
      %v624 = vld [vmem:[%s599 + $0xc0] sm:$0xff]
      %v625 = vld [vmem:[%s599 + $0xc8] sm:$0xff]
      %v626 = vld [vmem:[%s599 + $0xd0] sm:$0xff]
      %v627 = vld [vmem:[%s599 + $0xd8] sm:$0xff]
      %v628 = vld [vmem:[%s599 + $0xe0] sm:$0xff]
      %v629 = vld [vmem:[%s599 + $0xe8] sm:$0xff]
      %v630 = vld [vmem:[%s599 + $0xf0] sm:$0xff]
      %v631 = vld [vmem:[%s599 + $0xf8] sm:$0xff]
      %vm632 = vsmask.f32 7424
      %v634 = vshrl.u32 %v595, 16
      %v636 = vshll.u32 %v595, 16
      %v638 = vrot.slane %v636, 1
      %v639 = vor.u32 %v634, %v638
      %v641 = vshll.u32 %v597, 16
      %v643 = vrot.slane %v641, 1
      %v644 = vsel %vm632, %v639, %v643
      %v646 = vshrl.u32 %v596, 16
      %v648 = vshll.u32 %v596, 16
      %v650 = vrot.slane %v648, 1
      %v651 = vor.u32 %v646, %v650
      %v653 = vshll.u32 %v598, 16
      %v655 = vrot.slane %v653, 1
      %v656 = vsel %vm632, %v651, %v655
      %v691 = vunpack.c.l.b16 %v600
      %v692 = vunpack.c.h.b16 %v600
      %v693 = vunpack.c.l.b16 %v601
      %v694 = vunpack.c.h.b16 %v601
      %v695 = vunpack.c.l.b16 %v602
      %v696 = vunpack.c.h.b16 %v602
      %v697 = vunpack.c.l.b16 %v603
      %v698 = vunpack.c.h.b16 %v603
      %v699 = vunpack.c.l.b16 %v604
      %v700 = vunpack.c.h.b16 %v604
      %v701 = vunpack.c.l.b16 %v605
      %v702 = vunpack.c.h.b16 %v605
      %v703 = vunpack.c.l.b16 %v606
      %v704 = vunpack.c.h.b16 %v606
      %v705 = vunpack.c.l.b16 %v607
      %v706 = vunpack.c.h.b16 %v607
      %v707 = vunpack.c.l.b16 %v608
      %v708 = vunpack.c.h.b16 %v608
      %v709 = vunpack.c.l.b16 %v609
      %v710 = vunpack.c.h.b16 %v609
      %v711 = vunpack.c.l.b16 %v610
      %v712 = vunpack.c.h.b16 %v610
      %v713 = vunpack.c.l.b16 %v611
      %v714 = vunpack.c.h.b16 %v611
      %v715 = vunpack.c.l.b16 %v612
      %v716 = vunpack.c.h.b16 %v612
      %v717 = vunpack.c.l.b16 %v613
      %v718 = vunpack.c.h.b16 %v613
      %v719 = vunpack.c.l.b16 %v614
      %v720 = vunpack.c.h.b16 %v614
      %v721 = vunpack.c.l.b16 %v615
      %v722 = vunpack.c.h.b16 %v615
      %v723 = vunpack.c.l.b16 %v616
      %v724 = vunpack.c.h.b16 %v616
      %v725 = vunpack.c.l.b16 %v617
      %v726 = vunpack.c.h.b16 %v617
      %v727 = vunpack.c.l.b16 %v618
      %v728 = vunpack.c.h.b16 %v618
      %v729 = vunpack.c.l.b16 %v619
      %v730 = vunpack.c.h.b16 %v619
      %v731 = vunpack.c.l.b16 %v620
      %v732 = vunpack.c.h.b16 %v620
      %v733 = vunpack.c.l.b16 %v621
      %v734 = vunpack.c.h.b16 %v621
      %v735 = vunpack.c.l.b16 %v622
      %v736 = vunpack.c.h.b16 %v622
      %v737 = vunpack.c.l.b16 %v623
      %v738 = vunpack.c.h.b16 %v623
      %v739 = vunpack.c.l.b16 %v624
      %v740 = vunpack.c.h.b16 %v624
      %v741 = vunpack.c.l.b16 %v625
      %v742 = vunpack.c.h.b16 %v625
      %v743 = vunpack.c.l.b16 %v626
      %v744 = vunpack.c.h.b16 %v626
      %v745 = vunpack.c.l.b16 %v627
      %v746 = vunpack.c.h.b16 %v627
      %v747 = vunpack.c.l.b16 %v628
      %v748 = vunpack.c.h.b16 %v628
      %v749 = vunpack.c.l.b16 %v629
      %v750 = vunpack.c.h.b16 %v629
      %v751 = vunpack.c.l.b16 %v630
      %v752 = vunpack.c.h.b16 %v630
      %v753 = vunpack.c.l.b16 %v631
      %v754 = vunpack.c.h.b16 %v631
      %v755 = vpack.c.b16 %v693, %v691
      %v756 = vpack.c.b16 %v694, %v692
      %v757 = vpack.c.b16 %v697, %v695
      %v758 = vpack.c.b16 %v698, %v696
      %v759 = vpack.c.b16 %v701, %v699
      %v760 = vpack.c.b16 %v702, %v700
      %v761 = vpack.c.b16 %v705, %v703
      %v762 = vpack.c.b16 %v706, %v704
      %v763 = vpack.c.b16 %v709, %v707
      %v764 = vpack.c.b16 %v710, %v708
      %v765 = vpack.c.b16 %v713, %v711
      %v766 = vpack.c.b16 %v714, %v712
      %v767 = vpack.c.b16 %v717, %v715
      %v768 = vpack.c.b16 %v718, %v716
      %v769 = vpack.c.b16 %v721, %v719
      %v770 = vpack.c.b16 %v722, %v720
      %v771 = vpack.c.b16 %v725, %v723
      %v772 = vpack.c.b16 %v726, %v724
      %v773 = vpack.c.b16 %v729, %v727
      %v774 = vpack.c.b16 %v730, %v728
      %v775 = vpack.c.b16 %v733, %v731
      %v776 = vpack.c.b16 %v734, %v732
      %v777 = vpack.c.b16 %v737, %v735
      %v778 = vpack.c.b16 %v738, %v736
      %v779 = vpack.c.b16 %v741, %v739
      %v780 = vpack.c.b16 %v742, %v740
      %v781 = vpack.c.b16 %v745, %v743
      %v782 = vpack.c.b16 %v746, %v744
      %v783 = vpack.c.b16 %v749, %v747
      %v784 = vpack.c.b16 %v750, %v748
      %v785 = vpack.c.b16 %v753, %v751
      %v786 = vpack.c.b16 %v754, %v752
      %819 = vmatprep.subr.bf16.mxu0 %v770
      %820 = vmatpush1.bf16.msra.mxu0 %v769
      %821 = vmatprep.subr.bf16.mxu0 %v768
      %822 = vmatpush1.bf16.msra.mxu0 %v767
      %823 = vmatprep.subr.bf16.mxu0 %v766
      %824 = vmatpush1.bf16.msra.mxu0 %v765
      %825 = vmatprep.subr.bf16.mxu0 %v764
      %826 = vmatpush1.bf16.msra.mxu0 %v763
      %827 = vmatprep.subr.bf16.mxu0 %v762
      %828 = vmatpush1.bf16.msra.mxu0 %v761
      %829 = vmatprep.subr.bf16.mxu0 %v760
      %830 = vmatpush1.bf16.msra.mxu0 %v759
      %831 = vmatprep.subr.bf16.mxu0 %v758
      %832 = vmatpush1.bf16.msra.mxu0 %v757
      %833 = vmatprep.subr.bf16.mxu0 %v756
      %834 = vmatpush1.bf16.msra.mxu0 %v755
      %835 = vmatprep.subr.bf16.mxu0 %v786
      %836 = vmatpush2.bf16.msra.mxu0 %v785
      %837 = vmatprep.subr.bf16.mxu0 %v784
      %838 = vmatpush2.bf16.msra.mxu0 %v783
      %839 = vmatprep.subr.bf16.mxu0 %v782
      %840 = vmatpush2.bf16.msra.mxu0 %v781
      %841 = vmatprep.subr.bf16.mxu0 %v780
      %842 = vmatpush2.bf16.msra.mxu0 %v779
      %843 = vmatprep.subr.bf16.mxu0 %v778
      %844 = vmatpush2.bf16.msra.mxu0 %v777
      %845 = vmatprep.subr.bf16.mxu0 %v776
      %846 = vmatpush2.bf16.msra.mxu0 %v775
      %847 = vmatprep.subr.bf16.mxu0 %v774
      %848 = vmatpush2.bf16.msra.mxu0 %v773
      %849 = vmatprep.subr.bf16.mxu0 %v772
      %850 = vmatpush2.bf16.msra.mxu0 %v771
      %851 = vmatprep.mubr.bf16.mxu0 %v656
      %852 = vmatmul.mubr.bf16.gmra.mxu0 %v644
      %v853 = vpop.f32.mrf.mxu0
      %v854 = vadd.f32 0.0, %v853
      %v855 = vpop.f32.mrf.mxu0
      %v856 = vadd.f32 0.0, %v855
      %v857 = vpop.f32.mrf.mxu0
      %v858 = vadd.f32 0.0, %v857
      %v859 = vpop.f32.mrf.mxu0
      %v860 = vadd.f32 0.0, %v859
      %861 = vdwg.mxu0
      %v862 = vadd.f32 %v585, %v854
      %v863 = vadd.f32 %v586, %v856
      %v864 = vadd.f32 %v587, %v858
      %v865 = vadd.f32 %v588, %v860
      %v866 = vld [vmem:[%s293] sm:$0xfc]
      %v867 = vld [vmem:[%s293 + $0x8] sm:$0xfc]
      %v868 = vld [vmem:[%s293 + $0x20] sm:$0x3]
      %v869 = vld [vmem:[%s293 + $0x28] sm:$0x3]
      %v870 = vpack.c.bf16 %v591, %v866
      %v871 = vpack.c.bf16 %v592, %v867
      %v872 = vpack.c.bf16 %v868, %v868
      %v873 = vpack.c.bf16 %v869, %v869
      %s874 = scalar_lea.vmem %s298, 512
      %v875 = vld [vmem:[%s874] sm:$0xff]
      %v876 = vld [vmem:[%s874 + $0x8] sm:$0xff]
      %v877 = vld [vmem:[%s874 + $0x10] sm:$0xff]
      %v878 = vld [vmem:[%s874 + $0x18] sm:$0xff]
      %v879 = vld [vmem:[%s874 + $0x20] sm:$0xff]
      %v880 = vld [vmem:[%s874 + $0x28] sm:$0xff]
      %v881 = vld [vmem:[%s874 + $0x30] sm:$0xff]
      %v882 = vld [vmem:[%s874 + $0x38] sm:$0xff]
      %v883 = vld [vmem:[%s874 + $0x40] sm:$0xff]
      %v884 = vld [vmem:[%s874 + $0x48] sm:$0xff]
      %v885 = vld [vmem:[%s874 + $0x50] sm:$0xff]
      %v886 = vld [vmem:[%s874 + $0x58] sm:$0xff]
      %v887 = vld [vmem:[%s874 + $0x60] sm:$0xff]
      %v888 = vld [vmem:[%s874 + $0x68] sm:$0xff]
      %v889 = vld [vmem:[%s874 + $0x70] sm:$0xff]
      %v890 = vld [vmem:[%s874 + $0x78] sm:$0xff]
      %v891 = vld [vmem:[%s874 + $0x80] sm:$0xff]
      %v892 = vld [vmem:[%s874 + $0x88] sm:$0xff]
      %v893 = vld [vmem:[%s874 + $0x90] sm:$0xff]
      %v894 = vld [vmem:[%s874 + $0x98] sm:$0xff]
      %v895 = vld [vmem:[%s874 + $0xa0] sm:$0xff]
      %v896 = vld [vmem:[%s874 + $0xa8] sm:$0xff]
      %v897 = vld [vmem:[%s874 + $0xb0] sm:$0xff]
      %v898 = vld [vmem:[%s874 + $0xb8] sm:$0xff]
      %v899 = vld [vmem:[%s874 + $0xc0] sm:$0xff]
      %v900 = vld [vmem:[%s874 + $0xc8] sm:$0xff]
      %v901 = vld [vmem:[%s874 + $0xd0] sm:$0xff]
      %v902 = vld [vmem:[%s874 + $0xd8] sm:$0xff]
      %v903 = vld [vmem:[%s874 + $0xe0] sm:$0xff]
      %v904 = vld [vmem:[%s874 + $0xe8] sm:$0xff]
      %v905 = vld [vmem:[%s874 + $0xf0] sm:$0xff]
      %v906 = vld [vmem:[%s874 + $0xf8] sm:$0xff]
      %vm911 = vcmask 1046528
      %v912 = vrot.slane %v870, 1
      %v913 = vrot.slane %v872, 1
      %v914 = vsel %vm911, %v912, %v913
      %v915 = vrot.slane %v871, 1
      %v916 = vrot.slane %v873, 1
      %v917 = vsel %vm911, %v915, %v916
      %v952 = vunpack.c.l.b16 %v875
      %v953 = vunpack.c.h.b16 %v875
      %v954 = vunpack.c.l.b16 %v876
      %v955 = vunpack.c.h.b16 %v876
      %v956 = vunpack.c.l.b16 %v877
      %v957 = vunpack.c.h.b16 %v877
      %v958 = vunpack.c.l.b16 %v878
      %v959 = vunpack.c.h.b16 %v878
      %v960 = vunpack.c.l.b16 %v879
      %v961 = vunpack.c.h.b16 %v879
      %v962 = vunpack.c.l.b16 %v880
      %v963 = vunpack.c.h.b16 %v880
      %v964 = vunpack.c.l.b16 %v881
      %v965 = vunpack.c.h.b16 %v881
      %v966 = vunpack.c.l.b16 %v882
      %v967 = vunpack.c.h.b16 %v882
      %v968 = vunpack.c.l.b16 %v883
      %v969 = vunpack.c.h.b16 %v883
      %v970 = vunpack.c.l.b16 %v884
      %v971 = vunpack.c.h.b16 %v884
      %v972 = vunpack.c.l.b16 %v885
      %v973 = vunpack.c.h.b16 %v885
      %v974 = vunpack.c.l.b16 %v886
      %v975 = vunpack.c.h.b16 %v886
      %v976 = vunpack.c.l.b16 %v887
      %v977 = vunpack.c.h.b16 %v887
      %v978 = vunpack.c.l.b16 %v888
      %v979 = vunpack.c.h.b16 %v888
      %v980 = vunpack.c.l.b16 %v889
      %v981 = vunpack.c.h.b16 %v889
      %v982 = vunpack.c.l.b16 %v890
      %v983 = vunpack.c.h.b16 %v890
      %v984 = vunpack.c.l.b16 %v891
      %v985 = vunpack.c.h.b16 %v891
      %v986 = vunpack.c.l.b16 %v892
      %v987 = vunpack.c.h.b16 %v892
      %v988 = vunpack.c.l.b16 %v893
      %v989 = vunpack.c.h.b16 %v893
      %v990 = vunpack.c.l.b16 %v894
      %v991 = vunpack.c.h.b16 %v894
      %v992 = vunpack.c.l.b16 %v895
      %v993 = vunpack.c.h.b16 %v895
      %v994 = vunpack.c.l.b16 %v896
      %v995 = vunpack.c.h.b16 %v896
      %v996 = vunpack.c.l.b16 %v897
      %v997 = vunpack.c.h.b16 %v897
      %v998 = vunpack.c.l.b16 %v898
      %v999 = vunpack.c.h.b16 %v898
      %v1000 = vunpack.c.l.b16 %v899
      %v1001 = vunpack.c.h.b16 %v899
      %v1002 = vunpack.c.l.b16 %v900
      %v1003 = vunpack.c.h.b16 %v900
      %v1004 = vunpack.c.l.b16 %v901
      %v1005 = vunpack.c.h.b16 %v901
      %v1006 = vunpack.c.l.b16 %v902
      %v1007 = vunpack.c.h.b16 %v902
      %v1008 = vunpack.c.l.b16 %v903
      %v1009 = vunpack.c.h.b16 %v903
      %v1010 = vunpack.c.l.b16 %v904
      %v1011 = vunpack.c.h.b16 %v904
      %v1012 = vunpack.c.l.b16 %v905
      %v1013 = vunpack.c.h.b16 %v905
      %v1014 = vunpack.c.l.b16 %v906
      %v1015 = vunpack.c.h.b16 %v906
      %v1016 = vpack.c.b16 %v954, %v952
      %v1017 = vpack.c.b16 %v955, %v953
      %v1018 = vpack.c.b16 %v958, %v956
      %v1019 = vpack.c.b16 %v959, %v957
      %v1020 = vpack.c.b16 %v962, %v960
      %v1021 = vpack.c.b16 %v963, %v961
      %v1022 = vpack.c.b16 %v966, %v964
      %v1023 = vpack.c.b16 %v967, %v965
      %v1024 = vpack.c.b16 %v970, %v968
      %v1025 = vpack.c.b16 %v971, %v969
      %v1026 = vpack.c.b16 %v974, %v972
      %v1027 = vpack.c.b16 %v975, %v973
      %v1028 = vpack.c.b16 %v978, %v976
      %v1029 = vpack.c.b16 %v979, %v977
      %v1030 = vpack.c.b16 %v982, %v980
      %v1031 = vpack.c.b16 %v983, %v981
      %v1032 = vpack.c.b16 %v986, %v984
      %v1033 = vpack.c.b16 %v987, %v985
      %v1034 = vpack.c.b16 %v990, %v988
      %v1035 = vpack.c.b16 %v991, %v989
      %v1036 = vpack.c.b16 %v994, %v992
      %v1037 = vpack.c.b16 %v995, %v993
      %v1038 = vpack.c.b16 %v998, %v996
      %v1039 = vpack.c.b16 %v999, %v997
      %v1040 = vpack.c.b16 %v1002, %v1000
      %v1041 = vpack.c.b16 %v1003, %v1001
      %v1042 = vpack.c.b16 %v1006, %v1004
      %v1043 = vpack.c.b16 %v1007, %v1005
      %v1044 = vpack.c.b16 %v1010, %v1008
      %v1045 = vpack.c.b16 %v1011, %v1009
      %v1046 = vpack.c.b16 %v1014, %v1012
      %v1047 = vpack.c.b16 %v1015, %v1013
      %1080 = vmatprep.subr.bf16.mxu0 %v1031
      %1081 = vmatpush1.bf16.msra.mxu0 %v1030
      %1082 = vmatprep.subr.bf16.mxu0 %v1029
      %1083 = vmatpush1.bf16.msra.mxu0 %v1028
      %1084 = vmatprep.subr.bf16.mxu0 %v1027
      %1085 = vmatpush1.bf16.msra.mxu0 %v1026
      %1086 = vmatprep.subr.bf16.mxu0 %v1025
      %1087 = vmatpush1.bf16.msra.mxu0 %v1024
      %1088 = vmatprep.subr.bf16.mxu0 %v1023
      %1089 = vmatpush1.bf16.msra.mxu0 %v1022
      %1090 = vmatprep.subr.bf16.mxu0 %v1021
      %1091 = vmatpush1.bf16.msra.mxu0 %v1020
      %1092 = vmatprep.subr.bf16.mxu0 %v1019
      %1093 = vmatpush1.bf16.msra.mxu0 %v1018
      %1094 = vmatprep.subr.bf16.mxu0 %v1017
      %1095 = vmatpush1.bf16.msra.mxu0 %v1016
      %1096 = vmatprep.subr.bf16.mxu0 %v1047
      %1097 = vmatpush2.bf16.msra.mxu0 %v1046
      %1098 = vmatprep.subr.bf16.mxu0 %v1045
      %1099 = vmatpush2.bf16.msra.mxu0 %v1044
      %1100 = vmatprep.subr.bf16.mxu0 %v1043
      %1101 = vmatpush2.bf16.msra.mxu0 %v1042
      %1102 = vmatprep.subr.bf16.mxu0 %v1041
      %1103 = vmatpush2.bf16.msra.mxu0 %v1040
      %1104 = vmatprep.subr.bf16.mxu0 %v1039
      %1105 = vmatpush2.bf16.msra.mxu0 %v1038
      %1106 = vmatprep.subr.bf16.mxu0 %v1037
      %1107 = vmatpush2.bf16.msra.mxu0 %v1036
      %1108 = vmatprep.subr.bf16.mxu0 %v1035
      %1109 = vmatpush2.bf16.msra.mxu0 %v1034
      %1110 = vmatprep.subr.bf16.mxu0 %v1033
      %1111 = vmatpush2.bf16.msra.mxu0 %v1032
      %1112 = vmatprep.mubr.bf16.mxu0 %v917
      %1113 = vmatmul.mubr.bf16.gmra.mxu0 %v914
      %v1114 = vpop.f32.mrf.mxu0
      %v1115 = vadd.f32 0.0, %v1114
      %v1116 = vpop.f32.mrf.mxu0
      %v1117 = vadd.f32 0.0, %v1116
      %v1118 = vpop.f32.mrf.mxu0
      %v1119 = vadd.f32 0.0, %v1118
      %v1120 = vpop.f32.mrf.mxu0
      %v1121 = vadd.f32 0.0, %v1120
      %1122 = vdwg.mxu0
      %1124 = vset.pattern.permute.xlu0 0
      %1125 = vperm.xlu0 %1124, %v328
      %v1126 = vpop.permute.xlu0 %1125
      %1129 = vset.pattern.permute.xlu0 0
      %1130 = vperm.xlu0 %1129, %v329
      %v1131 = vpop.permute.xlu0 %1130
      %v1133 = vmul.f32 %v1115, %v1126
      %v1134 = vmul.f32 %v1117, %v1126
      %v1135 = vmul.f32 %v1119, %v1131
      %v1136 = vmul.f32 %v1121, %v1131
      %v1137 = vadd.f32 %v862, %v1133
      %v1138 = vadd.f32 %v863, %v1134
      %v1139 = vadd.f32 %v864, %v1135
      %v1140 = vadd.f32 %v865, %v1136
      %v1141 = vld [vmem:[%s293] sm:$0xf0]
      %v1142 = vld [vmem:[%s293 + $0x8] sm:$0xf0]
      %v1143 = vld [vmem:[%s293 + $0x20] sm:$0xf]
      %v1144 = vld [vmem:[%s293 + $0x28] sm:$0xf]
      %v1145 = vpack.c.bf16 %v591, %v1141
      %v1146 = vpack.c.bf16 %v592, %v1142
      %v1147 = vpack.c.bf16 %v1143, %v1143
      %v1148 = vpack.c.bf16 %v1144, %v1144
      %s1149 = scalar_lea.vmem %s298, 768
      %v1150 = vld [vmem:[%s1149] sm:$0xff]
      %v1151 = vld [vmem:[%s1149 + $0x8] sm:$0xff]
      %v1152 = vld [vmem:[%s1149 + $0x10] sm:$0xff]
      %v1153 = vld [vmem:[%s1149 + $0x18] sm:$0xff]
      %v1154 = vld [vmem:[%s1149 + $0x20] sm:$0xff]
      %v1155 = vld [vmem:[%s1149 + $0x28] sm:$0xff]
      %v1156 = vld [vmem:[%s1149 + $0x30] sm:$0xff]
      %v1157 = vld [vmem:[%s1149 + $0x38] sm:$0xff]
      %v1158 = vld [vmem:[%s1149 + $0x40] sm:$0xff]
      %v1159 = vld [vmem:[%s1149 + $0x48] sm:$0xff]
      %v1160 = vld [vmem:[%s1149 + $0x50] sm:$0xff]
      %v1161 = vld [vmem:[%s1149 + $0x58] sm:$0xff]
      %v1162 = vld [vmem:[%s1149 + $0x60] sm:$0xff]
      %v1163 = vld [vmem:[%s1149 + $0x68] sm:$0xff]
      %v1164 = vld [vmem:[%s1149 + $0x70] sm:$0xff]
      %v1165 = vld [vmem:[%s1149 + $0x78] sm:$0xff]
      %v1166 = vld [vmem:[%s1149 + $0x80] sm:$0xff]
      %v1167 = vld [vmem:[%s1149 + $0x88] sm:$0xff]
      %v1168 = vld [vmem:[%s1149 + $0x90] sm:$0xff]
      %v1169 = vld [vmem:[%s1149 + $0x98] sm:$0xff]
      %v1170 = vld [vmem:[%s1149 + $0xa0] sm:$0xff]
      %v1171 = vld [vmem:[%s1149 + $0xa8] sm:$0xff]
      %v1172 = vld [vmem:[%s1149 + $0xb0] sm:$0xff]
      %v1173 = vld [vmem:[%s1149 + $0xb8] sm:$0xff]
      %v1174 = vld [vmem:[%s1149 + $0xc0] sm:$0xff]
      %v1175 = vld [vmem:[%s1149 + $0xc8] sm:$0xff]
      %v1176 = vld [vmem:[%s1149 + $0xd0] sm:$0xff]
      %v1177 = vld [vmem:[%s1149 + $0xd8] sm:$0xff]
      %v1178 = vld [vmem:[%s1149 + $0xe0] sm:$0xff]
      %v1179 = vld [vmem:[%s1149 + $0xe8] sm:$0xff]
      %v1180 = vld [vmem:[%s1149 + $0xf0] sm:$0xff]
      %v1181 = vld [vmem:[%s1149 + $0xf8] sm:$0xff]
      %vm1186 = vcmask 1045504
      %v1187 = vrot.slane %v1145, 2
      %v1188 = vrot.slane %v1147, 2
      %v1189 = vsel %vm1186, %v1187, %v1188
      %v1190 = vrot.slane %v1146, 2
      %v1191 = vrot.slane %v1148, 2
      %v1192 = vsel %vm1186, %v1190, %v1191
      %v1227 = vunpack.c.l.b16 %v1150
      %v1228 = vunpack.c.h.b16 %v1150
      %v1229 = vunpack.c.l.b16 %v1151
      %v1230 = vunpack.c.h.b16 %v1151
      %v1231 = vunpack.c.l.b16 %v1152
      %v1232 = vunpack.c.h.b16 %v1152
      %v1233 = vunpack.c.l.b16 %v1153
      %v1234 = vunpack.c.h.b16 %v1153
      %v1235 = vunpack.c.l.b16 %v1154
      %v1236 = vunpack.c.h.b16 %v1154
      %v1237 = vunpack.c.l.b16 %v1155
      %v1238 = vunpack.c.h.b16 %v1155
      %v1239 = vunpack.c.l.b16 %v1156
      %v1240 = vunpack.c.h.b16 %v1156
      %v1241 = vunpack.c.l.b16 %v1157
      %v1242 = vunpack.c.h.b16 %v1157
      %v1243 = vunpack.c.l.b16 %v1158
      %v1244 = vunpack.c.h.b16 %v1158
      %v1245 = vunpack.c.l.b16 %v1159
      %v1246 = vunpack.c.h.b16 %v1159
      %v1247 = vunpack.c.l.b16 %v1160
      %v1248 = vunpack.c.h.b16 %v1160
      %v1249 = vunpack.c.l.b16 %v1161
      %v1250 = vunpack.c.h.b16 %v1161
      %v1251 = vunpack.c.l.b16 %v1162
      %v1252 = vunpack.c.h.b16 %v1162
      %v1253 = vunpack.c.l.b16 %v1163
      %v1254 = vunpack.c.h.b16 %v1163
      %v1255 = vunpack.c.l.b16 %v1164
      %v1256 = vunpack.c.h.b16 %v1164
      %v1257 = vunpack.c.l.b16 %v1165
      %v1258 = vunpack.c.h.b16 %v1165
      %v1259 = vunpack.c.l.b16 %v1166
      %v1260 = vunpack.c.h.b16 %v1166
      %v1261 = vunpack.c.l.b16 %v1167
      %v1262 = vunpack.c.h.b16 %v1167
      %v1263 = vunpack.c.l.b16 %v1168
      %v1264 = vunpack.c.h.b16 %v1168
      %v1265 = vunpack.c.l.b16 %v1169
      %v1266 = vunpack.c.h.b16 %v1169
      %v1267 = vunpack.c.l.b16 %v1170
      %v1268 = vunpack.c.h.b16 %v1170
      %v1269 = vunpack.c.l.b16 %v1171
      %v1270 = vunpack.c.h.b16 %v1171
      %v1271 = vunpack.c.l.b16 %v1172
      %v1272 = vunpack.c.h.b16 %v1172
      %v1273 = vunpack.c.l.b16 %v1173
      %v1274 = vunpack.c.h.b16 %v1173
      %v1275 = vunpack.c.l.b16 %v1174
      %v1276 = vunpack.c.h.b16 %v1174
      %v1277 = vunpack.c.l.b16 %v1175
      %v1278 = vunpack.c.h.b16 %v1175
      %v1279 = vunpack.c.l.b16 %v1176
      %v1280 = vunpack.c.h.b16 %v1176
      %v1281 = vunpack.c.l.b16 %v1177
      %v1282 = vunpack.c.h.b16 %v1177
      %v1283 = vunpack.c.l.b16 %v1178
      %v1284 = vunpack.c.h.b16 %v1178
      %v1285 = vunpack.c.l.b16 %v1179
      %v1286 = vunpack.c.h.b16 %v1179
      %v1287 = vunpack.c.l.b16 %v1180
      %v1288 = vunpack.c.h.b16 %v1180
      %v1289 = vunpack.c.l.b16 %v1181
      %v1290 = vunpack.c.h.b16 %v1181
      %v1291 = vpack.c.b16 %v1229, %v1227
      %v1292 = vpack.c.b16 %v1230, %v1228
      %v1293 = vpack.c.b16 %v1233, %v1231
      %v1294 = vpack.c.b16 %v1234, %v1232
      %v1295 = vpack.c.b16 %v1237, %v1235
      %v1296 = vpack.c.b16 %v1238, %v1236
      %v1297 = vpack.c.b16 %v1241, %v1239
      %v1298 = vpack.c.b16 %v1242, %v1240
      %v1299 = vpack.c.b16 %v1245, %v1243
      %v1300 = vpack.c.b16 %v1246, %v1244
      %v1301 = vpack.c.b16 %v1249, %v1247
      %v1302 = vpack.c.b16 %v1250, %v1248
      %v1303 = vpack.c.b16 %v1253, %v1251
      %v1304 = vpack.c.b16 %v1254, %v1252
      %v1305 = vpack.c.b16 %v1257, %v1255
      %v1306 = vpack.c.b16 %v1258, %v1256
      %v1307 = vpack.c.b16 %v1261, %v1259
      %v1308 = vpack.c.b16 %v1262, %v1260
      %v1309 = vpack.c.b16 %v1265, %v1263
      %v1310 = vpack.c.b16 %v1266, %v1264
      %v1311 = vpack.c.b16 %v1269, %v1267
      %v1312 = vpack.c.b16 %v1270, %v1268
      %v1313 = vpack.c.b16 %v1273, %v1271
      %v1314 = vpack.c.b16 %v1274, %v1272
      %v1315 = vpack.c.b16 %v1277, %v1275
      %v1316 = vpack.c.b16 %v1278, %v1276
      %v1317 = vpack.c.b16 %v1281, %v1279
      %v1318 = vpack.c.b16 %v1282, %v1280
      %v1319 = vpack.c.b16 %v1285, %v1283
      %v1320 = vpack.c.b16 %v1286, %v1284
      %v1321 = vpack.c.b16 %v1289, %v1287
      %v1322 = vpack.c.b16 %v1290, %v1288
      %1355 = vmatprep.subr.bf16.mxu0 %v1306
      %1356 = vmatpush1.bf16.msra.mxu0 %v1305
      %1357 = vmatprep.subr.bf16.mxu0 %v1304
      %1358 = vmatpush1.bf16.msra.mxu0 %v1303
      %1359 = vmatprep.subr.bf16.mxu0 %v1302
      %1360 = vmatpush1.bf16.msra.mxu0 %v1301
      %1361 = vmatprep.subr.bf16.mxu0 %v1300
      %1362 = vmatpush1.bf16.msra.mxu0 %v1299
      %1363 = vmatprep.subr.bf16.mxu0 %v1298
      %1364 = vmatpush1.bf16.msra.mxu0 %v1297
      %1365 = vmatprep.subr.bf16.mxu0 %v1296
      %1366 = vmatpush1.bf16.msra.mxu0 %v1295
      %1367 = vmatprep.subr.bf16.mxu0 %v1294
      %1368 = vmatpush1.bf16.msra.mxu0 %v1293
      %1369 = vmatprep.subr.bf16.mxu0 %v1292
      %1370 = vmatpush1.bf16.msra.mxu0 %v1291
      %1371 = vmatprep.subr.bf16.mxu0 %v1322
      %1372 = vmatpush2.bf16.msra.mxu0 %v1321
      %1373 = vmatprep.subr.bf16.mxu0 %v1320
      %1374 = vmatpush2.bf16.msra.mxu0 %v1319
      %1375 = vmatprep.subr.bf16.mxu0 %v1318
      %1376 = vmatpush2.bf16.msra.mxu0 %v1317
      %1377 = vmatprep.subr.bf16.mxu0 %v1316
      %1378 = vmatpush2.bf16.msra.mxu0 %v1315
      %1379 = vmatprep.subr.bf16.mxu0 %v1314
      %1380 = vmatpush2.bf16.msra.mxu0 %v1313
      %1381 = vmatprep.subr.bf16.mxu0 %v1312
      %1382 = vmatpush2.bf16.msra.mxu0 %v1311
      %1383 = vmatprep.subr.bf16.mxu0 %v1310
      %1384 = vmatpush2.bf16.msra.mxu0 %v1309
      %1385 = vmatprep.subr.bf16.mxu0 %v1308
      %1386 = vmatpush2.bf16.msra.mxu0 %v1307
      %1387 = vmatprep.mubr.bf16.mxu0 %v1192
      %1388 = vmatmul.mubr.bf16.gmra.mxu0 %v1189
      %v1389 = vpop.f32.mrf.mxu0
      %v1390 = vadd.f32 0.0, %v1389
      %v1391 = vpop.f32.mrf.mxu0
      %v1392 = vadd.f32 0.0, %v1391
      %v1393 = vpop.f32.mrf.mxu0
      %v1394 = vadd.f32 0.0, %v1393
      %v1395 = vpop.f32.mrf.mxu0
      %v1396 = vadd.f32 0.0, %v1395
      %1397 = vdwg.mxu0
      %v1398 = vmul.f32 %v1390, %v574
      %v1399 = vmul.f32 %v1392, %v574
      %v1400 = vmul.f32 %v1394, %v579
      %v1401 = vmul.f32 %v1396, %v579
      %v1402 = vadd.f32 %v1137, %v1398
      %v1403 = vadd.f32 %v1138, %v1399
      %v1404 = vadd.f32 %v1139, %v1400
      %v1405 = vadd.f32 %v1140, %v1401
      %v1406 = vld [vmem:[%s293] sm:$0xe0]
      %v1407 = vld [vmem:[%s293 + $0x8] sm:$0xe0]
      %v1408 = vld [vmem:[%s293 + $0x20] sm:$0x1f]
      %v1409 = vld [vmem:[%s293 + $0x28] sm:$0x1f]
      %v1410 = vpack.c.bf16 %v591, %v1406
      %v1411 = vpack.c.bf16 %v592, %v1407
      %v1412 = vpack.c.bf16 %v1408, %v1408
      %v1413 = vpack.c.bf16 %v1409, %v1409
      %s1414 = scalar_lea.vmem %s298, 1024
      %v1415 = vld [vmem:[%s1414] sm:$0xff]
      %v1416 = vld [vmem:[%s1414 + $0x8] sm:$0xff]
      %v1417 = vld [vmem:[%s1414 + $0x10] sm:$0xff]
      %v1418 = vld [vmem:[%s1414 + $0x18] sm:$0xff]
      %v1419 = vld [vmem:[%s1414 + $0x20] sm:$0xff]
      %v1420 = vld [vmem:[%s1414 + $0x28] sm:$0xff]
      %v1421 = vld [vmem:[%s1414 + $0x30] sm:$0xff]
      %v1422 = vld [vmem:[%s1414 + $0x38] sm:$0xff]
      %v1423 = vld [vmem:[%s1414 + $0x40] sm:$0xff]
      %v1424 = vld [vmem:[%s1414 + $0x48] sm:$0xff]
      %v1425 = vld [vmem:[%s1414 + $0x50] sm:$0xff]
      %v1426 = vld [vmem:[%s1414 + $0x58] sm:$0xff]
      %v1427 = vld [vmem:[%s1414 + $0x60] sm:$0xff]
      %v1428 = vld [vmem:[%s1414 + $0x68] sm:$0xff]
      %v1429 = vld [vmem:[%s1414 + $0x70] sm:$0xff]
      %v1430 = vld [vmem:[%s1414 + $0x78] sm:$0xff]
      %v1431 = vld [vmem:[%s1414 + $0x80] sm:$0xff]
      %v1432 = vld [vmem:[%s1414 + $0x88] sm:$0xff]
      %v1433 = vld [vmem:[%s1414 + $0x90] sm:$0xff]
      %v1434 = vld [vmem:[%s1414 + $0x98] sm:$0xff]
      %v1435 = vld [vmem:[%s1414 + $0xa0] sm:$0xff]
      %v1436 = vld [vmem:[%s1414 + $0xa8] sm:$0xff]
      %v1437 = vld [vmem:[%s1414 + $0xb0] sm:$0xff]
      %v1438 = vld [vmem:[%s1414 + $0xb8] sm:$0xff]
      %v1439 = vld [vmem:[%s1414 + $0xc0] sm:$0xff]
      %v1440 = vld [vmem:[%s1414 + $0xc8] sm:$0xff]
      %v1441 = vld [vmem:[%s1414 + $0xd0] sm:$0xff]
      %v1442 = vld [vmem:[%s1414 + $0xd8] sm:$0xff]
      %v1443 = vld [vmem:[%s1414 + $0xe0] sm:$0xff]
      %v1444 = vld [vmem:[%s1414 + $0xe8] sm:$0xff]
      %v1445 = vld [vmem:[%s1414 + $0xf0] sm:$0xff]
      %v1446 = vld [vmem:[%s1414 + $0xf8] sm:$0xff]
      %vm1447 = vsmask.f32 5376
      %v1449 = vshrl.u32 %v1410, 16
      %v1451 = vrot.slane %v1449, 2
      %v1452 = vshll.u32 %v1410, 16
      %v1454 = vrot.slane %v1452, 3
      %v1455 = vor.u32 %v1451, %v1454
      %v1457 = vshrl.u32 %v1412, 16
      %v1459 = vrot.slane %v1457, 2
      %v1460 = vshll.u32 %v1412, 16
      %v1462 = vrot.slane %v1460, 3
      %v1463 = vor.u32 %v1459, %v1462
      %v1464 = vsel %vm1447, %v1455, %v1463
      %v1466 = vshrl.u32 %v1411, 16
      %v1468 = vrot.slane %v1466, 2
      %v1469 = vshll.u32 %v1411, 16
      %v1471 = vrot.slane %v1469, 3
      %v1472 = vor.u32 %v1468, %v1471
      %v1474 = vshrl.u32 %v1413, 16
      %v1476 = vrot.slane %v1474, 2
      %v1477 = vshll.u32 %v1413, 16
      %v1479 = vrot.slane %v1477, 3
      %v1480 = vor.u32 %v1476, %v1479
      %v1481 = vsel %vm1447, %v1472, %v1480
      %v1516 = vunpack.c.l.b16 %v1415
      %v1517 = vunpack.c.h.b16 %v1415
      %v1518 = vunpack.c.l.b16 %v1416
      %v1519 = vunpack.c.h.b16 %v1416
      %v1520 = vunpack.c.l.b16 %v1417
      %v1521 = vunpack.c.h.b16 %v1417
      %v1522 = vunpack.c.l.b16 %v1418
      %v1523 = vunpack.c.h.b16 %v1418
      %v1524 = vunpack.c.l.b16 %v1419
      %v1525 = vunpack.c.h.b16 %v1419
      %v1526 = vunpack.c.l.b16 %v1420
      %v1527 = vunpack.c.h.b16 %v1420
      %v1528 = vunpack.c.l.b16 %v1421
      %v1529 = vunpack.c.h.b16 %v1421
      %v1530 = vunpack.c.l.b16 %v1422
      %v1531 = vunpack.c.h.b16 %v1422
      %v1532 = vunpack.c.l.b16 %v1423
      %v1533 = vunpack.c.h.b16 %v1423
      %v1534 = vunpack.c.l.b16 %v1424
      %v1535 = vunpack.c.h.b16 %v1424
      %v1536 = vunpack.c.l.b16 %v1425
      %v1537 = vunpack.c.h.b16 %v1425
      %v1538 = vunpack.c.l.b16 %v1426
      %v1539 = vunpack.c.h.b16 %v1426
      %v1540 = vunpack.c.l.b16 %v1427
      %v1541 = vunpack.c.h.b16 %v1427
      %v1542 = vunpack.c.l.b16 %v1428
      %v1543 = vunpack.c.h.b16 %v1428
      %v1544 = vunpack.c.l.b16 %v1429
      %v1545 = vunpack.c.h.b16 %v1429
      %v1546 = vunpack.c.l.b16 %v1430
      %v1547 = vunpack.c.h.b16 %v1430
      %v1548 = vunpack.c.l.b16 %v1431
      %v1549 = vunpack.c.h.b16 %v1431
      %v1550 = vunpack.c.l.b16 %v1432
      %v1551 = vunpack.c.h.b16 %v1432
      %v1552 = vunpack.c.l.b16 %v1433
      %v1553 = vunpack.c.h.b16 %v1433
      %v1554 = vunpack.c.l.b16 %v1434
      %v1555 = vunpack.c.h.b16 %v1434
      %v1556 = vunpack.c.l.b16 %v1435
      %v1557 = vunpack.c.h.b16 %v1435
      %v1558 = vunpack.c.l.b16 %v1436
      %v1559 = vunpack.c.h.b16 %v1436
      %v1560 = vunpack.c.l.b16 %v1437
      %v1561 = vunpack.c.h.b16 %v1437
      %v1562 = vunpack.c.l.b16 %v1438
      %v1563 = vunpack.c.h.b16 %v1438
      %v1564 = vunpack.c.l.b16 %v1439
      %v1565 = vunpack.c.h.b16 %v1439
      %v1566 = vunpack.c.l.b16 %v1440
      %v1567 = vunpack.c.h.b16 %v1440
      %v1568 = vunpack.c.l.b16 %v1441
      %v1569 = vunpack.c.h.b16 %v1441
      %v1570 = vunpack.c.l.b16 %v1442
      %v1571 = vunpack.c.h.b16 %v1442
      %v1572 = vunpack.c.l.b16 %v1443
      %v1573 = vunpack.c.h.b16 %v1443
      %v1574 = vunpack.c.l.b16 %v1444
      %v1575 = vunpack.c.h.b16 %v1444
      %v1576 = vunpack.c.l.b16 %v1445
      %v1577 = vunpack.c.h.b16 %v1445
      %v1578 = vunpack.c.l.b16 %v1446
      %v1579 = vunpack.c.h.b16 %v1446
      %v1580 = vpack.c.b16 %v1518, %v1516
      %v1581 = vpack.c.b16 %v1519, %v1517
      %v1582 = vpack.c.b16 %v1522, %v1520
      %v1583 = vpack.c.b16 %v1523, %v1521
      %v1584 = vpack.c.b16 %v1526, %v1524
      %v1585 = vpack.c.b16 %v1527, %v1525
      %v1586 = vpack.c.b16 %v1530, %v1528
      %v1587 = vpack.c.b16 %v1531, %v1529
      %v1588 = vpack.c.b16 %v1534, %v1532
      %v1589 = vpack.c.b16 %v1535, %v1533
      %v1590 = vpack.c.b16 %v1538, %v1536
      %v1591 = vpack.c.b16 %v1539, %v1537
      %v1592 = vpack.c.b16 %v1542, %v1540
      %v1593 = vpack.c.b16 %v1543, %v1541
      %v1594 = vpack.c.b16 %v1546, %v1544
      %v1595 = vpack.c.b16 %v1547, %v1545
      %v1596 = vpack.c.b16 %v1550, %v1548
      %v1597 = vpack.c.b16 %v1551, %v1549
      %v1598 = vpack.c.b16 %v1554, %v1552
      %v1599 = vpack.c.b16 %v1555, %v1553
      %v1600 = vpack.c.b16 %v1558, %v1556
      %v1601 = vpack.c.b16 %v1559, %v1557
      %v1602 = vpack.c.b16 %v1562, %v1560
      %v1603 = vpack.c.b16 %v1563, %v1561
      %v1604 = vpack.c.b16 %v1566, %v1564
      %v1605 = vpack.c.b16 %v1567, %v1565
      %v1606 = vpack.c.b16 %v1570, %v1568
      %v1607 = vpack.c.b16 %v1571, %v1569
      %v1608 = vpack.c.b16 %v1574, %v1572
      %v1609 = vpack.c.b16 %v1575, %v1573
      %v1610 = vpack.c.b16 %v1578, %v1576
      %v1611 = vpack.c.b16 %v1579, %v1577
      %1644 = vmatprep.subr.bf16.mxu0 %v1595
      %1645 = vmatpush1.bf16.msra.mxu0 %v1594
      %1646 = vmatprep.subr.bf16.mxu0 %v1593
      %1647 = vmatpush1.bf16.msra.mxu0 %v1592
      %1648 = vmatprep.subr.bf16.mxu0 %v1591
      %1649 = vmatpush1.bf16.msra.mxu0 %v1590
      %1650 = vmatprep.subr.bf16.mxu0 %v1589
      %1651 = vmatpush1.bf16.msra.mxu0 %v1588
      %1652 = vmatprep.subr.bf16.mxu0 %v1587
      %1653 = vmatpush1.bf16.msra.mxu0 %v1586
      %1654 = vmatprep.subr.bf16.mxu0 %v1585
      %1655 = vmatpush1.bf16.msra.mxu0 %v1584
      %1656 = vmatprep.subr.bf16.mxu0 %v1583
      %1657 = vmatpush1.bf16.msra.mxu0 %v1582
      %1658 = vmatprep.subr.bf16.mxu0 %v1581
      %1659 = vmatpush1.bf16.msra.mxu0 %v1580
      %1660 = vmatprep.subr.bf16.mxu0 %v1611
      %1661 = vmatpush2.bf16.msra.mxu0 %v1610
      %1662 = vmatprep.subr.bf16.mxu0 %v1609
      %1663 = vmatpush2.bf16.msra.mxu0 %v1608
      %1664 = vmatprep.subr.bf16.mxu0 %v1607
      %1665 = vmatpush2.bf16.msra.mxu0 %v1606
      %1666 = vmatprep.subr.bf16.mxu0 %v1605
      %1667 = vmatpush2.bf16.msra.mxu0 %v1604
      %1668 = vmatprep.subr.bf16.mxu0 %v1603
      %1669 = vmatpush2.bf16.msra.mxu0 %v1602
      %1670 = vmatprep.subr.bf16.mxu0 %v1601
      %1671 = vmatpush2.bf16.msra.mxu0 %v1600
      %1672 = vmatprep.subr.bf16.mxu0 %v1599
      %1673 = vmatpush2.bf16.msra.mxu0 %v1598
      %1674 = vmatprep.subr.bf16.mxu0 %v1597
      %1675 = vmatpush2.bf16.msra.mxu0 %v1596
      %1676 = vmatprep.mubr.bf16.mxu0 %v1481
      %1677 = vmatmul.mubr.bf16.gmra.mxu0 %v1464
      %v1678 = vpop.f32.mrf.mxu0
      %v1679 = vadd.f32 0.0, %v1678
      %v1680 = vpop.f32.mrf.mxu0
      %v1681 = vadd.f32 0.0, %v1680
      %v1682 = vpop.f32.mrf.mxu0
      %v1683 = vadd.f32 0.0, %v1682
      %v1684 = vpop.f32.mrf.mxu0
      %v1685 = vadd.f32 0.0, %v1684
      %1686 = vdwg.mxu0
      %v1687 = vadd.f32 %v1402, %v1679
      %v1688 = vadd.f32 %v1403, %v1681
      %v1689 = vadd.f32 %v1404, %v1683
      %v1690 = vadd.f32 %v1405, %v1685
      %v1691 = vld [vmem:[%s293] sm:$0xc0]
      %v1692 = vld [vmem:[%s293 + $0x8] sm:$0xc0]
      %v1693 = vld [vmem:[%s293 + $0x20] sm:$0x3f]
      %v1694 = vld [vmem:[%s293 + $0x28] sm:$0x3f]
      %v1695 = vpack.c.bf16 %v591, %v1691
      %v1696 = vpack.c.bf16 %v592, %v1692
      %v1697 = vpack.c.bf16 %v1693, %v1693
      %v1698 = vpack.c.bf16 %v1694, %v1694
      %s1699 = scalar_lea.vmem %s298, 1280
      %v1700 = vld [vmem:[%s1699] sm:$0xff]
      %v1701 = vld [vmem:[%s1699 + $0x8] sm:$0xff]
      %v1702 = vld [vmem:[%s1699 + $0x10] sm:$0xff]
      %v1703 = vld [vmem:[%s1699 + $0x18] sm:$0xff]
      %v1704 = vld [vmem:[%s1699 + $0x20] sm:$0xff]
      %v1705 = vld [vmem:[%s1699 + $0x28] sm:$0xff]
      %v1706 = vld [vmem:[%s1699 + $0x30] sm:$0xff]
      %v1707 = vld [vmem:[%s1699 + $0x38] sm:$0xff]
      %v1708 = vld [vmem:[%s1699 + $0x40] sm:$0xff]
      %v1709 = vld [vmem:[%s1699 + $0x48] sm:$0xff]
      %v1710 = vld [vmem:[%s1699 + $0x50] sm:$0xff]
      %v1711 = vld [vmem:[%s1699 + $0x58] sm:$0xff]
      %v1712 = vld [vmem:[%s1699 + $0x60] sm:$0xff]
      %v1713 = vld [vmem:[%s1699 + $0x68] sm:$0xff]
      %v1714 = vld [vmem:[%s1699 + $0x70] sm:$0xff]
      %v1715 = vld [vmem:[%s1699 + $0x78] sm:$0xff]
      %v1716 = vld [vmem:[%s1699 + $0x80] sm:$0xff]
      %v1717 = vld [vmem:[%s1699 + $0x88] sm:$0xff]
      %v1718 = vld [vmem:[%s1699 + $0x90] sm:$0xff]
      %v1719 = vld [vmem:[%s1699 + $0x98] sm:$0xff]
      %v1720 = vld [vmem:[%s1699 + $0xa0] sm:$0xff]
      %v1721 = vld [vmem:[%s1699 + $0xa8] sm:$0xff]
      %v1722 = vld [vmem:[%s1699 + $0xb0] sm:$0xff]
      %v1723 = vld [vmem:[%s1699 + $0xb8] sm:$0xff]
      %v1724 = vld [vmem:[%s1699 + $0xc0] sm:$0xff]
      %v1725 = vld [vmem:[%s1699 + $0xc8] sm:$0xff]
      %v1726 = vld [vmem:[%s1699 + $0xd0] sm:$0xff]
      %v1727 = vld [vmem:[%s1699 + $0xd8] sm:$0xff]
      %v1728 = vld [vmem:[%s1699 + $0xe0] sm:$0xff]
      %v1729 = vld [vmem:[%s1699 + $0xe8] sm:$0xff]
      %v1730 = vld [vmem:[%s1699 + $0xf0] sm:$0xff]
      %v1731 = vld [vmem:[%s1699 + $0xf8] sm:$0xff]
      %vm1736 = vcmask 1044480
      %v1737 = vrot.slane %v1695, 3
      %v1738 = vrot.slane %v1697, 3
      %v1739 = vsel %vm1736, %v1737, %v1738
      %v1740 = vrot.slane %v1696, 3
      %v1741 = vrot.slane %v1698, 3
      %v1742 = vsel %vm1736, %v1740, %v1741
      %v1777 = vunpack.c.l.b16 %v1700
      %v1778 = vunpack.c.h.b16 %v1700
      %v1779 = vunpack.c.l.b16 %v1701
      %v1780 = vunpack.c.h.b16 %v1701
      %v1781 = vunpack.c.l.b16 %v1702
      %v1782 = vunpack.c.h.b16 %v1702
      %v1783 = vunpack.c.l.b16 %v1703
      %v1784 = vunpack.c.h.b16 %v1703
      %v1785 = vunpack.c.l.b16 %v1704
      %v1786 = vunpack.c.h.b16 %v1704
      %v1787 = vunpack.c.l.b16 %v1705
      %v1788 = vunpack.c.h.b16 %v1705
      %v1789 = vunpack.c.l.b16 %v1706
      %v1790 = vunpack.c.h.b16 %v1706
      %v1791 = vunpack.c.l.b16 %v1707
      %v1792 = vunpack.c.h.b16 %v1707
      %v1793 = vunpack.c.l.b16 %v1708
      %v1794 = vunpack.c.h.b16 %v1708
      %v1795 = vunpack.c.l.b16 %v1709
      %v1796 = vunpack.c.h.b16 %v1709
      %v1797 = vunpack.c.l.b16 %v1710
      %v1798 = vunpack.c.h.b16 %v1710
      %v1799 = vunpack.c.l.b16 %v1711
      %v1800 = vunpack.c.h.b16 %v1711
      %v1801 = vunpack.c.l.b16 %v1712
      %v1802 = vunpack.c.h.b16 %v1712
      %v1803 = vunpack.c.l.b16 %v1713
      %v1804 = vunpack.c.h.b16 %v1713
      %v1805 = vunpack.c.l.b16 %v1714
      %v1806 = vunpack.c.h.b16 %v1714
      %v1807 = vunpack.c.l.b16 %v1715
      %v1808 = vunpack.c.h.b16 %v1715
      %v1809 = vunpack.c.l.b16 %v1716
      %v1810 = vunpack.c.h.b16 %v1716
      %v1811 = vunpack.c.l.b16 %v1717
      %v1812 = vunpack.c.h.b16 %v1717
      %v1813 = vunpack.c.l.b16 %v1718
      %v1814 = vunpack.c.h.b16 %v1718
      %v1815 = vunpack.c.l.b16 %v1719
      %v1816 = vunpack.c.h.b16 %v1719
      %v1817 = vunpack.c.l.b16 %v1720
      %v1818 = vunpack.c.h.b16 %v1720
      %v1819 = vunpack.c.l.b16 %v1721
      %v1820 = vunpack.c.h.b16 %v1721
      %v1821 = vunpack.c.l.b16 %v1722
      %v1822 = vunpack.c.h.b16 %v1722
      %v1823 = vunpack.c.l.b16 %v1723
      %v1824 = vunpack.c.h.b16 %v1723
      %v1825 = vunpack.c.l.b16 %v1724
      %v1826 = vunpack.c.h.b16 %v1724
      %v1827 = vunpack.c.l.b16 %v1725
      %v1828 = vunpack.c.h.b16 %v1725
      %v1829 = vunpack.c.l.b16 %v1726
      %v1830 = vunpack.c.h.b16 %v1726
      %v1831 = vunpack.c.l.b16 %v1727
      %v1832 = vunpack.c.h.b16 %v1727
      %v1833 = vunpack.c.l.b16 %v1728
      %v1834 = vunpack.c.h.b16 %v1728
      %v1835 = vunpack.c.l.b16 %v1729
      %v1836 = vunpack.c.h.b16 %v1729
      %v1837 = vunpack.c.l.b16 %v1730
      %v1838 = vunpack.c.h.b16 %v1730
      %v1839 = vunpack.c.l.b16 %v1731
      %v1840 = vunpack.c.h.b16 %v1731
      %v1841 = vpack.c.b16 %v1779, %v1777
      %v1842 = vpack.c.b16 %v1780, %v1778
      %v1843 = vpack.c.b16 %v1783, %v1781
      %v1844 = vpack.c.b16 %v1784, %v1782
      %v1845 = vpack.c.b16 %v1787, %v1785
      %v1846 = vpack.c.b16 %v1788, %v1786
      %v1847 = vpack.c.b16 %v1791, %v1789
      %v1848 = vpack.c.b16 %v1792, %v1790
      %v1849 = vpack.c.b16 %v1795, %v1793
      %v1850 = vpack.c.b16 %v1796, %v1794
      %v1851 = vpack.c.b16 %v1799, %v1797
      %v1852 = vpack.c.b16 %v1800, %v1798
      %v1853 = vpack.c.b16 %v1803, %v1801
      %v1854 = vpack.c.b16 %v1804, %v1802
      %v1855 = vpack.c.b16 %v1807, %v1805
      %v1856 = vpack.c.b16 %v1808, %v1806
      %v1857 = vpack.c.b16 %v1811, %v1809
      %v1858 = vpack.c.b16 %v1812, %v1810
      %v1859 = vpack.c.b16 %v1815, %v1813
      %v1860 = vpack.c.b16 %v1816, %v1814
      %v1861 = vpack.c.b16 %v1819, %v1817
      %v1862 = vpack.c.b16 %v1820, %v1818
      %v1863 = vpack.c.b16 %v1823, %v1821
      %v1864 = vpack.c.b16 %v1824, %v1822
      %v1865 = vpack.c.b16 %v1827, %v1825
      %v1866 = vpack.c.b16 %v1828, %v1826
      %v1867 = vpack.c.b16 %v1831, %v1829
      %v1868 = vpack.c.b16 %v1832, %v1830
      %v1869 = vpack.c.b16 %v1835, %v1833
      %v1870 = vpack.c.b16 %v1836, %v1834
      %v1871 = vpack.c.b16 %v1839, %v1837
      %v1872 = vpack.c.b16 %v1840, %v1838
      %1905 = vmatprep.subr.bf16.mxu0 %v1856
      %1906 = vmatpush1.bf16.msra.mxu0 %v1855
      %1907 = vmatprep.subr.bf16.mxu0 %v1854
      %1908 = vmatpush1.bf16.msra.mxu0 %v1853
      %1909 = vmatprep.subr.bf16.mxu0 %v1852
      %1910 = vmatpush1.bf16.msra.mxu0 %v1851
      %1911 = vmatprep.subr.bf16.mxu0 %v1850
      %1912 = vmatpush1.bf16.msra.mxu0 %v1849
      %1913 = vmatprep.subr.bf16.mxu0 %v1848
      %1914 = vmatpush1.bf16.msra.mxu0 %v1847
      %1915 = vmatprep.subr.bf16.mxu0 %v1846
      %1916 = vmatpush1.bf16.msra.mxu0 %v1845
      %1917 = vmatprep.subr.bf16.mxu0 %v1844
      %1918 = vmatpush1.bf16.msra.mxu0 %v1843
      %1919 = vmatprep.subr.bf16.mxu0 %v1842
      %1920 = vmatpush1.bf16.msra.mxu0 %v1841
      %1921 = vmatprep.subr.bf16.mxu0 %v1872
      %1922 = vmatpush2.bf16.msra.mxu0 %v1871
      %1923 = vmatprep.subr.bf16.mxu0 %v1870
      %1924 = vmatpush2.bf16.msra.mxu0 %v1869
      %1925 = vmatprep.subr.bf16.mxu0 %v1868
      %1926 = vmatpush2.bf16.msra.mxu0 %v1867
      %1927 = vmatprep.subr.bf16.mxu0 %v1866
      %1928 = vmatpush2.bf16.msra.mxu0 %v1865
      %1929 = vmatprep.subr.bf16.mxu0 %v1864
      %1930 = vmatpush2.bf16.msra.mxu0 %v1863
      %1931 = vmatprep.subr.bf16.mxu0 %v1862
      %1932 = vmatpush2.bf16.msra.mxu0 %v1861
      %1933 = vmatprep.subr.bf16.mxu0 %v1860
      %1934 = vmatpush2.bf16.msra.mxu0 %v1859
      %1935 = vmatprep.subr.bf16.mxu0 %v1858
      %1936 = vmatpush2.bf16.msra.mxu0 %v1857
      %1937 = vmatprep.mubr.bf16.mxu0 %v1742
      %1938 = vmatmul.mubr.bf16.gmra.mxu0 %v1739
      %v1939 = vpop.f32.mrf.mxu0
      %v1940 = vadd.f32 0.0, %v1939
      %v1941 = vpop.f32.mrf.mxu0
      %v1942 = vadd.f32 0.0, %v1941
      %v1943 = vpop.f32.mrf.mxu0
      %v1944 = vadd.f32 0.0, %v1943
      %v1945 = vpop.f32.mrf.mxu0
      %v1946 = vadd.f32 0.0, %v1945
      %1947 = vdwg.mxu0
      %v1948 = vmul.f32 %v1940, %v1126
      %v1949 = vmul.f32 %v1942, %v1126
      %v1950 = vmul.f32 %v1944, %v1131
      %v1951 = vmul.f32 %v1946, %v1131
      %v1952 = vadd.f32 %v1687, %v1948
      %v1953 = vadd.f32 %v1688, %v1949
      %v1954 = vadd.f32 %v1689, %v1950
      %v1955 = vadd.f32 %v1690, %v1951
      %v1956 = vld [vmem:[%s293 + $0x20] sm:$0xff]
      %v1957 = vld [vmem:[%s293 + $0x28] sm:$0xff]
      %v1958 = vpack.c.bf16 %v1956, %v591
      %v1959 = vpack.c.bf16 %v1957, %v592
      %s1960 = scalar_lea.vmem %s298, 1536
      %v1961 = vld [vmem:[%s1960] sm:$0xff]
      %v1962 = vld [vmem:[%s1960 + $0x8] sm:$0xff]
      %v1963 = vld [vmem:[%s1960 + $0x10] sm:$0xff]
      %v1964 = vld [vmem:[%s1960 + $0x18] sm:$0xff]
      %v1965 = vld [vmem:[%s1960 + $0x20] sm:$0xff]
      %v1966 = vld [vmem:[%s1960 + $0x28] sm:$0xff]
      %v1967 = vld [vmem:[%s1960 + $0x30] sm:$0xff]
      %v1968 = vld [vmem:[%s1960 + $0x38] sm:$0xff]
      %v1969 = vld [vmem:[%s1960 + $0x40] sm:$0xff]
      %v1970 = vld [vmem:[%s1960 + $0x48] sm:$0xff]
      %v1971 = vld [vmem:[%s1960 + $0x50] sm:$0xff]
      %v1972 = vld [vmem:[%s1960 + $0x58] sm:$0xff]
      %v1973 = vld [vmem:[%s1960 + $0x60] sm:$0xff]
      %v1974 = vld [vmem:[%s1960 + $0x68] sm:$0xff]
      %v1975 = vld [vmem:[%s1960 + $0x70] sm:$0xff]
      %v1976 = vld [vmem:[%s1960 + $0x78] sm:$0xff]
      %v1977 = vld [vmem:[%s1960 + $0x80] sm:$0xff]
      %v1978 = vld [vmem:[%s1960 + $0x88] sm:$0xff]
      %v1979 = vld [vmem:[%s1960 + $0x90] sm:$0xff]
      %v1980 = vld [vmem:[%s1960 + $0x98] sm:$0xff]
      %v1981 = vld [vmem:[%s1960 + $0xa0] sm:$0xff]
      %v1982 = vld [vmem:[%s1960 + $0xa8] sm:$0xff]
      %v1983 = vld [vmem:[%s1960 + $0xb0] sm:$0xff]
      %v1984 = vld [vmem:[%s1960 + $0xb8] sm:$0xff]
      %v1985 = vld [vmem:[%s1960 + $0xc0] sm:$0xff]
      %v1986 = vld [vmem:[%s1960 + $0xc8] sm:$0xff]
      %v1987 = vld [vmem:[%s1960 + $0xd0] sm:$0xff]
      %v1988 = vld [vmem:[%s1960 + $0xd8] sm:$0xff]
      %v1989 = vld [vmem:[%s1960 + $0xe0] sm:$0xff]
      %v1990 = vld [vmem:[%s1960 + $0xe8] sm:$0xff]
      %v1991 = vld [vmem:[%s1960 + $0xf0] sm:$0xff]
      %v1992 = vld [vmem:[%s1960 + $0xf8] sm:$0xff]
      %v2025 = vunpack.c.l.b16 %v1961
      %v2026 = vunpack.c.h.b16 %v1961
      %v2027 = vunpack.c.l.b16 %v1962
      %v2028 = vunpack.c.h.b16 %v1962
      %v2029 = vunpack.c.l.b16 %v1963
      %v2030 = vunpack.c.h.b16 %v1963
      %v2031 = vunpack.c.l.b16 %v1964
      %v2032 = vunpack.c.h.b16 %v1964
      %v2033 = vunpack.c.l.b16 %v1965
      %v2034 = vunpack.c.h.b16 %v1965
      %v2035 = vunpack.c.l.b16 %v1966
      %v2036 = vunpack.c.h.b16 %v1966
      %v2037 = vunpack.c.l.b16 %v1967
      %v2038 = vunpack.c.h.b16 %v1967
      %v2039 = vunpack.c.l.b16 %v1968
      %v2040 = vunpack.c.h.b16 %v1968
      %v2041 = vunpack.c.l.b16 %v1969
      %v2042 = vunpack.c.h.b16 %v1969
      %v2043 = vunpack.c.l.b16 %v1970
      %v2044 = vunpack.c.h.b16 %v1970
      %v2045 = vunpack.c.l.b16 %v1971
      %v2046 = vunpack.c.h.b16 %v1971
      %v2047 = vunpack.c.l.b16 %v1972
      %v2048 = vunpack.c.h.b16 %v1972
      %v2049 = vunpack.c.l.b16 %v1973
      %v2050 = vunpack.c.h.b16 %v1973
      %v2051 = vunpack.c.l.b16 %v1974
      %v2052 = vunpack.c.h.b16 %v1974
      %v2053 = vunpack.c.l.b16 %v1975
      %v2054 = vunpack.c.h.b16 %v1975
      %v2055 = vunpack.c.l.b16 %v1976
      %v2056 = vunpack.c.h.b16 %v1976
      %v2057 = vunpack.c.l.b16 %v1977
      %v2058 = vunpack.c.h.b16 %v1977
      %v2059 = vunpack.c.l.b16 %v1978
      %v2060 = vunpack.c.h.b16 %v1978
      %v2061 = vunpack.c.l.b16 %v1979
      %v2062 = vunpack.c.h.b16 %v1979
      %v2063 = vunpack.c.l.b16 %v1980
      %v2064 = vunpack.c.h.b16 %v1980
      %v2065 = vunpack.c.l.b16 %v1981
      %v2066 = vunpack.c.h.b16 %v1981
      %v2067 = vunpack.c.l.b16 %v1982
      %v2068 = vunpack.c.h.b16 %v1982
      %v2069 = vunpack.c.l.b16 %v1983
      %v2070 = vunpack.c.h.b16 %v1983
      %v2071 = vunpack.c.l.b16 %v1984
      %v2072 = vunpack.c.h.b16 %v1984
      %v2073 = vunpack.c.l.b16 %v1985
      %v2074 = vunpack.c.h.b16 %v1985
      %v2075 = vunpack.c.l.b16 %v1986
      %v2076 = vunpack.c.h.b16 %v1986
      %v2077 = vunpack.c.l.b16 %v1987
      %v2078 = vunpack.c.h.b16 %v1987
      %v2079 = vunpack.c.l.b16 %v1988
      %v2080 = vunpack.c.h.b16 %v1988
      %v2081 = vunpack.c.l.b16 %v1989
      %v2082 = vunpack.c.h.b16 %v1989
      %v2083 = vunpack.c.l.b16 %v1990
      %v2084 = vunpack.c.h.b16 %v1990
      %v2085 = vunpack.c.l.b16 %v1991
      %v2086 = vunpack.c.h.b16 %v1991
      %v2087 = vunpack.c.l.b16 %v1992
      %v2088 = vunpack.c.h.b16 %v1992
      %v2089 = vpack.c.b16 %v2027, %v2025
      %v2090 = vpack.c.b16 %v2028, %v2026
      %v2091 = vpack.c.b16 %v2031, %v2029
      %v2092 = vpack.c.b16 %v2032, %v2030
      %v2093 = vpack.c.b16 %v2035, %v2033
      %v2094 = vpack.c.b16 %v2036, %v2034
      %v2095 = vpack.c.b16 %v2039, %v2037
      %v2096 = vpack.c.b16 %v2040, %v2038
      %v2097 = vpack.c.b16 %v2043, %v2041
      %v2098 = vpack.c.b16 %v2044, %v2042
      %v2099 = vpack.c.b16 %v2047, %v2045
      %v2100 = vpack.c.b16 %v2048, %v2046
      %v2101 = vpack.c.b16 %v2051, %v2049
      %v2102 = vpack.c.b16 %v2052, %v2050
      %v2103 = vpack.c.b16 %v2055, %v2053
      %v2104 = vpack.c.b16 %v2056, %v2054
      %v2105 = vpack.c.b16 %v2059, %v2057
      %v2106 = vpack.c.b16 %v2060, %v2058
      %v2107 = vpack.c.b16 %v2063, %v2061
      %v2108 = vpack.c.b16 %v2064, %v2062
      %v2109 = vpack.c.b16 %v2067, %v2065
      %v2110 = vpack.c.b16 %v2068, %v2066
      %v2111 = vpack.c.b16 %v2071, %v2069
      %v2112 = vpack.c.b16 %v2072, %v2070
      %v2113 = vpack.c.b16 %v2075, %v2073
      %v2114 = vpack.c.b16 %v2076, %v2074
      %v2115 = vpack.c.b16 %v2079, %v2077
      %v2116 = vpack.c.b16 %v2080, %v2078
      %v2117 = vpack.c.b16 %v2083, %v2081
      %v2118 = vpack.c.b16 %v2084, %v2082
      %v2119 = vpack.c.b16 %v2087, %v2085
      %v2120 = vpack.c.b16 %v2088, %v2086
      %2153 = vmatprep.subr.bf16.mxu0 %v2104
      %2154 = vmatpush1.bf16.msra.mxu0 %v2103
      %2155 = vmatprep.subr.bf16.mxu0 %v2102
      %2156 = vmatpush1.bf16.msra.mxu0 %v2101
      %2157 = vmatprep.subr.bf16.mxu0 %v2100
      %2158 = vmatpush1.bf16.msra.mxu0 %v2099
      %2159 = vmatprep.subr.bf16.mxu0 %v2098
      %2160 = vmatpush1.bf16.msra.mxu0 %v2097
      %2161 = vmatprep.subr.bf16.mxu0 %v2096
      %2162 = vmatpush1.bf16.msra.mxu0 %v2095
      %2163 = vmatprep.subr.bf16.mxu0 %v2094
      %2164 = vmatpush1.bf16.msra.mxu0 %v2093
      %2165 = vmatprep.subr.bf16.mxu0 %v2092
      %2166 = vmatpush1.bf16.msra.mxu0 %v2091
      %2167 = vmatprep.subr.bf16.mxu0 %v2090
      %2168 = vmatpush1.bf16.msra.mxu0 %v2089
      %2169 = vmatprep.subr.bf16.mxu0 %v2120
      %2170 = vmatpush2.bf16.msra.mxu0 %v2119
      %2171 = vmatprep.subr.bf16.mxu0 %v2118
      %2172 = vmatpush2.bf16.msra.mxu0 %v2117
      %2173 = vmatprep.subr.bf16.mxu0 %v2116
      %2174 = vmatpush2.bf16.msra.mxu0 %v2115
      %2175 = vmatprep.subr.bf16.mxu0 %v2114
      %2176 = vmatpush2.bf16.msra.mxu0 %v2113
      %2177 = vmatprep.subr.bf16.mxu0 %v2112
      %2178 = vmatpush2.bf16.msra.mxu0 %v2111
      %2179 = vmatprep.subr.bf16.mxu0 %v2110
      %2180 = vmatpush2.bf16.msra.mxu0 %v2109
      %2181 = vmatprep.subr.bf16.mxu0 %v2108
      %2182 = vmatpush2.bf16.msra.mxu0 %v2107
      %2183 = vmatprep.subr.bf16.mxu0 %v2106
      %2184 = vmatpush2.bf16.msra.mxu0 %v2105
      %2185 = vmatprep.mubr.bf16.mxu0 %v1959
      %2186 = vmatmul.mubr.bf16.gmra.mxu0 %v1958
      %v2187 = vpop.f32.mrf.mxu0
      %v2188 = vadd.f32 0.0, %v2187
      %v2189 = vpop.f32.mrf.mxu0
      %v2190 = vadd.f32 0.0, %v2189
      %v2191 = vpop.f32.mrf.mxu0
      %v2192 = vadd.f32 0.0, %v2191
      %v2193 = vpop.f32.mrf.mxu0
      %v2194 = vadd.f32 0.0, %v2193
      %2195 = vdwg.mxu0
      %v2196 = vmul.f32 %v2188, %v574
      %v2197 = vmul.f32 %v2190, %v574
      %v2198 = vmul.f32 %v2192, %v579
      %v2199 = vmul.f32 %v2194, %v579
      %v2200 = vadd.f32 %v1952, %v2196
      %v2201 = vadd.f32 %v1953, %v2197
      %v2202 = vadd.f32 %v1954, %v2198
      %v2203 = vadd.f32 %v1955, %v2199
      %v2204 = vld [vmem:[%s293 + $0x10] sm:$0xfe]
      %v2205 = vld [vmem:[%s293 + $0x18] sm:$0xfe]
      %v2206 = vld [vmem:[%s293 + $0x20] sm:$0xff]
      %v2207 = vld [vmem:[%s293 + $0x28] sm:$0xff]
      %v2208 = vld [vmem:[%s293 + $0x30] sm:$0x1]
      %v2209 = vld [vmem:[%s293 + $0x38] sm:$0x1]
      %v2210 = vpack.c.bf16 %v2206, %v2204
      %v2211 = vpack.c.bf16 %v2207, %v2205
      %v2212 = vpack.c.bf16 %v2208, %v2208
      %v2213 = vpack.c.bf16 %v2209, %v2209
      %s2214 = scalar_lea.vmem %s298, 1792
      %v2215 = vld [vmem:[%s2214] sm:$0xff]
      %v2216 = vld [vmem:[%s2214 + $0x8] sm:$0xff]
      %v2217 = vld [vmem:[%s2214 + $0x10] sm:$0xff]
      %v2218 = vld [vmem:[%s2214 + $0x18] sm:$0xff]
      %v2219 = vld [vmem:[%s2214 + $0x20] sm:$0xff]
      %v2220 = vld [vmem:[%s2214 + $0x28] sm:$0xff]
      %v2221 = vld [vmem:[%s2214 + $0x30] sm:$0xff]
      %v2222 = vld [vmem:[%s2214 + $0x38] sm:$0xff]
      %v2223 = vld [vmem:[%s2214 + $0x40] sm:$0xff]
      %v2224 = vld [vmem:[%s2214 + $0x48] sm:$0xff]
      %v2225 = vld [vmem:[%s2214 + $0x50] sm:$0xff]
      %v2226 = vld [vmem:[%s2214 + $0x58] sm:$0xff]
      %v2227 = vld [vmem:[%s2214 + $0x60] sm:$0xff]
      %v2228 = vld [vmem:[%s2214 + $0x68] sm:$0xff]
      %v2229 = vld [vmem:[%s2214 + $0x70] sm:$0xff]
      %v2230 = vld [vmem:[%s2214 + $0x78] sm:$0xff]
      %v2231 = vld [vmem:[%s2214 + $0x80] sm:$0xff]
      %v2232 = vld [vmem:[%s2214 + $0x88] sm:$0xff]
      %v2233 = vld [vmem:[%s2214 + $0x90] sm:$0xff]
      %v2234 = vld [vmem:[%s2214 + $0x98] sm:$0xff]
      %v2235 = vld [vmem:[%s2214 + $0xa0] sm:$0xff]
      %v2236 = vld [vmem:[%s2214 + $0xa8] sm:$0xff]
      %v2237 = vld [vmem:[%s2214 + $0xb0] sm:$0xff]
      %v2238 = vld [vmem:[%s2214 + $0xb8] sm:$0xff]
      %v2239 = vld [vmem:[%s2214 + $0xc0] sm:$0xff]
      %v2240 = vld [vmem:[%s2214 + $0xc8] sm:$0xff]
      %v2241 = vld [vmem:[%s2214 + $0xd0] sm:$0xff]
      %v2242 = vld [vmem:[%s2214 + $0xd8] sm:$0xff]
      %v2243 = vld [vmem:[%s2214 + $0xe0] sm:$0xff]
      %v2244 = vld [vmem:[%s2214 + $0xe8] sm:$0xff]
      %v2245 = vld [vmem:[%s2214 + $0xf0] sm:$0xff]
      %v2246 = vld [vmem:[%s2214 + $0xf8] sm:$0xff]
      %v2248 = vshrl.u32 %v2210, 16
      %v2250 = vshll.u32 %v2210, 16
      %v2252 = vrot.slane %v2250, 1
      %v2253 = vor.u32 %v2248, %v2252
      %v2255 = vshll.u32 %v2212, 16
      %v2257 = vrot.slane %v2255, 1
      %v2258 = vsel %vm632, %v2253, %v2257
      %v2260 = vshrl.u32 %v2211, 16
      %v2262 = vshll.u32 %v2211, 16
      %v2264 = vrot.slane %v2262, 1
      %v2265 = vor.u32 %v2260, %v2264
      %v2267 = vshll.u32 %v2213, 16
      %v2269 = vrot.slane %v2267, 1
      %v2270 = vsel %vm632, %v2265, %v2269
      %v2305 = vunpack.c.l.b16 %v2215
      %v2306 = vunpack.c.h.b16 %v2215
      %v2307 = vunpack.c.l.b16 %v2216
      %v2308 = vunpack.c.h.b16 %v2216
      %v2309 = vunpack.c.l.b16 %v2217
      %v2310 = vunpack.c.h.b16 %v2217
      %v2311 = vunpack.c.l.b16 %v2218
      %v2312 = vunpack.c.h.b16 %v2218
      %v2313 = vunpack.c.l.b16 %v2219
      %v2314 = vunpack.c.h.b16 %v2219
      %v2315 = vunpack.c.l.b16 %v2220
      %v2316 = vunpack.c.h.b16 %v2220
      %v2317 = vunpack.c.l.b16 %v2221
      %v2318 = vunpack.c.h.b16 %v2221
      %v2319 = vunpack.c.l.b16 %v2222
      %v2320 = vunpack.c.h.b16 %v2222
      %v2321 = vunpack.c.l.b16 %v2223
      %v2322 = vunpack.c.h.b16 %v2223
      %v2323 = vunpack.c.l.b16 %v2224
      %v2324 = vunpack.c.h.b16 %v2224
      %v2325 = vunpack.c.l.b16 %v2225
      %v2326 = vunpack.c.h.b16 %v2225
      %v2327 = vunpack.c.l.b16 %v2226
      %v2328 = vunpack.c.h.b16 %v2226
      %v2329 = vunpack.c.l.b16 %v2227
      %v2330 = vunpack.c.h.b16 %v2227
      %v2331 = vunpack.c.l.b16 %v2228
      %v2332 = vunpack.c.h.b16 %v2228
      %v2333 = vunpack.c.l.b16 %v2229
      %v2334 = vunpack.c.h.b16 %v2229
      %v2335 = vunpack.c.l.b16 %v2230
      %v2336 = vunpack.c.h.b16 %v2230
      %v2337 = vunpack.c.l.b16 %v2231
      %v2338 = vunpack.c.h.b16 %v2231
      %v2339 = vunpack.c.l.b16 %v2232
      %v2340 = vunpack.c.h.b16 %v2232
      %v2341 = vunpack.c.l.b16 %v2233
      %v2342 = vunpack.c.h.b16 %v2233
      %v2343 = vunpack.c.l.b16 %v2234
      %v2344 = vunpack.c.h.b16 %v2234
      %v2345 = vunpack.c.l.b16 %v2235
      %v2346 = vunpack.c.h.b16 %v2235
      %v2347 = vunpack.c.l.b16 %v2236
      %v2348 = vunpack.c.h.b16 %v2236
      %v2349 = vunpack.c.l.b16 %v2237
      %v2350 = vunpack.c.h.b16 %v2237
      %v2351 = vunpack.c.l.b16 %v2238
      %v2352 = vunpack.c.h.b16 %v2238
      %v2353 = vunpack.c.l.b16 %v2239
      %v2354 = vunpack.c.h.b16 %v2239
      %v2355 = vunpack.c.l.b16 %v2240
      %v2356 = vunpack.c.h.b16 %v2240
      %v2357 = vunpack.c.l.b16 %v2241
      %v2358 = vunpack.c.h.b16 %v2241
      %v2359 = vunpack.c.l.b16 %v2242
      %v2360 = vunpack.c.h.b16 %v2242
      %v2361 = vunpack.c.l.b16 %v2243
      %v2362 = vunpack.c.h.b16 %v2243
      %v2363 = vunpack.c.l.b16 %v2244
      %v2364 = vunpack.c.h.b16 %v2244
      %v2365 = vunpack.c.l.b16 %v2245
      %v2366 = vunpack.c.h.b16 %v2245
      %v2367 = vunpack.c.l.b16 %v2246
      %v2368 = vunpack.c.h.b16 %v2246
      %v2369 = vpack.c.b16 %v2307, %v2305
      %v2370 = vpack.c.b16 %v2308, %v2306
      %v2371 = vpack.c.b16 %v2311, %v2309
      %v2372 = vpack.c.b16 %v2312, %v2310
      %v2373 = vpack.c.b16 %v2315, %v2313
      %v2374 = vpack.c.b16 %v2316, %v2314
      %v2375 = vpack.c.b16 %v2319, %v2317
      %v2376 = vpack.c.b16 %v2320, %v2318
      %v2377 = vpack.c.b16 %v2323, %v2321
      %v2378 = vpack.c.b16 %v2324, %v2322
      %v2379 = vpack.c.b16 %v2327, %v2325
      %v2380 = vpack.c.b16 %v2328, %v2326
      %v2381 = vpack.c.b16 %v2331, %v2329
      %v2382 = vpack.c.b16 %v2332, %v2330
      %v2383 = vpack.c.b16 %v2335, %v2333
      %v2384 = vpack.c.b16 %v2336, %v2334
      %v2385 = vpack.c.b16 %v2339, %v2337
      %v2386 = vpack.c.b16 %v2340, %v2338
      %v2387 = vpack.c.b16 %v2343, %v2341
      %v2388 = vpack.c.b16 %v2344, %v2342
      %v2389 = vpack.c.b16 %v2347, %v2345
      %v2390 = vpack.c.b16 %v2348, %v2346
      %v2391 = vpack.c.b16 %v2351, %v2349
      %v2392 = vpack.c.b16 %v2352, %v2350
      %v2393 = vpack.c.b16 %v2355, %v2353
      %v2394 = vpack.c.b16 %v2356, %v2354
      %v2395 = vpack.c.b16 %v2359, %v2357
      %v2396 = vpack.c.b16 %v2360, %v2358
      %v2397 = vpack.c.b16 %v2363, %v2361
      %v2398 = vpack.c.b16 %v2364, %v2362
      %v2399 = vpack.c.b16 %v2367, %v2365
      %v2400 = vpack.c.b16 %v2368, %v2366
      %2433 = vmatprep.subr.bf16.mxu0 %v2384
      %2434 = vmatpush1.bf16.msra.mxu0 %v2383
      %2435 = vmatprep.subr.bf16.mxu0 %v2382
      %2436 = vmatpush1.bf16.msra.mxu0 %v2381
      %2437 = vmatprep.subr.bf16.mxu0 %v2380
      %2438 = vmatpush1.bf16.msra.mxu0 %v2379
      %2439 = vmatprep.subr.bf16.mxu0 %v2378
      %2440 = vmatpush1.bf16.msra.mxu0 %v2377
      %2441 = vmatprep.subr.bf16.mxu0 %v2376
      %2442 = vmatpush1.bf16.msra.mxu0 %v2375
      %2443 = vmatprep.subr.bf16.mxu0 %v2374
      %2444 = vmatpush1.bf16.msra.mxu0 %v2373
      %2445 = vmatprep.subr.bf16.mxu0 %v2372
      %2446 = vmatpush1.bf16.msra.mxu0 %v2371
      %2447 = vmatprep.subr.bf16.mxu0 %v2370
      %2448 = vmatpush1.bf16.msra.mxu0 %v2369
      %2449 = vmatprep.subr.bf16.mxu0 %v2400
      %2450 = vmatpush2.bf16.msra.mxu0 %v2399
      %2451 = vmatprep.subr.bf16.mxu0 %v2398
      %2452 = vmatpush2.bf16.msra.mxu0 %v2397
      %2453 = vmatprep.subr.bf16.mxu0 %v2396
      %2454 = vmatpush2.bf16.msra.mxu0 %v2395
      %2455 = vmatprep.subr.bf16.mxu0 %v2394
      %2456 = vmatpush2.bf16.msra.mxu0 %v2393
      %2457 = vmatprep.subr.bf16.mxu0 %v2392
      %2458 = vmatpush2.bf16.msra.mxu0 %v2391
      %2459 = vmatprep.subr.bf16.mxu0 %v2390
      %2460 = vmatpush2.bf16.msra.mxu0 %v2389
      %2461 = vmatprep.subr.bf16.mxu0 %v2388
      %2462 = vmatpush2.bf16.msra.mxu0 %v2387
      %2463 = vmatprep.subr.bf16.mxu0 %v2386
      %2464 = vmatpush2.bf16.msra.mxu0 %v2385
      %2465 = vmatprep.mubr.bf16.mxu0 %v2270
      %2466 = vmatmul.mubr.bf16.gmra.mxu0 %v2258
      %v2467 = vpop.f32.mrf.mxu0
      %v2468 = vadd.f32 0.0, %v2467
      %v2469 = vpop.f32.mrf.mxu0
      %v2470 = vadd.f32 0.0, %v2469
      %v2471 = vpop.f32.mrf.mxu0
      %v2472 = vadd.f32 0.0, %v2471
      %v2473 = vpop.f32.mrf.mxu0
      %v2474 = vadd.f32 0.0, %v2473
      %2475 = vdwg.mxu0
      %v2476 = vadd.f32 %v2200, %v2468
      %v2477 = vadd.f32 %v2201, %v2470
      %v2478 = vadd.f32 %v2202, %v2472
      %v2479 = vadd.f32 %v2203, %v2474
      %v2480 = vld [vmem:[%s293 + $0x10] sm:$0xfc]
      %v2481 = vld [vmem:[%s293 + $0x18] sm:$0xfc]
      %v2482 = vld [vmem:[%s293 + $0x30] sm:$0x3]
      %v2483 = vld [vmem:[%s293 + $0x38] sm:$0x3]
      %v2484 = vpack.c.bf16 %v2206, %v2480
      %v2485 = vpack.c.bf16 %v2207, %v2481
      %v2486 = vpack.c.bf16 %v2482, %v2482
      %v2487 = vpack.c.bf16 %v2483, %v2483
      %s2488 = scalar_lea.vmem %s298, 2048
      %v2489 = vld [vmem:[%s2488] sm:$0xff]
      %v2490 = vld [vmem:[%s2488 + $0x8] sm:$0xff]
      %v2491 = vld [vmem:[%s2488 + $0x10] sm:$0xff]
      %v2492 = vld [vmem:[%s2488 + $0x18] sm:$0xff]
      %v2493 = vld [vmem:[%s2488 + $0x20] sm:$0xff]
      %v2494 = vld [vmem:[%s2488 + $0x28] sm:$0xff]
      %v2495 = vld [vmem:[%s2488 + $0x30] sm:$0xff]
      %v2496 = vld [vmem:[%s2488 + $0x38] sm:$0xff]
      %v2497 = vld [vmem:[%s2488 + $0x40] sm:$0xff]
      %v2498 = vld [vmem:[%s2488 + $0x48] sm:$0xff]
      %v2499 = vld [vmem:[%s2488 + $0x50] sm:$0xff]
      %v2500 = vld [vmem:[%s2488 + $0x58] sm:$0xff]
      %v2501 = vld [vmem:[%s2488 + $0x60] sm:$0xff]
      %v2502 = vld [vmem:[%s2488 + $0x68] sm:$0xff]
      %v2503 = vld [vmem:[%s2488 + $0x70] sm:$0xff]
      %v2504 = vld [vmem:[%s2488 + $0x78] sm:$0xff]
      %v2505 = vld [vmem:[%s2488 + $0x80] sm:$0xff]
      %v2506 = vld [vmem:[%s2488 + $0x88] sm:$0xff]
      %v2507 = vld [vmem:[%s2488 + $0x90] sm:$0xff]
      %v2508 = vld [vmem:[%s2488 + $0x98] sm:$0xff]
      %v2509 = vld [vmem:[%s2488 + $0xa0] sm:$0xff]
      %v2510 = vld [vmem:[%s2488 + $0xa8] sm:$0xff]
      %v2511 = vld [vmem:[%s2488 + $0xb0] sm:$0xff]
      %v2512 = vld [vmem:[%s2488 + $0xb8] sm:$0xff]
      %v2513 = vld [vmem:[%s2488 + $0xc0] sm:$0xff]
      %v2514 = vld [vmem:[%s2488 + $0xc8] sm:$0xff]
      %v2515 = vld [vmem:[%s2488 + $0xd0] sm:$0xff]
      %v2516 = vld [vmem:[%s2488 + $0xd8] sm:$0xff]
      %v2517 = vld [vmem:[%s2488 + $0xe0] sm:$0xff]
      %v2518 = vld [vmem:[%s2488 + $0xe8] sm:$0xff]
      %v2519 = vld [vmem:[%s2488 + $0xf0] sm:$0xff]
      %v2520 = vld [vmem:[%s2488 + $0xf8] sm:$0xff]
      %v2525 = vrot.slane %v2484, 1
      %v2526 = vrot.slane %v2486, 1
      %v2527 = vsel %vm911, %v2525, %v2526
      %v2528 = vrot.slane %v2485, 1
      %v2529 = vrot.slane %v2487, 1
      %v2530 = vsel %vm911, %v2528, %v2529
      %v2565 = vunpack.c.l.b16 %v2489
      %v2566 = vunpack.c.h.b16 %v2489
      %v2567 = vunpack.c.l.b16 %v2490
      %v2568 = vunpack.c.h.b16 %v2490
      %v2569 = vunpack.c.l.b16 %v2491
      %v2570 = vunpack.c.h.b16 %v2491
      %v2571 = vunpack.c.l.b16 %v2492
      %v2572 = vunpack.c.h.b16 %v2492
      %v2573 = vunpack.c.l.b16 %v2493
      %v2574 = vunpack.c.h.b16 %v2493
      %v2575 = vunpack.c.l.b16 %v2494
      %v2576 = vunpack.c.h.b16 %v2494
      %v2577 = vunpack.c.l.b16 %v2495
      %v2578 = vunpack.c.h.b16 %v2495
      %v2579 = vunpack.c.l.b16 %v2496
      %v2580 = vunpack.c.h.b16 %v2496
      %v2581 = vunpack.c.l.b16 %v2497
      %v2582 = vunpack.c.h.b16 %v2497
      %v2583 = vunpack.c.l.b16 %v2498
      %v2584 = vunpack.c.h.b16 %v2498
      %v2585 = vunpack.c.l.b16 %v2499
      %v2586 = vunpack.c.h.b16 %v2499
      %v2587 = vunpack.c.l.b16 %v2500
      %v2588 = vunpack.c.h.b16 %v2500
      %v2589 = vunpack.c.l.b16 %v2501
      %v2590 = vunpack.c.h.b16 %v2501
      %v2591 = vunpack.c.l.b16 %v2502
      %v2592 = vunpack.c.h.b16 %v2502
      %v2593 = vunpack.c.l.b16 %v2503
      %v2594 = vunpack.c.h.b16 %v2503
      %v2595 = vunpack.c.l.b16 %v2504
      %v2596 = vunpack.c.h.b16 %v2504
      %v2597 = vunpack.c.l.b16 %v2505
      %v2598 = vunpack.c.h.b16 %v2505
      %v2599 = vunpack.c.l.b16 %v2506
      %v2600 = vunpack.c.h.b16 %v2506
      %v2601 = vunpack.c.l.b16 %v2507
      %v2602 = vunpack.c.h.b16 %v2507
      %v2603 = vunpack.c.l.b16 %v2508
      %v2604 = vunpack.c.h.b16 %v2508
      %v2605 = vunpack.c.l.b16 %v2509
      %v2606 = vunpack.c.h.b16 %v2509
      %v2607 = vunpack.c.l.b16 %v2510
      %v2608 = vunpack.c.h.b16 %v2510
      %v2609 = vunpack.c.l.b16 %v2511
      %v2610 = vunpack.c.h.b16 %v2511
      %v2611 = vunpack.c.l.b16 %v2512
      %v2612 = vunpack.c.h.b16 %v2512
      %v2613 = vunpack.c.l.b16 %v2513
      %v2614 = vunpack.c.h.b16 %v2513
      %v2615 = vunpack.c.l.b16 %v2514
      %v2616 = vunpack.c.h.b16 %v2514
      %v2617 = vunpack.c.l.b16 %v2515
      %v2618 = vunpack.c.h.b16 %v2515
      %v2619 = vunpack.c.l.b16 %v2516
      %v2620 = vunpack.c.h.b16 %v2516
      %v2621 = vunpack.c.l.b16 %v2517
      %v2622 = vunpack.c.h.b16 %v2517
      %v2623 = vunpack.c.l.b16 %v2518
      %v2624 = vunpack.c.h.b16 %v2518
      %v2625 = vunpack.c.l.b16 %v2519
      %v2626 = vunpack.c.h.b16 %v2519
      %v2627 = vunpack.c.l.b16 %v2520
      %v2628 = vunpack.c.h.b16 %v2520
      %v2629 = vpack.c.b16 %v2567, %v2565
      %v2630 = vpack.c.b16 %v2568, %v2566
      %v2631 = vpack.c.b16 %v2571, %v2569
      %v2632 = vpack.c.b16 %v2572, %v2570
      %v2633 = vpack.c.b16 %v2575, %v2573
      %v2634 = vpack.c.b16 %v2576, %v2574
      %v2635 = vpack.c.b16 %v2579, %v2577
      %v2636 = vpack.c.b16 %v2580, %v2578
      %v2637 = vpack.c.b16 %v2583, %v2581
      %v2638 = vpack.c.b16 %v2584, %v2582
      %v2639 = vpack.c.b16 %v2587, %v2585
      %v2640 = vpack.c.b16 %v2588, %v2586
      %v2641 = vpack.c.b16 %v2591, %v2589
      %v2642 = vpack.c.b16 %v2592, %v2590
      %v2643 = vpack.c.b16 %v2595, %v2593
      %v2644 = vpack.c.b16 %v2596, %v2594
      %v2645 = vpack.c.b16 %v2599, %v2597
      %v2646 = vpack.c.b16 %v2600, %v2598
      %v2647 = vpack.c.b16 %v2603, %v2601
      %v2648 = vpack.c.b16 %v2604, %v2602
      %v2649 = vpack.c.b16 %v2607, %v2605
      %v2650 = vpack.c.b16 %v2608, %v2606
      %v2651 = vpack.c.b16 %v2611, %v2609
      %v2652 = vpack.c.b16 %v2612, %v2610
      %v2653 = vpack.c.b16 %v2615, %v2613
      %v2654 = vpack.c.b16 %v2616, %v2614
      %v2655 = vpack.c.b16 %v2619, %v2617
      %v2656 = vpack.c.b16 %v2620, %v2618
      %v2657 = vpack.c.b16 %v2623, %v2621
      %v2658 = vpack.c.b16 %v2624, %v2622
      %v2659 = vpack.c.b16 %v2627, %v2625
      %v2660 = vpack.c.b16 %v2628, %v2626
      %2693 = vmatprep.subr.bf16.mxu0 %v2644
      %2694 = vmatpush1.bf16.msra.mxu0 %v2643
      %2695 = vmatprep.subr.bf16.mxu0 %v2642
      %2696 = vmatpush1.bf16.msra.mxu0 %v2641
      %2697 = vmatprep.subr.bf16.mxu0 %v2640
      %2698 = vmatpush1.bf16.msra.mxu0 %v2639
      %2699 = vmatprep.subr.bf16.mxu0 %v2638
      %2700 = vmatpush1.bf16.msra.mxu0 %v2637
      %2701 = vmatprep.subr.bf16.mxu0 %v2636
      %2702 = vmatpush1.bf16.msra.mxu0 %v2635
      %2703 = vmatprep.subr.bf16.mxu0 %v2634
      %2704 = vmatpush1.bf16.msra.mxu0 %v2633
      %2705 = vmatprep.subr.bf16.mxu0 %v2632
      %2706 = vmatpush1.bf16.msra.mxu0 %v2631
      %2707 = vmatprep.subr.bf16.mxu0 %v2630
      %2708 = vmatpush1.bf16.msra.mxu0 %v2629
      %2709 = vmatprep.subr.bf16.mxu0 %v2660
      %2710 = vmatpush2.bf16.msra.mxu0 %v2659
      %2711 = vmatprep.subr.bf16.mxu0 %v2658
      %2712 = vmatpush2.bf16.msra.mxu0 %v2657
      %2713 = vmatprep.subr.bf16.mxu0 %v2656
      %2714 = vmatpush2.bf16.msra.mxu0 %v2655
      %2715 = vmatprep.subr.bf16.mxu0 %v2654
      %2716 = vmatpush2.bf16.msra.mxu0 %v2653
      %2717 = vmatprep.subr.bf16.mxu0 %v2652
      %2718 = vmatpush2.bf16.msra.mxu0 %v2651
      %2719 = vmatprep.subr.bf16.mxu0 %v2650
      %2720 = vmatpush2.bf16.msra.mxu0 %v2649
      %2721 = vmatprep.subr.bf16.mxu0 %v2648
      %2722 = vmatpush2.bf16.msra.mxu0 %v2647
      %2723 = vmatprep.subr.bf16.mxu0 %v2646
      %2724 = vmatpush2.bf16.msra.mxu0 %v2645
      %2725 = vmatprep.mubr.bf16.mxu0 %v2530
      %2726 = vmatmul.mubr.bf16.gmra.mxu0 %v2527
      %v2727 = vpop.f32.mrf.mxu0
      %v2728 = vadd.f32 0.0, %v2727
      %v2729 = vpop.f32.mrf.mxu0
      %v2730 = vadd.f32 0.0, %v2729
      %v2731 = vpop.f32.mrf.mxu0
      %v2732 = vadd.f32 0.0, %v2731
      %v2733 = vpop.f32.mrf.mxu0
      %v2734 = vadd.f32 0.0, %v2733
      %2735 = vdwg.mxu0
      %v2736 = vmul.f32 %v2728, %v1126
      %v2737 = vmul.f32 %v2730, %v1126
      %v2738 = vmul.f32 %v2732, %v1131
      %v2739 = vmul.f32 %v2734, %v1131
      %v2740 = vadd.f32 %v2476, %v2736
      %v2741 = vadd.f32 %v2477, %v2737
      %v2742 = vadd.f32 %v2478, %v2738
      %v2743 = vadd.f32 %v2479, %v2739
      %v2744 = vld [vmem:[%s303] sm:$0x3]
      %v2746 = vlaneseq
      %v2747 = vshrl.u32 %v2746, 7
      %v2748 = vsub.s32 0, %v2747
      %v2749 = vrot.slane %v2744, %v2748
      %v2750 = vlaneseq
      %v2751 = vshrl.u32 %v2750, 7
      %v2752 = vsub.s32 1, %v2751
      %v2753 = vrot.slane %v2744, %v2752
      %v2756 = vadd.f32 %v2740, %v2749
      %v2757 = vadd.f32 %v2741, %v2753
      %v2758 = vadd.f32 %v2742, %v2749
      %v2759 = vadd.f32 %v2743, %v2753
      %v2760 = vld [vmem:[%s313] sm:$0xff]
      %v2761 = vld [vmem:[%s313 + $0x8] sm:$0xff]
      %v2762 = vunpack.c.l.bf16 %v2760
      %v2763 = vunpack.c.h.bf16 %v2760
      %v2764 = vunpack.c.l.bf16 %v2761
      %v2765 = vunpack.c.h.bf16 %v2761
      %v2766 = vadd.f32 %v2756, %v2762
      %v2767 = vadd.f32 %v2757, %v2763
      %v2768 = vadd.f32 %v2758, %v2764
      %v2769 = vadd.f32 %v2759, %v2765
      %v2770 = vmax.f32 %v2766, 0.0
      %v2771 = vmax.f32 %v2767, 0.0
      %v2772 = vmax.f32 %v2768, 0.0
      %v2773 = vmax.f32 %v2769, 0.0
      %2774 = vst [vmem:[%s323] sm:$0xff] %v2770
      %2775 = vst [vmem:[%s323 + $0x8] sm:$0xff] %v2771
      %2776 = vst [vmem:[%s323 + $0x10] sm:$0xff] %v2772
      %2777 = vst [vmem:[%s323 + $0x18] sm:$0xff] %v2773
      %s2778 = smul.u32 2, %s20
      %p2779 = scmp.lt.s32.totalorder %s21, 1
      %s2780 = scalar_select %p2779, %s21, 1
      %p2781 = scmp.lt.s32.totalorder %s2778, 1
      %s2782 = scalar_select %p2781, %s2778, 1
      %s2783 = smul.addr %s2780, 4
      %s2784 = sadd.s32 %s2782, %s2783
      %s2785 = smul.addr %s2784, 8
      %s2786 = scalar_lea.vmem %s5, %s2785
      // Predicated region
      $region41: #{stage2_forward.11} parent=39 // pred_check
        %p2787 = pneg %p175
      $region42: #{stage2_forward.11} parent=39 // pred_check_branch
        %2789 = sbr.rel (%p2787) target = $region44
      $region43: #{stage2_forward.11} parent=39 // pred_region
        %s2790 = smul.u32 2, %s20
      $region44: #{stage2_forward.11} parent=39 // pred_fallthru
        _
    $region40: #{stage2_forward.11} parent=5 // pred_fallthru
      _
    %p2791 = scmp.le.s32.totalorder 2, %s11
    // Predicated region
    $region45: #{stage2_forward.11} parent=5 // pred_check
      %p2792 = pneg %p2791
    $region46: #{stage2_forward.11} parent=5 // pred_check_branch
      %2794 = sbr.rel (%p2792) target = $region48
    $region47: #{stage2_forward.11} parent=5 // pred_region
      %s2795 = ssub.s32 %s11, 2
      // Predicated region
      $region49: #{stage2_forward.11} parent=47 // pred_check
        %p2796 = pneg %p181
      $region50: #{stage2_forward.11} parent=47 // pred_check_branch
        %2798 = sbr.rel (%p2796) target = $region52
      $region51: #{stage2_forward.11} parent=47 // pred_region
        %s2799 = smul.u32 2, %s22
        %p2800 = scmp.lt.s32.totalorder %s23, 1
        %s2801 = scalar_select %p2800, %s23, 1
        %p2802 = scmp.lt.s32.totalorder %s2799, 1
        %s2803 = scalar_select %p2802, %s2799, 1
        %s2804 = smul.addr %s2801, 4
        %s2805 = sadd.s32 %s2803, %s2804
        %s2806 = smul.addr %s2805, 8
        %s2807 = scalar_lea.vmem %s5, %s2806
      $region52: #{stage2_forward.11} parent=47 // pred_fallthru
        _
    $region48: #{stage2_forward.11} parent=5 // pred_fallthru
      _
  $region6: #{stage2_forward.11} parent=0 // loop_footer
    %s15 = sadd.s32 1, %s11
  $region7: #{stage2_forward.11} parent=0 // loop_footer_branch
    %10 = sbr.rel target = $region3
  $region8: #{stage2_forward.11} parent=0 // loop_exit
    _

</llo_original>
